<compile_context>
chip_gen: v7x
topology: tpu7x:2x2x1
jax: 0.10.0
libtpu: 0.0.40
codegen_flags: <defaults>
</compile_context>

<pallas_src>
import functools
import math

import numpy as np
import jax
import jax.numpy as jnp
from jax import lax
from jax.experimental import pallas as pl
from jax.experimental.pallas import tpu as pltpu


# ------------------------------ fused kernel ---------------------------------

def _lka_kernel(x_ref, w0_ref, b0_ref, w1_ref, b1_ref, w2t_ref, b2_ref,
                o_ref, xp_ref, a1p_ref, *, H, W, C):
    # x_ref  : (H, W, C)         NHWC tile for one batch element
    # w0_ref : (25, C)           depthwise 5x5 taps, tap = 5*kh + kw
    # b0_ref : (1, C)
    # w1_ref : (49, C)           depthwise 7x7 (dilation 3) taps, tap = 7*kh + kw
    # b1_ref : (1, C)
    # w2t_ref: (C_in, C_out)     1x1 conv weight, transposed
    # b2_ref : (1, C)
    # o_ref  : (H, W, C)
    # xp_ref : VMEM scratch (H+4,  W+4,  C)   x zero-padded by 2
    # a1p_ref: VMEM scratch (H+18, W+18, C)   conv0 output zero-padded by 9

    # ---- conv0 "same" pad 2: zero only the 4 halo strips, write interior ----
    xp_ref[0:2, :, :] = jnp.zeros((2, W + 4, C), jnp.float32)
    xp_ref[H + 2:H + 4, :, :] = jnp.zeros((2, W + 4, C), jnp.float32)
    xp_ref[2:H + 2, 0:2, :] = jnp.zeros((H, 2, C), jnp.float32)
    xp_ref[2:H + 2, W + 2:W + 4, :] = jnp.zeros((H, 2, C), jnp.float32)
    xp_ref[2:H + 2, 2:W + 2, :] = x_ref[...]

    # ---- conv0: depthwise 5x5 (+ bias).  Taps are H (leading) / W (sublane)
    # shifts; per-channel weights broadcast along the lane (C) dimension. ----
    acc0 = jnp.zeros((H, W, C), jnp.float32)
    for kh in range(5):
        for kw in range(5):
            t = 5 * kh + kw
            acc0 = acc0 + xp_ref[kh:kh + H, kw:kw + W, :] * w0_ref[t:t + 1, :]
    acc0 = acc0 + b0_ref[...]

    # ---- conv_spatial "same" pad 9: halo-strip zero + interior write --------
    a1p_ref[0:9, :, :] = jnp.zeros((9, W + 18, C), jnp.float32)
    a1p_ref[H + 9:H + 18, :, :] = jnp.zeros((9, W + 18, C), jnp.float32)
    a1p_ref[9:H + 9, 0:9, :] = jnp.zeros((H, 9, C), jnp.float32)
    a1p_ref[9:H + 9, W + 9:W + 18, :] = jnp.zeros((H, 9, C), jnp.float32)
    a1p_ref[9:H + 9, 9:W + 9, :] = acc0

    # ---- conv_spatial: depthwise 7x7, dilation 3 (+ bias) --------------------
    acc1 = jnp.zeros((H, W, C), jnp.float32)
    for kh in range(7):
        for kw in range(7):
            t = 7 * kh + kw
            acc1 = acc1 + (a1p_ref[3 * kh:3 * kh + H, 3 * kw:3 * kw + W, :]
                           * w1_ref[t:t + 1, :])
    acc1 = acc1 + b1_ref[...]

    # ---- conv1: 1x1 pointwise channel mix on the MXU (+ bias) ----------------
    attn = jnp.dot(acc1.reshape(H * W, C), w2t_ref[...],
                   preferred_element_type=jnp.float32) + b2_ref[...]

    # ---- gate: u * attn, single dense full-tile store -------------------------
    o_ref[...] = x_ref[...] * attn.reshape(H, W, C)


def prepare_kernel_params(params):
    """One-time re-layout of the PyTorch-shaped weights for the kernel."""
    C = params['b0'].shape[0]
    return {
        'w0': params['w0'].reshape(C, 25).T,     # (25, C), tap-major
        'b0': params['b0'].reshape(1, C),
        'w1': params['w1'].reshape(C, 49).T,     # (49, C), tap-major
        'b1': params['b1'].reshape(1, C),
        'w2t': params['w2'].reshape(C, C).T,     # (C_in, C_out)
        'b2': params['b2'].reshape(1, C),
    }


@jax.jit
def lka_forward(x, kp):
    """x: (B, C, H, W) NCHW, PyTorch layout.  Returns (B, C, H, W)."""
    B, C, H, W = x.shape
    # Layout plumbing only: compute channels-last so C lives in the lane dim.
    x_nhwc = jnp.transpose(x, (0, 2, 3, 1))

    flops = B * (2 * (25 + 49) * C * H * W + 2 * C * C * H * W)
    bytes_accessed = 2 * B * C * H * W * 4 + (25 * C + 49 * C + C * C + 3 * C) * 4

    kern = functools.partial(_lka_kernel, H=H, W=W, C=C)
    out_nhwc = pl.pallas_call(
        kern,
        out_shape=jax.ShapeDtypeStruct((B, H, W, C), jnp.float32),
        grid=(B,),
        in_specs=[
            pl.BlockSpec((None, H, W, C), lambda b: (b, 0, 0, 0)),   # x
            pl.BlockSpec((25, C), lambda b: (0, 0)),                 # w0
            pl.BlockSpec((1, C), lambda b: (0, 0)),                  # b0
            pl.BlockSpec((49, C), lambda b: (0, 0)),                 # w1
            pl.BlockSpec((1, C), lambda b: (0, 0)),                  # b1
            pl.BlockSpec((C, C), lambda b: (0, 0)),                  # w2 (transposed)
            pl.BlockSpec((1, C), lambda b: (0, 0)),                  # b2
        ],
        out_specs=pl.BlockSpec((None, H, W, C), lambda b: (b, 0, 0, 0)),
        scratch_shapes=[
            pltpu.VMEM((H + 4, W + 4, C), jnp.float32),      # padded x
            pltpu.VMEM((H + 18, W + 18, C), jnp.float32),    # padded conv0 out
        ],
        compiler_params=pltpu.CompilerParams(
            dimension_semantics=("parallel",)),
        cost_estimate=pl.CostEstimate(flops=flops, transcendentals=0,
                                      bytes_accessed=bytes_accessed),
    )(x_nhwc, kp['w0'], kp['b0'], kp['w1'], kp['b1'], kp['w2t'], kp['b2'])

    return jnp.transpose(out_nhwc, (0, 3, 1, 2))


# ------------------------------- parameters ----------------------------------

def init_params(key, dim):
    ks = jax.random.split(key, 6)

    def unif(k, shape, fan_in):
        bound = 1.0 / math.sqrt(fan_in)
        return jax.random.uniform(k, shape, jnp.float32, -bound, bound)

    return {
        'w0': unif(ks[0], (dim, 1, 5, 5), 25),       # depthwise 5x5
        'b0': unif(ks[1], (dim,), 25),
        'w1': unif(ks[2], (dim, 1, 7, 7), 49),       # depthwise 7x7, dilation 3
        'b1': unif(ks[3], (dim,), 49),
        'w2': unif(ks[4], (dim, dim, 1, 1), dim),    # 1x1 pointwise
        'b2': unif(ks[5], (dim,), dim),
    }


# ---------------------------- pure-JAX reference ------------------------------

def lka_reference(x, p):
    C = x.shape[1]
    dn = ('NCHW', 'OIHW', 'NCHW')
    a = lax.conv_general_dilated(x, p['w0'], (1, 1), ((2, 2), (2, 2)),
                                 dimension_numbers=dn, feature_group_count=C)
    a = a + p['b0'][None, :, None, None]
    a = lax.conv_general_dilated(a, p['w1'], (1, 1), ((9, 9), (9, 9)),
                                 rhs_dilation=(3, 3), dimension_numbers=dn,
                                 feature_group_count=C)
    a = a + p['b1'][None, :, None, None]
    a = lax.conv_general_dilated(a, p['w2'], (1, 1), ((0, 0), (0, 0)),
                                 dimension_numbers=dn)
    a = a + p['b2'][None, :, None, None]
    return x * a


# ------------------------------------ main ------------------------------------

if __name__ == "__main__":
    key = jax.random.PRNGKey(0)
    kx, kp = jax.random.split(key)

    B, C, H, W = 2, 4, 16, 16
    x = jax.random.normal(kx, (B, C, H, W), jnp.float32)
    params = init_params(kp, C)
    kparams = prepare_kernel_params(params)

    out = jax.block_until_ready(lka_forward(x, kparams))
    ref = jax.block_until_ready(lka_reference(x, params))

    assert out.shape == (B, C, H, W)
    np.testing.assert_allclose(np.asarray(out), np.asarray(ref),
                               rtol=1e-4, atol=1e-4)
    print("KERNEL_OK")
</pallas_src>

<mosaic_0001>
module attributes {stable_mosaic.version = 11 : i64} {
  func.func @_lka_kernel(%arg0: i32, %arg1: memref<1x16x16x4xf32, #tpu.memory_space<vmem>>, %arg2: memref<25x4xf32, #tpu.memory_space<vmem>>, %arg3: memref<1x4xf32, #tpu.memory_space<vmem>>, %arg4: memref<49x4xf32, #tpu.memory_space<vmem>>, %arg5: memref<1x4xf32, #tpu.memory_space<vmem>>, %arg6: memref<4x4xf32, #tpu.memory_space<vmem>>, %arg7: memref<1x4xf32, #tpu.memory_space<vmem>>, %arg8: memref<1x16x16x4xf32, #tpu.memory_space<vmem>>, %arg9: memref<20x20x4xf32, #tpu.memory_space<vmem>>, %arg10: memref<34x34x4xf32, #tpu.memory_space<vmem>>) attributes {dimension_semantics = [#tpu.dimension_semantics<parallel>], iteration_bounds = array<i64: 2>, scalar_prefetch = 0 : i64, scratch_operands = 2 : i64, tpu.core_type = #tpu.core_type<tc>, window_params = [{transform_indices = @transform_0, window_bounds = array<i64: 1, 16, 16, 4>}, {pipeline_mode = #tpu.pipeline_mode<synchronous>, transform_indices = @transform_1, window_bounds = array<i64: 25, 4>}, {pipeline_mode = #tpu.pipeline_mode<synchronous>, transform_indices = @transform_2, window_bounds = array<i64: 1, 4>}, {pipeline_mode = #tpu.pipeline_mode<synchronous>, transform_indices = @transform_3, window_bounds = array<i64: 49, 4>}, {pipeline_mode = #tpu.pipeline_mode<synchronous>, transform_indices = @transform_4, window_bounds = array<i64: 1, 4>}, {pipeline_mode = #tpu.pipeline_mode<synchronous>, transform_indices = @transform_5, window_bounds = array<i64: 4, 4>}, {pipeline_mode = #tpu.pipeline_mode<synchronous>, transform_indices = @transform_6, window_bounds = array<i64: 1, 4>}, {transform_indices = @transform_7, window_bounds = array<i64: 1, 16, 16, 4>}]} {
    %cst = arith.constant 0.000000e+00 : f32
    %0 = vector.broadcast %cst : f32 to vector<2x20x4xf32>
    %c0 = arith.constant 0 : index
    %c0_0 = arith.constant 0 : index
    %c0_1 = arith.constant 0 : index
    %1 = vector.load %arg9[%c0, %c0_0, %c0_1] : memref<20x20x4xf32, #tpu.memory_space<vmem>>, vector<2x20x4xf32>
    tpu.vector_store %arg9[%c0, %c0_0, %c0_1], %0 {strides = array<i32>} : memref<20x20x4xf32, #tpu.memory_space<vmem>>, vector<2x20x4xf32>,
    %cst_2 = arith.constant 0.000000e+00 : f32
    %2 = vector.broadcast %cst_2 : f32 to vector<2x20x4xf32>
    %c18 = arith.constant 18 : index
    %c0_3 = arith.constant 0 : index
    %c0_4 = arith.constant 0 : index
    %3 = vector.load %arg9[%c18, %c0_3, %c0_4] : memref<20x20x4xf32, #tpu.memory_space<vmem>>, vector<2x20x4xf32>
    tpu.vector_store %arg9[%c18, %c0_3, %c0_4], %2 {strides = array<i32>} : memref<20x20x4xf32, #tpu.memory_space<vmem>>, vector<2x20x4xf32>,
    %cst_5 = arith.constant 0.000000e+00 : f32
    %4 = vector.broadcast %cst_5 : f32 to vector<16x2x4xf32>
    %c2 = arith.constant 2 : index
    %c0_6 = arith.constant 0 : index
    %c0_7 = arith.constant 0 : index
    %5 = vector.load %arg9[%c2, %c0_6, %c0_7] : memref<20x20x4xf32, #tpu.memory_space<vmem>>, vector<16x2x4xf32>
    tpu.vector_store %arg9[%c2, %c0_6, %c0_7], %4 {strides = array<i32>} : memref<20x20x4xf32, #tpu.memory_space<vmem>>, vector<16x2x4xf32>,
    %cst_8 = arith.constant 0.000000e+00 : f32
    %6 = vector.broadcast %cst_8 : f32 to vector<16x2x4xf32>
    %c2_9 = arith.constant 2 : index
    %c18_10 = arith.constant 18 : index
    %c0_11 = arith.constant 0 : index
    %7 = vector.load %arg9[%c2_9, %c18_10, %c0_11] : memref<20x20x4xf32, #tpu.memory_space<vmem>>, vector<16x2x4xf32>
    tpu.vector_store %arg9[%c2_9, %c18_10, %c0_11], %6 {strides = array<i32>} : memref<20x20x4xf32, #tpu.memory_space<vmem>>, vector<16x2x4xf32>,
    %c0_12 = arith.constant 0 : index
    %c0_13 = arith.constant 0 : index
    %c0_14 = arith.constant 0 : index
    %c0_15 = arith.constant 0 : index
    %8 = vector.load %arg1[%c0_12, %c0_13, %c0_14, %c0_15] : memref<1x16x16x4xf32, #tpu.memory_space<vmem>>, vector<1x16x16x4xf32>
    %9 = vector.shape_cast %8 : vector<1x16x16x4xf32> to vector<16x16x4xf32>
    %c2_16 = arith.constant 2 : index
    %c2_17 = arith.constant 2 : index
    %c0_18 = arith.constant 0 : index
    %10 = vector.load %arg9[%c2_16, %c2_17, %c0_18] : memref<20x20x4xf32, #tpu.memory_space<vmem>>, vector<16x16x4xf32>
    tpu.vector_store %arg9[%c2_16, %c2_17, %c0_18], %9 {strides = array<i32>} : memref<20x20x4xf32, #tpu.memory_space<vmem>>, vector<16x16x4xf32>,
    %cst_19 = arith.constant 0.000000e+00 : f32
    %11 = vector.broadcast %cst_19 : f32 to vector<16x16x4xf32>
    %c0_20 = arith.constant 0 : index
    %c0_21 = arith.constant 0 : index
    %c0_22 = arith.constant 0 : index
    %12 = vector.load %arg9[%c0_20, %c0_21, %c0_22] : memref<20x20x4xf32, #tpu.memory_space<vmem>>, vector<16x16x4xf32>
    %c0_23 = arith.constant 0 : index
    %c0_24 = arith.constant 0 : index
    %13 = vector.load %arg2[%c0_23, %c0_24] : memref<25x4xf32, #tpu.memory_space<vmem>>, vector<1x4xf32>
    %14 = vector.shape_cast %13 : vector<1x4xf32> to vector<1x1x4xf32>
    %15 = vector.broadcast %14 : vector<1x1x4xf32> to vector<16x16x4xf32>
    %16 = arith.mulf %12, %15 : vector<16x16x4xf32>
    %17 = arith.addf %11, %16 : vector<16x16x4xf32>
    %c0_25 = arith.constant 0 : index
    %c1 = arith.constant 1 : index
    %c0_26 = arith.constant 0 : index
    %18 = vector.load %arg9[%c0_25, %c1, %c0_26] : memref<20x20x4xf32, #tpu.memory_space<vmem>>, vector<16x16x4xf32>
    %c1_27 = arith.constant 1 : index
    %c0_28 = arith.constant 0 : index
    %19 = vector.load %arg2[%c1_27, %c0_28] : memref<25x4xf32, #tpu.memory_space<vmem>>, vector<1x4xf32>
    %20 = vector.shape_cast %19 : vector<1x4xf32> to vector<1x1x4xf32>
    %21 = vector.broadcast %20 : vector<1x1x4xf32> to vector<16x16x4xf32>
    %22 = arith.mulf %18, %21 : vector<16x16x4xf32>
    %23 = arith.addf %17, %22 : vector<16x16x4xf32>
    %c0_29 = arith.constant 0 : index
    %c2_30 = arith.constant 2 : index
    %c0_31 = arith.constant 0 : index
    %24 = vector.load %arg9[%c0_29, %c2_30, %c0_31] : memref<20x20x4xf32, #tpu.memory_space<vmem>>, vector<16x16x4xf32>
    %c2_32 = arith.constant 2 : index
    %c0_33 = arith.constant 0 : index
    %25 = vector.load %arg2[%c2_32, %c0_33] : memref<25x4xf32, #tpu.memory_space<vmem>>, vector<1x4xf32>
    %26 = vector.shape_cast %25 : vector<1x4xf32> to vector<1x1x4xf32>
    %27 = vector.broadcast %26 : vector<1x1x4xf32> to vector<16x16x4xf32>
    %28 = arith.mulf %24, %27 : vector<16x16x4xf32>
    %29 = arith.addf %23, %28 : vector<16x16x4xf32>
    %c0_34 = arith.constant 0 : index
    %c3 = arith.constant 3 : index
    %c0_35 = arith.constant 0 : index
    %30 = vector.load %arg9[%c0_34, %c3, %c0_35] : memref<20x20x4xf32, #tpu.memory_space<vmem>>, vector<16x16x4xf32>
    %c3_36 = arith.constant 3 : index
    %c0_37 = arith.constant 0 : index
    %31 = vector.load %arg2[%c3_36, %c0_37] : memref<25x4xf32, #tpu.memory_space<vmem>>, vector<1x4xf32>
    %32 = vector.shape_cast %31 : vector<1x4xf32> to vector<1x1x4xf32>
    %33 = vector.broadcast %32 : vector<1x1x4xf32> to vector<16x16x4xf32>
    %34 = arith.mulf %30, %33 : vector<16x16x4xf32>
    %35 = arith.addf %29, %34 : vector<16x16x4xf32>
    %c0_38 = arith.constant 0 : index
    %c4 = arith.constant 4 : index
    %c0_39 = arith.constant 0 : index
    %36 = vector.load %arg9[%c0_38, %c4, %c0_39] : memref<20x20x4xf32, #tpu.memory_space<vmem>>, vector<16x16x4xf32>
    %c4_40 = arith.constant 4 : index
    %c0_41 = arith.constant 0 : index
    %37 = vector.load %arg2[%c4_40, %c0_41] : memref<25x4xf32, #tpu.memory_space<vmem>>, vector<1x4xf32>
    %38 = vector.shape_cast %37 : vector<1x4xf32> to vector<1x1x4xf32>
    %39 = vector.broadcast %38 : vector<1x1x4xf32> to vector<16x16x4xf32>
    %40 = arith.mulf %36, %39 : vector<16x16x4xf32>
    %41 = arith.addf %35, %40 : vector<16x16x4xf32>
    %c1_42 = arith.constant 1 : index
    %c0_43 = arith.constant 0 : index
    %c0_44 = arith.constant 0 : index
    %42 = vector.load %arg9[%c1_42, %c0_43, %c0_44] : memref<20x20x4xf32, #tpu.memory_space<vmem>>, vector<16x16x4xf32>
    %c5 = arith.constant 5 : index
    %c0_45 = arith.constant 0 : index
    %43 = vector.load %arg2[%c5, %c0_45] : memref<25x4xf32, #tpu.memory_space<vmem>>, vector<1x4xf32>
    %44 = vector.shape_cast %43 : vector<1x4xf32> to vector<1x1x4xf32>
    %45 = vector.broadcast %44 : vector<1x1x4xf32> to vector<16x16x4xf32>
    %46 = arith.mulf %42, %45 : vector<16x16x4xf32>
    %47 = arith.addf %41, %46 : vector<16x16x4xf32>
    %c1_46 = arith.constant 1 : index
    %c1_47 = arith.constant 1 : index
    %c0_48 = arith.constant 0 : index
    %48 = vector.load %arg9[%c1_46, %c1_47, %c0_48] : memref<20x20x4xf32, #tpu.memory_space<vmem>>, vector<16x16x4xf32>
    %c6 = arith.constant 6 : index
    %c0_49 = arith.constant 0 : index
    %49 = vector.load %arg2[%c6, %c0_49] : memref<25x4xf32, #tpu.memory_space<vmem>>, vector<1x4xf32>
    %50 = vector.shape_cast %49 : vector<1x4xf32> to vector<1x1x4xf32>
    %51 = vector.broadcast %50 : vector<1x1x4xf32> to vector<16x16x4xf32>
    %52 = arith.mulf %48, %51 : vector<16x16x4xf32>
    %53 = arith.addf %47, %52 : vector<16x16x4xf32>
    %c1_50 = arith.constant 1 : index
    %c2_51 = arith.constant 2 : index
    %c0_52 = arith.constant 0 : index
    %54 = vector.load %arg9[%c1_50, %c2_51, %c0_52] : memref<20x20x4xf32, #tpu.memory_space<vmem>>, vector<16x16x4xf32>
    %c7 = arith.constant 7 : index
    %c0_53 = arith.constant 0 : index
    %55 = vector.load %arg2[%c7, %c0_53] : memref<25x4xf32, #tpu.memory_space<vmem>>, vector<1x4xf32>
    %56 = vector.shape_cast %55 : vector<1x4xf32> to vector<1x1x4xf32>
    %57 = vector.broadcast %56 : vector<1x1x4xf32> to vector<16x16x4xf32>
    %58 = arith.mulf %54, %57 : vector<16x16x4xf32>
    %59 = arith.addf %53, %58 : vector<16x16x4xf32>
    %c1_54 = arith.constant 1 : index
    %c3_55 = arith.constant 3 : index
    %c0_56 = arith.constant 0 : index
    %60 = vector.load %arg9[%c1_54, %c3_55, %c0_56] : memref<20x20x4xf32, #tpu.memory_space<vmem>>, vector<16x16x4xf32>
    %c8 = arith.constant 8 : index
    %c0_57 = arith.constant 0 : index
    %61 = vector.load %arg2[%c8, %c0_57] : memref<25x4xf32, #tpu.memory_space<vmem>>, vector<1x4xf32>
    %62 = vector.shape_cast %61 : vector<1x4xf32> to vector<1x1x4xf32>
    %63 = vector.broadcast %62 : vector<1x1x4xf32> to vector<16x16x4xf32>
    %64 = arith.mulf %60, %63 : vector<16x16x4xf32>
    %65 = arith.addf %59, %64 : vector<16x16x4xf32>
    %c1_58 = arith.constant 1 : index
    %c4_59 = arith.constant 4 : index
    %c0_60 = arith.constant 0 : index
    %66 = vector.load %arg9[%c1_58, %c4_59, %c0_60] : memref<20x20x4xf32, #tpu.memory_space<vmem>>, vector<16x16x4xf32>
    %c9 = arith.constant 9 : index
    %c0_61 = arith.constant 0 : index
    %67 = vector.load %arg2[%c9, %c0_61] : memref<25x4xf32, #tpu.memory_space<vmem>>, vector<1x4xf32>
    %68 = vector.shape_cast %67 : vector<1x4xf32> to vector<1x1x4xf32>
    %69 = vector.broadcast %68 : vector<1x1x4xf32> to vector<16x16x4xf32>
    %70 = arith.mulf %66, %69 : vector<16x16x4xf32>
    %71 = arith.addf %65, %70 : vector<16x16x4xf32>
    %c2_62 = arith.constant 2 : index
    %c0_63 = arith.constant 0 : index
    %c0_64 = arith.constant 0 : index
    %72 = vector.load %arg9[%c2_62, %c0_63, %c0_64] : memref<20x20x4xf32, #tpu.memory_space<vmem>>, vector<16x16x4xf32>
    %c10 = arith.constant 10 : index
    %c0_65 = arith.constant 0 : index
    %73 = vector.load %arg2[%c10, %c0_65] : memref<25x4xf32, #tpu.memory_space<vmem>>, vector<1x4xf32>
    %74 = vector.shape_cast %73 : vector<1x4xf32> to vector<1x1x4xf32>
    %75 = vector.broadcast %74 : vector<1x1x4xf32> to vector<16x16x4xf32>
    %76 = arith.mulf %72, %75 : vector<16x16x4xf32>
    %77 = arith.addf %71, %76 : vector<16x16x4xf32>
    %c2_66 = arith.constant 2 : index
    %c1_67 = arith.constant 1 : index
    %c0_68 = arith.constant 0 : index
    %78 = vector.load %arg9[%c2_66, %c1_67, %c0_68] : memref<20x20x4xf32, #tpu.memory_space<vmem>>, vector<16x16x4xf32>
    %c11 = arith.constant 11 : index
    %c0_69 = arith.constant 0 : index
    %79 = vector.load %arg2[%c11, %c0_69] : memref<25x4xf32, #tpu.memory_space<vmem>>, vector<1x4xf32>
    %80 = vector.shape_cast %79 : vector<1x4xf32> to vector<1x1x4xf32>
    %81 = vector.broadcast %80 : vector<1x1x4xf32> to vector<16x16x4xf32>
    %82 = arith.mulf %78, %81 : vector<16x16x4xf32>
    %83 = arith.addf %77, %82 : vector<16x16x4xf32>
    %c2_70 = arith.constant 2 : index
    %c2_71 = arith.constant 2 : index
    %c0_72 = arith.constant 0 : index
    %84 = vector.load %arg9[%c2_70, %c2_71, %c0_72] : memref<20x20x4xf32, #tpu.memory_space<vmem>>, vector<16x16x4xf32>
    %c12 = arith.constant 12 : index
    %c0_73 = arith.constant 0 : index
    %85 = vector.load %arg2[%c12, %c0_73] : memref<25x4xf32, #tpu.memory_space<vmem>>, vector<1x4xf32>
    %86 = vector.shape_cast %85 : vector<1x4xf32> to vector<1x1x4xf32>
    %87 = vector.broadcast %86 : vector<1x1x4xf32> to vector<16x16x4xf32>
    %88 = arith.mulf %84, %87 : vector<16x16x4xf32>
    %89 = arith.addf %83, %88 : vector<16x16x4xf32>
    %c2_74 = arith.constant 2 : index
    %c3_75 = arith.constant 3 : index
    %c0_76 = arith.constant 0 : index
    %90 = vector.load %arg9[%c2_74, %c3_75, %c0_76] : memref<20x20x4xf32, #tpu.memory_space<vmem>>, vector<16x16x4xf32>
    %c13 = arith.constant 13 : index
    %c0_77 = arith.constant 0 : index
    %91 = vector.load %arg2[%c13, %c0_77] : memref<25x4xf32, #tpu.memory_space<vmem>>, vector<1x4xf32>
    %92 = vector.shape_cast %91 : vector<1x4xf32> to vector<1x1x4xf32>
    %93 = vector.broadcast %92 : vector<1x1x4xf32> to vector<16x16x4xf32>
    %94 = arith.mulf %90, %93 : vector<16x16x4xf32>
    %95 = arith.addf %89, %94 : vector<16x16x4xf32>
    %c2_78 = arith.constant 2 : index
    %c4_79 = arith.constant 4 : index
    %c0_80 = arith.constant 0 : index
    %96 = vector.load %arg9[%c2_78, %c4_79, %c0_80] : memref<20x20x4xf32, #tpu.memory_space<vmem>>, vector<16x16x4xf32>
    %c14 = arith.constant 14 : index
    %c0_81 = arith.constant 0 : index
    %97 = vector.load %arg2[%c14, %c0_81] : memref<25x4xf32, #tpu.memory_space<vmem>>, vector<1x4xf32>
    %98 = vector.shape_cast %97 : vector<1x4xf32> to vector<1x1x4xf32>
    %99 = vector.broadcast %98 : vector<1x1x4xf32> to vector<16x16x4xf32>
    %100 = arith.mulf %96, %99 : vector<16x16x4xf32>
    %101 = arith.addf %95, %100 : vector<16x16x4xf32>
    %c3_82 = arith.constant 3 : index
    %c0_83 = arith.constant 0 : index
    %c0_84 = arith.constant 0 : index
    %102 = vector.load %arg9[%c3_82, %c0_83, %c0_84] : memref<20x20x4xf32, #tpu.memory_space<vmem>>, vector<16x16x4xf32>
    %c15 = arith.constant 15 : index
    %c0_85 = arith.constant 0 : index
    %103 = vector.load %arg2[%c15, %c0_85] : memref<25x4xf32, #tpu.memory_space<vmem>>, vector<1x4xf32>
    %104 = vector.shape_cast %103 : vector<1x4xf32> to vector<1x1x4xf32>
    %105 = vector.broadcast %104 : vector<1x1x4xf32> to vector<16x16x4xf32>
    %106 = arith.mulf %102, %105 : vector<16x16x4xf32>
    %107 = arith.addf %101, %106 : vector<16x16x4xf32>
    %c3_86 = arith.constant 3 : index
    %c1_87 = arith.constant 1 : index
    %c0_88 = arith.constant 0 : index
    %108 = vector.load %arg9[%c3_86, %c1_87, %c0_88] : memref<20x20x4xf32, #tpu.memory_space<vmem>>, vector<16x16x4xf32>
    %c16 = arith.constant 16 : index
    %c0_89 = arith.constant 0 : index
    %109 = vector.load %arg2[%c16, %c0_89] : memref<25x4xf32, #tpu.memory_space<vmem>>, vector<1x4xf32>
    %110 = vector.shape_cast %109 : vector<1x4xf32> to vector<1x1x4xf32>
    %111 = vector.broadcast %110 : vector<1x1x4xf32> to vector<16x16x4xf32>
    %112 = arith.mulf %108, %111 : vector<16x16x4xf32>
    %113 = arith.addf %107, %112 : vector<16x16x4xf32>
    %c3_90 = arith.constant 3 : index
    %c2_91 = arith.constant 2 : index
    %c0_92 = arith.constant 0 : index
    %114 = vector.load %arg9[%c3_90, %c2_91, %c0_92] : memref<20x20x4xf32, #tpu.memory_space<vmem>>, vector<16x16x4xf32>
    %c17 = arith.constant 17 : index
    %c0_93 = arith.constant 0 : index
    %115 = vector.load %arg2[%c17, %c0_93] : memref<25x4xf32, #tpu.memory_space<vmem>>, vector<1x4xf32>
    %116 = vector.shape_cast %115 : vector<1x4xf32> to vector<1x1x4xf32>
    %117 = vector.broadcast %116 : vector<1x1x4xf32> to vector<16x16x4xf32>
    %118 = arith.mulf %114, %117 : vector<16x16x4xf32>
    %119 = arith.addf %113, %118 : vector<16x16x4xf32>
    %c3_94 = arith.constant 3 : index
    %c3_95 = arith.constant 3 : index
    %c0_96 = arith.constant 0 : index
    %120 = vector.load %arg9[%c3_94, %c3_95, %c0_96] : memref<20x20x4xf32, #tpu.memory_space<vmem>>, vector<16x16x4xf32>
    %c18_97 = arith.constant 18 : index
    %c0_98 = arith.constant 0 : index
    %121 = vector.load %arg2[%c18_97, %c0_98] : memref<25x4xf32, #tpu.memory_space<vmem>>, vector<1x4xf32>
    %122 = vector.shape_cast %121 : vector<1x4xf32> to vector<1x1x4xf32>
    %123 = vector.broadcast %122 : vector<1x1x4xf32> to vector<16x16x4xf32>
    %124 = arith.mulf %120, %123 : vector<16x16x4xf32>
    %125 = arith.addf %119, %124 : vector<16x16x4xf32>
    %c3_99 = arith.constant 3 : index
    %c4_100 = arith.constant 4 : index
    %c0_101 = arith.constant 0 : index
    %126 = vector.load %arg9[%c3_99, %c4_100, %c0_101] : memref<20x20x4xf32, #tpu.memory_space<vmem>>, vector<16x16x4xf32>
    %c19 = arith.constant 19 : index
    %c0_102 = arith.constant 0 : index
    %127 = vector.load %arg2[%c19, %c0_102] : memref<25x4xf32, #tpu.memory_space<vmem>>, vector<1x4xf32>
    %128 = vector.shape_cast %127 : vector<1x4xf32> to vector<1x1x4xf32>
    %129 = vector.broadcast %128 : vector<1x1x4xf32> to vector<16x16x4xf32>
    %130 = arith.mulf %126, %129 : vector<16x16x4xf32>
    %131 = arith.addf %125, %130 : vector<16x16x4xf32>
    %c4_103 = arith.constant 4 : index
    %c0_104 = arith.constant 0 : index
    %c0_105 = arith.constant 0 : index
    %132 = vector.load %arg9[%c4_103, %c0_104, %c0_105] : memref<20x20x4xf32, #tpu.memory_space<vmem>>, vector<16x16x4xf32>
    %c20 = arith.constant 20 : index
    %c0_106 = arith.constant 0 : index
    %133 = vector.load %arg2[%c20, %c0_106] : memref<25x4xf32, #tpu.memory_space<vmem>>, vector<1x4xf32>
    %134 = vector.shape_cast %133 : vector<1x4xf32> to vector<1x1x4xf32>
    %135 = vector.broadcast %134 : vector<1x1x4xf32> to vector<16x16x4xf32>
    %136 = arith.mulf %132, %135 : vector<16x16x4xf32>
    %137 = arith.addf %131, %136 : vector<16x16x4xf32>
    %c4_107 = arith.constant 4 : index
    %c1_108 = arith.constant 1 : index
    %c0_109 = arith.constant 0 : index
    %138 = vector.load %arg9[%c4_107, %c1_108, %c0_109] : memref<20x20x4xf32, #tpu.memory_space<vmem>>, vector<16x16x4xf32>
    %c21 = arith.constant 21 : index
    %c0_110 = arith.constant 0 : index
    %139 = vector.load %arg2[%c21, %c0_110] : memref<25x4xf32, #tpu.memory_space<vmem>>, vector<1x4xf32>
    %140 = vector.shape_cast %139 : vector<1x4xf32> to vector<1x1x4xf32>
    %141 = vector.broadcast %140 : vector<1x1x4xf32> to vector<16x16x4xf32>
    %142 = arith.mulf %138, %141 : vector<16x16x4xf32>
    %143 = arith.addf %137, %142 : vector<16x16x4xf32>
    %c4_111 = arith.constant 4 : index
    %c2_112 = arith.constant 2 : index
    %c0_113 = arith.constant 0 : index
    %144 = vector.load %arg9[%c4_111, %c2_112, %c0_113] : memref<20x20x4xf32, #tpu.memory_space<vmem>>, vector<16x16x4xf32>
    %c22 = arith.constant 22 : index
    %c0_114 = arith.constant 0 : index
    %145 = vector.load %arg2[%c22, %c0_114] : memref<25x4xf32, #tpu.memory_space<vmem>>, vector<1x4xf32>
    %146 = vector.shape_cast %145 : vector<1x4xf32> to vector<1x1x4xf32>
    %147 = vector.broadcast %146 : vector<1x1x4xf32> to vector<16x16x4xf32>
    %148 = arith.mulf %144, %147 : vector<16x16x4xf32>
    %149 = arith.addf %143, %148 : vector<16x16x4xf32>
    %c4_115 = arith.constant 4 : index
    %c3_116 = arith.constant 3 : index
    %c0_117 = arith.constant 0 : index
    %150 = vector.load %arg9[%c4_115, %c3_116, %c0_117] : memref<20x20x4xf32, #tpu.memory_space<vmem>>, vector<16x16x4xf32>
    %c23 = arith.constant 23 : index
    %c0_118 = arith.constant 0 : index
    %151 = vector.load %arg2[%c23, %c0_118] : memref<25x4xf32, #tpu.memory_space<vmem>>, vector<1x4xf32>
    %152 = vector.shape_cast %151 : vector<1x4xf32> to vector<1x1x4xf32>
    %153 = vector.broadcast %152 : vector<1x1x4xf32> to vector<16x16x4xf32>
    %154 = arith.mulf %150, %153 : vector<16x16x4xf32>
    %155 = arith.addf %149, %154 : vector<16x16x4xf32>
    %c4_119 = arith.constant 4 : index
    %c4_120 = arith.constant 4 : index
    %c0_121 = arith.constant 0 : index
    %156 = vector.load %arg9[%c4_119, %c4_120, %c0_121] : memref<20x20x4xf32, #tpu.memory_space<vmem>>, vector<16x16x4xf32>
    %c24 = arith.constant 24 : index
    %c0_122 = arith.constant 0 : index
    %157 = vector.load %arg2[%c24, %c0_122] : memref<25x4xf32, #tpu.memory_space<vmem>>, vector<1x4xf32>
    %158 = vector.shape_cast %157 : vector<1x4xf32> to vector<1x1x4xf32>
    %159 = vector.broadcast %158 : vector<1x1x4xf32> to vector<16x16x4xf32>
    %160 = arith.mulf %156, %159 : vector<16x16x4xf32>
    %161 = arith.addf %155, %160 : vector<16x16x4xf32>
    %c0_123 = arith.constant 0 : index
    %c0_124 = arith.constant 0 : index
    %162 = vector.load %arg3[%c0_123, %c0_124] : memref<1x4xf32, #tpu.memory_space<vmem>>, vector<1x4xf32>
    %163 = vector.shape_cast %162 : vector<1x4xf32> to vector<1x1x4xf32>
    %164 = vector.broadcast %163 : vector<1x1x4xf32> to vector<16x16x4xf32>
    %165 = arith.addf %161, %164 : vector<16x16x4xf32>
    %cst_125 = arith.constant 0.000000e+00 : f32
    %166 = vector.broadcast %cst_125 : f32 to vector<9x34x4xf32>
    %c0_126 = arith.constant 0 : index
    %c0_127 = arith.constant 0 : index
    %c0_128 = arith.constant 0 : index
    %167 = vector.load %arg10[%c0_126, %c0_127, %c0_128] : memref<34x34x4xf32, #tpu.memory_space<vmem>>, vector<9x34x4xf32>
    tpu.vector_store %arg10[%c0_126, %c0_127, %c0_128], %166 {strides = array<i32>} : memref<34x34x4xf32, #tpu.memory_space<vmem>>, vector<9x34x4xf32>,
    %cst_129 = arith.constant 0.000000e+00 : f32
    %168 = vector.broadcast %cst_129 : f32 to vector<9x34x4xf32>
    %c25 = arith.constant 25 : index
    %c0_130 = arith.constant 0 : index
    %c0_131 = arith.constant 0 : index
    %169 = vector.load %arg10[%c25, %c0_130, %c0_131] : memref<34x34x4xf32, #tpu.memory_space<vmem>>, vector<9x34x4xf32>
    tpu.vector_store %arg10[%c25, %c0_130, %c0_131], %168 {strides = array<i32>} : memref<34x34x4xf32, #tpu.memory_space<vmem>>, vector<9x34x4xf32>,
    %cst_132 = arith.constant 0.000000e+00 : f32
    %170 = vector.broadcast %cst_132 : f32 to vector<16x9x4xf32>
    %c9_133 = arith.constant 9 : index
    %c0_134 = arith.constant 0 : index
    %c0_135 = arith.constant 0 : index
    %171 = vector.load %arg10[%c9_133, %c0_134, %c0_135] : memref<34x34x4xf32, #tpu.memory_space<vmem>>, vector<16x9x4xf32>
    tpu.vector_store %arg10[%c9_133, %c0_134, %c0_135], %170 {strides = array<i32>} : memref<34x34x4xf32, #tpu.memory_space<vmem>>, vector<16x9x4xf32>,
    %cst_136 = arith.constant 0.000000e+00 : f32
    %172 = vector.broadcast %cst_136 : f32 to vector<16x9x4xf32>
    %c9_137 = arith.constant 9 : index
    %c25_138 = arith.constant 25 : index
    %c0_139 = arith.constant 0 : index
    %173 = vector.load %arg10[%c9_137, %c25_138, %c0_139] : memref<34x34x4xf32, #tpu.memory_space<vmem>>, vector<16x9x4xf32>
    tpu.vector_store %arg10[%c9_137, %c25_138, %c0_139], %172 {strides = array<i32>} : memref<34x34x4xf32, #tpu.memory_space<vmem>>, vector<16x9x4xf32>,
    %c9_140 = arith.constant 9 : index
    %c9_141 = arith.constant 9 : index
    %c0_142 = arith.constant 0 : index
    %174 = vector.load %arg10[%c9_140, %c9_141, %c0_142] : memref<34x34x4xf32, #tpu.memory_space<vmem>>, vector<16x16x4xf32>
    tpu.vector_store %arg10[%c9_140, %c9_141, %c0_142], %165 {strides = array<i32>} : memref<34x34x4xf32, #tpu.memory_space<vmem>>, vector<16x16x4xf32>,
    %cst_143 = arith.constant 0.000000e+00 : f32
    %175 = vector.broadcast %cst_143 : f32 to vector<16x16x4xf32>
    %c0_144 = arith.constant 0 : index
    %c0_145 = arith.constant 0 : index
    %c0_146 = arith.constant 0 : index
    %176 = vector.load %arg10[%c0_144, %c0_145, %c0_146] : memref<34x34x4xf32, #tpu.memory_space<vmem>>, vector<16x16x4xf32>
    %c0_147 = arith.constant 0 : index
    %c0_148 = arith.constant 0 : index
    %177 = vector.load %arg4[%c0_147, %c0_148] : memref<49x4xf32, #tpu.memory_space<vmem>>, vector<1x4xf32>
    %178 = vector.shape_cast %177 : vector<1x4xf32> to vector<1x1x4xf32>
    %179 = vector.broadcast %178 : vector<1x1x4xf32> to vector<16x16x4xf32>
    %180 = arith.mulf %176, %179 : vector<16x16x4xf32>
    %181 = arith.addf %175, %180 : vector<16x16x4xf32>
    %c0_149 = arith.constant 0 : index
    %c3_150 = arith.constant 3 : index
    %c0_151 = arith.constant 0 : index
    %182 = vector.load %arg10[%c0_149, %c3_150, %c0_151] : memref<34x34x4xf32, #tpu.memory_space<vmem>>, vector<16x16x4xf32>
    %c1_152 = arith.constant 1 : index
    %c0_153 = arith.constant 0 : index
    %183 = vector.load %arg4[%c1_152, %c0_153] : memref<49x4xf32, #tpu.memory_space<vmem>>, vector<1x4xf32>
    %184 = vector.shape_cast %183 : vector<1x4xf32> to vector<1x1x4xf32>
    %185 = vector.broadcast %184 : vector<1x1x4xf32> to vector<16x16x4xf32>
    %186 = arith.mulf %182, %185 : vector<16x16x4xf32>
    %187 = arith.addf %181, %186 : vector<16x16x4xf32>
    %c0_154 = arith.constant 0 : index
    %c6_155 = arith.constant 6 : index
    %c0_156 = arith.constant 0 : index
    %188 = vector.load %arg10[%c0_154, %c6_155, %c0_156] : memref<34x34x4xf32, #tpu.memory_space<vmem>>, vector<16x16x4xf32>
    %c2_157 = arith.constant 2 : index
    %c0_158 = arith.constant 0 : index
    %189 = vector.load %arg4[%c2_157, %c0_158] : memref<49x4xf32, #tpu.memory_space<vmem>>, vector<1x4xf32>
    %190 = vector.shape_cast %189 : vector<1x4xf32> to vector<1x1x4xf32>
    %191 = vector.broadcast %190 : vector<1x1x4xf32> to vector<16x16x4xf32>
    %192 = arith.mulf %188, %191 : vector<16x16x4xf32>
    %193 = arith.addf %187, %192 : vector<16x16x4xf32>
    %c0_159 = arith.constant 0 : index
    %c9_160 = arith.constant 9 : index
    %c0_161 = arith.constant 0 : index
    %194 = vector.load %arg10[%c0_159, %c9_160, %c0_161] : memref<34x34x4xf32, #tpu.memory_space<vmem>>, vector<16x16x4xf32>
    %c3_162 = arith.constant 3 : index
    %c0_163 = arith.constant 0 : index
    %195 = vector.load %arg4[%c3_162, %c0_163] : memref<49x4xf32, #tpu.memory_space<vmem>>, vector<1x4xf32>
    %196 = vector.shape_cast %195 : vector<1x4xf32> to vector<1x1x4xf32>
    %197 = vector.broadcast %196 : vector<1x1x4xf32> to vector<16x16x4xf32>
    %198 = arith.mulf %194, %197 : vector<16x16x4xf32>
    %199 = arith.addf %193, %198 : vector<16x16x4xf32>
    %c0_164 = arith.constant 0 : index
    %c12_165 = arith.constant 12 : index
    %c0_166 = arith.constant 0 : index
    %200 = vector.load %arg10[%c0_164, %c12_165, %c0_166] : memref<34x34x4xf32, #tpu.memory_space<vmem>>, vector<16x16x4xf32>
    %c4_167 = arith.constant 4 : index
    %c0_168 = arith.constant 0 : index
    %201 = vector.load %arg4[%c4_167, %c0_168] : memref<49x4xf32, #tpu.memory_space<vmem>>, vector<1x4xf32>
    %202 = vector.shape_cast %201 : vector<1x4xf32> to vector<1x1x4xf32>
    %203 = vector.broadcast %202 : vector<1x1x4xf32> to vector<16x16x4xf32>
    %204 = arith.mulf %200, %203 : vector<16x16x4xf32>
    %205 = arith.addf %199, %204 : vector<16x16x4xf32>
    %c0_169 = arith.constant 0 : index
    %c15_170 = arith.constant 15 : index
    %c0_171 = arith.constant 0 : index
    %206 = vector.load %arg10[%c0_169, %c15_170, %c0_171] : memref<34x34x4xf32, #tpu.memory_space<vmem>>, vector<16x16x4xf32>
    %c5_172 = arith.constant 5 : index
    %c0_173 = arith.constant 0 : index
    %207 = vector.load %arg4[%c5_172, %c0_173] : memref<49x4xf32, #tpu.memory_space<vmem>>, vector<1x4xf32>
    %208 = vector.shape_cast %207 : vector<1x4xf32> to vector<1x1x4xf32>
    %209 = vector.broadcast %208 : vector<1x1x4xf32> to vector<16x16x4xf32>
    %210 = arith.mulf %206, %209 : vector<16x16x4xf32>
    %211 = arith.addf %205, %210 : vector<16x16x4xf32>
    %c0_174 = arith.constant 0 : index
    %c18_175 = arith.constant 18 : index
    %c0_176 = arith.constant 0 : index
    %212 = vector.load %arg10[%c0_174, %c18_175, %c0_176] : memref<34x34x4xf32, #tpu.memory_space<vmem>>, vector<16x16x4xf32>
    %c6_177 = arith.constant 6 : index
    %c0_178 = arith.constant 0 : index
    %213 = vector.load %arg4[%c6_177, %c0_178] : memref<49x4xf32, #tpu.memory_space<vmem>>, vector<1x4xf32>
    %214 = vector.shape_cast %213 : vector<1x4xf32> to vector<1x1x4xf32>
    %215 = vector.broadcast %214 : vector<1x1x4xf32> to vector<16x16x4xf32>
    %216 = arith.mulf %212, %215 : vector<16x16x4xf32>
    %217 = arith.addf %211, %216 : vector<16x16x4xf32>
    %c3_179 = arith.constant 3 : index
    %c0_180 = arith.constant 0 : index
    %c0_181 = arith.constant 0 : index
    %218 = vector.load %arg10[%c3_179, %c0_180, %c0_181] : memref<34x34x4xf32, #tpu.memory_space<vmem>>, vector<16x16x4xf32>
    %c7_182 = arith.constant 7 : index
    %c0_183 = arith.constant 0 : index
    %219 = vector.load %arg4[%c7_182, %c0_183] : memref<49x4xf32, #tpu.memory_space<vmem>>, vector<1x4xf32>
    %220 = vector.shape_cast %219 : vector<1x4xf32> to vector<1x1x4xf32>
    %221 = vector.broadcast %220 : vector<1x1x4xf32> to vector<16x16x4xf32>
    %222 = arith.mulf %218, %221 : vector<16x16x4xf32>
    %223 = arith.addf %217, %222 : vector<16x16x4xf32>
    %c3_184 = arith.constant 3 : index
    %c3_185 = arith.constant 3 : index
    %c0_186 = arith.constant 0 : index
    %224 = vector.load %arg10[%c3_184, %c3_185, %c0_186] : memref<34x34x4xf32, #tpu.memory_space<vmem>>, vector<16x16x4xf32>
    %c8_187 = arith.constant 8 : index
    %c0_188 = arith.constant 0 : index
    %225 = vector.load %arg4[%c8_187, %c0_188] : memref<49x4xf32, #tpu.memory_space<vmem>>, vector<1x4xf32>
    %226 = vector.shape_cast %225 : vector<1x4xf32> to vector<1x1x4xf32>
    %227 = vector.broadcast %226 : vector<1x1x4xf32> to vector<16x16x4xf32>
    %228 = arith.mulf %224, %227 : vector<16x16x4xf32>
    %229 = arith.addf %223, %228 : vector<16x16x4xf32>
    %c3_189 = arith.constant 3 : index
    %c6_190 = arith.constant 6 : index
    %c0_191 = arith.constant 0 : index
    %230 = vector.load %arg10[%c3_189, %c6_190, %c0_191] : memref<34x34x4xf32, #tpu.memory_space<vmem>>, vector<16x16x4xf32>
    %c9_192 = arith.constant 9 : index
    %c0_193 = arith.constant 0 : index
    %231 = vector.load %arg4[%c9_192, %c0_193] : memref<49x4xf32, #tpu.memory_space<vmem>>, vector<1x4xf32>
    %232 = vector.shape_cast %231 : vector<1x4xf32> to vector<1x1x4xf32>
    %233 = vector.broadcast %232 : vector<1x1x4xf32> to vector<16x16x4xf32>
    %234 = arith.mulf %230, %233 : vector<16x16x4xf32>
    %235 = arith.addf %229, %234 : vector<16x16x4xf32>
    %c3_194 = arith.constant 3 : index
    %c9_195 = arith.constant 9 : index
    %c0_196 = arith.constant 0 : index
    %236 = vector.load %arg10[%c3_194, %c9_195, %c0_196] : memref<34x34x4xf32, #tpu.memory_space<vmem>>, vector<16x16x4xf32>
    %c10_197 = arith.constant 10 : index
    %c0_198 = arith.constant 0 : index
    %237 = vector.load %arg4[%c10_197, %c0_198] : memref<49x4xf32, #tpu.memory_space<vmem>>, vector<1x4xf32>
    %238 = vector.shape_cast %237 : vector<1x4xf32> to vector<1x1x4xf32>
    %239 = vector.broadcast %238 : vector<1x1x4xf32> to vector<16x16x4xf32>
    %240 = arith.mulf %236, %239 : vector<16x16x4xf32>
    %241 = arith.addf %235, %240 : vector<16x16x4xf32>
    %c3_199 = arith.constant 3 : index
    %c12_200 = arith.constant 12 : index
    %c0_201 = arith.constant 0 : index
    %242 = vector.load %arg10[%c3_199, %c12_200, %c0_201] : memref<34x34x4xf32, #tpu.memory_space<vmem>>, vector<16x16x4xf32>
    %c11_202 = arith.constant 11 : index
    %c0_203 = arith.constant 0 : index
    %243 = vector.load %arg4[%c11_202, %c0_203] : memref<49x4xf32, #tpu.memory_space<vmem>>, vector<1x4xf32>
    %244 = vector.shape_cast %243 : vector<1x4xf32> to vector<1x1x4xf32>
    %245 = vector.broadcast %244 : vector<1x1x4xf32> to vector<16x16x4xf32>
    %246 = arith.mulf %242, %245 : vector<16x16x4xf32>
    %247 = arith.addf %241, %246 : vector<16x16x4xf32>
    %c3_204 = arith.constant 3 : index
    %c15_205 = arith.constant 15 : index
    %c0_206 = arith.constant 0 : index
    %248 = vector.load %arg10[%c3_204, %c15_205, %c0_206] : memref<34x34x4xf32, #tpu.memory_space<vmem>>, vector<16x16x4xf32>
    %c12_207 = arith.constant 12 : index
    %c0_208 = arith.constant 0 : index
    %249 = vector.load %arg4[%c12_207, %c0_208] : memref<49x4xf32, #tpu.memory_space<vmem>>, vector<1x4xf32>
    %250 = vector.shape_cast %249 : vector<1x4xf32> to vector<1x1x4xf32>
    %251 = vector.broadcast %250 : vector<1x1x4xf32> to vector<16x16x4xf32>
    %252 = arith.mulf %248, %251 : vector<16x16x4xf32>
    %253 = arith.addf %247, %252 : vector<16x16x4xf32>
    %c3_209 = arith.constant 3 : index
    %c18_210 = arith.constant 18 : index
    %c0_211 = arith.constant 0 : index
    %254 = vector.load %arg10[%c3_209, %c18_210, %c0_211] : memref<34x34x4xf32, #tpu.memory_space<vmem>>, vector<16x16x4xf32>
    %c13_212 = arith.constant 13 : index
    %c0_213 = arith.constant 0 : index
    %255 = vector.load %arg4[%c13_212, %c0_213] : memref<49x4xf32, #tpu.memory_space<vmem>>, vector<1x4xf32>
    %256 = vector.shape_cast %255 : vector<1x4xf32> to vector<1x1x4xf32>
    %257 = vector.broadcast %256 : vector<1x1x4xf32> to vector<16x16x4xf32>
    %258 = arith.mulf %254, %257 : vector<16x16x4xf32>
    %259 = arith.addf %253, %258 : vector<16x16x4xf32>
    %c6_214 = arith.constant 6 : index
    %c0_215 = arith.constant 0 : index
    %c0_216 = arith.constant 0 : index
    %260 = vector.load %arg10[%c6_214, %c0_215, %c0_216] : memref<34x34x4xf32, #tpu.memory_space<vmem>>, vector<16x16x4xf32>
    %c14_217 = arith.constant 14 : index
    %c0_218 = arith.constant 0 : index
    %261 = vector.load %arg4[%c14_217, %c0_218] : memref<49x4xf32, #tpu.memory_space<vmem>>, vector<1x4xf32>
    %262 = vector.shape_cast %261 : vector<1x4xf32> to vector<1x1x4xf32>
    %263 = vector.broadcast %262 : vector<1x1x4xf32> to vector<16x16x4xf32>
    %264 = arith.mulf %260, %263 : vector<16x16x4xf32>
    %265 = arith.addf %259, %264 : vector<16x16x4xf32>
    %c6_219 = arith.constant 6 : index
    %c3_220 = arith.constant 3 : index
    %c0_221 = arith.constant 0 : index
    %266 = vector.load %arg10[%c6_219, %c3_220, %c0_221] : memref<34x34x4xf32, #tpu.memory_space<vmem>>, vector<16x16x4xf32>
    %c15_222 = arith.constant 15 : index
    %c0_223 = arith.constant 0 : index
    %267 = vector.load %arg4[%c15_222, %c0_223] : memref<49x4xf32, #tpu.memory_space<vmem>>, vector<1x4xf32>
    %268 = vector.shape_cast %267 : vector<1x4xf32> to vector<1x1x4xf32>
    %269 = vector.broadcast %268 : vector<1x1x4xf32> to vector<16x16x4xf32>
    %270 = arith.mulf %266, %269 : vector<16x16x4xf32>
    %271 = arith.addf %265, %270 : vector<16x16x4xf32>
    %c6_224 = arith.constant 6 : index
    %c6_225 = arith.constant 6 : index
    %c0_226 = arith.constant 0 : index
    %272 = vector.load %arg10[%c6_224, %c6_225, %c0_226] : memref<34x34x4xf32, #tpu.memory_space<vmem>>, vector<16x16x4xf32>
    %c16_227 = arith.constant 16 : index
    %c0_228 = arith.constant 0 : index
    %273 = vector.load %arg4[%c16_227, %c0_228] : memref<49x4xf32, #tpu.memory_space<vmem>>, vector<1x4xf32>
    %274 = vector.shape_cast %273 : vector<1x4xf32> to vector<1x1x4xf32>
    %275 = vector.broadcast %274 : vector<1x1x4xf32> to vector<16x16x4xf32>
    %276 = arith.mulf %272, %275 : vector<16x16x4xf32>
    %277 = arith.addf %271, %276 : vector<16x16x4xf32>
    %c6_229 = arith.constant 6 : index
    %c9_230 = arith.constant 9 : index
    %c0_231 = arith.constant 0 : index
    %278 = vector.load %arg10[%c6_229, %c9_230, %c0_231] : memref<34x34x4xf32, #tpu.memory_space<vmem>>, vector<16x16x4xf32>
    %c17_232 = arith.constant 17 : index
    %c0_233 = arith.constant 0 : index
    %279 = vector.load %arg4[%c17_232, %c0_233] : memref<49x4xf32, #tpu.memory_space<vmem>>, vector<1x4xf32>
    %280 = vector.shape_cast %279 : vector<1x4xf32> to vector<1x1x4xf32>
    %281 = vector.broadcast %280 : vector<1x1x4xf32> to vector<16x16x4xf32>
    %282 = arith.mulf %278, %281 : vector<16x16x4xf32>
    %283 = arith.addf %277, %282 : vector<16x16x4xf32>
    %c6_234 = arith.constant 6 : index
    %c12_235 = arith.constant 12 : index
    %c0_236 = arith.constant 0 : index
    %284 = vector.load %arg10[%c6_234, %c12_235, %c0_236] : memref<34x34x4xf32, #tpu.memory_space<vmem>>, vector<16x16x4xf32>
    %c18_237 = arith.constant 18 : index
    %c0_238 = arith.constant 0 : index
    %285 = vector.load %arg4[%c18_237, %c0_238] : memref<49x4xf32, #tpu.memory_space<vmem>>, vector<1x4xf32>
    %286 = vector.shape_cast %285 : vector<1x4xf32> to vector<1x1x4xf32>
    %287 = vector.broadcast %286 : vector<1x1x4xf32> to vector<16x16x4xf32>
    %288 = arith.mulf %284, %287 : vector<16x16x4xf32>
    %289 = arith.addf %283, %288 : vector<16x16x4xf32>
    %c6_239 = arith.constant 6 : index
    %c15_240 = arith.constant 15 : index
    %c0_241 = arith.constant 0 : index
    %290 = vector.load %arg10[%c6_239, %c15_240, %c0_241] : memref<34x34x4xf32, #tpu.memory_space<vmem>>, vector<16x16x4xf32>
    %c19_242 = arith.constant 19 : index
    %c0_243 = arith.constant 0 : index
    %291 = vector.load %arg4[%c19_242, %c0_243] : memref<49x4xf32, #tpu.memory_space<vmem>>, vector<1x4xf32>
    %292 = vector.shape_cast %291 : vector<1x4xf32> to vector<1x1x4xf32>
    %293 = vector.broadcast %292 : vector<1x1x4xf32> to vector<16x16x4xf32>
    %294 = arith.mulf %290, %293 : vector<16x16x4xf32>
    %295 = arith.addf %289, %294 : vector<16x16x4xf32>
    %c6_244 = arith.constant 6 : index
    %c18_245 = arith.constant 18 : index
    %c0_246 = arith.constant 0 : index
    %296 = vector.load %arg10[%c6_244, %c18_245, %c0_246] : memref<34x34x4xf32, #tpu.memory_space<vmem>>, vector<16x16x4xf32>
    %c20_247 = arith.constant 20 : index
    %c0_248 = arith.constant 0 : index
    %297 = vector.load %arg4[%c20_247, %c0_248] : memref<49x4xf32, #tpu.memory_space<vmem>>, vector<1x4xf32>
    %298 = vector.shape_cast %297 : vector<1x4xf32> to vector<1x1x4xf32>
    %299 = vector.broadcast %298 : vector<1x1x4xf32> to vector<16x16x4xf32>
    %300 = arith.mulf %296, %299 : vector<16x16x4xf32>
    %301 = arith.addf %295, %300 : vector<16x16x4xf32>
    %c9_249 = arith.constant 9 : index
    %c0_250 = arith.constant 0 : index
    %c0_251 = arith.constant 0 : index
    %302 = vector.load %arg10[%c9_249, %c0_250, %c0_251] : memref<34x34x4xf32, #tpu.memory_space<vmem>>, vector<16x16x4xf32>
    %c21_252 = arith.constant 21 : index
    %c0_253 = arith.constant 0 : index
    %303 = vector.load %arg4[%c21_252, %c0_253] : memref<49x4xf32, #tpu.memory_space<vmem>>, vector<1x4xf32>
    %304 = vector.shape_cast %303 : vector<1x4xf32> to vector<1x1x4xf32>
    %305 = vector.broadcast %304 : vector<1x1x4xf32> to vector<16x16x4xf32>
    %306 = arith.mulf %302, %305 : vector<16x16x4xf32>
    %307 = arith.addf %301, %306 : vector<16x16x4xf32>
    %c9_254 = arith.constant 9 : index
    %c3_255 = arith.constant 3 : index
    %c0_256 = arith.constant 0 : index
    %308 = vector.load %arg10[%c9_254, %c3_255, %c0_256] : memref<34x34x4xf32, #tpu.memory_space<vmem>>, vector<16x16x4xf32>
    %c22_257 = arith.constant 22 : index
    %c0_258 = arith.constant 0 : index
    %309 = vector.load %arg4[%c22_257, %c0_258] : memref<49x4xf32, #tpu.memory_space<vmem>>, vector<1x4xf32>
    %310 = vector.shape_cast %309 : vector<1x4xf32> to vector<1x1x4xf32>
    %311 = vector.broadcast %310 : vector<1x1x4xf32> to vector<16x16x4xf32>
    %312 = arith.mulf %308, %311 : vector<16x16x4xf32>
    %313 = arith.addf %307, %312 : vector<16x16x4xf32>
    %c9_259 = arith.constant 9 : index
    %c6_260 = arith.constant 6 : index
    %c0_261 = arith.constant 0 : index
    %314 = vector.load %arg10[%c9_259, %c6_260, %c0_261] : memref<34x34x4xf32, #tpu.memory_space<vmem>>, vector<16x16x4xf32>
    %c23_262 = arith.constant 23 : index
    %c0_263 = arith.constant 0 : index
    %315 = vector.load %arg4[%c23_262, %c0_263] : memref<49x4xf32, #tpu.memory_space<vmem>>, vector<1x4xf32>
    %316 = vector.shape_cast %315 : vector<1x4xf32> to vector<1x1x4xf32>
    %317 = vector.broadcast %316 : vector<1x1x4xf32> to vector<16x16x4xf32>
    %318 = arith.mulf %314, %317 : vector<16x16x4xf32>
    %319 = arith.addf %313, %318 : vector<16x16x4xf32>
    %c9_264 = arith.constant 9 : index
    %c9_265 = arith.constant 9 : index
    %c0_266 = arith.constant 0 : index
    %320 = vector.load %arg10[%c9_264, %c9_265, %c0_266] : memref<34x34x4xf32, #tpu.memory_space<vmem>>, vector<16x16x4xf32>
    %c24_267 = arith.constant 24 : index
    %c0_268 = arith.constant 0 : index
    %321 = vector.load %arg4[%c24_267, %c0_268] : memref<49x4xf32, #tpu.memory_space<vmem>>, vector<1x4xf32>
    %322 = vector.shape_cast %321 : vector<1x4xf32> to vector<1x1x4xf32>
    %323 = vector.broadcast %322 : vector<1x1x4xf32> to vector<16x16x4xf32>
    %324 = arith.mulf %320, %323 : vector<16x16x4xf32>
    %325 = arith.addf %319, %324 : vector<16x16x4xf32>
    %c9_269 = arith.constant 9 : index
    %c12_270 = arith.constant 12 : index
    %c0_271 = arith.constant 0 : index
    %326 = vector.load %arg10[%c9_269, %c12_270, %c0_271] : memref<34x34x4xf32, #tpu.memory_space<vmem>>, vector<16x16x4xf32>
    %c25_272 = arith.constant 25 : index
    %c0_273 = arith.constant 0 : index
    %327 = vector.load %arg4[%c25_272, %c0_273] : memref<49x4xf32, #tpu.memory_space<vmem>>, vector<1x4xf32>
    %328 = vector.shape_cast %327 : vector<1x4xf32> to vector<1x1x4xf32>
    %329 = vector.broadcast %328 : vector<1x1x4xf32> to vector<16x16x4xf32>
    %330 = arith.mulf %326, %329 : vector<16x16x4xf32>
    %331 = arith.addf %325, %330 : vector<16x16x4xf32>
    %c9_274 = arith.constant 9 : index
    %c15_275 = arith.constant 15 : index
    %c0_276 = arith.constant 0 : index
    %332 = vector.load %arg10[%c9_274, %c15_275, %c0_276] : memref<34x34x4xf32, #tpu.memory_space<vmem>>, vector<16x16x4xf32>
    %c26 = arith.constant 26 : index
    %c0_277 = arith.constant 0 : index
    %333 = vector.load %arg4[%c26, %c0_277] : memref<49x4xf32, #tpu.memory_space<vmem>>, vector<1x4xf32>
    %334 = vector.shape_cast %333 : vector<1x4xf32> to vector<1x1x4xf32>
    %335 = vector.broadcast %334 : vector<1x1x4xf32> to vector<16x16x4xf32>
    %336 = arith.mulf %332, %335 : vector<16x16x4xf32>
    %337 = arith.addf %331, %336 : vector<16x16x4xf32>
    %c9_278 = arith.constant 9 : index
    %c18_279 = arith.constant 18 : index
    %c0_280 = arith.constant 0 : index
    %338 = vector.load %arg10[%c9_278, %c18_279, %c0_280] : memref<34x34x4xf32, #tpu.memory_space<vmem>>, vector<16x16x4xf32>
    %c27 = arith.constant 27 : index
    %c0_281 = arith.constant 0 : index
    %339 = vector.load %arg4[%c27, %c0_281] : memref<49x4xf32, #tpu.memory_space<vmem>>, vector<1x4xf32>
    %340 = vector.shape_cast %339 : vector<1x4xf32> to vector<1x1x4xf32>
    %341 = vector.broadcast %340 : vector<1x1x4xf32> to vector<16x16x4xf32>
    %342 = arith.mulf %338, %341 : vector<16x16x4xf32>
    %343 = arith.addf %337, %342 : vector<16x16x4xf32>
    %c12_282 = arith.constant 12 : index
    %c0_283 = arith.constant 0 : index
    %c0_284 = arith.constant 0 : index
    %344 = vector.load %arg10[%c12_282, %c0_283, %c0_284] : memref<34x34x4xf32, #tpu.memory_space<vmem>>, vector<16x16x4xf32>
    %c28 = arith.constant 28 : index
    %c0_285 = arith.constant 0 : index
    %345 = vector.load %arg4[%c28, %c0_285] : memref<49x4xf32, #tpu.memory_space<vmem>>, vector<1x4xf32>
    %346 = vector.shape_cast %345 : vector<1x4xf32> to vector<1x1x4xf32>
    %347 = vector.broadcast %346 : vector<1x1x4xf32> to vector<16x16x4xf32>
    %348 = arith.mulf %344, %347 : vector<16x16x4xf32>
    %349 = arith.addf %343, %348 : vector<16x16x4xf32>
    %c12_286 = arith.constant 12 : index
    %c3_287 = arith.constant 3 : index
    %c0_288 = arith.constant 0 : index
    %350 = vector.load %arg10[%c12_286, %c3_287, %c0_288] : memref<34x34x4xf32, #tpu.memory_space<vmem>>, vector<16x16x4xf32>
    %c29 = arith.constant 29 : index
    %c0_289 = arith.constant 0 : index
    %351 = vector.load %arg4[%c29, %c0_289] : memref<49x4xf32, #tpu.memory_space<vmem>>, vector<1x4xf32>
    %352 = vector.shape_cast %351 : vector<1x4xf32> to vector<1x1x4xf32>
    %353 = vector.broadcast %352 : vector<1x1x4xf32> to vector<16x16x4xf32>
    %354 = arith.mulf %350, %353 : vector<16x16x4xf32>
    %355 = arith.addf %349, %354 : vector<16x16x4xf32>
    %c12_290 = arith.constant 12 : index
    %c6_291 = arith.constant 6 : index
    %c0_292 = arith.constant 0 : index
    %356 = vector.load %arg10[%c12_290, %c6_291, %c0_292] : memref<34x34x4xf32, #tpu.memory_space<vmem>>, vector<16x16x4xf32>
    %c30 = arith.constant 30 : index
    %c0_293 = arith.constant 0 : index
    %357 = vector.load %arg4[%c30, %c0_293] : memref<49x4xf32, #tpu.memory_space<vmem>>, vector<1x4xf32>
    %358 = vector.shape_cast %357 : vector<1x4xf32> to vector<1x1x4xf32>
    %359 = vector.broadcast %358 : vector<1x1x4xf32> to vector<16x16x4xf32>
    %360 = arith.mulf %356, %359 : vector<16x16x4xf32>
    %361 = arith.addf %355, %360 : vector<16x16x4xf32>
    %c12_294 = arith.constant 12 : index
    %c9_295 = arith.constant 9 : index
    %c0_296 = arith.constant 0 : index
    %362 = vector.load %arg10[%c12_294, %c9_295, %c0_296] : memref<34x34x4xf32, #tpu.memory_space<vmem>>, vector<16x16x4xf32>
    %c31 = arith.constant 31 : index
    %c0_297 = arith.constant 0 : index
    %363 = vector.load %arg4[%c31, %c0_297] : memref<49x4xf32, #tpu.memory_space<vmem>>, vector<1x4xf32>
    %364 = vector.shape_cast %363 : vector<1x4xf32> to vector<1x1x4xf32>
    %365 = vector.broadcast %364 : vector<1x1x4xf32> to vector<16x16x4xf32>
    %366 = arith.mulf %362, %365 : vector<16x16x4xf32>
    %367 = arith.addf %361, %366 : vector<16x16x4xf32>
    %c12_298 = arith.constant 12 : index
    %c12_299 = arith.constant 12 : index
    %c0_300 = arith.constant 0 : index
    %368 = vector.load %arg10[%c12_298, %c12_299, %c0_300] : memref<34x34x4xf32, #tpu.memory_space<vmem>>, vector<16x16x4xf32>
    %c32 = arith.constant 32 : index
    %c0_301 = arith.constant 0 : index
    %369 = vector.load %arg4[%c32, %c0_301] : memref<49x4xf32, #tpu.memory_space<vmem>>, vector<1x4xf32>
    %370 = vector.shape_cast %369 : vector<1x4xf32> to vector<1x1x4xf32>
    %371 = vector.broadcast %370 : vector<1x1x4xf32> to vector<16x16x4xf32>
    %372 = arith.mulf %368, %371 : vector<16x16x4xf32>
    %373 = arith.addf %367, %372 : vector<16x16x4xf32>
    %c12_302 = arith.constant 12 : index
    %c15_303 = arith.constant 15 : index
    %c0_304 = arith.constant 0 : index
    %374 = vector.load %arg10[%c12_302, %c15_303, %c0_304] : memref<34x34x4xf32, #tpu.memory_space<vmem>>, vector<16x16x4xf32>
    %c33 = arith.constant 33 : index
    %c0_305 = arith.constant 0 : index
    %375 = vector.load %arg4[%c33, %c0_305] : memref<49x4xf32, #tpu.memory_space<vmem>>, vector<1x4xf32>
    %376 = vector.shape_cast %375 : vector<1x4xf32> to vector<1x1x4xf32>
    %377 = vector.broadcast %376 : vector<1x1x4xf32> to vector<16x16x4xf32>
    %378 = arith.mulf %374, %377 : vector<16x16x4xf32>
    %379 = arith.addf %373, %378 : vector<16x16x4xf32>
    %c12_306 = arith.constant 12 : index
    %c18_307 = arith.constant 18 : index
    %c0_308 = arith.constant 0 : index
    %380 = vector.load %arg10[%c12_306, %c18_307, %c0_308] : memref<34x34x4xf32, #tpu.memory_space<vmem>>, vector<16x16x4xf32>
    %c34 = arith.constant 34 : index
    %c0_309 = arith.constant 0 : index
    %381 = vector.load %arg4[%c34, %c0_309] : memref<49x4xf32, #tpu.memory_space<vmem>>, vector<1x4xf32>
    %382 = vector.shape_cast %381 : vector<1x4xf32> to vector<1x1x4xf32>
    %383 = vector.broadcast %382 : vector<1x1x4xf32> to vector<16x16x4xf32>
    %384 = arith.mulf %380, %383 : vector<16x16x4xf32>
    %385 = arith.addf %379, %384 : vector<16x16x4xf32>
    %c15_310 = arith.constant 15 : index
    %c0_311 = arith.constant 0 : index
    %c0_312 = arith.constant 0 : index
    %386 = vector.load %arg10[%c15_310, %c0_311, %c0_312] : memref<34x34x4xf32, #tpu.memory_space<vmem>>, vector<16x16x4xf32>
    %c35 = arith.constant 35 : index
    %c0_313 = arith.constant 0 : index
    %387 = vector.load %arg4[%c35, %c0_313] : memref<49x4xf32, #tpu.memory_space<vmem>>, vector<1x4xf32>
    %388 = vector.shape_cast %387 : vector<1x4xf32> to vector<1x1x4xf32>
    %389 = vector.broadcast %388 : vector<1x1x4xf32> to vector<16x16x4xf32>
    %390 = arith.mulf %386, %389 : vector<16x16x4xf32>
    %391 = arith.addf %385, %390 : vector<16x16x4xf32>
    %c15_314 = arith.constant 15 : index
    %c3_315 = arith.constant 3 : index
    %c0_316 = arith.constant 0 : index
    %392 = vector.load %arg10[%c15_314, %c3_315, %c0_316] : memref<34x34x4xf32, #tpu.memory_space<vmem>>, vector<16x16x4xf32>
    %c36 = arith.constant 36 : index
    %c0_317 = arith.constant 0 : index
    %393 = vector.load %arg4[%c36, %c0_317] : memref<49x4xf32, #tpu.memory_space<vmem>>, vector<1x4xf32>
    %394 = vector.shape_cast %393 : vector<1x4xf32> to vector<1x1x4xf32>
    %395 = vector.broadcast %394 : vector<1x1x4xf32> to vector<16x16x4xf32>
    %396 = arith.mulf %392, %395 : vector<16x16x4xf32>
    %397 = arith.addf %391, %396 : vector<16x16x4xf32>
    %c15_318 = arith.constant 15 : index
    %c6_319 = arith.constant 6 : index
    %c0_320 = arith.constant 0 : index
    %398 = vector.load %arg10[%c15_318, %c6_319, %c0_320] : memref<34x34x4xf32, #tpu.memory_space<vmem>>, vector<16x16x4xf32>
    %c37 = arith.constant 37 : index
    %c0_321 = arith.constant 0 : index
    %399 = vector.load %arg4[%c37, %c0_321] : memref<49x4xf32, #tpu.memory_space<vmem>>, vector<1x4xf32>
    %400 = vector.shape_cast %399 : vector<1x4xf32> to vector<1x1x4xf32>
    %401 = vector.broadcast %400 : vector<1x1x4xf32> to vector<16x16x4xf32>
    %402 = arith.mulf %398, %401 : vector<16x16x4xf32>
    %403 = arith.addf %397, %402 : vector<16x16x4xf32>
    %c15_322 = arith.constant 15 : index
    %c9_323 = arith.constant 9 : index
    %c0_324 = arith.constant 0 : index
    %404 = vector.load %arg10[%c15_322, %c9_323, %c0_324] : memref<34x34x4xf32, #tpu.memory_space<vmem>>, vector<16x16x4xf32>
    %c38 = arith.constant 38 : index
    %c0_325 = arith.constant 0 : index
    %405 = vector.load %arg4[%c38, %c0_325] : memref<49x4xf32, #tpu.memory_space<vmem>>, vector<1x4xf32>
    %406 = vector.shape_cast %405 : vector<1x4xf32> to vector<1x1x4xf32>
    %407 = vector.broadcast %406 : vector<1x1x4xf32> to vector<16x16x4xf32>
    %408 = arith.mulf %404, %407 : vector<16x16x4xf32>
    %409 = arith.addf %403, %408 : vector<16x16x4xf32>
    %c15_326 = arith.constant 15 : index
    %c12_327 = arith.constant 12 : index
    %c0_328 = arith.constant 0 : index
    %410 = vector.load %arg10[%c15_326, %c12_327, %c0_328] : memref<34x34x4xf32, #tpu.memory_space<vmem>>, vector<16x16x4xf32>
    %c39 = arith.constant 39 : index
    %c0_329 = arith.constant 0 : index
    %411 = vector.load %arg4[%c39, %c0_329] : memref<49x4xf32, #tpu.memory_space<vmem>>, vector<1x4xf32>
    %412 = vector.shape_cast %411 : vector<1x4xf32> to vector<1x1x4xf32>
    %413 = vector.broadcast %412 : vector<1x1x4xf32> to vector<16x16x4xf32>
    %414 = arith.mulf %410, %413 : vector<16x16x4xf32>
    %415 = arith.addf %409, %414 : vector<16x16x4xf32>
    %c15_330 = arith.constant 15 : index
    %c15_331 = arith.constant 15 : index
    %c0_332 = arith.constant 0 : index
    %416 = vector.load %arg10[%c15_330, %c15_331, %c0_332] : memref<34x34x4xf32, #tpu.memory_space<vmem>>, vector<16x16x4xf32>
    %c40 = arith.constant 40 : index
    %c0_333 = arith.constant 0 : index
    %417 = vector.load %arg4[%c40, %c0_333] : memref<49x4xf32, #tpu.memory_space<vmem>>, vector<1x4xf32>
    %418 = vector.shape_cast %417 : vector<1x4xf32> to vector<1x1x4xf32>
    %419 = vector.broadcast %418 : vector<1x1x4xf32> to vector<16x16x4xf32>
    %420 = arith.mulf %416, %419 : vector<16x16x4xf32>
    %421 = arith.addf %415, %420 : vector<16x16x4xf32>
    %c15_334 = arith.constant 15 : index
    %c18_335 = arith.constant 18 : index
    %c0_336 = arith.constant 0 : index
    %422 = vector.load %arg10[%c15_334, %c18_335, %c0_336] : memref<34x34x4xf32, #tpu.memory_space<vmem>>, vector<16x16x4xf32>
    %c41 = arith.constant 41 : index
    %c0_337 = arith.constant 0 : index
    %423 = vector.load %arg4[%c41, %c0_337] : memref<49x4xf32, #tpu.memory_space<vmem>>, vector<1x4xf32>
    %424 = vector.shape_cast %423 : vector<1x4xf32> to vector<1x1x4xf32>
    %425 = vector.broadcast %424 : vector<1x1x4xf32> to vector<16x16x4xf32>
    %426 = arith.mulf %422, %425 : vector<16x16x4xf32>
    %427 = arith.addf %421, %426 : vector<16x16x4xf32>
    %c18_338 = arith.constant 18 : index
    %c0_339 = arith.constant 0 : index
    %c0_340 = arith.constant 0 : index
    %428 = vector.load %arg10[%c18_338, %c0_339, %c0_340] : memref<34x34x4xf32, #tpu.memory_space<vmem>>, vector<16x16x4xf32>
    %c42 = arith.constant 42 : index
    %c0_341 = arith.constant 0 : index
    %429 = vector.load %arg4[%c42, %c0_341] : memref<49x4xf32, #tpu.memory_space<vmem>>, vector<1x4xf32>
    %430 = vector.shape_cast %429 : vector<1x4xf32> to vector<1x1x4xf32>
    %431 = vector.broadcast %430 : vector<1x1x4xf32> to vector<16x16x4xf32>
    %432 = arith.mulf %428, %431 : vector<16x16x4xf32>
    %433 = arith.addf %427, %432 : vector<16x16x4xf32>
    %c18_342 = arith.constant 18 : index
    %c3_343 = arith.constant 3 : index
    %c0_344 = arith.constant 0 : index
    %434 = vector.load %arg10[%c18_342, %c3_343, %c0_344] : memref<34x34x4xf32, #tpu.memory_space<vmem>>, vector<16x16x4xf32>
    %c43 = arith.constant 43 : index
    %c0_345 = arith.constant 0 : index
    %435 = vector.load %arg4[%c43, %c0_345] : memref<49x4xf32, #tpu.memory_space<vmem>>, vector<1x4xf32>
    %436 = vector.shape_cast %435 : vector<1x4xf32> to vector<1x1x4xf32>
    %437 = vector.broadcast %436 : vector<1x1x4xf32> to vector<16x16x4xf32>
    %438 = arith.mulf %434, %437 : vector<16x16x4xf32>
    %439 = arith.addf %433, %438 : vector<16x16x4xf32>
    %c18_346 = arith.constant 18 : index
    %c6_347 = arith.constant 6 : index
    %c0_348 = arith.constant 0 : index
    %440 = vector.load %arg10[%c18_346, %c6_347, %c0_348] : memref<34x34x4xf32, #tpu.memory_space<vmem>>, vector<16x16x4xf32>
    %c44 = arith.constant 44 : index
    %c0_349 = arith.constant 0 : index
    %441 = vector.load %arg4[%c44, %c0_349] : memref<49x4xf32, #tpu.memory_space<vmem>>, vector<1x4xf32>
    %442 = vector.shape_cast %441 : vector<1x4xf32> to vector<1x1x4xf32>
    %443 = vector.broadcast %442 : vector<1x1x4xf32> to vector<16x16x4xf32>
    %444 = arith.mulf %440, %443 : vector<16x16x4xf32>
    %445 = arith.addf %439, %444 : vector<16x16x4xf32>
    %c18_350 = arith.constant 18 : index
    %c9_351 = arith.constant 9 : index
    %c0_352 = arith.constant 0 : index
    %446 = vector.load %arg10[%c18_350, %c9_351, %c0_352] : memref<34x34x4xf32, #tpu.memory_space<vmem>>, vector<16x16x4xf32>
    %c45 = arith.constant 45 : index
    %c0_353 = arith.constant 0 : index
    %447 = vector.load %arg4[%c45, %c0_353] : memref<49x4xf32, #tpu.memory_space<vmem>>, vector<1x4xf32>
    %448 = vector.shape_cast %447 : vector<1x4xf32> to vector<1x1x4xf32>
    %449 = vector.broadcast %448 : vector<1x1x4xf32> to vector<16x16x4xf32>
    %450 = arith.mulf %446, %449 : vector<16x16x4xf32>
    %451 = arith.addf %445, %450 : vector<16x16x4xf32>
    %c18_354 = arith.constant 18 : index
    %c12_355 = arith.constant 12 : index
    %c0_356 = arith.constant 0 : index
    %452 = vector.load %arg10[%c18_354, %c12_355, %c0_356] : memref<34x34x4xf32, #tpu.memory_space<vmem>>, vector<16x16x4xf32>
    %c46 = arith.constant 46 : index
    %c0_357 = arith.constant 0 : index
    %453 = vector.load %arg4[%c46, %c0_357] : memref<49x4xf32, #tpu.memory_space<vmem>>, vector<1x4xf32>
    %454 = vector.shape_cast %453 : vector<1x4xf32> to vector<1x1x4xf32>
    %455 = vector.broadcast %454 : vector<1x1x4xf32> to vector<16x16x4xf32>
    %456 = arith.mulf %452, %455 : vector<16x16x4xf32>
    %457 = arith.addf %451, %456 : vector<16x16x4xf32>
    %c18_358 = arith.constant 18 : index
    %c15_359 = arith.constant 15 : index
    %c0_360 = arith.constant 0 : index
    %458 = vector.load %arg10[%c18_358, %c15_359, %c0_360] : memref<34x34x4xf32, #tpu.memory_space<vmem>>, vector<16x16x4xf32>
    %c47 = arith.constant 47 : index
    %c0_361 = arith.constant 0 : index
    %459 = vector.load %arg4[%c47, %c0_361] : memref<49x4xf32, #tpu.memory_space<vmem>>, vector<1x4xf32>
    %460 = vector.shape_cast %459 : vector<1x4xf32> to vector<1x1x4xf32>
    %461 = vector.broadcast %460 : vector<1x1x4xf32> to vector<16x16x4xf32>
    %462 = arith.mulf %458, %461 : vector<16x16x4xf32>
    %463 = arith.addf %457, %462 : vector<16x16x4xf32>
    %c18_362 = arith.constant 18 : index
    %c18_363 = arith.constant 18 : index
    %c0_364 = arith.constant 0 : index
    %464 = vector.load %arg10[%c18_362, %c18_363, %c0_364] : memref<34x34x4xf32, #tpu.memory_space<vmem>>, vector<16x16x4xf32>
    %c48 = arith.constant 48 : index
    %c0_365 = arith.constant 0 : index
    %465 = vector.load %arg4[%c48, %c0_365] : memref<49x4xf32, #tpu.memory_space<vmem>>, vector<1x4xf32>
    %466 = vector.shape_cast %465 : vector<1x4xf32> to vector<1x1x4xf32>
    %467 = vector.broadcast %466 : vector<1x1x4xf32> to vector<16x16x4xf32>
    %468 = arith.mulf %464, %467 : vector<16x16x4xf32>
    %469 = arith.addf %463, %468 : vector<16x16x4xf32>
    %c0_366 = arith.constant 0 : index
    %c0_367 = arith.constant 0 : index
    %470 = vector.load %arg5[%c0_366, %c0_367] : memref<1x4xf32, #tpu.memory_space<vmem>>, vector<1x4xf32>
    %471 = vector.shape_cast %470 : vector<1x4xf32> to vector<1x1x4xf32>
    %472 = vector.broadcast %471 : vector<1x1x4xf32> to vector<16x16x4xf32>
    %473 = arith.addf %469, %472 : vector<16x16x4xf32>
    %474 = vector.shape_cast %473 : vector<16x16x4xf32> to vector<256x4xf32>
    %c0_368 = arith.constant 0 : index
    %c0_369 = arith.constant 0 : index
    %475 = vector.load %arg6[%c0_368, %c0_369] : memref<4x4xf32, #tpu.memory_space<vmem>>, vector<4x4xf32>
    %cst_370 = arith.constant dense<0.000000e+00> : vector<256x4xf32>
    %476 = tpu.matmul %474, %475, %cst_370 {dimension_numbers = #tpu.dot_dimension_numbers<[1], [0], [0], [1], [0, 0, 1, 1], [], []>} : vector<256x4xf32>, vector<4x4xf32>, vector<256x4xf32> -> vector<256x4xf32>
    %c0_371 = arith.constant 0 : index
    %c0_372 = arith.constant 0 : index
    %477 = vector.load %arg7[%c0_371, %c0_372] : memref<1x4xf32, #tpu.memory_space<vmem>>, vector<1x4xf32>
    %478 = vector.broadcast %477 : vector<1x4xf32> to vector<256x4xf32>
    %479 = arith.addf %476, %478 : vector<256x4xf32>
    %c0_373 = arith.constant 0 : index
    %c0_374 = arith.constant 0 : index
    %c0_375 = arith.constant 0 : index
    %c0_376 = arith.constant 0 : index
    %480 = vector.load %arg1[%c0_373, %c0_374, %c0_375, %c0_376] : memref<1x16x16x4xf32, #tpu.memory_space<vmem>>, vector<1x16x16x4xf32>
    %481 = vector.shape_cast %480 : vector<1x16x16x4xf32> to vector<16x16x4xf32>
    %482 = vector.shape_cast %479 : vector<256x4xf32> to vector<16x16x4xf32>
    %483 = arith.mulf %481, %482 : vector<16x16x4xf32>
    %c0_377 = arith.constant 0 : index
    %c0_378 = arith.constant 0 : index
    %c0_379 = arith.constant 0 : index
    %c0_380 = arith.constant 0 : index
    %484 = vector.load %arg8[%c0_377, %c0_378, %c0_379, %c0_380] : memref<1x16x16x4xf32, #tpu.memory_space<vmem>>, vector<1x16x16x4xf32>
    %485 = vector.shape_cast %484 : vector<1x16x16x4xf32> to vector<16x16x4xf32>
    %486 = vector.shape_cast %483 : vector<16x16x4xf32> to vector<1x16x16x4xf32>
    tpu.vector_store %arg8[%c0_377, %c0_378, %c0_379, %c0_380], %486 {strides = array<i32>} : memref<1x16x16x4xf32, #tpu.memory_space<vmem>>, vector<1x16x16x4xf32>,
    return
  }
  func.func @transform_0(%arg0: i32) -> (i32, i32, i32, i32) {
    %c0_i32 = arith.constant 0 : i32
    %c0_i32_0 = arith.constant 0 : i32
    %c0_i32_1 = arith.constant 0 : i32
    %c0_i32_2 = arith.constant 0 : i32
    return %arg0, %c0_i32, %c0_i32_0, %c0_i32_1 : i32, i32, i32, i32
  }
  func.func @transform_1(%arg0: i32) -> (i32, i32) {
    %c0_i32 = arith.constant 0 : i32
    %c0_i32_0 = arith.constant 0 : i32
    %c0_i32_1 = arith.constant 0 : i32
    return %c0_i32, %c0_i32_0 : i32, i32
  }
  func.func @transform_2(%arg0: i32) -> (i32, i32) {
    %c0_i32 = arith.constant 0 : i32
    %c0_i32_0 = arith.constant 0 : i32
    %c0_i32_1 = arith.constant 0 : i32
    return %c0_i32, %c0_i32_0 : i32, i32
  }
  func.func @transform_3(%arg0: i32) -> (i32, i32) {
    %c0_i32 = arith.constant 0 : i32
    %c0_i32_0 = arith.constant 0 : i32
    %c0_i32_1 = arith.constant 0 : i32
    return %c0_i32, %c0_i32_0 : i32, i32
  }
  func.func @transform_4(%arg0: i32) -> (i32, i32) {
    %c0_i32 = arith.constant 0 : i32
    %c0_i32_0 = arith.constant 0 : i32
    %c0_i32_1 = arith.constant 0 : i32
    return %c0_i32, %c0_i32_0 : i32, i32
  }
  func.func @transform_5(%arg0: i32) -> (i32, i32) {
    %c0_i32 = arith.constant 0 : i32
    %c0_i32_0 = arith.constant 0 : i32
    %c0_i32_1 = arith.constant 0 : i32
    return %c0_i32, %c0_i32_0 : i32, i32
  }
  func.func @transform_6(%arg0: i32) -> (i32, i32) {
    %c0_i32 = arith.constant 0 : i32
    %c0_i32_0 = arith.constant 0 : i32
    %c0_i32_1 = arith.constant 0 : i32
    return %c0_i32, %c0_i32_0 : i32, i32
  }
  func.func @transform_7(%arg0: i32) -> (i32, i32, i32, i32) {
    %c0_i32 = arith.constant 0 : i32
    %c0_i32_0 = arith.constant 0 : i32
    %c0_i32_1 = arith.constant 0 : i32
    %c0_i32_2 = arith.constant 0 : i32
    return %arg0, %c0_i32, %c0_i32_0, %c0_i32_1 : i32, i32, i32, i32
  }
}

</mosaic_0001>

<llo_original>
// kernel: lka_forward.1
$region0: #{lka_forward.1}
  #allocation0 [shape = 'u32[]', space=smem, size = 0x4, offset = 0x4, fixed_abs, tag = 'smem constant byte address 0x4 - core index']
  #allocation1 [shape = 'u32[144,128]{1,0:T(1,128)}', space=vmem, size = 0x12000, scoped, tag = 'internal scratch']
  #allocation2 [shape = 'f32[20,20,4]{2,1,0:T(8,128)}', space=vmem, size = 0x3c000, scoped, tag = 'scratch operand']
  #allocation3 [shape = 'f32[34,34,4]{2,1,0:T(8,128)}', space=vmem, size = 0xaa000, scoped, tag = 'scratch operand']
  %s0 = inlined_call_operand.vmem [shape: f32[2,16,16,4], index: 0, kind: input, shape index: {}]
  %s1 = inlined_call_operand.vmem [shape: f32[25,4], index: 1, kind: input, shape index: {}]
  %s2 = inlined_call_operand.vmem [shape: f32[1,4], index: 2, kind: input, shape index: {}]
  %s3 = inlined_call_operand.vmem [shape: f32[49,4], index: 3, kind: input, shape index: {}]
  %s4 = inlined_call_operand.vmem [shape: f32[1,4], index: 4, kind: input, shape index: {}]
  %s5 = inlined_call_operand.vmem [shape: f32[4,4], index: 5, kind: input, shape index: {}]
  %s6 = inlined_call_operand.vmem [shape: f32[1,4], index: 6, kind: input, shape index: {}]
  %s7 = inlined_call_operand.vmem [shape: f32[2,16,16,4], index: 7, kind: output, shape index: {}]
  %s8 = sld [smem:[#allocation0]]
  $region61: #{lka_forward.1} parent=0
    _
  %s10 = ssub.s32 1, %s8
  %s11 = scalar_select 0, %s10, %s8
  loop: start=0, step=1, limit=4
  $region2: #{lka_forward.1} parent=0 // loop_pre_header
    _
  $region3: #{lka_forward.1} parent=0 // loop_header
    %s13 = sphi 0, %s17
    %p14 = scmp.ge.s32.totalorder %s13, 4
    %s23 = sphi 0, %s25
    %s26 = sphi 0, %s23
    %s27 = sphi 0, %s26
    %s43 = sphi 0, %s27
    %s47 = sphi 0, %s47
    %s49 = sphi 0, %s47
    %s50 = sphi 0, %s49
    %s64 = sphi 0, %s50
    %s68 = sphi 0, %s68
    %s70 = sphi 0, %s68
    %s71 = sphi 0, %s70
    %s85 = sphi 0, %s71
    %s89 = sphi 0, %s89
    %s91 = sphi 0, %s89
    %s92 = sphi 0, %s91
    %s106 = sphi 0, %s92
    %s110 = sphi 0, %s110
    %s112 = sphi 0, %s110
    %s113 = sphi 0, %s112
    %s127 = sphi 0, %s113
    %s131 = sphi 0, %s131
    %s133 = sphi 0, %s131
    %s134 = sphi 0, %s133
    %s148 = sphi 0, %s134
    %s152 = sphi 0, %s152
    %s154 = sphi 0, %s152
    %s155 = sphi 0, %s154
    %s169 = sphi 0, %s155
    %s175 = sphi 0, %s177
    %s178 = sphi 0, %s175
    %s179 = sphi 0, %s178
    %s195 = sphi 0, %s179
  $region4: #{lka_forward.1} parent=0 // loop_header_branch
    %16 = sbr.rel (%p14) target = $region8
  $region5: #{lka_forward.1} parent=0 // loop_body
    %s18 = ssub.s32 %s13, 1
    %s19 = ssub.s32 %s13, 2
    %s20 = sadd.s32 %s13, 1
    %s21 = ssub.s32 %s13, %s20
    %p22 = scmp.eq.s32.totalorder %s21, 0
    %s24 = sadd.s32 %s23, 1
    %s25 = scalar_select %p22, %s23, %s24
    %p28 = pneg %p22
    %p29 = scmp.eq.s32.totalorder %s13, 1
    %p30 = por %p28, %p29
    %p31 = scmp.ne.s32.totalorder %s23, %s26
    %p32 = scmp.eq.s32.totalorder %s13, 0
    %p33 = por %p31, %p32
    %p34 = scmp.ne.s32.totalorder %s23, %s26
    %p35 = scmp.eq.s32.totalorder %s18, 1
    %p36 = por %p34, %p35
    %p37 = scmp.ne.s32.totalorder %s26, %s27
    %p38 = scmp.eq.s32.totalorder %s18, 0
    %p39 = por %p37, %p38
    %p40 = scmp.ne.s32.totalorder %s26, %s27
    %p41 = scmp.eq.s32.totalorder %s19, 1
    %p42 = por %p40, %p41
    %p44 = scmp.ne.s32.totalorder %s27, %s43
    %p45 = scmp.eq.s32.totalorder %s19, 0
    %p46 = por %p44, %p45
    %s48 = sadd.s32 %s47, 1
    %p51 = scmp.eq.s32.totalorder %s13, 1
    %p52 = scmp.ne.s32.totalorder %s47, %s49
    %p53 = scmp.eq.s32.totalorder %s13, 0
    %p54 = por %p52, %p53
    %p55 = scmp.ne.s32.totalorder %s47, %s49
    %p56 = scmp.eq.s32.totalorder %s18, 1
    %p57 = por %p55, %p56
    %p58 = scmp.ne.s32.totalorder %s49, %s50
    %p59 = scmp.eq.s32.totalorder %s18, 0
    %p60 = por %p58, %p59
    %p61 = scmp.ne.s32.totalorder %s49, %s50
    %p62 = scmp.eq.s32.totalorder %s19, 1
    %p63 = por %p61, %p62
    %p65 = scmp.ne.s32.totalorder %s50, %s64
    %p66 = scmp.eq.s32.totalorder %s19, 0
    %p67 = por %p65, %p66
    %s69 = sadd.s32 %s68, 1
    %p72 = scmp.eq.s32.totalorder %s13, 1
    %p73 = scmp.ne.s32.totalorder %s68, %s70
    %p74 = scmp.eq.s32.totalorder %s13, 0
    %p75 = por %p73, %p74
    %p76 = scmp.ne.s32.totalorder %s68, %s70
    %p77 = scmp.eq.s32.totalorder %s18, 1
    %p78 = por %p76, %p77
    %p79 = scmp.ne.s32.totalorder %s70, %s71
    %p80 = scmp.eq.s32.totalorder %s18, 0
    %p81 = por %p79, %p80
    %p82 = scmp.ne.s32.totalorder %s70, %s71
    %p83 = scmp.eq.s32.totalorder %s19, 1
    %p84 = por %p82, %p83
    %p86 = scmp.ne.s32.totalorder %s71, %s85
    %p87 = scmp.eq.s32.totalorder %s19, 0
    %p88 = por %p86, %p87
    %s90 = sadd.s32 %s89, 1
    %p93 = scmp.eq.s32.totalorder %s13, 1
    %p94 = scmp.ne.s32.totalorder %s89, %s91
    %p95 = scmp.eq.s32.totalorder %s13, 0
    %p96 = por %p94, %p95
    %p97 = scmp.ne.s32.totalorder %s89, %s91
    %p98 = scmp.eq.s32.totalorder %s18, 1
    %p99 = por %p97, %p98
    %p100 = scmp.ne.s32.totalorder %s91, %s92
    %p101 = scmp.eq.s32.totalorder %s18, 0
    %p102 = por %p100, %p101
    %p103 = scmp.ne.s32.totalorder %s91, %s92
    %p104 = scmp.eq.s32.totalorder %s19, 1
    %p105 = por %p103, %p104
    %p107 = scmp.ne.s32.totalorder %s92, %s106
    %p108 = scmp.eq.s32.totalorder %s19, 0
    %p109 = por %p107, %p108
    %s111 = sadd.s32 %s110, 1
    %p114 = scmp.eq.s32.totalorder %s13, 1
    %p115 = scmp.ne.s32.totalorder %s110, %s112
    %p116 = scmp.eq.s32.totalorder %s13, 0
    %p117 = por %p115, %p116
    %p118 = scmp.ne.s32.totalorder %s110, %s112
    %p119 = scmp.eq.s32.totalorder %s18, 1
    %p120 = por %p118, %p119
    %p121 = scmp.ne.s32.totalorder %s112, %s113
    %p122 = scmp.eq.s32.totalorder %s18, 0
    %p123 = por %p121, %p122
    %p124 = scmp.ne.s32.totalorder %s112, %s113
    %p125 = scmp.eq.s32.totalorder %s19, 1
    %p126 = por %p124, %p125
    %p128 = scmp.ne.s32.totalorder %s113, %s127
    %p129 = scmp.eq.s32.totalorder %s19, 0
    %p130 = por %p128, %p129
    %s132 = sadd.s32 %s131, 1
    %p135 = scmp.eq.s32.totalorder %s13, 1
    %p136 = scmp.ne.s32.totalorder %s131, %s133
    %p137 = scmp.eq.s32.totalorder %s13, 0
    %p138 = por %p136, %p137
    %p139 = scmp.ne.s32.totalorder %s131, %s133
    %p140 = scmp.eq.s32.totalorder %s18, 1
    %p141 = por %p139, %p140
    %p142 = scmp.ne.s32.totalorder %s133, %s134
    %p143 = scmp.eq.s32.totalorder %s18, 0
    %p144 = por %p142, %p143
    %p145 = scmp.ne.s32.totalorder %s133, %s134
    %p146 = scmp.eq.s32.totalorder %s19, 1
    %p147 = por %p145, %p146
    %p149 = scmp.ne.s32.totalorder %s134, %s148
    %p150 = scmp.eq.s32.totalorder %s19, 0
    %p151 = por %p149, %p150
    %s153 = sadd.s32 %s152, 1
    %p156 = scmp.eq.s32.totalorder %s13, 1
    %p157 = scmp.ne.s32.totalorder %s152, %s154
    %p158 = scmp.eq.s32.totalorder %s13, 0
    %p159 = por %p157, %p158
    %p160 = scmp.ne.s32.totalorder %s152, %s154
    %p161 = scmp.eq.s32.totalorder %s18, 1
    %p162 = por %p160, %p161
    %p163 = scmp.ne.s32.totalorder %s154, %s155
    %p164 = scmp.eq.s32.totalorder %s18, 0
    %p165 = por %p163, %p164
    %p166 = scmp.ne.s32.totalorder %s154, %s155
    %p167 = scmp.eq.s32.totalorder %s19, 1
    %p168 = por %p166, %p167
    %p170 = scmp.ne.s32.totalorder %s155, %s169
    %p171 = scmp.eq.s32.totalorder %s19, 0
    %p172 = por %p170, %p171
    %s173 = ssub.s32 %s13, %s20
    %p174 = scmp.eq.s32.totalorder %s173, 0
    %s176 = sadd.s32 %s175, 1
    %s177 = scalar_select %p174, %s175, %s176
    %p180 = pneg %p174
    %p181 = scmp.eq.s32.totalorder %s13, 1
    %p182 = por %p180, %p181
    %p183 = scmp.ne.s32.totalorder %s175, %s178
    %p184 = scmp.eq.s32.totalorder %s13, 0
    %p185 = por %p183, %p184
    %p186 = scmp.ne.s32.totalorder %s175, %s178
    %p187 = scmp.eq.s32.totalorder %s18, 1
    %p188 = por %p186, %p187
    %p189 = scmp.ne.s32.totalorder %s178, %s179
    %p190 = scmp.eq.s32.totalorder %s18, 0
    %p191 = por %p189, %p190
    %p192 = scmp.ne.s32.totalorder %s178, %s179
    %p193 = scmp.eq.s32.totalorder %s19, 1
    %p194 = por %p192, %p193
    %p196 = scmp.ne.s32.totalorder %s179, %s195
    %p197 = scmp.eq.s32.totalorder %s19, 0
    %p198 = por %p196, %p197
    %p199 = scmp.le.s32.totalorder 1, %s13
    %p200 = scmp.lt.s32.totalorder %s13, 3
    %p201 = pnand %p199, %p200
    %p202 = pneg %p201
    // Predicated region
    $region9: #{lka_forward.1} parent=5 // pred_check
      _
    $region10: #{lka_forward.1} parent=5 // pred_check_branch
      %204 = sbr.rel (%p201) target = $region12
    $region11: #{lka_forward.1} parent=5 // pred_region
      %s205 = ssub.s32 %s13, 1
      // Predicated region
      $region13: #{lka_forward.1} parent=11 // pred_check
        %p206 = pneg %p60
      $region14: #{lka_forward.1} parent=11 // pred_check_branch
        %208 = sbr.rel (%p206) target = $region16
      $region15: #{lka_forward.1} parent=11 // pred_region
        _
      $region16: #{lka_forward.1} parent=11 // pred_fallthru
        _
      // Predicated region
      $region17: #{lka_forward.1} parent=11 // pred_check
        %p209 = pneg %p81
      $region18: #{lka_forward.1} parent=11 // pred_check_branch
        %211 = sbr.rel (%p209) target = $region20
      $region19: #{lka_forward.1} parent=11 // pred_region
        _
      $region20: #{lka_forward.1} parent=11 // pred_fallthru
        _
      // Predicated region
      $region21: #{lka_forward.1} parent=11 // pred_check
        %p212 = pneg %p102
      $region22: #{lka_forward.1} parent=11 // pred_check_branch
        %214 = sbr.rel (%p212) target = $region24
      $region23: #{lka_forward.1} parent=11 // pred_region
        _
      $region24: #{lka_forward.1} parent=11 // pred_fallthru
        _
      // Predicated region
      $region25: #{lka_forward.1} parent=11 // pred_check
        %p215 = pneg %p123
      $region26: #{lka_forward.1} parent=11 // pred_check_branch
        %217 = sbr.rel (%p215) target = $region28
      $region27: #{lka_forward.1} parent=11 // pred_region
        _
      $region28: #{lka_forward.1} parent=11 // pred_fallthru
        _
      // Predicated region
      $region29: #{lka_forward.1} parent=11 // pred_check
        %p218 = pneg %p144
      $region30: #{lka_forward.1} parent=11 // pred_check_branch
        %220 = sbr.rel (%p218) target = $region32
      $region31: #{lka_forward.1} parent=11 // pred_region
        _
      $region32: #{lka_forward.1} parent=11 // pred_fallthru
        _
      // Predicated region
      $region33: #{lka_forward.1} parent=11 // pred_check
        %p221 = pneg %p165
      $region34: #{lka_forward.1} parent=11 // pred_check_branch
        %223 = sbr.rel (%p221) target = $region36
      $region35: #{lka_forward.1} parent=11 // pred_region
        _
      $region36: #{lka_forward.1} parent=11 // pred_fallthru
        _
    $region12: #{lka_forward.1} parent=5 // pred_fallthru
      _
    %p224 = scmp.lt.s32.totalorder %s13, 2
    // Predicated region
    $region37: #{lka_forward.1} parent=5 // pred_check
      %p225 = pneg %p224
    $region38: #{lka_forward.1} parent=5 // pred_check_branch
      %227 = sbr.rel (%p225) target = $region40
    $region39: #{lka_forward.1} parent=5 // pred_region
      // Predicated region
      $region41: #{lka_forward.1} parent=39 // pred_check
        %p228 = pneg %p33
      $region42: #{lka_forward.1} parent=39 // pred_check_branch
        %230 = sbr.rel (%p228) target = $region44
      $region43: #{lka_forward.1} parent=39 // pred_region
        %p231 = scmp.lt.s32.totalorder %s13, 1
        %s232 = scalar_select %p231, %s13, 1
        %s233 = smul.addr %s232, 32
        %s234 = smul.addr %s233, 8
        %s235 = scalar_lea.vmem %s0, %s234
      $region44: #{lka_forward.1} parent=39 // pred_fallthru
        _
    $region40: #{lka_forward.1} parent=5 // pred_fallthru
      _
    %p236 = scmp.le.s32.totalorder 1, %s13
    %p237 = scmp.lt.s32.totalorder %s13, 3
    %p238 = pnand %p236, %p237
    %p239 = pneg %p238
    // Predicated region
    $region45: #{lka_forward.1} parent=5 // pred_check
      _
    $region46: #{lka_forward.1} parent=5 // pred_check_branch
      %241 = sbr.rel (%p238) target = $region48
    $region47: #{lka_forward.1} parent=5 // pred_region
      %s242 = ssub.s32 %s13, 1
      %p243 = scmp.lt.s32.totalorder %s18, 1
      %s244 = scalar_select %p243, %s18, 1
      %s245 = smul.addr %s244, 32
      %s246 = smul.addr %s245, 8
      %s247 = scalar_lea.vmem %s0, %s246
      %p248 = pneg %p39
      %p249 = pneg %p36
      %p250 = pneg %p60
      %p251 = pneg %p57
      %p252 = pneg %p81
      %p253 = pneg %p78
      %p254 = pneg %p102
      %p255 = pneg %p99
      %p256 = pneg %p123
      %p257 = pneg %p120
      %p258 = pneg %p144
      %p259 = pneg %p141
      %p260 = pneg %p165
      %p261 = pneg %p162
      %p262 = pneg %p191
      %p263 = pneg %p188
      %p264 = scmp.lt.s32.totalorder %s18, 1
      %s265 = scalar_select %p264, %s18, 1
      %s266 = smul.addr %s265, 32
      %s267 = smul.addr %s266, 8
      %s268 = scalar_lea.vmem %s7, %s267
      %p269 = scmp.lt.s32.totalorder %s18, 1
      %s270 = scalar_select %p269, %s18, 1
      %s271 = smul.addr %s270, 32
      %s272 = smul.addr %s271, 8
      %s273 = scalar_lea.vmem %s0, %s272
      %p274 = scmp.lt.s32.totalorder %s18, 1
      %s275 = scalar_select %p274, %s18, 1
      %s276 = smul.addr %s275, 32
      %s277 = smul.addr %s276, 8
      %s278 = scalar_lea.vmem %s7, %s277
      %vm279 = vcmask 31744
      %280 = vst.msk [vmem:[#allocation2] sm:$0xff] %vm279, 0.0
      %281 = vst.msk [vmem:[#allocation2 + $0x8] sm:$0xff] %vm279, 0.0
      %vm282 = vcmask 27648
      %283 = vst.msk [vmem:[#allocation2 + $0x10] sm:$0xf] %vm282, 0.0
      %284 = vst.msk [vmem:[#allocation2 + $0x18] sm:$0xff] %vm279, 0.0
      %285 = vst.msk [vmem:[#allocation2 + $0x20] sm:$0xff] %vm279, 0.0
      %286 = vst.msk [vmem:[#allocation2 + $0x28] sm:$0xf] %vm282, 0.0
      %s287 = scalar_lea.vmem [#allocation2], 432
      %288 = vst.msk [vmem:[%s287] sm:$0xff] %vm279, 0.0
      %289 = vst.msk [vmem:[%s287 + $0x8] sm:$0xff] %vm279, 0.0
      %290 = vst.msk [vmem:[%s287 + $0x10] sm:$0xf] %vm282, 0.0
      %291 = vst.msk [vmem:[%s287 + $0x18] sm:$0xff] %vm279, 0.0
      %292 = vst.msk [vmem:[%s287 + $0x20] sm:$0xff] %vm279, 0.0
      %293 = vst.msk [vmem:[%s287 + $0x28] sm:$0xf] %vm282, 0.0
      %s294 = scalar_lea.vmem [#allocation2], 48
      %vm295 = vcmask 25600
      %296 = vst.msk [vmem:[%s294] sm:$0x3] %vm295, 0.0
      %297 = vst.msk [vmem:[%s294 + $0x18] sm:$0x3] %vm295, 0.0
      %298 = vst.msk [vmem:[%s294 + $0x30] sm:$0x3] %vm295, 0.0
      %299 = vst.msk [vmem:[%s294 + $0x48] sm:$0x3] %vm295, 0.0
      %300 = vst.msk [vmem:[%s294 + $0x60] sm:$0x3] %vm295, 0.0
      %301 = vst.msk [vmem:[%s294 + $0x78] sm:$0x3] %vm295, 0.0
      %302 = vst.msk [vmem:[%s294 + $0x90] sm:$0x3] %vm295, 0.0
      %303 = vst.msk [vmem:[%s294 + $0xa8] sm:$0x3] %vm295, 0.0
      %304 = vst.msk [vmem:[%s294 + $0xc0] sm:$0x3] %vm295, 0.0
      %305 = vst.msk [vmem:[%s294 + $0xd8] sm:$0x3] %vm295, 0.0
      %306 = vst.msk [vmem:[%s294 + $0xf0] sm:$0x3] %vm295, 0.0
      %307 = vst.msk [vmem:[%s294 + $0x108] sm:$0x3] %vm295, 0.0
      %308 = vst.msk [vmem:[%s294 + $0x120] sm:$0x3] %vm295, 0.0
      %309 = vst.msk [vmem:[%s294 + $0x138] sm:$0x3] %vm295, 0.0
      %310 = vst.msk [vmem:[%s294 + $0x150] sm:$0x3] %vm295, 0.0
      %311 = vst.msk [vmem:[%s294 + $0x168] sm:$0x3] %vm295, 0.0
      %312 = vst.msk [vmem:[%s294 + $0x12] sm:$0x3] %vm295, 0.0
      %313 = vst.msk [vmem:[%s294 + $0x2a] sm:$0x3] %vm295, 0.0
      %314 = vst.msk [vmem:[%s294 + $0x42] sm:$0x3] %vm295, 0.0
      %315 = vst.msk [vmem:[%s294 + $0x5a] sm:$0x3] %vm295, 0.0
      %316 = vst.msk [vmem:[%s294 + $0x72] sm:$0x3] %vm295, 0.0
      %317 = vst.msk [vmem:[%s294 + $0x8a] sm:$0x3] %vm295, 0.0
      %318 = vst.msk [vmem:[%s294 + $0xa2] sm:$0x3] %vm295, 0.0
      %319 = vst.msk [vmem:[%s294 + $0xba] sm:$0x3] %vm295, 0.0
      %320 = vst.msk [vmem:[%s294 + $0xd2] sm:$0x3] %vm295, 0.0
      %321 = vst.msk [vmem:[%s294 + $0xea] sm:$0x3] %vm295, 0.0
      %322 = vst.msk [vmem:[%s294 + $0x102] sm:$0x3] %vm295, 0.0
      %323 = vst.msk [vmem:[%s294 + $0x11a] sm:$0x3] %vm295, 0.0
      %324 = vst.msk [vmem:[%s294 + $0x132] sm:$0x3] %vm295, 0.0
      %325 = vst.msk [vmem:[%s294 + $0x14a] sm:$0x3] %vm295, 0.0
      %326 = vst.msk [vmem:[%s294 + $0x162] sm:$0x3] %vm295, 0.0
      %327 = vst.msk [vmem:[%s294 + $0x17a] sm:$0x3] %vm295, 0.0
      %v328 = vld [vmem:[%s273] sm:$0xff]
      %v329 = vld [vmem:[%s273 + $0x8] sm:$0xff]
      %v330 = vld [vmem:[%s273 + $0x10] sm:$0xff]
      %v331 = vld [vmem:[%s273 + $0x18] sm:$0xff]
      %v332 = vld [vmem:[%s273 + $0x20] sm:$0xff]
      %v333 = vld [vmem:[%s273 + $0x28] sm:$0xff]
      %v334 = vld [vmem:[%s273 + $0x30] sm:$0xff]
      %v335 = vld [vmem:[%s273 + $0x38] sm:$0xff]
      %v336 = vld [vmem:[%s273 + $0x40] sm:$0xff]
      %v337 = vld [vmem:[%s273 + $0x48] sm:$0xff]
      %v338 = vld [vmem:[%s273 + $0x50] sm:$0xff]
      %v339 = vld [vmem:[%s273 + $0x58] sm:$0xff]
      %v340 = vld [vmem:[%s273 + $0x60] sm:$0xff]
      %v341 = vld [vmem:[%s273 + $0x68] sm:$0xff]
      %v342 = vld [vmem:[%s273 + $0x70] sm:$0xff]
      %v343 = vld [vmem:[%s273 + $0x78] sm:$0xff]
      %v344 = vld [vmem:[%s273 + $0x80] sm:$0xff]
      %v345 = vld [vmem:[%s273 + $0x88] sm:$0xff]
      %v346 = vld [vmem:[%s273 + $0x90] sm:$0xff]
      %v347 = vld [vmem:[%s273 + $0x98] sm:$0xff]
      %v348 = vld [vmem:[%s273 + $0xa0] sm:$0xff]
      %v349 = vld [vmem:[%s273 + $0xa8] sm:$0xff]
      %v350 = vld [vmem:[%s273 + $0xb0] sm:$0xff]
      %v351 = vld [vmem:[%s273 + $0xb8] sm:$0xff]
      %v352 = vld [vmem:[%s273 + $0xc0] sm:$0xff]
      %v353 = vld [vmem:[%s273 + $0xc8] sm:$0xff]
      %v354 = vld [vmem:[%s273 + $0xd0] sm:$0xff]
      %v355 = vld [vmem:[%s273 + $0xd8] sm:$0xff]
      %v356 = vld [vmem:[%s273 + $0xe0] sm:$0xff]
      %v357 = vld [vmem:[%s273 + $0xe8] sm:$0xff]
      %v358 = vld [vmem:[%s273 + $0xf0] sm:$0xff]
      %v359 = vld [vmem:[%s273 + $0xf8] sm:$0xff]
      %360 = vst.msk [vmem:[%s294 + $0x2] sm:$0xff] %vm279, %v328
      %361 = vst.msk [vmem:[%s294 + $0xa] sm:$0xff] %vm279, %v329
      %362 = vst.msk [vmem:[%s294 + $0x1a] sm:$0xff] %vm279, %v330
      %363 = vst.msk [vmem:[%s294 + $0x22] sm:$0xff] %vm279, %v331
      %364 = vst.msk [vmem:[%s294 + $0x32] sm:$0xff] %vm279, %v332
      %365 = vst.msk [vmem:[%s294 + $0x3a] sm:$0xff] %vm279, %v333
      %366 = vst.msk [vmem:[%s294 + $0x4a] sm:$0xff] %vm279, %v334
      %367 = vst.msk [vmem:[%s294 + $0x52] sm:$0xff] %vm279, %v335
      %368 = vst.msk [vmem:[%s294 + $0x62] sm:$0xff] %vm279, %v336
      %369 = vst.msk [vmem:[%s294 + $0x6a] sm:$0xff] %vm279, %v337
      %370 = vst.msk [vmem:[%s294 + $0x7a] sm:$0xff] %vm279, %v338
      %371 = vst.msk [vmem:[%s294 + $0x82] sm:$0xff] %vm279, %v339
      %372 = vst.msk [vmem:[%s294 + $0x92] sm:$0xff] %vm279, %v340
      %373 = vst.msk [vmem:[%s294 + $0x9a] sm:$0xff] %vm279, %v341
      %374 = vst.msk [vmem:[%s294 + $0xaa] sm:$0xff] %vm279, %v342
      %375 = vst.msk [vmem:[%s294 + $0xb2] sm:$0xff] %vm279, %v343
      %376 = vst.msk [vmem:[%s294 + $0xc2] sm:$0xff] %vm279, %v344
      %377 = vst.msk [vmem:[%s294 + $0xca] sm:$0xff] %vm279, %v345
      %378 = vst.msk [vmem:[%s294 + $0xda] sm:$0xff] %vm279, %v346
      %379 = vst.msk [vmem:[%s294 + $0xe2] sm:$0xff] %vm279, %v347
      %380 = vst.msk [vmem:[%s294 + $0xf2] sm:$0xff] %vm279, %v348
      %381 = vst.msk [vmem:[%s294 + $0xfa] sm:$0xff] %vm279, %v349
      %382 = vst.msk [vmem:[%s294 + $0x10a] sm:$0xff] %vm279, %v350
      %383 = vst.msk [vmem:[%s294 + $0x112] sm:$0xff] %vm279, %v351
      %384 = vst.msk [vmem:[%s294 + $0x122] sm:$0xff] %vm279, %v352
      %385 = vst.msk [vmem:[%s294 + $0x12a] sm:$0xff] %vm279, %v353
      %386 = vst.msk [vmem:[%s294 + $0x13a] sm:$0xff] %vm279, %v354
      %387 = vst.msk [vmem:[%s294 + $0x142] sm:$0xff] %vm279, %v355
      %388 = vst.msk [vmem:[%s294 + $0x152] sm:$0xff] %vm279, %v356
      %389 = vst.msk [vmem:[%s294 + $0x15a] sm:$0xff] %vm279, %v357
      %390 = vst.msk [vmem:[%s294 + $0x16a] sm:$0xff] %vm279, %v358
      %391 = vst.msk [vmem:[%s294 + $0x172] sm:$0xff] %vm279, %v359
      %v392 = vld [vmem:[#allocation2] sm:$0xff]
      %v393 = vld [vmem:[#allocation2 + $0x8] sm:$0xff]
      %v394 = vld [vmem:[#allocation2 + $0x18] sm:$0xff]
      %v395 = vld [vmem:[#allocation2 + $0x20] sm:$0xff]
      %v396 = vld [vmem:[#allocation2 + $0x30] sm:$0xff]
      %v397 = vld [vmem:[#allocation2 + $0x38] sm:$0xff]
      %v398 = vld [vmem:[#allocation2 + $0x48] sm:$0xff]
      %v399 = vld [vmem:[#allocation2 + $0x50] sm:$0xff]
      %v400 = vld [vmem:[#allocation2 + $0x60] sm:$0xff]
      %v401 = vld [vmem:[#allocation2 + $0x68] sm:$0xff]
      %v402 = vld [vmem:[#allocation2 + $0x78] sm:$0xff]
      %v403 = vld [vmem:[#allocation2 + $0x80] sm:$0xff]
      %v404 = vld [vmem:[#allocation2 + $0x90] sm:$0xff]
      %v405 = vld [vmem:[#allocation2 + $0x98] sm:$0xff]
      %v406 = vld [vmem:[#allocation2 + $0xa8] sm:$0xff]
      %v407 = vld [vmem:[#allocation2 + $0xb0] sm:$0xff]
      %v408 = vld [vmem:[#allocation2 + $0xc0] sm:$0xff]
      %v409 = vld [vmem:[#allocation2 + $0xc8] sm:$0xff]
      %v410 = vld [vmem:[#allocation2 + $0xd8] sm:$0xff]
      %v411 = vld [vmem:[#allocation2 + $0xe0] sm:$0xff]
      %v412 = vld [vmem:[#allocation2 + $0xf0] sm:$0xff]
      %v413 = vld [vmem:[#allocation2 + $0xf8] sm:$0xff]
      %v414 = vld [vmem:[#allocation2 + $0x108] sm:$0xff]
      %v415 = vld [vmem:[#allocation2 + $0x110] sm:$0xff]
      %v416 = vld [vmem:[#allocation2 + $0x120] sm:$0xff]
      %v417 = vld [vmem:[#allocation2 + $0x128] sm:$0xff]
      %v418 = vld [vmem:[#allocation2 + $0x138] sm:$0xff]
      %v419 = vld [vmem:[#allocation2 + $0x140] sm:$0xff]
      %v420 = vld [vmem:[#allocation2 + $0x150] sm:$0xff]
      %v421 = vld [vmem:[#allocation2 + $0x158] sm:$0xff]
      %v422 = vld [vmem:[#allocation2 + $0x168] sm:$0xff]
      %v423 = vld [vmem:[#allocation2 + $0x170] sm:$0xff]
      %v424 = vld [vmem:[%s1] sm:$0x1]
      %v425 = vlaneseq
      %v426 = vshrl.u32 %v425, 7
      %v427 = vsub.s32 0, %v426
      %v428 = vrot.slane %v424, %v427
      %v429 = vmul.f32 %v392, %v428
      %v430 = vmul.f32 %v393, %v428
      %v431 = vmul.f32 %v394, %v428
      %v432 = vmul.f32 %v395, %v428
      %v433 = vmul.f32 %v396, %v428
      %v434 = vmul.f32 %v397, %v428
      %v435 = vmul.f32 %v398, %v428
      %v436 = vmul.f32 %v399, %v428
      %v437 = vmul.f32 %v400, %v428
      %v438 = vmul.f32 %v401, %v428
      %v439 = vmul.f32 %v402, %v428
      %v440 = vmul.f32 %v403, %v428
      %v441 = vmul.f32 %v404, %v428
      %v442 = vmul.f32 %v405, %v428
      %v443 = vmul.f32 %v406, %v428
      %v444 = vmul.f32 %v407, %v428
      %v445 = vmul.f32 %v408, %v428
      %v446 = vmul.f32 %v409, %v428
      %v447 = vmul.f32 %v410, %v428
      %v448 = vmul.f32 %v411, %v428
      %v449 = vmul.f32 %v412, %v428
      %v450 = vmul.f32 %v413, %v428
      %v451 = vmul.f32 %v414, %v428
      %v452 = vmul.f32 %v415, %v428
      %v453 = vmul.f32 %v416, %v428
      %v454 = vmul.f32 %v417, %v428
      %v455 = vmul.f32 %v418, %v428
      %v456 = vmul.f32 %v419, %v428
      %v457 = vmul.f32 %v420, %v428
      %v458 = vmul.f32 %v421, %v428
      %v459 = vmul.f32 %v422, %v428
      %v460 = vmul.f32 %v423, %v428
      %v461 = vadd.f32 %v429, 0.0
      %v462 = vadd.f32 %v430, 0.0
      %v463 = vadd.f32 %v431, 0.0
      %v464 = vadd.f32 %v432, 0.0
      %v465 = vadd.f32 %v433, 0.0
      %v466 = vadd.f32 %v434, 0.0
      %v467 = vadd.f32 %v435, 0.0
      %v468 = vadd.f32 %v436, 0.0
      %v469 = vadd.f32 %v437, 0.0
      %v470 = vadd.f32 %v438, 0.0
      %v471 = vadd.f32 %v439, 0.0
      %v472 = vadd.f32 %v440, 0.0
      %v473 = vadd.f32 %v441, 0.0
      %v474 = vadd.f32 %v442, 0.0
      %v475 = vadd.f32 %v443, 0.0
      %v476 = vadd.f32 %v444, 0.0
      %v477 = vadd.f32 %v445, 0.0
      %v478 = vadd.f32 %v446, 0.0
      %v479 = vadd.f32 %v447, 0.0
      %v480 = vadd.f32 %v448, 0.0
      %v481 = vadd.f32 %v449, 0.0
      %v482 = vadd.f32 %v450, 0.0
      %v483 = vadd.f32 %v451, 0.0
      %v484 = vadd.f32 %v452, 0.0
      %v485 = vadd.f32 %v453, 0.0
      %v486 = vadd.f32 %v454, 0.0
      %v487 = vadd.f32 %v455, 0.0
      %v488 = vadd.f32 %v456, 0.0
      %v489 = vadd.f32 %v457, 0.0
      %v490 = vadd.f32 %v458, 0.0
      %v491 = vadd.f32 %v459, 0.0
      %v492 = vadd.f32 %v460, 0.0
      %v493 = vld [vmem:[#allocation2 + $0x1] sm:$0xff]
      %v494 = vld [vmem:[#allocation2 + $0x9] sm:$0xff]
      %v495 = vld [vmem:[#allocation2 + $0x19] sm:$0xff]
      %v496 = vld [vmem:[#allocation2 + $0x21] sm:$0xff]
      %v497 = vld [vmem:[#allocation2 + $0x31] sm:$0xff]
      %v498 = vld [vmem:[#allocation2 + $0x39] sm:$0xff]
      %v499 = vld [vmem:[#allocation2 + $0x49] sm:$0xff]
      %v500 = vld [vmem:[#allocation2 + $0x51] sm:$0xff]
      %v501 = vld [vmem:[#allocation2 + $0x61] sm:$0xff]
      %v502 = vld [vmem:[#allocation2 + $0x69] sm:$0xff]
      %v503 = vld [vmem:[#allocation2 + $0x79] sm:$0xff]
      %v504 = vld [vmem:[#allocation2 + $0x81] sm:$0xff]
      %v505 = vld [vmem:[#allocation2 + $0x91] sm:$0xff]
      %v506 = vld [vmem:[#allocation2 + $0x99] sm:$0xff]
      %v507 = vld [vmem:[#allocation2 + $0xa9] sm:$0xff]
      %v508 = vld [vmem:[#allocation2 + $0xb1] sm:$0xff]
      %v509 = vld [vmem:[#allocation2 + $0xc1] sm:$0xff]
      %v510 = vld [vmem:[#allocation2 + $0xc9] sm:$0xff]
      %v511 = vld [vmem:[#allocation2 + $0xd9] sm:$0xff]
      %v512 = vld [vmem:[#allocation2 + $0xe1] sm:$0xff]
      %v513 = vld [vmem:[#allocation2 + $0xf1] sm:$0xff]
      %v514 = vld [vmem:[#allocation2 + $0xf9] sm:$0xff]
      %v515 = vld [vmem:[#allocation2 + $0x109] sm:$0xff]
      %v516 = vld [vmem:[#allocation2 + $0x111] sm:$0xff]
      %v517 = vld [vmem:[#allocation2 + $0x121] sm:$0xff]
      %v518 = vld [vmem:[#allocation2 + $0x129] sm:$0xff]
      %v519 = vld [vmem:[#allocation2 + $0x139] sm:$0xff]
      %v520 = vld [vmem:[#allocation2 + $0x141] sm:$0xff]
      %v521 = vld [vmem:[#allocation2 + $0x151] sm:$0xff]
      %v522 = vld [vmem:[#allocation2 + $0x159] sm:$0xff]
      %v523 = vld [vmem:[#allocation2 + $0x169] sm:$0xff]
      %v524 = vld [vmem:[#allocation2 + $0x171] sm:$0xff]
      %v525 = vld [vmem:[%s1 + $0x1] sm:$0x1]
      %v526 = vlaneseq
      %v527 = vshrl.u32 %v526, 7
      %v528 = vsub.s32 0, %v527
      %v529 = vrot.slane %v525, %v528
      %v530 = vmul.f32 %v493, %v529
      %v531 = vmul.f32 %v494, %v529
      %v532 = vmul.f32 %v495, %v529
      %v533 = vmul.f32 %v496, %v529
      %v534 = vmul.f32 %v497, %v529
      %v535 = vmul.f32 %v498, %v529
      %v536 = vmul.f32 %v499, %v529
      %v537 = vmul.f32 %v500, %v529
      %v538 = vmul.f32 %v501, %v529
      %v539 = vmul.f32 %v502, %v529
      %v540 = vmul.f32 %v503, %v529
      %v541 = vmul.f32 %v504, %v529
      %v542 = vmul.f32 %v505, %v529
      %v543 = vmul.f32 %v506, %v529
      %v544 = vmul.f32 %v507, %v529
      %v545 = vmul.f32 %v508, %v529
      %v546 = vmul.f32 %v509, %v529
      %v547 = vmul.f32 %v510, %v529
      %v548 = vmul.f32 %v511, %v529
      %v549 = vmul.f32 %v512, %v529
      %v550 = vmul.f32 %v513, %v529
      %v551 = vmul.f32 %v514, %v529
      %v552 = vmul.f32 %v515, %v529
      %v553 = vmul.f32 %v516, %v529
      %v554 = vmul.f32 %v517, %v529
      %v555 = vmul.f32 %v518, %v529
      %v556 = vmul.f32 %v519, %v529
      %v557 = vmul.f32 %v520, %v529
      %v558 = vmul.f32 %v521, %v529
      %v559 = vmul.f32 %v522, %v529
      %v560 = vmul.f32 %v523, %v529
      %v561 = vmul.f32 %v524, %v529
      %v562 = vadd.f32 %v461, %v530
      %v563 = vadd.f32 %v462, %v531
      %v564 = vadd.f32 %v463, %v532
      %v565 = vadd.f32 %v464, %v533
      %v566 = vadd.f32 %v465, %v534
      %v567 = vadd.f32 %v466, %v535
      %v568 = vadd.f32 %v467, %v536
      %v569 = vadd.f32 %v468, %v537
      %v570 = vadd.f32 %v469, %v538
      %v571 = vadd.f32 %v470, %v539
      %v572 = vadd.f32 %v471, %v540
      %v573 = vadd.f32 %v472, %v541
      %v574 = vadd.f32 %v473, %v542
      %v575 = vadd.f32 %v474, %v543
      %v576 = vadd.f32 %v475, %v544
      %v577 = vadd.f32 %v476, %v545
      %v578 = vadd.f32 %v477, %v546
      %v579 = vadd.f32 %v478, %v547
      %v580 = vadd.f32 %v479, %v548
      %v581 = vadd.f32 %v480, %v549
      %v582 = vadd.f32 %v481, %v550
      %v583 = vadd.f32 %v482, %v551
      %v584 = vadd.f32 %v483, %v552
      %v585 = vadd.f32 %v484, %v553
      %v586 = vadd.f32 %v485, %v554
      %v587 = vadd.f32 %v486, %v555
      %v588 = vadd.f32 %v487, %v556
      %v589 = vadd.f32 %v488, %v557
      %v590 = vadd.f32 %v489, %v558
      %v591 = vadd.f32 %v490, %v559
      %v592 = vadd.f32 %v491, %v560
      %v593 = vadd.f32 %v492, %v561
      %v594 = vld [vmem:[#allocation2 + $0x2] sm:$0xff]
      %v595 = vld [vmem:[#allocation2 + $0xa] sm:$0xff]
      %v596 = vld [vmem:[#allocation2 + $0x1a] sm:$0xff]
      %v597 = vld [vmem:[#allocation2 + $0x22] sm:$0xff]
      %v598 = vld [vmem:[#allocation2 + $0x32] sm:$0xff]
      %v599 = vld [vmem:[#allocation2 + $0x3a] sm:$0xff]
      %v600 = vld [vmem:[#allocation2 + $0x4a] sm:$0xff]
      %v601 = vld [vmem:[#allocation2 + $0x52] sm:$0xff]
      %v602 = vld [vmem:[#allocation2 + $0x62] sm:$0xff]
      %v603 = vld [vmem:[#allocation2 + $0x6a] sm:$0xff]
      %v604 = vld [vmem:[#allocation2 + $0x7a] sm:$0xff]
      %v605 = vld [vmem:[#allocation2 + $0x82] sm:$0xff]
      %v606 = vld [vmem:[#allocation2 + $0x92] sm:$0xff]
      %v607 = vld [vmem:[#allocation2 + $0x9a] sm:$0xff]
      %v608 = vld [vmem:[#allocation2 + $0xaa] sm:$0xff]
      %v609 = vld [vmem:[#allocation2 + $0xb2] sm:$0xff]
      %v610 = vld [vmem:[#allocation2 + $0xc2] sm:$0xff]
      %v611 = vld [vmem:[#allocation2 + $0xca] sm:$0xff]
      %v612 = vld [vmem:[#allocation2 + $0xda] sm:$0xff]
      %v613 = vld [vmem:[#allocation2 + $0xe2] sm:$0xff]
      %v614 = vld [vmem:[#allocation2 + $0xf2] sm:$0xff]
      %v615 = vld [vmem:[#allocation2 + $0xfa] sm:$0xff]
      %v616 = vld [vmem:[#allocation2 + $0x10a] sm:$0xff]
      %v617 = vld [vmem:[#allocation2 + $0x112] sm:$0xff]
      %v618 = vld [vmem:[#allocation2 + $0x122] sm:$0xff]
      %v619 = vld [vmem:[#allocation2 + $0x12a] sm:$0xff]
      %v620 = vld [vmem:[#allocation2 + $0x13a] sm:$0xff]
      %v621 = vld [vmem:[#allocation2 + $0x142] sm:$0xff]
      %v622 = vld [vmem:[#allocation2 + $0x152] sm:$0xff]
      %v623 = vld [vmem:[#allocation2 + $0x15a] sm:$0xff]
      %v624 = vld [vmem:[#allocation2 + $0x16a] sm:$0xff]
      %v625 = vld [vmem:[#allocation2 + $0x172] sm:$0xff]
      %v626 = vld [vmem:[%s1 + $0x2] sm:$0x1]
      %v627 = vlaneseq
      %v628 = vshrl.u32 %v627, 7
      %v629 = vsub.s32 0, %v628
      %v630 = vrot.slane %v626, %v629
      %v631 = vmul.f32 %v594, %v630
      %v632 = vmul.f32 %v595, %v630
      %v633 = vmul.f32 %v596, %v630
      %v634 = vmul.f32 %v597, %v630
      %v635 = vmul.f32 %v598, %v630
      %v636 = vmul.f32 %v599, %v630
      %v637 = vmul.f32 %v600, %v630
      %v638 = vmul.f32 %v601, %v630
      %v639 = vmul.f32 %v602, %v630
      %v640 = vmul.f32 %v603, %v630
      %v641 = vmul.f32 %v604, %v630
      %v642 = vmul.f32 %v605, %v630
      %v643 = vmul.f32 %v606, %v630
      %v644 = vmul.f32 %v607, %v630
      %v645 = vmul.f32 %v608, %v630
      %v646 = vmul.f32 %v609, %v630
      %v647 = vmul.f32 %v610, %v630
      %v648 = vmul.f32 %v611, %v630
      %v649 = vmul.f32 %v612, %v630
      %v650 = vmul.f32 %v613, %v630
      %v651 = vmul.f32 %v614, %v630
      %v652 = vmul.f32 %v615, %v630
      %v653 = vmul.f32 %v616, %v630
      %v654 = vmul.f32 %v617, %v630
      %v655 = vmul.f32 %v618, %v630
      %v656 = vmul.f32 %v619, %v630
      %v657 = vmul.f32 %v620, %v630
      %v658 = vmul.f32 %v621, %v630
      %v659 = vmul.f32 %v622, %v630
      %v660 = vmul.f32 %v623, %v630
      %v661 = vmul.f32 %v624, %v630
      %v662 = vmul.f32 %v625, %v630
      %v663 = vadd.f32 %v562, %v631
      %v664 = vadd.f32 %v563, %v632
      %v665 = vadd.f32 %v564, %v633
      %v666 = vadd.f32 %v565, %v634
      %v667 = vadd.f32 %v566, %v635
      %v668 = vadd.f32 %v567, %v636
      %v669 = vadd.f32 %v568, %v637
      %v670 = vadd.f32 %v569, %v638
      %v671 = vadd.f32 %v570, %v639
      %v672 = vadd.f32 %v571, %v640
      %v673 = vadd.f32 %v572, %v641
      %v674 = vadd.f32 %v573, %v642
      %v675 = vadd.f32 %v574, %v643
      %v676 = vadd.f32 %v575, %v644
      %v677 = vadd.f32 %v576, %v645
      %v678 = vadd.f32 %v577, %v646
      %v679 = vadd.f32 %v578, %v647
      %v680 = vadd.f32 %v579, %v648
      %v681 = vadd.f32 %v580, %v649
      %v682 = vadd.f32 %v581, %v650
      %v683 = vadd.f32 %v582, %v651
      %v684 = vadd.f32 %v583, %v652
      %v685 = vadd.f32 %v584, %v653
      %v686 = vadd.f32 %v585, %v654
      %v687 = vadd.f32 %v586, %v655
      %v688 = vadd.f32 %v587, %v656
      %v689 = vadd.f32 %v588, %v657
      %v690 = vadd.f32 %v589, %v658
      %v691 = vadd.f32 %v590, %v659
      %v692 = vadd.f32 %v591, %v660
      %v693 = vadd.f32 %v592, %v661
      %v694 = vadd.f32 %v593, %v662
      %v695 = vld [vmem:[#allocation2 + $0x3] sm:$0xff]
      %v696 = vld [vmem:[#allocation2 + $0xb] sm:$0xff]
      %v697 = vld [vmem:[#allocation2 + $0x1b] sm:$0xff]
      %v698 = vld [vmem:[#allocation2 + $0x23] sm:$0xff]
      %v699 = vld [vmem:[#allocation2 + $0x33] sm:$0xff]
      %v700 = vld [vmem:[#allocation2 + $0x3b] sm:$0xff]
      %v701 = vld [vmem:[#allocation2 + $0x4b] sm:$0xff]
      %v702 = vld [vmem:[#allocation2 + $0x53] sm:$0xff]
      %v703 = vld [vmem:[#allocation2 + $0x63] sm:$0xff]
      %v704 = vld [vmem:[#allocation2 + $0x6b] sm:$0xff]
      %v705 = vld [vmem:[#allocation2 + $0x7b] sm:$0xff]
      %v706 = vld [vmem:[#allocation2 + $0x83] sm:$0xff]
      %v707 = vld [vmem:[#allocation2 + $0x93] sm:$0xff]
      %v708 = vld [vmem:[#allocation2 + $0x9b] sm:$0xff]
      %v709 = vld [vmem:[#allocation2 + $0xab] sm:$0xff]
      %v710 = vld [vmem:[#allocation2 + $0xb3] sm:$0xff]
      %v711 = vld [vmem:[#allocation2 + $0xc3] sm:$0xff]
      %v712 = vld [vmem:[#allocation2 + $0xcb] sm:$0xff]
      %v713 = vld [vmem:[#allocation2 + $0xdb] sm:$0xff]
      %v714 = vld [vmem:[#allocation2 + $0xe3] sm:$0xff]
      %v715 = vld [vmem:[#allocation2 + $0xf3] sm:$0xff]
      %v716 = vld [vmem:[#allocation2 + $0xfb] sm:$0xff]
      %v717 = vld [vmem:[#allocation2 + $0x10b] sm:$0xff]
      %v718 = vld [vmem:[#allocation2 + $0x113] sm:$0xff]
      %v719 = vld [vmem:[#allocation2 + $0x123] sm:$0xff]
      %v720 = vld [vmem:[#allocation2 + $0x12b] sm:$0xff]
      %v721 = vld [vmem:[#allocation2 + $0x13b] sm:$0xff]
      %v722 = vld [vmem:[#allocation2 + $0x143] sm:$0xff]
      %v723 = vld [vmem:[#allocation2 + $0x153] sm:$0xff]
      %v724 = vld [vmem:[#allocation2 + $0x15b] sm:$0xff]
      %v725 = vld [vmem:[#allocation2 + $0x16b] sm:$0xff]
      %v726 = vld [vmem:[#allocation2 + $0x173] sm:$0xff]
      %v727 = vld [vmem:[%s1 + $0x3] sm:$0x1]
      %v728 = vlaneseq
      %v729 = vshrl.u32 %v728, 7
      %v730 = vsub.s32 0, %v729
      %v731 = vrot.slane %v727, %v730
      %v732 = vmul.f32 %v695, %v731
      %v733 = vmul.f32 %v696, %v731
      %v734 = vmul.f32 %v697, %v731
      %v735 = vmul.f32 %v698, %v731
      %v736 = vmul.f32 %v699, %v731
      %v737 = vmul.f32 %v700, %v731
      %v738 = vmul.f32 %v701, %v731
      %v739 = vmul.f32 %v702, %v731
      %v740 = vmul.f32 %v703, %v731
      %v741 = vmul.f32 %v704, %v731
      %v742 = vmul.f32 %v705, %v731
      %v743 = vmul.f32 %v706, %v731
      %v744 = vmul.f32 %v707, %v731
      %v745 = vmul.f32 %v708, %v731
      %v746 = vmul.f32 %v709, %v731
      %v747 = vmul.f32 %v710, %v731
      %v748 = vmul.f32 %v711, %v731
      %v749 = vmul.f32 %v712, %v731
      %v750 = vmul.f32 %v713, %v731
      %v751 = vmul.f32 %v714, %v731
      %v752 = vmul.f32 %v715, %v731
      %v753 = vmul.f32 %v716, %v731
      %v754 = vmul.f32 %v717, %v731
      %v755 = vmul.f32 %v718, %v731
      %v756 = vmul.f32 %v719, %v731
      %v757 = vmul.f32 %v720, %v731
      %v758 = vmul.f32 %v721, %v731
      %v759 = vmul.f32 %v722, %v731
      %v760 = vmul.f32 %v723, %v731
      %v761 = vmul.f32 %v724, %v731
      %v762 = vmul.f32 %v725, %v731
      %v763 = vmul.f32 %v726, %v731
      %v764 = vadd.f32 %v663, %v732
      %v765 = vadd.f32 %v664, %v733
      %v766 = vadd.f32 %v665, %v734
      %v767 = vadd.f32 %v666, %v735
      %v768 = vadd.f32 %v667, %v736
      %v769 = vadd.f32 %v668, %v737
      %v770 = vadd.f32 %v669, %v738
      %v771 = vadd.f32 %v670, %v739
      %v772 = vadd.f32 %v671, %v740
      %v773 = vadd.f32 %v672, %v741
      %v774 = vadd.f32 %v673, %v742
      %v775 = vadd.f32 %v674, %v743
      %v776 = vadd.f32 %v675, %v744
      %v777 = vadd.f32 %v676, %v745
      %v778 = vadd.f32 %v677, %v746
      %v779 = vadd.f32 %v678, %v747
      %v780 = vadd.f32 %v679, %v748
      %v781 = vadd.f32 %v680, %v749
      %v782 = vadd.f32 %v681, %v750
      %v783 = vadd.f32 %v682, %v751
      %v784 = vadd.f32 %v683, %v752
      %v785 = vadd.f32 %v684, %v753
      %v786 = vadd.f32 %v685, %v754
      %v787 = vadd.f32 %v686, %v755
      %v788 = vadd.f32 %v687, %v756
      %v789 = vadd.f32 %v688, %v757
      %v790 = vadd.f32 %v689, %v758
      %v791 = vadd.f32 %v690, %v759
      %v792 = vadd.f32 %v691, %v760
      %v793 = vadd.f32 %v692, %v761
      %v794 = vadd.f32 %v693, %v762
      %v795 = vadd.f32 %v694, %v763
      %v796 = vld [vmem:[#allocation2 + $0x4] sm:$0xff]
      %v797 = vld [vmem:[#allocation2 + $0xc] sm:$0xff]
      %v798 = vld [vmem:[#allocation2 + $0x1c] sm:$0xff]
      %v799 = vld [vmem:[#allocation2 + $0x24] sm:$0xff]
      %v800 = vld [vmem:[#allocation2 + $0x34] sm:$0xff]
      %v801 = vld [vmem:[#allocation2 + $0x3c] sm:$0xff]
      %v802 = vld [vmem:[#allocation2 + $0x4c] sm:$0xff]
      %v803 = vld [vmem:[#allocation2 + $0x54] sm:$0xff]
      %v804 = vld [vmem:[#allocation2 + $0x64] sm:$0xff]
      %v805 = vld [vmem:[#allocation2 + $0x6c] sm:$0xff]
      %v806 = vld [vmem:[#allocation2 + $0x7c] sm:$0xff]
      %v807 = vld [vmem:[#allocation2 + $0x84] sm:$0xff]
      %v808 = vld [vmem:[#allocation2 + $0x94] sm:$0xff]
      %v809 = vld [vmem:[#allocation2 + $0x9c] sm:$0xff]
      %v810 = vld [vmem:[#allocation2 + $0xac] sm:$0xff]
      %v811 = vld [vmem:[#allocation2 + $0xb4] sm:$0xff]
      %v812 = vld [vmem:[#allocation2 + $0xc4] sm:$0xff]
      %v813 = vld [vmem:[#allocation2 + $0xcc] sm:$0xff]
      %v814 = vld [vmem:[#allocation2 + $0xdc] sm:$0xff]
      %v815 = vld [vmem:[#allocation2 + $0xe4] sm:$0xff]
      %v816 = vld [vmem:[#allocation2 + $0xf4] sm:$0xff]
      %v817 = vld [vmem:[#allocation2 + $0xfc] sm:$0xff]
      %v818 = vld [vmem:[#allocation2 + $0x10c] sm:$0xff]
      %v819 = vld [vmem:[#allocation2 + $0x114] sm:$0xff]
      %v820 = vld [vmem:[#allocation2 + $0x124] sm:$0xff]
      %v821 = vld [vmem:[#allocation2 + $0x12c] sm:$0xff]
      %v822 = vld [vmem:[#allocation2 + $0x13c] sm:$0xff]
      %v823 = vld [vmem:[#allocation2 + $0x144] sm:$0xff]
      %v824 = vld [vmem:[#allocation2 + $0x154] sm:$0xff]
      %v825 = vld [vmem:[#allocation2 + $0x15c] sm:$0xff]
      %v826 = vld [vmem:[#allocation2 + $0x16c] sm:$0xff]
      %v827 = vld [vmem:[#allocation2 + $0x174] sm:$0xff]
      %v828 = vld [vmem:[%s1 + $0x4] sm:$0x1]
      %v829 = vlaneseq
      %v830 = vshrl.u32 %v829, 7
      %v831 = vsub.s32 0, %v830
      %v832 = vrot.slane %v828, %v831
      %v833 = vmul.f32 %v796, %v832
      %v834 = vmul.f32 %v797, %v832
      %v835 = vmul.f32 %v798, %v832
      %v836 = vmul.f32 %v799, %v832
      %v837 = vmul.f32 %v800, %v832
      %v838 = vmul.f32 %v801, %v832
      %v839 = vmul.f32 %v802, %v832
      %v840 = vmul.f32 %v803, %v832
      %v841 = vmul.f32 %v804, %v832
      %v842 = vmul.f32 %v805, %v832
      %v843 = vmul.f32 %v806, %v832
      %v844 = vmul.f32 %v807, %v832
      %v845 = vmul.f32 %v808, %v832
      %v846 = vmul.f32 %v809, %v832
      %v847 = vmul.f32 %v810, %v832
      %v848 = vmul.f32 %v811, %v832
      %v849 = vmul.f32 %v812, %v832
      %v850 = vmul.f32 %v813, %v832
      %v851 = vmul.f32 %v814, %v832
      %v852 = vmul.f32 %v815, %v832
      %v853 = vmul.f32 %v816, %v832
      %v854 = vmul.f32 %v817, %v832
      %v855 = vmul.f32 %v818, %v832
      %v856 = vmul.f32 %v819, %v832
      %v857 = vmul.f32 %v820, %v832
      %v858 = vmul.f32 %v821, %v832
      %v859 = vmul.f32 %v822, %v832
      %v860 = vmul.f32 %v823, %v832
      %v861 = vmul.f32 %v824, %v832
      %v862 = vmul.f32 %v825, %v832
      %v863 = vmul.f32 %v826, %v832
      %v864 = vmul.f32 %v827, %v832
      %v865 = vadd.f32 %v764, %v833
      %v866 = vadd.f32 %v765, %v834
      %v867 = vadd.f32 %v766, %v835
      %v868 = vadd.f32 %v767, %v836
      %v869 = vadd.f32 %v768, %v837
      %v870 = vadd.f32 %v769, %v838
      %v871 = vadd.f32 %v770, %v839
      %v872 = vadd.f32 %v771, %v840
      %v873 = vadd.f32 %v772, %v841
      %v874 = vadd.f32 %v773, %v842
      %v875 = vadd.f32 %v774, %v843
      %v876 = vadd.f32 %v775, %v844
      %v877 = vadd.f32 %v776, %v845
      %v878 = vadd.f32 %v777, %v846
      %v879 = vadd.f32 %v778, %v847
      %v880 = vadd.f32 %v779, %v848
      %v881 = vadd.f32 %v780, %v849
      %v882 = vadd.f32 %v781, %v850
      %v883 = vadd.f32 %v782, %v851
      %v884 = vadd.f32 %v783, %v852
      %v885 = vadd.f32 %v784, %v853
      %v886 = vadd.f32 %v785, %v854
      %v887 = vadd.f32 %v786, %v855
      %v888 = vadd.f32 %v787, %v856
      %v889 = vadd.f32 %v788, %v857
      %v890 = vadd.f32 %v789, %v858
      %v891 = vadd.f32 %v790, %v859
      %v892 = vadd.f32 %v791, %v860
      %v893 = vadd.f32 %v792, %v861
      %v894 = vadd.f32 %v793, %v862
      %v895 = vadd.f32 %v794, %v863
      %v896 = vadd.f32 %v795, %v864
      %s897 = scalar_lea.vmem [#allocation2], 24
      %v898 = vld [vmem:[%s897] sm:$0xff]
      %v899 = vld [vmem:[%s897 + $0x8] sm:$0xff]
      %v900 = vld [vmem:[%s897 + $0x18] sm:$0xff]
      %v901 = vld [vmem:[%s897 + $0x20] sm:$0xff]
      %v902 = vld [vmem:[%s897 + $0x30] sm:$0xff]
      %v903 = vld [vmem:[%s897 + $0x38] sm:$0xff]
      %v904 = vld [vmem:[%s897 + $0x48] sm:$0xff]
      %v905 = vld [vmem:[%s897 + $0x50] sm:$0xff]
      %v906 = vld [vmem:[%s897 + $0x60] sm:$0xff]
      %v907 = vld [vmem:[%s897 + $0x68] sm:$0xff]
      %v908 = vld [vmem:[%s897 + $0x78] sm:$0xff]
      %v909 = vld [vmem:[%s897 + $0x80] sm:$0xff]
      %v910 = vld [vmem:[%s897 + $0x90] sm:$0xff]
      %v911 = vld [vmem:[%s897 + $0x98] sm:$0xff]
      %v912 = vld [vmem:[%s897 + $0xa8] sm:$0xff]
      %v913 = vld [vmem:[%s897 + $0xb0] sm:$0xff]
      %v914 = vld [vmem:[%s897 + $0xc0] sm:$0xff]
      %v915 = vld [vmem:[%s897 + $0xc8] sm:$0xff]
      %v916 = vld [vmem:[%s897 + $0xd8] sm:$0xff]
      %v917 = vld [vmem:[%s897 + $0xe0] sm:$0xff]
      %v918 = vld [vmem:[%s897 + $0xf0] sm:$0xff]
      %v919 = vld [vmem:[%s897 + $0xf8] sm:$0xff]
      %v920 = vld [vmem:[%s897 + $0x108] sm:$0xff]
      %v921 = vld [vmem:[%s897 + $0x110] sm:$0xff]
      %v922 = vld [vmem:[%s897 + $0x120] sm:$0xff]
      %v923 = vld [vmem:[%s897 + $0x128] sm:$0xff]
      %v924 = vld [vmem:[%s897 + $0x138] sm:$0xff]
      %v925 = vld [vmem:[%s897 + $0x140] sm:$0xff]
      %v926 = vld [vmem:[%s897 + $0x150] sm:$0xff]
      %v927 = vld [vmem:[%s897 + $0x158] sm:$0xff]
      %v928 = vld [vmem:[%s897 + $0x168] sm:$0xff]
      %v929 = vld [vmem:[%s897 + $0x170] sm:$0xff]
      %v930 = vld [vmem:[%s1 + $0x5] sm:$0x1]
      %v931 = vlaneseq
      %v932 = vshrl.u32 %v931, 7
      %v933 = vsub.s32 0, %v932
      %v934 = vrot.slane %v930, %v933
      %v935 = vmul.f32 %v898, %v934
      %v936 = vmul.f32 %v899, %v934
      %v937 = vmul.f32 %v900, %v934
      %v938 = vmul.f32 %v901, %v934
      %v939 = vmul.f32 %v902, %v934
      %v940 = vmul.f32 %v903, %v934
      %v941 = vmul.f32 %v904, %v934
      %v942 = vmul.f32 %v905, %v934
      %v943 = vmul.f32 %v906, %v934
      %v944 = vmul.f32 %v907, %v934
      %v945 = vmul.f32 %v908, %v934
      %v946 = vmul.f32 %v909, %v934
      %v947 = vmul.f32 %v910, %v934
      %v948 = vmul.f32 %v911, %v934
      %v949 = vmul.f32 %v912, %v934
      %v950 = vmul.f32 %v913, %v934
      %v951 = vmul.f32 %v914, %v934
      %v952 = vmul.f32 %v915, %v934
      %v953 = vmul.f32 %v916, %v934
      %v954 = vmul.f32 %v917, %v934
      %v955 = vmul.f32 %v918, %v934
      %v956 = vmul.f32 %v919, %v934
      %v957 = vmul.f32 %v920, %v934
      %v958 = vmul.f32 %v921, %v934
      %v959 = vmul.f32 %v922, %v934
      %v960 = vmul.f32 %v923, %v934
      %v961 = vmul.f32 %v924, %v934
      %v962 = vmul.f32 %v925, %v934
      %v963 = vmul.f32 %v926, %v934
      %v964 = vmul.f32 %v927, %v934
      %v965 = vmul.f32 %v928, %v934
      %v966 = vmul.f32 %v929, %v934
      %v967 = vadd.f32 %v865, %v935
      %v968 = vadd.f32 %v866, %v936
      %v969 = vadd.f32 %v867, %v937
      %v970 = vadd.f32 %v868, %v938
      %v971 = vadd.f32 %v869, %v939
      %v972 = vadd.f32 %v870, %v940
      %v973 = vadd.f32 %v871, %v941
      %v974 = vadd.f32 %v872, %v942
      %v975 = vadd.f32 %v873, %v943
      %v976 = vadd.f32 %v874, %v944
      %v977 = vadd.f32 %v875, %v945
      %v978 = vadd.f32 %v876, %v946
      %v979 = vadd.f32 %v877, %v947
      %v980 = vadd.f32 %v878, %v948
      %v981 = vadd.f32 %v879, %v949
      %v982 = vadd.f32 %v880, %v950
      %v983 = vadd.f32 %v881, %v951
      %v984 = vadd.f32 %v882, %v952
      %v985 = vadd.f32 %v883, %v953
      %v986 = vadd.f32 %v884, %v954
      %v987 = vadd.f32 %v885, %v955
      %v988 = vadd.f32 %v886, %v956
      %v989 = vadd.f32 %v887, %v957
      %v990 = vadd.f32 %v888, %v958
      %v991 = vadd.f32 %v889, %v959
      %v992 = vadd.f32 %v890, %v960
      %v993 = vadd.f32 %v891, %v961
      %v994 = vadd.f32 %v892, %v962
      %v995 = vadd.f32 %v893, %v963
      %v996 = vadd.f32 %v894, %v964
      %v997 = vadd.f32 %v895, %v965
      %v998 = vadd.f32 %v896, %v966
      %v999 = vld [vmem:[%s897 + $0x1] sm:$0xff]
      %v1000 = vld [vmem:[%s897 + $0x9] sm:$0xff]
      %v1001 = vld [vmem:[%s897 + $0x19] sm:$0xff]
      %v1002 = vld [vmem:[%s897 + $0x21] sm:$0xff]
      %v1003 = vld [vmem:[%s897 + $0x31] sm:$0xff]
      %v1004 = vld [vmem:[%s897 + $0x39] sm:$0xff]
      %v1005 = vld [vmem:[%s897 + $0x49] sm:$0xff]
      %v1006 = vld [vmem:[%s897 + $0x51] sm:$0xff]
      %v1007 = vld [vmem:[%s897 + $0x61] sm:$0xff]
      %v1008 = vld [vmem:[%s897 + $0x69] sm:$0xff]
      %v1009 = vld [vmem:[%s897 + $0x79] sm:$0xff]
      %v1010 = vld [vmem:[%s897 + $0x81] sm:$0xff]
      %v1011 = vld [vmem:[%s897 + $0x91] sm:$0xff]
      %v1012 = vld [vmem:[%s897 + $0x99] sm:$0xff]
      %v1013 = vld [vmem:[%s897 + $0xa9] sm:$0xff]
      %v1014 = vld [vmem:[%s897 + $0xb1] sm:$0xff]
      %v1015 = vld [vmem:[%s897 + $0xc1] sm:$0xff]
      %v1016 = vld [vmem:[%s897 + $0xc9] sm:$0xff]
      %v1017 = vld [vmem:[%s897 + $0xd9] sm:$0xff]
      %v1018 = vld [vmem:[%s897 + $0xe1] sm:$0xff]
      %v1019 = vld [vmem:[%s897 + $0xf1] sm:$0xff]
      %v1020 = vld [vmem:[%s897 + $0xf9] sm:$0xff]
      %v1021 = vld [vmem:[%s897 + $0x109] sm:$0xff]
      %v1022 = vld [vmem:[%s897 + $0x111] sm:$0xff]
      %v1023 = vld [vmem:[%s897 + $0x121] sm:$0xff]
      %v1024 = vld [vmem:[%s897 + $0x129] sm:$0xff]
      %v1025 = vld [vmem:[%s897 + $0x139] sm:$0xff]
      %v1026 = vld [vmem:[%s897 + $0x141] sm:$0xff]
      %v1027 = vld [vmem:[%s897 + $0x151] sm:$0xff]
      %v1028 = vld [vmem:[%s897 + $0x159] sm:$0xff]
      %v1029 = vld [vmem:[%s897 + $0x169] sm:$0xff]
      %v1030 = vld [vmem:[%s897 + $0x171] sm:$0xff]
      %v1031 = vld [vmem:[%s1 + $0x6] sm:$0x1]
      %v1032 = vlaneseq
      %v1033 = vshrl.u32 %v1032, 7
      %v1034 = vsub.s32 0, %v1033
      %v1035 = vrot.slane %v1031, %v1034
      %v1036 = vmul.f32 %v999, %v1035
      %v1037 = vmul.f32 %v1000, %v1035
      %v1038 = vmul.f32 %v1001, %v1035
      %v1039 = vmul.f32 %v1002, %v1035
      %v1040 = vmul.f32 %v1003, %v1035
      %v1041 = vmul.f32 %v1004, %v1035
      %v1042 = vmul.f32 %v1005, %v1035
      %v1043 = vmul.f32 %v1006, %v1035
      %v1044 = vmul.f32 %v1007, %v1035
      %v1045 = vmul.f32 %v1008, %v1035
      %v1046 = vmul.f32 %v1009, %v1035
      %v1047 = vmul.f32 %v1010, %v1035
      %v1048 = vmul.f32 %v1011, %v1035
      %v1049 = vmul.f32 %v1012, %v1035
      %v1050 = vmul.f32 %v1013, %v1035
      %v1051 = vmul.f32 %v1014, %v1035
      %v1052 = vmul.f32 %v1015, %v1035
      %v1053 = vmul.f32 %v1016, %v1035
      %v1054 = vmul.f32 %v1017, %v1035
      %v1055 = vmul.f32 %v1018, %v1035
      %v1056 = vmul.f32 %v1019, %v1035
      %v1057 = vmul.f32 %v1020, %v1035
      %v1058 = vmul.f32 %v1021, %v1035
      %v1059 = vmul.f32 %v1022, %v1035
      %v1060 = vmul.f32 %v1023, %v1035
      %v1061 = vmul.f32 %v1024, %v1035
      %v1062 = vmul.f32 %v1025, %v1035
      %v1063 = vmul.f32 %v1026, %v1035
      %v1064 = vmul.f32 %v1027, %v1035
      %v1065 = vmul.f32 %v1028, %v1035
      %v1066 = vmul.f32 %v1029, %v1035
      %v1067 = vmul.f32 %v1030, %v1035
      %v1068 = vadd.f32 %v967, %v1036
      %v1069 = vadd.f32 %v968, %v1037
      %v1070 = vadd.f32 %v969, %v1038
      %v1071 = vadd.f32 %v970, %v1039
      %v1072 = vadd.f32 %v971, %v1040
      %v1073 = vadd.f32 %v972, %v1041
      %v1074 = vadd.f32 %v973, %v1042
      %v1075 = vadd.f32 %v974, %v1043
      %v1076 = vadd.f32 %v975, %v1044
      %v1077 = vadd.f32 %v976, %v1045
      %v1078 = vadd.f32 %v977, %v1046
      %v1079 = vadd.f32 %v978, %v1047
      %v1080 = vadd.f32 %v979, %v1048
      %v1081 = vadd.f32 %v980, %v1049
      %v1082 = vadd.f32 %v981, %v1050
      %v1083 = vadd.f32 %v982, %v1051
      %v1084 = vadd.f32 %v983, %v1052
      %v1085 = vadd.f32 %v984, %v1053
      %v1086 = vadd.f32 %v985, %v1054
      %v1087 = vadd.f32 %v986, %v1055
      %v1088 = vadd.f32 %v987, %v1056
      %v1089 = vadd.f32 %v988, %v1057
      %v1090 = vadd.f32 %v989, %v1058
      %v1091 = vadd.f32 %v990, %v1059
      %v1092 = vadd.f32 %v991, %v1060
      %v1093 = vadd.f32 %v992, %v1061
      %v1094 = vadd.f32 %v993, %v1062
      %v1095 = vadd.f32 %v994, %v1063
      %v1096 = vadd.f32 %v995, %v1064
      %v1097 = vadd.f32 %v996, %v1065
      %v1098 = vadd.f32 %v997, %v1066
      %v1099 = vadd.f32 %v998, %v1067
      %v1100 = vld [vmem:[%s897 + $0x2] sm:$0xff]
      %v1101 = vld [vmem:[%s897 + $0xa] sm:$0xff]
      %v1102 = vld [vmem:[%s897 + $0x1a] sm:$0xff]
      %v1103 = vld [vmem:[%s897 + $0x22] sm:$0xff]
      %v1104 = vld [vmem:[%s897 + $0x32] sm:$0xff]
      %v1105 = vld [vmem:[%s897 + $0x3a] sm:$0xff]
      %v1106 = vld [vmem:[%s897 + $0x4a] sm:$0xff]
      %v1107 = vld [vmem:[%s897 + $0x52] sm:$0xff]
      %v1108 = vld [vmem:[%s897 + $0x62] sm:$0xff]
      %v1109 = vld [vmem:[%s897 + $0x6a] sm:$0xff]
      %v1110 = vld [vmem:[%s897 + $0x7a] sm:$0xff]
      %v1111 = vld [vmem:[%s897 + $0x82] sm:$0xff]
      %v1112 = vld [vmem:[%s897 + $0x92] sm:$0xff]
      %v1113 = vld [vmem:[%s897 + $0x9a] sm:$0xff]
      %v1114 = vld [vmem:[%s897 + $0xaa] sm:$0xff]
      %v1115 = vld [vmem:[%s897 + $0xb2] sm:$0xff]
      %v1116 = vld [vmem:[%s897 + $0xc2] sm:$0xff]
      %v1117 = vld [vmem:[%s897 + $0xca] sm:$0xff]
      %v1118 = vld [vmem:[%s897 + $0xda] sm:$0xff]
      %v1119 = vld [vmem:[%s897 + $0xe2] sm:$0xff]
      %v1120 = vld [vmem:[%s897 + $0xf2] sm:$0xff]
      %v1121 = vld [vmem:[%s897 + $0xfa] sm:$0xff]
      %v1122 = vld [vmem:[%s897 + $0x10a] sm:$0xff]
      %v1123 = vld [vmem:[%s897 + $0x112] sm:$0xff]
      %v1124 = vld [vmem:[%s897 + $0x122] sm:$0xff]
      %v1125 = vld [vmem:[%s897 + $0x12a] sm:$0xff]
      %v1126 = vld [vmem:[%s897 + $0x13a] sm:$0xff]
      %v1127 = vld [vmem:[%s897 + $0x142] sm:$0xff]
      %v1128 = vld [vmem:[%s897 + $0x152] sm:$0xff]
      %v1129 = vld [vmem:[%s897 + $0x15a] sm:$0xff]
      %v1130 = vld [vmem:[%s897 + $0x16a] sm:$0xff]
      %v1131 = vld [vmem:[%s897 + $0x172] sm:$0xff]
      %v1132 = vld [vmem:[%s1 + $0x7] sm:$0x1]
      %v1133 = vlaneseq
      %v1134 = vshrl.u32 %v1133, 7
      %v1135 = vsub.s32 0, %v1134
      %v1136 = vrot.slane %v1132, %v1135
      %v1137 = vmul.f32 %v1100, %v1136
      %v1138 = vmul.f32 %v1101, %v1136
      %v1139 = vmul.f32 %v1102, %v1136
      %v1140 = vmul.f32 %v1103, %v1136
      %v1141 = vmul.f32 %v1104, %v1136
      %v1142 = vmul.f32 %v1105, %v1136
      %v1143 = vmul.f32 %v1106, %v1136
      %v1144 = vmul.f32 %v1107, %v1136
      %v1145 = vmul.f32 %v1108, %v1136
      %v1146 = vmul.f32 %v1109, %v1136
      %v1147 = vmul.f32 %v1110, %v1136
      %v1148 = vmul.f32 %v1111, %v1136
      %v1149 = vmul.f32 %v1112, %v1136
      %v1150 = vmul.f32 %v1113, %v1136
      %v1151 = vmul.f32 %v1114, %v1136
      %v1152 = vmul.f32 %v1115, %v1136
      %v1153 = vmul.f32 %v1116, %v1136
      %v1154 = vmul.f32 %v1117, %v1136
      %v1155 = vmul.f32 %v1118, %v1136
      %v1156 = vmul.f32 %v1119, %v1136
      %v1157 = vmul.f32 %v1120, %v1136
      %v1158 = vmul.f32 %v1121, %v1136
      %v1159 = vmul.f32 %v1122, %v1136
      %v1160 = vmul.f32 %v1123, %v1136
      %v1161 = vmul.f32 %v1124, %v1136
      %v1162 = vmul.f32 %v1125, %v1136
      %v1163 = vmul.f32 %v1126, %v1136
      %v1164 = vmul.f32 %v1127, %v1136
      %v1165 = vmul.f32 %v1128, %v1136
      %v1166 = vmul.f32 %v1129, %v1136
      %v1167 = vmul.f32 %v1130, %v1136
      %v1168 = vmul.f32 %v1131, %v1136
      %v1169 = vadd.f32 %v1068, %v1137
      %v1170 = vadd.f32 %v1069, %v1138
      %v1171 = vadd.f32 %v1070, %v1139
      %v1172 = vadd.f32 %v1071, %v1140
      %v1173 = vadd.f32 %v1072, %v1141
      %v1174 = vadd.f32 %v1073, %v1142
      %v1175 = vadd.f32 %v1074, %v1143
      %v1176 = vadd.f32 %v1075, %v1144
      %v1177 = vadd.f32 %v1076, %v1145
      %v1178 = vadd.f32 %v1077, %v1146
      %v1179 = vadd.f32 %v1078, %v1147
      %v1180 = vadd.f32 %v1079, %v1148
      %v1181 = vadd.f32 %v1080, %v1149
      %v1182 = vadd.f32 %v1081, %v1150
      %v1183 = vadd.f32 %v1082, %v1151
      %v1184 = vadd.f32 %v1083, %v1152
      %v1185 = vadd.f32 %v1084, %v1153
      %v1186 = vadd.f32 %v1085, %v1154
      %v1187 = vadd.f32 %v1086, %v1155
      %v1188 = vadd.f32 %v1087, %v1156
      %v1189 = vadd.f32 %v1088, %v1157
      %v1190 = vadd.f32 %v1089, %v1158
      %v1191 = vadd.f32 %v1090, %v1159
      %v1192 = vadd.f32 %v1091, %v1160
      %v1193 = vadd.f32 %v1092, %v1161
      %v1194 = vadd.f32 %v1093, %v1162
      %v1195 = vadd.f32 %v1094, %v1163
      %v1196 = vadd.f32 %v1095, %v1164
      %v1197 = vadd.f32 %v1096, %v1165
      %v1198 = vadd.f32 %v1097, %v1166
      %v1199 = vadd.f32 %v1098, %v1167
      %v1200 = vadd.f32 %v1099, %v1168
      %v1201 = vld [vmem:[%s897 + $0x3] sm:$0xff]
      %v1202 = vld [vmem:[%s897 + $0xb] sm:$0xff]
      %v1203 = vld [vmem:[%s897 + $0x1b] sm:$0xff]
      %v1204 = vld [vmem:[%s897 + $0x23] sm:$0xff]
      %v1205 = vld [vmem:[%s897 + $0x33] sm:$0xff]
      %v1206 = vld [vmem:[%s897 + $0x3b] sm:$0xff]
      %v1207 = vld [vmem:[%s897 + $0x4b] sm:$0xff]
      %v1208 = vld [vmem:[%s897 + $0x53] sm:$0xff]
      %v1209 = vld [vmem:[%s897 + $0x63] sm:$0xff]
      %v1210 = vld [vmem:[%s897 + $0x6b] sm:$0xff]
      %v1211 = vld [vmem:[%s897 + $0x7b] sm:$0xff]
      %v1212 = vld [vmem:[%s897 + $0x83] sm:$0xff]
      %v1213 = vld [vmem:[%s897 + $0x93] sm:$0xff]
      %v1214 = vld [vmem:[%s897 + $0x9b] sm:$0xff]
      %v1215 = vld [vmem:[%s897 + $0xab] sm:$0xff]
      %v1216 = vld [vmem:[%s897 + $0xb3] sm:$0xff]
      %v1217 = vld [vmem:[%s897 + $0xc3] sm:$0xff]
      %v1218 = vld [vmem:[%s897 + $0xcb] sm:$0xff]
      %v1219 = vld [vmem:[%s897 + $0xdb] sm:$0xff]
      %v1220 = vld [vmem:[%s897 + $0xe3] sm:$0xff]
      %v1221 = vld [vmem:[%s897 + $0xf3] sm:$0xff]
      %v1222 = vld [vmem:[%s897 + $0xfb] sm:$0xff]
      %v1223 = vld [vmem:[%s897 + $0x10b] sm:$0xff]
      %v1224 = vld [vmem:[%s897 + $0x113] sm:$0xff]
      %v1225 = vld [vmem:[%s897 + $0x123] sm:$0xff]
      %v1226 = vld [vmem:[%s897 + $0x12b] sm:$0xff]
      %v1227 = vld [vmem:[%s897 + $0x13b] sm:$0xff]
      %v1228 = vld [vmem:[%s897 + $0x143] sm:$0xff]
      %v1229 = vld [vmem:[%s897 + $0x153] sm:$0xff]
      %v1230 = vld [vmem:[%s897 + $0x15b] sm:$0xff]
      %v1231 = vld [vmem:[%s897 + $0x16b] sm:$0xff]
      %v1232 = vld [vmem:[%s897 + $0x173] sm:$0xff]
      %v1233 = vld [vmem:[%s1 + $0x8] sm:$0x1]
      %v1234 = vlaneseq
      %v1235 = vshrl.u32 %v1234, 7
      %v1236 = vsub.s32 0, %v1235
      %v1237 = vrot.slane %v1233, %v1236
      %v1238 = vmul.f32 %v1201, %v1237
      %v1239 = vmul.f32 %v1202, %v1237
      %v1240 = vmul.f32 %v1203, %v1237
      %v1241 = vmul.f32 %v1204, %v1237
      %v1242 = vmul.f32 %v1205, %v1237
      %v1243 = vmul.f32 %v1206, %v1237
      %v1244 = vmul.f32 %v1207, %v1237
      %v1245 = vmul.f32 %v1208, %v1237
      %v1246 = vmul.f32 %v1209, %v1237
      %v1247 = vmul.f32 %v1210, %v1237
      %v1248 = vmul.f32 %v1211, %v1237
      %v1249 = vmul.f32 %v1212, %v1237
      %v1250 = vmul.f32 %v1213, %v1237
      %v1251 = vmul.f32 %v1214, %v1237
      %v1252 = vmul.f32 %v1215, %v1237
      %v1253 = vmul.f32 %v1216, %v1237
      %v1254 = vmul.f32 %v1217, %v1237
      %v1255 = vmul.f32 %v1218, %v1237
      %v1256 = vmul.f32 %v1219, %v1237
      %v1257 = vmul.f32 %v1220, %v1237
      %v1258 = vmul.f32 %v1221, %v1237
      %v1259 = vmul.f32 %v1222, %v1237
      %v1260 = vmul.f32 %v1223, %v1237
      %v1261 = vmul.f32 %v1224, %v1237
      %v1262 = vmul.f32 %v1225, %v1237
      %v1263 = vmul.f32 %v1226, %v1237
      %v1264 = vmul.f32 %v1227, %v1237
      %v1265 = vmul.f32 %v1228, %v1237
      %v1266 = vmul.f32 %v1229, %v1237
      %v1267 = vmul.f32 %v1230, %v1237
      %v1268 = vmul.f32 %v1231, %v1237
      %v1269 = vmul.f32 %v1232, %v1237
      %v1270 = vadd.f32 %v1169, %v1238
      %v1271 = vadd.f32 %v1170, %v1239
      %v1272 = vadd.f32 %v1171, %v1240
      %v1273 = vadd.f32 %v1172, %v1241
      %v1274 = vadd.f32 %v1173, %v1242
      %v1275 = vadd.f32 %v1174, %v1243
      %v1276 = vadd.f32 %v1175, %v1244
      %v1277 = vadd.f32 %v1176, %v1245
      %v1278 = vadd.f32 %v1177, %v1246
      %v1279 = vadd.f32 %v1178, %v1247
      %v1280 = vadd.f32 %v1179, %v1248
      %v1281 = vadd.f32 %v1180, %v1249
      %v1282 = vadd.f32 %v1181, %v1250
      %v1283 = vadd.f32 %v1182, %v1251
      %v1284 = vadd.f32 %v1183, %v1252
      %v1285 = vadd.f32 %v1184, %v1253
      %v1286 = vadd.f32 %v1185, %v1254
      %v1287 = vadd.f32 %v1186, %v1255
      %v1288 = vadd.f32 %v1187, %v1256
      %v1289 = vadd.f32 %v1188, %v1257
      %v1290 = vadd.f32 %v1189, %v1258
      %v1291 = vadd.f32 %v1190, %v1259
      %v1292 = vadd.f32 %v1191, %v1260
      %v1293 = vadd.f32 %v1192, %v1261
      %v1294 = vadd.f32 %v1193, %v1262
      %v1295 = vadd.f32 %v1194, %v1263
      %v1296 = vadd.f32 %v1195, %v1264
      %v1297 = vadd.f32 %v1196, %v1265
      %v1298 = vadd.f32 %v1197, %v1266
      %v1299 = vadd.f32 %v1198, %v1267
      %v1300 = vadd.f32 %v1199, %v1268
      %v1301 = vadd.f32 %v1200, %v1269
      %v1302 = vld [vmem:[%s897 + $0x4] sm:$0xff]
      %v1303 = vld [vmem:[%s897 + $0xc] sm:$0xff]
      %v1304 = vld [vmem:[%s897 + $0x1c] sm:$0xff]
      %v1305 = vld [vmem:[%s897 + $0x24] sm:$0xff]
      %v1306 = vld [vmem:[%s897 + $0x34] sm:$0xff]
      %v1307 = vld [vmem:[%s897 + $0x3c] sm:$0xff]
      %v1308 = vld [vmem:[%s897 + $0x4c] sm:$0xff]
      %v1309 = vld [vmem:[%s897 + $0x54] sm:$0xff]
      %v1310 = vld [vmem:[%s897 + $0x64] sm:$0xff]
      %v1311 = vld [vmem:[%s897 + $0x6c] sm:$0xff]
      %v1312 = vld [vmem:[%s897 + $0x7c] sm:$0xff]
      %v1313 = vld [vmem:[%s897 + $0x84] sm:$0xff]
      %v1314 = vld [vmem:[%s897 + $0x94] sm:$0xff]
      %v1315 = vld [vmem:[%s897 + $0x9c] sm:$0xff]
      %v1316 = vld [vmem:[%s897 + $0xac] sm:$0xff]
      %v1317 = vld [vmem:[%s897 + $0xb4] sm:$0xff]
      %v1318 = vld [vmem:[%s897 + $0xc4] sm:$0xff]
      %v1319 = vld [vmem:[%s897 + $0xcc] sm:$0xff]
      %v1320 = vld [vmem:[%s897 + $0xdc] sm:$0xff]
      %v1321 = vld [vmem:[%s897 + $0xe4] sm:$0xff]
      %v1322 = vld [vmem:[%s897 + $0xf4] sm:$0xff]
      %v1323 = vld [vmem:[%s897 + $0xfc] sm:$0xff]
      %v1324 = vld [vmem:[%s897 + $0x10c] sm:$0xff]
      %v1325 = vld [vmem:[%s897 + $0x114] sm:$0xff]
      %v1326 = vld [vmem:[%s897 + $0x124] sm:$0xff]
      %v1327 = vld [vmem:[%s897 + $0x12c] sm:$0xff]
      %v1328 = vld [vmem:[%s897 + $0x13c] sm:$0xff]
      %v1329 = vld [vmem:[%s897 + $0x144] sm:$0xff]
      %v1330 = vld [vmem:[%s897 + $0x154] sm:$0xff]
      %v1331 = vld [vmem:[%s897 + $0x15c] sm:$0xff]
      %v1332 = vld [vmem:[%s897 + $0x16c] sm:$0xff]
      %v1333 = vld [vmem:[%s897 + $0x174] sm:$0xff]
      %v1334 = vld [vmem:[%s1 + $0x9] sm:$0x1]
      %v1335 = vlaneseq
      %v1336 = vshrl.u32 %v1335, 7
      %v1337 = vsub.s32 0, %v1336
      %v1338 = vrot.slane %v1334, %v1337
      %v1339 = vmul.f32 %v1302, %v1338
      %v1340 = vmul.f32 %v1303, %v1338
      %v1341 = vmul.f32 %v1304, %v1338
      %v1342 = vmul.f32 %v1305, %v1338
      %v1343 = vmul.f32 %v1306, %v1338
      %v1344 = vmul.f32 %v1307, %v1338
      %v1345 = vmul.f32 %v1308, %v1338
      %v1346 = vmul.f32 %v1309, %v1338
      %v1347 = vmul.f32 %v1310, %v1338
      %v1348 = vmul.f32 %v1311, %v1338
      %v1349 = vmul.f32 %v1312, %v1338
      %v1350 = vmul.f32 %v1313, %v1338
      %v1351 = vmul.f32 %v1314, %v1338
      %v1352 = vmul.f32 %v1315, %v1338
      %v1353 = vmul.f32 %v1316, %v1338
      %v1354 = vmul.f32 %v1317, %v1338
      %v1355 = vmul.f32 %v1318, %v1338
      %v1356 = vmul.f32 %v1319, %v1338
      %v1357 = vmul.f32 %v1320, %v1338
      %v1358 = vmul.f32 %v1321, %v1338
      %v1359 = vmul.f32 %v1322, %v1338
      %v1360 = vmul.f32 %v1323, %v1338
      %v1361 = vmul.f32 %v1324, %v1338
      %v1362 = vmul.f32 %v1325, %v1338
      %v1363 = vmul.f32 %v1326, %v1338
      %v1364 = vmul.f32 %v1327, %v1338
      %v1365 = vmul.f32 %v1328, %v1338
      %v1366 = vmul.f32 %v1329, %v1338
      %v1367 = vmul.f32 %v1330, %v1338
      %v1368 = vmul.f32 %v1331, %v1338
      %v1369 = vmul.f32 %v1332, %v1338
      %v1370 = vmul.f32 %v1333, %v1338
      %v1371 = vadd.f32 %v1270, %v1339
      %v1372 = vadd.f32 %v1271, %v1340
      %v1373 = vadd.f32 %v1272, %v1341
      %v1374 = vadd.f32 %v1273, %v1342
      %v1375 = vadd.f32 %v1274, %v1343
      %v1376 = vadd.f32 %v1275, %v1344
      %v1377 = vadd.f32 %v1276, %v1345
      %v1378 = vadd.f32 %v1277, %v1346
      %v1379 = vadd.f32 %v1278, %v1347
      %v1380 = vadd.f32 %v1279, %v1348
      %v1381 = vadd.f32 %v1280, %v1349
      %v1382 = vadd.f32 %v1281, %v1350
      %v1383 = vadd.f32 %v1282, %v1351
      %v1384 = vadd.f32 %v1283, %v1352
      %v1385 = vadd.f32 %v1284, %v1353
      %v1386 = vadd.f32 %v1285, %v1354
      %v1387 = vadd.f32 %v1286, %v1355
      %v1388 = vadd.f32 %v1287, %v1356
      %v1389 = vadd.f32 %v1288, %v1357
      %v1390 = vadd.f32 %v1289, %v1358
      %v1391 = vadd.f32 %v1290, %v1359
      %v1392 = vadd.f32 %v1291, %v1360
      %v1393 = vadd.f32 %v1292, %v1361
      %v1394 = vadd.f32 %v1293, %v1362
      %v1395 = vadd.f32 %v1294, %v1363
      %v1396 = vadd.f32 %v1295, %v1364
      %v1397 = vadd.f32 %v1296, %v1365
      %v1398 = vadd.f32 %v1297, %v1366
      %v1399 = vadd.f32 %v1298, %v1367
      %v1400 = vadd.f32 %v1299, %v1368
      %v1401 = vadd.f32 %v1300, %v1369
      %v1402 = vadd.f32 %v1301, %v1370
      %v1403 = vld [vmem:[%s294] sm:$0xff]
      %v1404 = vld [vmem:[%s294 + $0x8] sm:$0xff]
      %v1405 = vld [vmem:[%s294 + $0x18] sm:$0xff]
      %v1406 = vld [vmem:[%s294 + $0x20] sm:$0xff]
      %v1407 = vld [vmem:[%s294 + $0x30] sm:$0xff]
      %v1408 = vld [vmem:[%s294 + $0x38] sm:$0xff]
      %v1409 = vld [vmem:[%s294 + $0x48] sm:$0xff]
      %v1410 = vld [vmem:[%s294 + $0x50] sm:$0xff]
      %v1411 = vld [vmem:[%s294 + $0x60] sm:$0xff]
      %v1412 = vld [vmem:[%s294 + $0x68] sm:$0xff]
      %v1413 = vld [vmem:[%s294 + $0x78] sm:$0xff]
      %v1414 = vld [vmem:[%s294 + $0x80] sm:$0xff]
      %v1415 = vld [vmem:[%s294 + $0x90] sm:$0xff]
      %v1416 = vld [vmem:[%s294 + $0x98] sm:$0xff]
      %v1417 = vld [vmem:[%s294 + $0xa8] sm:$0xff]
      %v1418 = vld [vmem:[%s294 + $0xb0] sm:$0xff]
      %v1419 = vld [vmem:[%s294 + $0xc0] sm:$0xff]
      %v1420 = vld [vmem:[%s294 + $0xc8] sm:$0xff]
      %v1421 = vld [vmem:[%s294 + $0xd8] sm:$0xff]
      %v1422 = vld [vmem:[%s294 + $0xe0] sm:$0xff]
      %v1423 = vld [vmem:[%s294 + $0xf0] sm:$0xff]
      %v1424 = vld [vmem:[%s294 + $0xf8] sm:$0xff]
      %v1425 = vld [vmem:[%s294 + $0x108] sm:$0xff]
      %v1426 = vld [vmem:[%s294 + $0x110] sm:$0xff]
      %v1427 = vld [vmem:[%s294 + $0x120] sm:$0xff]
      %v1428 = vld [vmem:[%s294 + $0x128] sm:$0xff]
      %v1429 = vld [vmem:[%s294 + $0x138] sm:$0xff]
      %v1430 = vld [vmem:[%s294 + $0x140] sm:$0xff]
      %v1431 = vld [vmem:[%s294 + $0x150] sm:$0xff]
      %v1432 = vld [vmem:[%s294 + $0x158] sm:$0xff]
      %v1433 = vld [vmem:[%s294 + $0x168] sm:$0xff]
      %v1434 = vld [vmem:[%s294 + $0x170] sm:$0xff]
      %v1435 = vld [vmem:[%s1 + $0xa] sm:$0x1]
      %v1436 = vlaneseq
      %v1437 = vshrl.u32 %v1436, 7
      %v1438 = vsub.s32 0, %v1437
      %v1439 = vrot.slane %v1435, %v1438
      %v1440 = vmul.f32 %v1403, %v1439
      %v1441 = vmul.f32 %v1404, %v1439
      %v1442 = vmul.f32 %v1405, %v1439
      %v1443 = vmul.f32 %v1406, %v1439
      %v1444 = vmul.f32 %v1407, %v1439
      %v1445 = vmul.f32 %v1408, %v1439
      %v1446 = vmul.f32 %v1409, %v1439
      %v1447 = vmul.f32 %v1410, %v1439
      %v1448 = vmul.f32 %v1411, %v1439
      %v1449 = vmul.f32 %v1412, %v1439
      %v1450 = vmul.f32 %v1413, %v1439
      %v1451 = vmul.f32 %v1414, %v1439
      %v1452 = vmul.f32 %v1415, %v1439
      %v1453 = vmul.f32 %v1416, %v1439
      %v1454 = vmul.f32 %v1417, %v1439
      %v1455 = vmul.f32 %v1418, %v1439
      %v1456 = vmul.f32 %v1419, %v1439
      %v1457 = vmul.f32 %v1420, %v1439
      %v1458 = vmul.f32 %v1421, %v1439
      %v1459 = vmul.f32 %v1422, %v1439
      %v1460 = vmul.f32 %v1423, %v1439
      %v1461 = vmul.f32 %v1424, %v1439
      %v1462 = vmul.f32 %v1425, %v1439
      %v1463 = vmul.f32 %v1426, %v1439
      %v1464 = vmul.f32 %v1427, %v1439
      %v1465 = vmul.f32 %v1428, %v1439
      %v1466 = vmul.f32 %v1429, %v1439
      %v1467 = vmul.f32 %v1430, %v1439
      %v1468 = vmul.f32 %v1431, %v1439
      %v1469 = vmul.f32 %v1432, %v1439
      %v1470 = vmul.f32 %v1433, %v1439
      %v1471 = vmul.f32 %v1434, %v1439
      %v1472 = vadd.f32 %v1371, %v1440
      %v1473 = vadd.f32 %v1372, %v1441
      %v1474 = vadd.f32 %v1373, %v1442
      %v1475 = vadd.f32 %v1374, %v1443
      %v1476 = vadd.f32 %v1375, %v1444
      %v1477 = vadd.f32 %v1376, %v1445
      %v1478 = vadd.f32 %v1377, %v1446
      %v1479 = vadd.f32 %v1378, %v1447
      %v1480 = vadd.f32 %v1379, %v1448
      %v1481 = vadd.f32 %v1380, %v1449
      %v1482 = vadd.f32 %v1381, %v1450
      %v1483 = vadd.f32 %v1382, %v1451
      %v1484 = vadd.f32 %v1383, %v1452
      %v1485 = vadd.f32 %v1384, %v1453
      %v1486 = vadd.f32 %v1385, %v1454
      %v1487 = vadd.f32 %v1386, %v1455
      %v1488 = vadd.f32 %v1387, %v1456
      %v1489 = vadd.f32 %v1388, %v1457
      %v1490 = vadd.f32 %v1389, %v1458
      %v1491 = vadd.f32 %v1390, %v1459
      %v1492 = vadd.f32 %v1391, %v1460
      %v1493 = vadd.f32 %v1392, %v1461
      %v1494 = vadd.f32 %v1393, %v1462
      %v1495 = vadd.f32 %v1394, %v1463
      %v1496 = vadd.f32 %v1395, %v1464
      %v1497 = vadd.f32 %v1396, %v1465
      %v1498 = vadd.f32 %v1397, %v1466
      %v1499 = vadd.f32 %v1398, %v1467
      %v1500 = vadd.f32 %v1399, %v1468
      %v1501 = vadd.f32 %v1400, %v1469
      %v1502 = vadd.f32 %v1401, %v1470
      %v1503 = vadd.f32 %v1402, %v1471
      %v1504 = vld [vmem:[%s294 + $0x1] sm:$0xff]
      %v1505 = vld [vmem:[%s294 + $0x9] sm:$0xff]
      %v1506 = vld [vmem:[%s294 + $0x19] sm:$0xff]
      %v1507 = vld [vmem:[%s294 + $0x21] sm:$0xff]
      %v1508 = vld [vmem:[%s294 + $0x31] sm:$0xff]
      %v1509 = vld [vmem:[%s294 + $0x39] sm:$0xff]
      %v1510 = vld [vmem:[%s294 + $0x49] sm:$0xff]
      %v1511 = vld [vmem:[%s294 + $0x51] sm:$0xff]
      %v1512 = vld [vmem:[%s294 + $0x61] sm:$0xff]
      %v1513 = vld [vmem:[%s294 + $0x69] sm:$0xff]
      %v1514 = vld [vmem:[%s294 + $0x79] sm:$0xff]
      %v1515 = vld [vmem:[%s294 + $0x81] sm:$0xff]
      %v1516 = vld [vmem:[%s294 + $0x91] sm:$0xff]
      %v1517 = vld [vmem:[%s294 + $0x99] sm:$0xff]
      %v1518 = vld [vmem:[%s294 + $0xa9] sm:$0xff]
      %v1519 = vld [vmem:[%s294 + $0xb1] sm:$0xff]
      %v1520 = vld [vmem:[%s294 + $0xc1] sm:$0xff]
      %v1521 = vld [vmem:[%s294 + $0xc9] sm:$0xff]
      %v1522 = vld [vmem:[%s294 + $0xd9] sm:$0xff]
      %v1523 = vld [vmem:[%s294 + $0xe1] sm:$0xff]
      %v1524 = vld [vmem:[%s294 + $0xf1] sm:$0xff]
      %v1525 = vld [vmem:[%s294 + $0xf9] sm:$0xff]
      %v1526 = vld [vmem:[%s294 + $0x109] sm:$0xff]
      %v1527 = vld [vmem:[%s294 + $0x111] sm:$0xff]
      %v1528 = vld [vmem:[%s294 + $0x121] sm:$0xff]
      %v1529 = vld [vmem:[%s294 + $0x129] sm:$0xff]
      %v1530 = vld [vmem:[%s294 + $0x139] sm:$0xff]
      %v1531 = vld [vmem:[%s294 + $0x141] sm:$0xff]
      %v1532 = vld [vmem:[%s294 + $0x151] sm:$0xff]
      %v1533 = vld [vmem:[%s294 + $0x159] sm:$0xff]
      %v1534 = vld [vmem:[%s294 + $0x169] sm:$0xff]
      %v1535 = vld [vmem:[%s294 + $0x171] sm:$0xff]
      %v1536 = vld [vmem:[%s1 + $0xb] sm:$0x1]
      %v1537 = vlaneseq
      %v1538 = vshrl.u32 %v1537, 7
      %v1539 = vsub.s32 0, %v1538
      %v1540 = vrot.slane %v1536, %v1539
      %v1541 = vmul.f32 %v1504, %v1540
      %v1542 = vmul.f32 %v1505, %v1540
      %v1543 = vmul.f32 %v1506, %v1540
      %v1544 = vmul.f32 %v1507, %v1540
      %v1545 = vmul.f32 %v1508, %v1540
      %v1546 = vmul.f32 %v1509, %v1540
      %v1547 = vmul.f32 %v1510, %v1540
      %v1548 = vmul.f32 %v1511, %v1540
      %v1549 = vmul.f32 %v1512, %v1540
      %v1550 = vmul.f32 %v1513, %v1540
      %v1551 = vmul.f32 %v1514, %v1540
      %v1552 = vmul.f32 %v1515, %v1540
      %v1553 = vmul.f32 %v1516, %v1540
      %v1554 = vmul.f32 %v1517, %v1540
      %v1555 = vmul.f32 %v1518, %v1540
      %v1556 = vmul.f32 %v1519, %v1540
      %v1557 = vmul.f32 %v1520, %v1540
      %v1558 = vmul.f32 %v1521, %v1540
      %v1559 = vmul.f32 %v1522, %v1540
      %v1560 = vmul.f32 %v1523, %v1540
      %v1561 = vmul.f32 %v1524, %v1540
      %v1562 = vmul.f32 %v1525, %v1540
      %v1563 = vmul.f32 %v1526, %v1540
      %v1564 = vmul.f32 %v1527, %v1540
      %v1565 = vmul.f32 %v1528, %v1540
      %v1566 = vmul.f32 %v1529, %v1540
      %v1567 = vmul.f32 %v1530, %v1540
      %v1568 = vmul.f32 %v1531, %v1540
      %v1569 = vmul.f32 %v1532, %v1540
      %v1570 = vmul.f32 %v1533, %v1540
      %v1571 = vmul.f32 %v1534, %v1540
      %v1572 = vmul.f32 %v1535, %v1540
      %v1573 = vadd.f32 %v1472, %v1541
      %v1574 = vadd.f32 %v1473, %v1542
      %v1575 = vadd.f32 %v1474, %v1543
      %v1576 = vadd.f32 %v1475, %v1544
      %v1577 = vadd.f32 %v1476, %v1545
      %v1578 = vadd.f32 %v1477, %v1546
      %v1579 = vadd.f32 %v1478, %v1547
      %v1580 = vadd.f32 %v1479, %v1548
      %v1581 = vadd.f32 %v1480, %v1549
      %v1582 = vadd.f32 %v1481, %v1550
      %v1583 = vadd.f32 %v1482, %v1551
      %v1584 = vadd.f32 %v1483, %v1552
      %v1585 = vadd.f32 %v1484, %v1553
      %v1586 = vadd.f32 %v1485, %v1554
      %v1587 = vadd.f32 %v1486, %v1555
      %v1588 = vadd.f32 %v1487, %v1556
      %v1589 = vadd.f32 %v1488, %v1557
      %v1590 = vadd.f32 %v1489, %v1558
      %v1591 = vadd.f32 %v1490, %v1559
      %v1592 = vadd.f32 %v1491, %v1560
      %v1593 = vadd.f32 %v1492, %v1561
      %v1594 = vadd.f32 %v1493, %v1562
      %v1595 = vadd.f32 %v1494, %v1563
      %v1596 = vadd.f32 %v1495, %v1564
      %v1597 = vadd.f32 %v1496, %v1565
      %v1598 = vadd.f32 %v1497, %v1566
      %v1599 = vadd.f32 %v1498, %v1567
      %v1600 = vadd.f32 %v1499, %v1568
      %v1601 = vadd.f32 %v1500, %v1569
      %v1602 = vadd.f32 %v1501, %v1570
      %v1603 = vadd.f32 %v1502, %v1571
      %v1604 = vadd.f32 %v1503, %v1572
      %v1605 = vld [vmem:[%s294 + $0x2] sm:$0xff]
      %v1606 = vld [vmem:[%s294 + $0xa] sm:$0xff]
      %v1607 = vld [vmem:[%s294 + $0x1a] sm:$0xff]
      %v1608 = vld [vmem:[%s294 + $0x22] sm:$0xff]
      %v1609 = vld [vmem:[%s294 + $0x32] sm:$0xff]
      %v1610 = vld [vmem:[%s294 + $0x3a] sm:$0xff]
      %v1611 = vld [vmem:[%s294 + $0x4a] sm:$0xff]
      %v1612 = vld [vmem:[%s294 + $0x52] sm:$0xff]
      %v1613 = vld [vmem:[%s294 + $0x62] sm:$0xff]
      %v1614 = vld [vmem:[%s294 + $0x6a] sm:$0xff]
      %v1615 = vld [vmem:[%s294 + $0x7a] sm:$0xff]
      %v1616 = vld [vmem:[%s294 + $0x82] sm:$0xff]
      %v1617 = vld [vmem:[%s294 + $0x92] sm:$0xff]
      %v1618 = vld [vmem:[%s294 + $0x9a] sm:$0xff]
      %v1619 = vld [vmem:[%s294 + $0xaa] sm:$0xff]
      %v1620 = vld [vmem:[%s294 + $0xb2] sm:$0xff]
      %v1621 = vld [vmem:[%s294 + $0xc2] sm:$0xff]
      %v1622 = vld [vmem:[%s294 + $0xca] sm:$0xff]
      %v1623 = vld [vmem:[%s294 + $0xda] sm:$0xff]
      %v1624 = vld [vmem:[%s294 + $0xe2] sm:$0xff]
      %v1625 = vld [vmem:[%s294 + $0xf2] sm:$0xff]
      %v1626 = vld [vmem:[%s294 + $0xfa] sm:$0xff]
      %v1627 = vld [vmem:[%s294 + $0x10a] sm:$0xff]
      %v1628 = vld [vmem:[%s294 + $0x112] sm:$0xff]
      %v1629 = vld [vmem:[%s294 + $0x122] sm:$0xff]
      %v1630 = vld [vmem:[%s294 + $0x12a] sm:$0xff]
      %v1631 = vld [vmem:[%s294 + $0x13a] sm:$0xff]
      %v1632 = vld [vmem:[%s294 + $0x142] sm:$0xff]
      %v1633 = vld [vmem:[%s294 + $0x152] sm:$0xff]
      %v1634 = vld [vmem:[%s294 + $0x15a] sm:$0xff]
      %v1635 = vld [vmem:[%s294 + $0x16a] sm:$0xff]
      %v1636 = vld [vmem:[%s294 + $0x172] sm:$0xff]
      %v1637 = vld [vmem:[%s1 + $0xc] sm:$0x1]
      %v1638 = vlaneseq
      %v1639 = vshrl.u32 %v1638, 7
      %v1640 = vsub.s32 0, %v1639
      %v1641 = vrot.slane %v1637, %v1640
      %v1642 = vmul.f32 %v1605, %v1641
      %v1643 = vmul.f32 %v1606, %v1641
      %v1644 = vmul.f32 %v1607, %v1641
      %v1645 = vmul.f32 %v1608, %v1641
      %v1646 = vmul.f32 %v1609, %v1641
      %v1647 = vmul.f32 %v1610, %v1641
      %v1648 = vmul.f32 %v1611, %v1641
      %v1649 = vmul.f32 %v1612, %v1641
      %v1650 = vmul.f32 %v1613, %v1641
      %v1651 = vmul.f32 %v1614, %v1641
      %v1652 = vmul.f32 %v1615, %v1641
      %v1653 = vmul.f32 %v1616, %v1641
      %v1654 = vmul.f32 %v1617, %v1641
      %v1655 = vmul.f32 %v1618, %v1641
      %v1656 = vmul.f32 %v1619, %v1641
      %v1657 = vmul.f32 %v1620, %v1641
      %v1658 = vmul.f32 %v1621, %v1641
      %v1659 = vmul.f32 %v1622, %v1641
      %v1660 = vmul.f32 %v1623, %v1641
      %v1661 = vmul.f32 %v1624, %v1641
      %v1662 = vmul.f32 %v1625, %v1641
      %v1663 = vmul.f32 %v1626, %v1641
      %v1664 = vmul.f32 %v1627, %v1641
      %v1665 = vmul.f32 %v1628, %v1641
      %v1666 = vmul.f32 %v1629, %v1641
      %v1667 = vmul.f32 %v1630, %v1641
      %v1668 = vmul.f32 %v1631, %v1641
      %v1669 = vmul.f32 %v1632, %v1641
      %v1670 = vmul.f32 %v1633, %v1641
      %v1671 = vmul.f32 %v1634, %v1641
      %v1672 = vmul.f32 %v1635, %v1641
      %v1673 = vmul.f32 %v1636, %v1641
      %v1674 = vadd.f32 %v1573, %v1642
      %v1675 = vadd.f32 %v1574, %v1643
      %v1676 = vadd.f32 %v1575, %v1644
      %v1677 = vadd.f32 %v1576, %v1645
      %v1678 = vadd.f32 %v1577, %v1646
      %v1679 = vadd.f32 %v1578, %v1647
      %v1680 = vadd.f32 %v1579, %v1648
      %v1681 = vadd.f32 %v1580, %v1649
      %v1682 = vadd.f32 %v1581, %v1650
      %v1683 = vadd.f32 %v1582, %v1651
      %v1684 = vadd.f32 %v1583, %v1652
      %v1685 = vadd.f32 %v1584, %v1653
      %v1686 = vadd.f32 %v1585, %v1654
      %v1687 = vadd.f32 %v1586, %v1655
      %v1688 = vadd.f32 %v1587, %v1656
      %v1689 = vadd.f32 %v1588, %v1657
      %v1690 = vadd.f32 %v1589, %v1658
      %v1691 = vadd.f32 %v1590, %v1659
      %v1692 = vadd.f32 %v1591, %v1660
      %v1693 = vadd.f32 %v1592, %v1661
      %v1694 = vadd.f32 %v1593, %v1662
      %v1695 = vadd.f32 %v1594, %v1663
      %v1696 = vadd.f32 %v1595, %v1664
      %v1697 = vadd.f32 %v1596, %v1665
      %v1698 = vadd.f32 %v1597, %v1666
      %v1699 = vadd.f32 %v1598, %v1667
      %v1700 = vadd.f32 %v1599, %v1668
      %v1701 = vadd.f32 %v1600, %v1669
      %v1702 = vadd.f32 %v1601, %v1670
      %v1703 = vadd.f32 %v1602, %v1671
      %v1704 = vadd.f32 %v1603, %v1672
      %v1705 = vadd.f32 %v1604, %v1673
      %v1706 = vld [vmem:[%s294 + $0x3] sm:$0xff]
      %v1707 = vld [vmem:[%s294 + $0xb] sm:$0xff]
      %v1708 = vld [vmem:[%s294 + $0x1b] sm:$0xff]
      %v1709 = vld [vmem:[%s294 + $0x23] sm:$0xff]
      %v1710 = vld [vmem:[%s294 + $0x33] sm:$0xff]
      %v1711 = vld [vmem:[%s294 + $0x3b] sm:$0xff]
      %v1712 = vld [vmem:[%s294 + $0x4b] sm:$0xff]
      %v1713 = vld [vmem:[%s294 + $0x53] sm:$0xff]
      %v1714 = vld [vmem:[%s294 + $0x63] sm:$0xff]
      %v1715 = vld [vmem:[%s294 + $0x6b] sm:$0xff]
      %v1716 = vld [vmem:[%s294 + $0x7b] sm:$0xff]
      %v1717 = vld [vmem:[%s294 + $0x83] sm:$0xff]
      %v1718 = vld [vmem:[%s294 + $0x93] sm:$0xff]
      %v1719 = vld [vmem:[%s294 + $0x9b] sm:$0xff]
      %v1720 = vld [vmem:[%s294 + $0xab] sm:$0xff]
      %v1721 = vld [vmem:[%s294 + $0xb3] sm:$0xff]
      %v1722 = vld [vmem:[%s294 + $0xc3] sm:$0xff]
      %v1723 = vld [vmem:[%s294 + $0xcb] sm:$0xff]
      %v1724 = vld [vmem:[%s294 + $0xdb] sm:$0xff]
      %v1725 = vld [vmem:[%s294 + $0xe3] sm:$0xff]
      %v1726 = vld [vmem:[%s294 + $0xf3] sm:$0xff]
      %v1727 = vld [vmem:[%s294 + $0xfb] sm:$0xff]
      %v1728 = vld [vmem:[%s294 + $0x10b] sm:$0xff]
      %v1729 = vld [vmem:[%s294 + $0x113] sm:$0xff]
      %v1730 = vld [vmem:[%s294 + $0x123] sm:$0xff]
      %v1731 = vld [vmem:[%s294 + $0x12b] sm:$0xff]
      %v1732 = vld [vmem:[%s294 + $0x13b] sm:$0xff]
      %v1733 = vld [vmem:[%s294 + $0x143] sm:$0xff]
      %v1734 = vld [vmem:[%s294 + $0x153] sm:$0xff]
      %v1735 = vld [vmem:[%s294 + $0x15b] sm:$0xff]
      %v1736 = vld [vmem:[%s294 + $0x16b] sm:$0xff]
      %v1737 = vld [vmem:[%s294 + $0x173] sm:$0xff]
      %v1738 = vld [vmem:[%s1 + $0xd] sm:$0x1]
      %v1739 = vlaneseq
      %v1740 = vshrl.u32 %v1739, 7
      %v1741 = vsub.s32 0, %v1740
      %v1742 = vrot.slane %v1738, %v1741
      %v1743 = vmul.f32 %v1706, %v1742
      %v1744 = vmul.f32 %v1707, %v1742
      %v1745 = vmul.f32 %v1708, %v1742
      %v1746 = vmul.f32 %v1709, %v1742
      %v1747 = vmul.f32 %v1710, %v1742
      %v1748 = vmul.f32 %v1711, %v1742
      %v1749 = vmul.f32 %v1712, %v1742
      %v1750 = vmul.f32 %v1713, %v1742
      %v1751 = vmul.f32 %v1714, %v1742
      %v1752 = vmul.f32 %v1715, %v1742
      %v1753 = vmul.f32 %v1716, %v1742
      %v1754 = vmul.f32 %v1717, %v1742
      %v1755 = vmul.f32 %v1718, %v1742
      %v1756 = vmul.f32 %v1719, %v1742
      %v1757 = vmul.f32 %v1720, %v1742
      %v1758 = vmul.f32 %v1721, %v1742
      %v1759 = vmul.f32 %v1722, %v1742
      %v1760 = vmul.f32 %v1723, %v1742
      %v1761 = vmul.f32 %v1724, %v1742
      %v1762 = vmul.f32 %v1725, %v1742
      %v1763 = vmul.f32 %v1726, %v1742
      %v1764 = vmul.f32 %v1727, %v1742
      %v1765 = vmul.f32 %v1728, %v1742
      %v1766 = vmul.f32 %v1729, %v1742
      %v1767 = vmul.f32 %v1730, %v1742
      %v1768 = vmul.f32 %v1731, %v1742
      %v1769 = vmul.f32 %v1732, %v1742
      %v1770 = vmul.f32 %v1733, %v1742
      %v1771 = vmul.f32 %v1734, %v1742
      %v1772 = vmul.f32 %v1735, %v1742
      %v1773 = vmul.f32 %v1736, %v1742
      %v1774 = vmul.f32 %v1737, %v1742
      %v1775 = vadd.f32 %v1674, %v1743
      %v1776 = vadd.f32 %v1675, %v1744
      %v1777 = vadd.f32 %v1676, %v1745
      %v1778 = vadd.f32 %v1677, %v1746
      %v1779 = vadd.f32 %v1678, %v1747
      %v1780 = vadd.f32 %v1679, %v1748
      %v1781 = vadd.f32 %v1680, %v1749
      %v1782 = vadd.f32 %v1681, %v1750
      %v1783 = vadd.f32 %v1682, %v1751
      %v1784 = vadd.f32 %v1683, %v1752
      %v1785 = vadd.f32 %v1684, %v1753
      %v1786 = vadd.f32 %v1685, %v1754
      %v1787 = vadd.f32 %v1686, %v1755
      %v1788 = vadd.f32 %v1687, %v1756
      %v1789 = vadd.f32 %v1688, %v1757
      %v1790 = vadd.f32 %v1689, %v1758
      %v1791 = vadd.f32 %v1690, %v1759
      %v1792 = vadd.f32 %v1691, %v1760
      %v1793 = vadd.f32 %v1692, %v1761
      %v1794 = vadd.f32 %v1693, %v1762
      %v1795 = vadd.f32 %v1694, %v1763
      %v1796 = vadd.f32 %v1695, %v1764
      %v1797 = vadd.f32 %v1696, %v1765
      %v1798 = vadd.f32 %v1697, %v1766
      %v1799 = vadd.f32 %v1698, %v1767
      %v1800 = vadd.f32 %v1699, %v1768
      %v1801 = vadd.f32 %v1700, %v1769
      %v1802 = vadd.f32 %v1701, %v1770
      %v1803 = vadd.f32 %v1702, %v1771
      %v1804 = vadd.f32 %v1703, %v1772
      %v1805 = vadd.f32 %v1704, %v1773
      %v1806 = vadd.f32 %v1705, %v1774
      %v1807 = vld [vmem:[%s294 + $0x4] sm:$0xff]
      %v1808 = vld [vmem:[%s294 + $0xc] sm:$0xff]
      %v1809 = vld [vmem:[%s294 + $0x1c] sm:$0xff]
      %v1810 = vld [vmem:[%s294 + $0x24] sm:$0xff]
      %v1811 = vld [vmem:[%s294 + $0x34] sm:$0xff]
      %v1812 = vld [vmem:[%s294 + $0x3c] sm:$0xff]
      %v1813 = vld [vmem:[%s294 + $0x4c] sm:$0xff]
      %v1814 = vld [vmem:[%s294 + $0x54] sm:$0xff]
      %v1815 = vld [vmem:[%s294 + $0x64] sm:$0xff]
      %v1816 = vld [vmem:[%s294 + $0x6c] sm:$0xff]
      %v1817 = vld [vmem:[%s294 + $0x7c] sm:$0xff]
      %v1818 = vld [vmem:[%s294 + $0x84] sm:$0xff]
      %v1819 = vld [vmem:[%s294 + $0x94] sm:$0xff]
      %v1820 = vld [vmem:[%s294 + $0x9c] sm:$0xff]
      %v1821 = vld [vmem:[%s294 + $0xac] sm:$0xff]
      %v1822 = vld [vmem:[%s294 + $0xb4] sm:$0xff]
      %v1823 = vld [vmem:[%s294 + $0xc4] sm:$0xff]
      %v1824 = vld [vmem:[%s294 + $0xcc] sm:$0xff]
      %v1825 = vld [vmem:[%s294 + $0xdc] sm:$0xff]
      %v1826 = vld [vmem:[%s294 + $0xe4] sm:$0xff]
      %v1827 = vld [vmem:[%s294 + $0xf4] sm:$0xff]
      %v1828 = vld [vmem:[%s294 + $0xfc] sm:$0xff]
      %v1829 = vld [vmem:[%s294 + $0x10c] sm:$0xff]
      %v1830 = vld [vmem:[%s294 + $0x114] sm:$0xff]
      %v1831 = vld [vmem:[%s294 + $0x124] sm:$0xff]
      %v1832 = vld [vmem:[%s294 + $0x12c] sm:$0xff]
      %v1833 = vld [vmem:[%s294 + $0x13c] sm:$0xff]
      %v1834 = vld [vmem:[%s294 + $0x144] sm:$0xff]
      %v1835 = vld [vmem:[%s294 + $0x154] sm:$0xff]
      %v1836 = vld [vmem:[%s294 + $0x15c] sm:$0xff]
      %v1837 = vld [vmem:[%s294 + $0x16c] sm:$0xff]
      %v1838 = vld [vmem:[%s294 + $0x174] sm:$0xff]
      %v1839 = vld [vmem:[%s1 + $0xe] sm:$0x1]
      %v1840 = vlaneseq
      %v1841 = vshrl.u32 %v1840, 7
      %v1842 = vsub.s32 0, %v1841
      %v1843 = vrot.slane %v1839, %v1842
      %v1844 = vmul.f32 %v1807, %v1843
      %v1845 = vmul.f32 %v1808, %v1843
      %v1846 = vmul.f32 %v1809, %v1843
      %v1847 = vmul.f32 %v1810, %v1843
      %v1848 = vmul.f32 %v1811, %v1843
      %v1849 = vmul.f32 %v1812, %v1843
      %v1850 = vmul.f32 %v1813, %v1843
      %v1851 = vmul.f32 %v1814, %v1843
      %v1852 = vmul.f32 %v1815, %v1843
      %v1853 = vmul.f32 %v1816, %v1843
      %v1854 = vmul.f32 %v1817, %v1843
      %v1855 = vmul.f32 %v1818, %v1843
      %v1856 = vmul.f32 %v1819, %v1843
      %v1857 = vmul.f32 %v1820, %v1843
      %v1858 = vmul.f32 %v1821, %v1843
      %v1859 = vmul.f32 %v1822, %v1843
      %v1860 = vmul.f32 %v1823, %v1843
      %v1861 = vmul.f32 %v1824, %v1843
      %v1862 = vmul.f32 %v1825, %v1843
      %v1863 = vmul.f32 %v1826, %v1843
      %v1864 = vmul.f32 %v1827, %v1843
      %v1865 = vmul.f32 %v1828, %v1843
      %v1866 = vmul.f32 %v1829, %v1843
      %v1867 = vmul.f32 %v1830, %v1843
      %v1868 = vmul.f32 %v1831, %v1843
      %v1869 = vmul.f32 %v1832, %v1843
      %v1870 = vmul.f32 %v1833, %v1843
      %v1871 = vmul.f32 %v1834, %v1843
      %v1872 = vmul.f32 %v1835, %v1843
      %v1873 = vmul.f32 %v1836, %v1843
      %v1874 = vmul.f32 %v1837, %v1843
      %v1875 = vmul.f32 %v1838, %v1843
      %v1876 = vadd.f32 %v1775, %v1844
      %v1877 = vadd.f32 %v1776, %v1845
      %v1878 = vadd.f32 %v1777, %v1846
      %v1879 = vadd.f32 %v1778, %v1847
      %v1880 = vadd.f32 %v1779, %v1848
      %v1881 = vadd.f32 %v1780, %v1849
      %v1882 = vadd.f32 %v1781, %v1850
      %v1883 = vadd.f32 %v1782, %v1851
      %v1884 = vadd.f32 %v1783, %v1852
      %v1885 = vadd.f32 %v1784, %v1853
      %v1886 = vadd.f32 %v1785, %v1854
      %v1887 = vadd.f32 %v1786, %v1855
      %v1888 = vadd.f32 %v1787, %v1856
      %v1889 = vadd.f32 %v1788, %v1857
      %v1890 = vadd.f32 %v1789, %v1858
      %v1891 = vadd.f32 %v1790, %v1859
      %v1892 = vadd.f32 %v1791, %v1860
      %v1893 = vadd.f32 %v1792, %v1861
      %v1894 = vadd.f32 %v1793, %v1862
      %v1895 = vadd.f32 %v1794, %v1863
      %v1896 = vadd.f32 %v1795, %v1864
      %v1897 = vadd.f32 %v1796, %v1865
      %v1898 = vadd.f32 %v1797, %v1866
      %v1899 = vadd.f32 %v1798, %v1867
      %v1900 = vadd.f32 %v1799, %v1868
      %v1901 = vadd.f32 %v1800, %v1869
      %v1902 = vadd.f32 %v1801, %v1870
      %v1903 = vadd.f32 %v1802, %v1871
      %v1904 = vadd.f32 %v1803, %v1872
      %v1905 = vadd.f32 %v1804, %v1873
      %v1906 = vadd.f32 %v1805, %v1874
      %v1907 = vadd.f32 %v1806, %v1875
      %s1908 = scalar_lea.vmem [#allocation2], 72
      %v1909 = vld [vmem:[%s1908] sm:$0xff]
      %v1910 = vld [vmem:[%s1908 + $0x8] sm:$0xff]
      %v1911 = vld [vmem:[%s1908 + $0x18] sm:$0xff]
      %v1912 = vld [vmem:[%s1908 + $0x20] sm:$0xff]
      %v1913 = vld [vmem:[%s1908 + $0x30] sm:$0xff]
      %v1914 = vld [vmem:[%s1908 + $0x38] sm:$0xff]
      %v1915 = vld [vmem:[%s1908 + $0x48] sm:$0xff]
      %v1916 = vld [vmem:[%s1908 + $0x50] sm:$0xff]
      %v1917 = vld [vmem:[%s1908 + $0x60] sm:$0xff]
      %v1918 = vld [vmem:[%s1908 + $0x68] sm:$0xff]
      %v1919 = vld [vmem:[%s1908 + $0x78] sm:$0xff]
      %v1920 = vld [vmem:[%s1908 + $0x80] sm:$0xff]
      %v1921 = vld [vmem:[%s1908 + $0x90] sm:$0xff]
      %v1922 = vld [vmem:[%s1908 + $0x98] sm:$0xff]
      %v1923 = vld [vmem:[%s1908 + $0xa8] sm:$0xff]
      %v1924 = vld [vmem:[%s1908 + $0xb0] sm:$0xff]
      %v1925 = vld [vmem:[%s1908 + $0xc0] sm:$0xff]
      %v1926 = vld [vmem:[%s1908 + $0xc8] sm:$0xff]
      %v1927 = vld [vmem:[%s1908 + $0xd8] sm:$0xff]
      %v1928 = vld [vmem:[%s1908 + $0xe0] sm:$0xff]
      %v1929 = vld [vmem:[%s1908 + $0xf0] sm:$0xff]
      %v1930 = vld [vmem:[%s1908 + $0xf8] sm:$0xff]
      %v1931 = vld [vmem:[%s1908 + $0x108] sm:$0xff]
      %v1932 = vld [vmem:[%s1908 + $0x110] sm:$0xff]
      %v1933 = vld [vmem:[%s1908 + $0x120] sm:$0xff]
      %v1934 = vld [vmem:[%s1908 + $0x128] sm:$0xff]
      %v1935 = vld [vmem:[%s1908 + $0x138] sm:$0xff]
      %v1936 = vld [vmem:[%s1908 + $0x140] sm:$0xff]
      %v1937 = vld [vmem:[%s1908 + $0x150] sm:$0xff]
      %v1938 = vld [vmem:[%s1908 + $0x158] sm:$0xff]
      %v1939 = vld [vmem:[%s1908 + $0x168] sm:$0xff]
      %v1940 = vld [vmem:[%s1908 + $0x170] sm:$0xff]
      %v1941 = vld [vmem:[%s1 + $0xf] sm:$0x1]
      %v1942 = vlaneseq
      %v1943 = vshrl.u32 %v1942, 7
      %v1944 = vsub.s32 0, %v1943
      %v1945 = vrot.slane %v1941, %v1944
      %v1946 = vmul.f32 %v1909, %v1945
      %v1947 = vmul.f32 %v1910, %v1945
      %v1948 = vmul.f32 %v1911, %v1945
      %v1949 = vmul.f32 %v1912, %v1945
      %v1950 = vmul.f32 %v1913, %v1945
      %v1951 = vmul.f32 %v1914, %v1945
      %v1952 = vmul.f32 %v1915, %v1945
      %v1953 = vmul.f32 %v1916, %v1945
      %v1954 = vmul.f32 %v1917, %v1945
      %v1955 = vmul.f32 %v1918, %v1945
      %v1956 = vmul.f32 %v1919, %v1945
      %v1957 = vmul.f32 %v1920, %v1945
      %v1958 = vmul.f32 %v1921, %v1945
      %v1959 = vmul.f32 %v1922, %v1945
      %v1960 = vmul.f32 %v1923, %v1945
      %v1961 = vmul.f32 %v1924, %v1945
      %v1962 = vmul.f32 %v1925, %v1945
      %v1963 = vmul.f32 %v1926, %v1945
      %v1964 = vmul.f32 %v1927, %v1945
      %v1965 = vmul.f32 %v1928, %v1945
      %v1966 = vmul.f32 %v1929, %v1945
      %v1967 = vmul.f32 %v1930, %v1945
      %v1968 = vmul.f32 %v1931, %v1945
      %v1969 = vmul.f32 %v1932, %v1945
      %v1970 = vmul.f32 %v1933, %v1945
      %v1971 = vmul.f32 %v1934, %v1945
      %v1972 = vmul.f32 %v1935, %v1945
      %v1973 = vmul.f32 %v1936, %v1945
      %v1974 = vmul.f32 %v1937, %v1945
      %v1975 = vmul.f32 %v1938, %v1945
      %v1976 = vmul.f32 %v1939, %v1945
      %v1977 = vmul.f32 %v1940, %v1945
      %v1978 = vadd.f32 %v1876, %v1946
      %v1979 = vadd.f32 %v1877, %v1947
      %v1980 = vadd.f32 %v1878, %v1948
      %v1981 = vadd.f32 %v1879, %v1949
      %v1982 = vadd.f32 %v1880, %v1950
      %v1983 = vadd.f32 %v1881, %v1951
      %v1984 = vadd.f32 %v1882, %v1952
      %v1985 = vadd.f32 %v1883, %v1953
      %v1986 = vadd.f32 %v1884, %v1954
      %v1987 = vadd.f32 %v1885, %v1955
      %v1988 = vadd.f32 %v1886, %v1956
      %v1989 = vadd.f32 %v1887, %v1957
      %v1990 = vadd.f32 %v1888, %v1958
      %v1991 = vadd.f32 %v1889, %v1959
      %v1992 = vadd.f32 %v1890, %v1960
      %v1993 = vadd.f32 %v1891, %v1961
      %v1994 = vadd.f32 %v1892, %v1962
      %v1995 = vadd.f32 %v1893, %v1963
      %v1996 = vadd.f32 %v1894, %v1964
      %v1997 = vadd.f32 %v1895, %v1965
      %v1998 = vadd.f32 %v1896, %v1966
      %v1999 = vadd.f32 %v1897, %v1967
      %v2000 = vadd.f32 %v1898, %v1968
      %v2001 = vadd.f32 %v1899, %v1969
      %v2002 = vadd.f32 %v1900, %v1970
      %v2003 = vadd.f32 %v1901, %v1971
      %v2004 = vadd.f32 %v1902, %v1972
      %v2005 = vadd.f32 %v1903, %v1973
      %v2006 = vadd.f32 %v1904, %v1974
      %v2007 = vadd.f32 %v1905, %v1975
      %v2008 = vadd.f32 %v1906, %v1976
      %v2009 = vadd.f32 %v1907, %v1977
      %v2010 = vld [vmem:[%s1908 + $0x1] sm:$0xff]
      %v2011 = vld [vmem:[%s1908 + $0x9] sm:$0xff]
      %v2012 = vld [vmem:[%s1908 + $0x19] sm:$0xff]
      %v2013 = vld [vmem:[%s1908 + $0x21] sm:$0xff]
      %v2014 = vld [vmem:[%s1908 + $0x31] sm:$0xff]
      %v2015 = vld [vmem:[%s1908 + $0x39] sm:$0xff]
      %v2016 = vld [vmem:[%s1908 + $0x49] sm:$0xff]
      %v2017 = vld [vmem:[%s1908 + $0x51] sm:$0xff]
      %v2018 = vld [vmem:[%s1908 + $0x61] sm:$0xff]
      %v2019 = vld [vmem:[%s1908 + $0x69] sm:$0xff]
      %v2020 = vld [vmem:[%s1908 + $0x79] sm:$0xff]
      %v2021 = vld [vmem:[%s1908 + $0x81] sm:$0xff]
      %v2022 = vld [vmem:[%s1908 + $0x91] sm:$0xff]
      %v2023 = vld [vmem:[%s1908 + $0x99] sm:$0xff]
      %v2024 = vld [vmem:[%s1908 + $0xa9] sm:$0xff]
      %v2025 = vld [vmem:[%s1908 + $0xb1] sm:$0xff]
      %v2026 = vld [vmem:[%s1908 + $0xc1] sm:$0xff]
      %v2027 = vld [vmem:[%s1908 + $0xc9] sm:$0xff]
      %v2028 = vld [vmem:[%s1908 + $0xd9] sm:$0xff]
      %v2029 = vld [vmem:[%s1908 + $0xe1] sm:$0xff]
      %v2030 = vld [vmem:[%s1908 + $0xf1] sm:$0xff]
      %v2031 = vld [vmem:[%s1908 + $0xf9] sm:$0xff]
      %v2032 = vld [vmem:[%s1908 + $0x109] sm:$0xff]
      %v2033 = vld [vmem:[%s1908 + $0x111] sm:$0xff]
      %v2034 = vld [vmem:[%s1908 + $0x121] sm:$0xff]
      %v2035 = vld [vmem:[%s1908 + $0x129] sm:$0xff]
      %v2036 = vld [vmem:[%s1908 + $0x139] sm:$0xff]
      %v2037 = vld [vmem:[%s1908 + $0x141] sm:$0xff]
      %v2038 = vld [vmem:[%s1908 + $0x151] sm:$0xff]
      %v2039 = vld [vmem:[%s1908 + $0x159] sm:$0xff]
      %v2040 = vld [vmem:[%s1908 + $0x169] sm:$0xff]
      %v2041 = vld [vmem:[%s1908 + $0x171] sm:$0xff]
      %v2042 = vld [vmem:[%s1 + $0x10] sm:$0x1]
      %v2043 = vlaneseq
      %v2044 = vshrl.u32 %v2043, 7
      %v2045 = vsub.s32 0, %v2044
      %v2046 = vrot.slane %v2042, %v2045
      %v2047 = vmul.f32 %v2010, %v2046
      %v2048 = vmul.f32 %v2011, %v2046
      %v2049 = vmul.f32 %v2012, %v2046
      %v2050 = vmul.f32 %v2013, %v2046
      %v2051 = vmul.f32 %v2014, %v2046
      %v2052 = vmul.f32 %v2015, %v2046
      %v2053 = vmul.f32 %v2016, %v2046
      %v2054 = vmul.f32 %v2017, %v2046
      %v2055 = vmul.f32 %v2018, %v2046
      %v2056 = vmul.f32 %v2019, %v2046
      %v2057 = vmul.f32 %v2020, %v2046
      %v2058 = vmul.f32 %v2021, %v2046
      %v2059 = vmul.f32 %v2022, %v2046
      %v2060 = vmul.f32 %v2023, %v2046
      %v2061 = vmul.f32 %v2024, %v2046
      %v2062 = vmul.f32 %v2025, %v2046
      %v2063 = vmul.f32 %v2026, %v2046
      %v2064 = vmul.f32 %v2027, %v2046
      %v2065 = vmul.f32 %v2028, %v2046
      %v2066 = vmul.f32 %v2029, %v2046
      %v2067 = vmul.f32 %v2030, %v2046
      %v2068 = vmul.f32 %v2031, %v2046
      %v2069 = vmul.f32 %v2032, %v2046
      %v2070 = vmul.f32 %v2033, %v2046
      %v2071 = vmul.f32 %v2034, %v2046
      %v2072 = vmul.f32 %v2035, %v2046
      %v2073 = vmul.f32 %v2036, %v2046
      %v2074 = vmul.f32 %v2037, %v2046
      %v2075 = vmul.f32 %v2038, %v2046
      %v2076 = vmul.f32 %v2039, %v2046
      %v2077 = vmul.f32 %v2040, %v2046
      %v2078 = vmul.f32 %v2041, %v2046
      %v2079 = vadd.f32 %v1978, %v2047
      %v2080 = vadd.f32 %v1979, %v2048
      %v2081 = vadd.f32 %v1980, %v2049
      %v2082 = vadd.f32 %v1981, %v2050
      %v2083 = vadd.f32 %v1982, %v2051
      %v2084 = vadd.f32 %v1983, %v2052
      %v2085 = vadd.f32 %v1984, %v2053
      %v2086 = vadd.f32 %v1985, %v2054
      %v2087 = vadd.f32 %v1986, %v2055
      %v2088 = vadd.f32 %v1987, %v2056
      %v2089 = vadd.f32 %v1988, %v2057
      %v2090 = vadd.f32 %v1989, %v2058
      %v2091 = vadd.f32 %v1990, %v2059
      %v2092 = vadd.f32 %v1991, %v2060
      %v2093 = vadd.f32 %v1992, %v2061
      %v2094 = vadd.f32 %v1993, %v2062
      %v2095 = vadd.f32 %v1994, %v2063
      %v2096 = vadd.f32 %v1995, %v2064
      %v2097 = vadd.f32 %v1996, %v2065
      %v2098 = vadd.f32 %v1997, %v2066
      %v2099 = vadd.f32 %v1998, %v2067
      %v2100 = vadd.f32 %v1999, %v2068
      %v2101 = vadd.f32 %v2000, %v2069
      %v2102 = vadd.f32 %v2001, %v2070
      %v2103 = vadd.f32 %v2002, %v2071
      %v2104 = vadd.f32 %v2003, %v2072
      %v2105 = vadd.f32 %v2004, %v2073
      %v2106 = vadd.f32 %v2005, %v2074
      %v2107 = vadd.f32 %v2006, %v2075
      %v2108 = vadd.f32 %v2007, %v2076
      %v2109 = vadd.f32 %v2008, %v2077
      %v2110 = vadd.f32 %v2009, %v2078
      %v2111 = vld [vmem:[%s1908 + $0x2] sm:$0xff]
      %v2112 = vld [vmem:[%s1908 + $0xa] sm:$0xff]
      %v2113 = vld [vmem:[%s1908 + $0x1a] sm:$0xff]
      %v2114 = vld [vmem:[%s1908 + $0x22] sm:$0xff]
      %v2115 = vld [vmem:[%s1908 + $0x32] sm:$0xff]
      %v2116 = vld [vmem:[%s1908 + $0x3a] sm:$0xff]
      %v2117 = vld [vmem:[%s1908 + $0x4a] sm:$0xff]
      %v2118 = vld [vmem:[%s1908 + $0x52] sm:$0xff]
      %v2119 = vld [vmem:[%s1908 + $0x62] sm:$0xff]
      %v2120 = vld [vmem:[%s1908 + $0x6a] sm:$0xff]
      %v2121 = vld [vmem:[%s1908 + $0x7a] sm:$0xff]
      %v2122 = vld [vmem:[%s1908 + $0x82] sm:$0xff]
      %v2123 = vld [vmem:[%s1908 + $0x92] sm:$0xff]
      %v2124 = vld [vmem:[%s1908 + $0x9a] sm:$0xff]
      %v2125 = vld [vmem:[%s1908 + $0xaa] sm:$0xff]
      %v2126 = vld [vmem:[%s1908 + $0xb2] sm:$0xff]
      %v2127 = vld [vmem:[%s1908 + $0xc2] sm:$0xff]
      %v2128 = vld [vmem:[%s1908 + $0xca] sm:$0xff]
      %v2129 = vld [vmem:[%s1908 + $0xda] sm:$0xff]
      %v2130 = vld [vmem:[%s1908 + $0xe2] sm:$0xff]
      %v2131 = vld [vmem:[%s1908 + $0xf2] sm:$0xff]
      %v2132 = vld [vmem:[%s1908 + $0xfa] sm:$0xff]
      %v2133 = vld [vmem:[%s1908 + $0x10a] sm:$0xff]
      %v2134 = vld [vmem:[%s1908 + $0x112] sm:$0xff]
      %v2135 = vld [vmem:[%s1908 + $0x122] sm:$0xff]
      %v2136 = vld [vmem:[%s1908 + $0x12a] sm:$0xff]
      %v2137 = vld [vmem:[%s1908 + $0x13a] sm:$0xff]
      %v2138 = vld [vmem:[%s1908 + $0x142] sm:$0xff]
      %v2139 = vld [vmem:[%s1908 + $0x152] sm:$0xff]
      %v2140 = vld [vmem:[%s1908 + $0x15a] sm:$0xff]
      %v2141 = vld [vmem:[%s1908 + $0x16a] sm:$0xff]
      %v2142 = vld [vmem:[%s1908 + $0x172] sm:$0xff]
      %v2143 = vld [vmem:[%s1 + $0x11] sm:$0x1]
      %v2144 = vlaneseq
      %v2145 = vshrl.u32 %v2144, 7
      %v2146 = vsub.s32 0, %v2145
      %v2147 = vrot.slane %v2143, %v2146
      %v2148 = vmul.f32 %v2111, %v2147
      %v2149 = vmul.f32 %v2112, %v2147
      %v2150 = vmul.f32 %v2113, %v2147
      %v2151 = vmul.f32 %v2114, %v2147
      %v2152 = vmul.f32 %v2115, %v2147
      %v2153 = vmul.f32 %v2116, %v2147
      %v2154 = vmul.f32 %v2117, %v2147
      %v2155 = vmul.f32 %v2118, %v2147
      %v2156 = vmul.f32 %v2119, %v2147
      %v2157 = vmul.f32 %v2120, %v2147
      %v2158 = vmul.f32 %v2121, %v2147
      %v2159 = vmul.f32 %v2122, %v2147
      %v2160 = vmul.f32 %v2123, %v2147
      %v2161 = vmul.f32 %v2124, %v2147
      %v2162 = vmul.f32 %v2125, %v2147
      %v2163 = vmul.f32 %v2126, %v2147
      %v2164 = vmul.f32 %v2127, %v2147
      %v2165 = vmul.f32 %v2128, %v2147
      %v2166 = vmul.f32 %v2129, %v2147
      %v2167 = vmul.f32 %v2130, %v2147
      %v2168 = vmul.f32 %v2131, %v2147
      %v2169 = vmul.f32 %v2132, %v2147
      %v2170 = vmul.f32 %v2133, %v2147
      %v2171 = vmul.f32 %v2134, %v2147
      %v2172 = vmul.f32 %v2135, %v2147
      %v2173 = vmul.f32 %v2136, %v2147
      %v2174 = vmul.f32 %v2137, %v2147
      %v2175 = vmul.f32 %v2138, %v2147
      %v2176 = vmul.f32 %v2139, %v2147
      %v2177 = vmul.f32 %v2140, %v2147
      %v2178 = vmul.f32 %v2141, %v2147
      %v2179 = vmul.f32 %v2142, %v2147
      %v2180 = vadd.f32 %v2079, %v2148
      %v2181 = vadd.f32 %v2080, %v2149
      %v2182 = vadd.f32 %v2081, %v2150
      %v2183 = vadd.f32 %v2082, %v2151
      %v2184 = vadd.f32 %v2083, %v2152
      %v2185 = vadd.f32 %v2084, %v2153
      %v2186 = vadd.f32 %v2085, %v2154
      %v2187 = vadd.f32 %v2086, %v2155
      %v2188 = vadd.f32 %v2087, %v2156
      %v2189 = vadd.f32 %v2088, %v2157
      %v2190 = vadd.f32 %v2089, %v2158
      %v2191 = vadd.f32 %v2090, %v2159
      %v2192 = vadd.f32 %v2091, %v2160
      %v2193 = vadd.f32 %v2092, %v2161
      %v2194 = vadd.f32 %v2093, %v2162
      %v2195 = vadd.f32 %v2094, %v2163
      %v2196 = vadd.f32 %v2095, %v2164
      %v2197 = vadd.f32 %v2096, %v2165
      %v2198 = vadd.f32 %v2097, %v2166
      %v2199 = vadd.f32 %v2098, %v2167
      %v2200 = vadd.f32 %v2099, %v2168
      %v2201 = vadd.f32 %v2100, %v2169
      %v2202 = vadd.f32 %v2101, %v2170
      %v2203 = vadd.f32 %v2102, %v2171
      %v2204 = vadd.f32 %v2103, %v2172
      %v2205 = vadd.f32 %v2104, %v2173
      %v2206 = vadd.f32 %v2105, %v2174
      %v2207 = vadd.f32 %v2106, %v2175
      %v2208 = vadd.f32 %v2107, %v2176
      %v2209 = vadd.f32 %v2108, %v2177
      %v2210 = vadd.f32 %v2109, %v2178
      %v2211 = vadd.f32 %v2110, %v2179
      %v2212 = vld [vmem:[%s1908 + $0x3] sm:$0xff]
      %v2213 = vld [vmem:[%s1908 + $0xb] sm:$0xff]
      %v2214 = vld [vmem:[%s1908 + $0x1b] sm:$0xff]
      %v2215 = vld [vmem:[%s1908 + $0x23] sm:$0xff]
      %v2216 = vld [vmem:[%s1908 + $0x33] sm:$0xff]
      %v2217 = vld [vmem:[%s1908 + $0x3b] sm:$0xff]
      %v2218 = vld [vmem:[%s1908 + $0x4b] sm:$0xff]
      %v2219 = vld [vmem:[%s1908 + $0x53] sm:$0xff]
      %v2220 = vld [vmem:[%s1908 + $0x63] sm:$0xff]
      %v2221 = vld [vmem:[%s1908 + $0x6b] sm:$0xff]
      %v2222 = vld [vmem:[%s1908 + $0x7b] sm:$0xff]
      %v2223 = vld [vmem:[%s1908 + $0x83] sm:$0xff]
      %v2224 = vld [vmem:[%s1908 + $0x93] sm:$0xff]
      %v2225 = vld [vmem:[%s1908 + $0x9b] sm:$0xff]
      %v2226 = vld [vmem:[%s1908 + $0xab] sm:$0xff]
      %v2227 = vld [vmem:[%s1908 + $0xb3] sm:$0xff]
      %v2228 = vld [vmem:[%s1908 + $0xc3] sm:$0xff]
      %v2229 = vld [vmem:[%s1908 + $0xcb] sm:$0xff]
      %v2230 = vld [vmem:[%s1908 + $0xdb] sm:$0xff]
      %v2231 = vld [vmem:[%s1908 + $0xe3] sm:$0xff]
      %v2232 = vld [vmem:[%s1908 + $0xf3] sm:$0xff]
      %v2233 = vld [vmem:[%s1908 + $0xfb] sm:$0xff]
      %v2234 = vld [vmem:[%s1908 + $0x10b] sm:$0xff]
      %v2235 = vld [vmem:[%s1908 + $0x113] sm:$0xff]
      %v2236 = vld [vmem:[%s1908 + $0x123] sm:$0xff]
      %v2237 = vld [vmem:[%s1908 + $0x12b] sm:$0xff]
      %v2238 = vld [vmem:[%s1908 + $0x13b] sm:$0xff]
      %v2239 = vld [vmem:[%s1908 + $0x143] sm:$0xff]
      %v2240 = vld [vmem:[%s1908 + $0x153] sm:$0xff]
      %v2241 = vld [vmem:[%s1908 + $0x15b] sm:$0xff]
      %v2242 = vld [vmem:[%s1908 + $0x16b] sm:$0xff]
      %v2243 = vld [vmem:[%s1908 + $0x173] sm:$0xff]
      %v2244 = vld [vmem:[%s1 + $0x12] sm:$0x1]
      %v2245 = vlaneseq
      %v2246 = vshrl.u32 %v2245, 7
      %v2247 = vsub.s32 0, %v2246
      %v2248 = vrot.slane %v2244, %v2247
      %v2249 = vmul.f32 %v2212, %v2248
      %v2250 = vmul.f32 %v2213, %v2248
      %v2251 = vmul.f32 %v2214, %v2248
      %v2252 = vmul.f32 %v2215, %v2248
      %v2253 = vmul.f32 %v2216, %v2248
      %v2254 = vmul.f32 %v2217, %v2248
      %v2255 = vmul.f32 %v2218, %v2248
      %v2256 = vmul.f32 %v2219, %v2248
      %v2257 = vmul.f32 %v2220, %v2248
      %v2258 = vmul.f32 %v2221, %v2248
      %v2259 = vmul.f32 %v2222, %v2248
      %v2260 = vmul.f32 %v2223, %v2248
      %v2261 = vmul.f32 %v2224, %v2248
      %v2262 = vmul.f32 %v2225, %v2248
      %v2263 = vmul.f32 %v2226, %v2248
      %v2264 = vmul.f32 %v2227, %v2248
      %v2265 = vmul.f32 %v2228, %v2248
      %v2266 = vmul.f32 %v2229, %v2248
      %v2267 = vmul.f32 %v2230, %v2248
      %v2268 = vmul.f32 %v2231, %v2248
      %v2269 = vmul.f32 %v2232, %v2248
      %v2270 = vmul.f32 %v2233, %v2248
      %v2271 = vmul.f32 %v2234, %v2248
      %v2272 = vmul.f32 %v2235, %v2248
      %v2273 = vmul.f32 %v2236, %v2248
      %v2274 = vmul.f32 %v2237, %v2248
      %v2275 = vmul.f32 %v2238, %v2248
      %v2276 = vmul.f32 %v2239, %v2248
      %v2277 = vmul.f32 %v2240, %v2248
      %v2278 = vmul.f32 %v2241, %v2248
      %v2279 = vmul.f32 %v2242, %v2248
      %v2280 = vmul.f32 %v2243, %v2248
      %v2281 = vadd.f32 %v2180, %v2249
      %v2282 = vadd.f32 %v2181, %v2250
      %v2283 = vadd.f32 %v2182, %v2251
      %v2284 = vadd.f32 %v2183, %v2252
      %v2285 = vadd.f32 %v2184, %v2253
      %v2286 = vadd.f32 %v2185, %v2254
      %v2287 = vadd.f32 %v2186, %v2255
      %v2288 = vadd.f32 %v2187, %v2256
      %v2289 = vadd.f32 %v2188, %v2257
      %v2290 = vadd.f32 %v2189, %v2258
      %v2291 = vadd.f32 %v2190, %v2259
      %v2292 = vadd.f32 %v2191, %v2260
      %v2293 = vadd.f32 %v2192, %v2261
      %v2294 = vadd.f32 %v2193, %v2262
      %v2295 = vadd.f32 %v2194, %v2263
      %v2296 = vadd.f32 %v2195, %v2264
      %v2297 = vadd.f32 %v2196, %v2265
      %v2298 = vadd.f32 %v2197, %v2266
      %v2299 = vadd.f32 %v2198, %v2267
      %v2300 = vadd.f32 %v2199, %v2268
      %v2301 = vadd.f32 %v2200, %v2269
      %v2302 = vadd.f32 %v2201, %v2270
      %v2303 = vadd.f32 %v2202, %v2271
      %v2304 = vadd.f32 %v2203, %v2272
      %v2305 = vadd.f32 %v2204, %v2273
      %v2306 = vadd.f32 %v2205, %v2274
      %v2307 = vadd.f32 %v2206, %v2275
      %v2308 = vadd.f32 %v2207, %v2276
      %v2309 = vadd.f32 %v2208, %v2277
      %v2310 = vadd.f32 %v2209, %v2278
      %v2311 = vadd.f32 %v2210, %v2279
      %v2312 = vadd.f32 %v2211, %v2280
      %v2313 = vld [vmem:[%s1908 + $0x4] sm:$0xff]
      %v2314 = vld [vmem:[%s1908 + $0xc] sm:$0xff]
      %v2315 = vld [vmem:[%s1908 + $0x1c] sm:$0xff]
      %v2316 = vld [vmem:[%s1908 + $0x24] sm:$0xff]
      %v2317 = vld [vmem:[%s1908 + $0x34] sm:$0xff]
      %v2318 = vld [vmem:[%s1908 + $0x3c] sm:$0xff]
      %v2319 = vld [vmem:[%s1908 + $0x4c] sm:$0xff]
      %v2320 = vld [vmem:[%s1908 + $0x54] sm:$0xff]
      %v2321 = vld [vmem:[%s1908 + $0x64] sm:$0xff]
      %v2322 = vld [vmem:[%s1908 + $0x6c] sm:$0xff]
      %v2323 = vld [vmem:[%s1908 + $0x7c] sm:$0xff]
      %v2324 = vld [vmem:[%s1908 + $0x84] sm:$0xff]
      %v2325 = vld [vmem:[%s1908 + $0x94] sm:$0xff]
      %v2326 = vld [vmem:[%s1908 + $0x9c] sm:$0xff]
      %v2327 = vld [vmem:[%s1908 + $0xac] sm:$0xff]
      %v2328 = vld [vmem:[%s1908 + $0xb4] sm:$0xff]
      %v2329 = vld [vmem:[%s1908 + $0xc4] sm:$0xff]
      %v2330 = vld [vmem:[%s1908 + $0xcc] sm:$0xff]
      %v2331 = vld [vmem:[%s1908 + $0xdc] sm:$0xff]
      %v2332 = vld [vmem:[%s1908 + $0xe4] sm:$0xff]
      %v2333 = vld [vmem:[%s1908 + $0xf4] sm:$0xff]
      %v2334 = vld [vmem:[%s1908 + $0xfc] sm:$0xff]
      %v2335 = vld [vmem:[%s1908 + $0x10c] sm:$0xff]
      %v2336 = vld [vmem:[%s1908 + $0x114] sm:$0xff]
      %v2337 = vld [vmem:[%s1908 + $0x124] sm:$0xff]
      %v2338 = vld [vmem:[%s1908 + $0x12c] sm:$0xff]
      %v2339 = vld [vmem:[%s1908 + $0x13c] sm:$0xff]
      %v2340 = vld [vmem:[%s1908 + $0x144] sm:$0xff]
      %v2341 = vld [vmem:[%s1908 + $0x154] sm:$0xff]
      %v2342 = vld [vmem:[%s1908 + $0x15c] sm:$0xff]
      %v2343 = vld [vmem:[%s1908 + $0x16c] sm:$0xff]
      %v2344 = vld [vmem:[%s1908 + $0x174] sm:$0xff]
      %v2345 = vld [vmem:[%s1 + $0x13] sm:$0x1]
      %v2346 = vlaneseq
      %v2347 = vshrl.u32 %v2346, 7
      %v2348 = vsub.s32 0, %v2347
      %v2349 = vrot.slane %v2345, %v2348
      %v2350 = vmul.f32 %v2313, %v2349
      %v2351 = vmul.f32 %v2314, %v2349
      %v2352 = vmul.f32 %v2315, %v2349
      %v2353 = vmul.f32 %v2316, %v2349
      %v2354 = vmul.f32 %v2317, %v2349
      %v2355 = vmul.f32 %v2318, %v2349
      %v2356 = vmul.f32 %v2319, %v2349
      %v2357 = vmul.f32 %v2320, %v2349
      %v2358 = vmul.f32 %v2321, %v2349
      %v2359 = vmul.f32 %v2322, %v2349
      %v2360 = vmul.f32 %v2323, %v2349
      %v2361 = vmul.f32 %v2324, %v2349
      %v2362 = vmul.f32 %v2325, %v2349
      %v2363 = vmul.f32 %v2326, %v2349
      %v2364 = vmul.f32 %v2327, %v2349
      %v2365 = vmul.f32 %v2328, %v2349
      %v2366 = vmul.f32 %v2329, %v2349
      %v2367 = vmul.f32 %v2330, %v2349
      %v2368 = vmul.f32 %v2331, %v2349
      %v2369 = vmul.f32 %v2332, %v2349
      %v2370 = vmul.f32 %v2333, %v2349
      %v2371 = vmul.f32 %v2334, %v2349
      %v2372 = vmul.f32 %v2335, %v2349
      %v2373 = vmul.f32 %v2336, %v2349
      %v2374 = vmul.f32 %v2337, %v2349
      %v2375 = vmul.f32 %v2338, %v2349
      %v2376 = vmul.f32 %v2339, %v2349
      %v2377 = vmul.f32 %v2340, %v2349
      %v2378 = vmul.f32 %v2341, %v2349
      %v2379 = vmul.f32 %v2342, %v2349
      %v2380 = vmul.f32 %v2343, %v2349
      %v2381 = vmul.f32 %v2344, %v2349
      %v2382 = vadd.f32 %v2281, %v2350
      %v2383 = vadd.f32 %v2282, %v2351
      %v2384 = vadd.f32 %v2283, %v2352
      %v2385 = vadd.f32 %v2284, %v2353
      %v2386 = vadd.f32 %v2285, %v2354
      %v2387 = vadd.f32 %v2286, %v2355
      %v2388 = vadd.f32 %v2287, %v2356
      %v2389 = vadd.f32 %v2288, %v2357
      %v2390 = vadd.f32 %v2289, %v2358
      %v2391 = vadd.f32 %v2290, %v2359
      %v2392 = vadd.f32 %v2291, %v2360
      %v2393 = vadd.f32 %v2292, %v2361
      %v2394 = vadd.f32 %v2293, %v2362
      %v2395 = vadd.f32 %v2294, %v2363
      %v2396 = vadd.f32 %v2295, %v2364
      %v2397 = vadd.f32 %v2296, %v2365
      %v2398 = vadd.f32 %v2297, %v2366
      %v2399 = vadd.f32 %v2298, %v2367
      %v2400 = vadd.f32 %v2299, %v2368
      %v2401 = vadd.f32 %v2300, %v2369
      %v2402 = vadd.f32 %v2301, %v2370
      %v2403 = vadd.f32 %v2302, %v2371
      %v2404 = vadd.f32 %v2303, %v2372
      %v2405 = vadd.f32 %v2304, %v2373
      %v2406 = vadd.f32 %v2305, %v2374
      %v2407 = vadd.f32 %v2306, %v2375
      %v2408 = vadd.f32 %v2307, %v2376
      %v2409 = vadd.f32 %v2308, %v2377
      %v2410 = vadd.f32 %v2309, %v2378
      %v2411 = vadd.f32 %v2310, %v2379
      %v2412 = vadd.f32 %v2311, %v2380
      %v2413 = vadd.f32 %v2312, %v2381
      %s2414 = scalar_lea.vmem [#allocation2], 96
      %v2415 = vld [vmem:[%s2414] sm:$0xff]
      %v2416 = vld [vmem:[%s2414 + $0x8] sm:$0xff]
      %v2417 = vld [vmem:[%s2414 + $0x18] sm:$0xff]
      %v2418 = vld [vmem:[%s2414 + $0x20] sm:$0xff]
      %v2419 = vld [vmem:[%s2414 + $0x30] sm:$0xff]
      %v2420 = vld [vmem:[%s2414 + $0x38] sm:$0xff]
      %v2421 = vld [vmem:[%s2414 + $0x48] sm:$0xff]
      %v2422 = vld [vmem:[%s2414 + $0x50] sm:$0xff]
      %v2423 = vld [vmem:[%s2414 + $0x60] sm:$0xff]
      %v2424 = vld [vmem:[%s2414 + $0x68] sm:$0xff]
      %v2425 = vld [vmem:[%s2414 + $0x78] sm:$0xff]
      %v2426 = vld [vmem:[%s2414 + $0x80] sm:$0xff]
      %v2427 = vld [vmem:[%s2414 + $0x90] sm:$0xff]
      %v2428 = vld [vmem:[%s2414 + $0x98] sm:$0xff]
      %v2429 = vld [vmem:[%s2414 + $0xa8] sm:$0xff]
      %v2430 = vld [vmem:[%s2414 + $0xb0] sm:$0xff]
      %v2431 = vld [vmem:[%s2414 + $0xc0] sm:$0xff]
      %v2432 = vld [vmem:[%s2414 + $0xc8] sm:$0xff]
      %v2433 = vld [vmem:[%s2414 + $0xd8] sm:$0xff]
      %v2434 = vld [vmem:[%s2414 + $0xe0] sm:$0xff]
      %v2435 = vld [vmem:[%s2414 + $0xf0] sm:$0xff]
      %v2436 = vld [vmem:[%s2414 + $0xf8] sm:$0xff]
      %v2437 = vld [vmem:[%s2414 + $0x108] sm:$0xff]
      %v2438 = vld [vmem:[%s2414 + $0x110] sm:$0xff]
      %v2439 = vld [vmem:[%s2414 + $0x120] sm:$0xff]
      %v2440 = vld [vmem:[%s2414 + $0x128] sm:$0xff]
      %v2441 = vld [vmem:[%s2414 + $0x138] sm:$0xff]
      %v2442 = vld [vmem:[%s2414 + $0x140] sm:$0xff]
      %v2443 = vld [vmem:[%s2414 + $0x150] sm:$0xff]
      %v2444 = vld [vmem:[%s2414 + $0x158] sm:$0xff]
      %v2445 = vld [vmem:[%s2414 + $0x168] sm:$0xff]
      %v2446 = vld [vmem:[%s2414 + $0x170] sm:$0xff]
      %v2447 = vld [vmem:[%s1 + $0x14] sm:$0x1]
      %v2448 = vlaneseq
      %v2449 = vshrl.u32 %v2448, 7
      %v2450 = vsub.s32 0, %v2449
      %v2451 = vrot.slane %v2447, %v2450
      %v2452 = vmul.f32 %v2415, %v2451
      %v2453 = vmul.f32 %v2416, %v2451
      %v2454 = vmul.f32 %v2417, %v2451
      %v2455 = vmul.f32 %v2418, %v2451
      %v2456 = vmul.f32 %v2419, %v2451
      %v2457 = vmul.f32 %v2420, %v2451
      %v2458 = vmul.f32 %v2421, %v2451
      %v2459 = vmul.f32 %v2422, %v2451
      %v2460 = vmul.f32 %v2423, %v2451
      %v2461 = vmul.f32 %v2424, %v2451
      %v2462 = vmul.f32 %v2425, %v2451
      %v2463 = vmul.f32 %v2426, %v2451
      %v2464 = vmul.f32 %v2427, %v2451
      %v2465 = vmul.f32 %v2428, %v2451
      %v2466 = vmul.f32 %v2429, %v2451
      %v2467 = vmul.f32 %v2430, %v2451
      %v2468 = vmul.f32 %v2431, %v2451
      %v2469 = vmul.f32 %v2432, %v2451
      %v2470 = vmul.f32 %v2433, %v2451
      %v2471 = vmul.f32 %v2434, %v2451
      %v2472 = vmul.f32 %v2435, %v2451
      %v2473 = vmul.f32 %v2436, %v2451
      %v2474 = vmul.f32 %v2437, %v2451
      %v2475 = vmul.f32 %v2438, %v2451
      %v2476 = vmul.f32 %v2439, %v2451
      %v2477 = vmul.f32 %v2440, %v2451
      %v2478 = vmul.f32 %v2441, %v2451
      %v2479 = vmul.f32 %v2442, %v2451
      %v2480 = vmul.f32 %v2443, %v2451
      %v2481 = vmul.f32 %v2444, %v2451
      %v2482 = vmul.f32 %v2445, %v2451
      %v2483 = vmul.f32 %v2446, %v2451
      %v2484 = vadd.f32 %v2382, %v2452
      %v2485 = vadd.f32 %v2383, %v2453
      %v2486 = vadd.f32 %v2384, %v2454
      %v2487 = vadd.f32 %v2385, %v2455
      %v2488 = vadd.f32 %v2386, %v2456
      %v2489 = vadd.f32 %v2387, %v2457
      %v2490 = vadd.f32 %v2388, %v2458
      %v2491 = vadd.f32 %v2389, %v2459
      %v2492 = vadd.f32 %v2390, %v2460
      %v2493 = vadd.f32 %v2391, %v2461
      %v2494 = vadd.f32 %v2392, %v2462
      %v2495 = vadd.f32 %v2393, %v2463
      %v2496 = vadd.f32 %v2394, %v2464
      %v2497 = vadd.f32 %v2395, %v2465
      %v2498 = vadd.f32 %v2396, %v2466
      %v2499 = vadd.f32 %v2397, %v2467
      %v2500 = vadd.f32 %v2398, %v2468
      %v2501 = vadd.f32 %v2399, %v2469
      %v2502 = vadd.f32 %v2400, %v2470
      %v2503 = vadd.f32 %v2401, %v2471
      %v2504 = vadd.f32 %v2402, %v2472
      %v2505 = vadd.f32 %v2403, %v2473
      %v2506 = vadd.f32 %v2404, %v2474
      %v2507 = vadd.f32 %v2405, %v2475
      %v2508 = vadd.f32 %v2406, %v2476
      %v2509 = vadd.f32 %v2407, %v2477
      %v2510 = vadd.f32 %v2408, %v2478
      %v2511 = vadd.f32 %v2409, %v2479
      %v2512 = vadd.f32 %v2410, %v2480
      %v2513 = vadd.f32 %v2411, %v2481
      %v2514 = vadd.f32 %v2412, %v2482
      %v2515 = vadd.f32 %v2413, %v2483
      %v2516 = vld [vmem:[%s2414 + $0x1] sm:$0xff]
      %v2517 = vld [vmem:[%s2414 + $0x9] sm:$0xff]
      %v2518 = vld [vmem:[%s2414 + $0x19] sm:$0xff]
      %v2519 = vld [vmem:[%s2414 + $0x21] sm:$0xff]
      %v2520 = vld [vmem:[%s2414 + $0x31] sm:$0xff]
      %v2521 = vld [vmem:[%s2414 + $0x39] sm:$0xff]
      %v2522 = vld [vmem:[%s2414 + $0x49] sm:$0xff]
      %v2523 = vld [vmem:[%s2414 + $0x51] sm:$0xff]
      %v2524 = vld [vmem:[%s2414 + $0x61] sm:$0xff]
      %v2525 = vld [vmem:[%s2414 + $0x69] sm:$0xff]
      %v2526 = vld [vmem:[%s2414 + $0x79] sm:$0xff]
      %v2527 = vld [vmem:[%s2414 + $0x81] sm:$0xff]
      %v2528 = vld [vmem:[%s2414 + $0x91] sm:$0xff]
      %v2529 = vld [vmem:[%s2414 + $0x99] sm:$0xff]
      %v2530 = vld [vmem:[%s2414 + $0xa9] sm:$0xff]
      %v2531 = vld [vmem:[%s2414 + $0xb1] sm:$0xff]
      %v2532 = vld [vmem:[%s2414 + $0xc1] sm:$0xff]
      %v2533 = vld [vmem:[%s2414 + $0xc9] sm:$0xff]
      %v2534 = vld [vmem:[%s2414 + $0xd9] sm:$0xff]
      %v2535 = vld [vmem:[%s2414 + $0xe1] sm:$0xff]
      %v2536 = vld [vmem:[%s2414 + $0xf1] sm:$0xff]
      %v2537 = vld [vmem:[%s2414 + $0xf9] sm:$0xff]
      %v2538 = vld [vmem:[%s2414 + $0x109] sm:$0xff]
      %v2539 = vld [vmem:[%s2414 + $0x111] sm:$0xff]
      %v2540 = vld [vmem:[%s2414 + $0x121] sm:$0xff]
      %v2541 = vld [vmem:[%s2414 + $0x129] sm:$0xff]
      %v2542 = vld [vmem:[%s2414 + $0x139] sm:$0xff]
      %v2543 = vld [vmem:[%s2414 + $0x141] sm:$0xff]
      %v2544 = vld [vmem:[%s2414 + $0x151] sm:$0xff]
      %v2545 = vld [vmem:[%s2414 + $0x159] sm:$0xff]
      %v2546 = vld [vmem:[%s2414 + $0x169] sm:$0xff]
      %v2547 = vld [vmem:[%s2414 + $0x171] sm:$0xff]
      %v2548 = vld [vmem:[%s1 + $0x15] sm:$0x1]
      %v2549 = vlaneseq
      %v2550 = vshrl.u32 %v2549, 7
      %v2551 = vsub.s32 0, %v2550
      %v2552 = vrot.slane %v2548, %v2551
      %v2553 = vmul.f32 %v2516, %v2552
      %v2554 = vmul.f32 %v2517, %v2552
      %v2555 = vmul.f32 %v2518, %v2552
      %v2556 = vmul.f32 %v2519, %v2552
      %v2557 = vmul.f32 %v2520, %v2552
      %v2558 = vmul.f32 %v2521, %v2552
      %v2559 = vmul.f32 %v2522, %v2552
      %v2560 = vmul.f32 %v2523, %v2552
      %v2561 = vmul.f32 %v2524, %v2552
      %v2562 = vmul.f32 %v2525, %v2552
      %v2563 = vmul.f32 %v2526, %v2552
      %v2564 = vmul.f32 %v2527, %v2552
      %v2565 = vmul.f32 %v2528, %v2552
      %v2566 = vmul.f32 %v2529, %v2552
      %v2567 = vmul.f32 %v2530, %v2552
      %v2568 = vmul.f32 %v2531, %v2552
      %v2569 = vmul.f32 %v2532, %v2552
      %v2570 = vmul.f32 %v2533, %v2552
      %v2571 = vmul.f32 %v2534, %v2552
      %v2572 = vmul.f32 %v2535, %v2552
      %v2573 = vmul.f32 %v2536, %v2552
      %v2574 = vmul.f32 %v2537, %v2552
      %v2575 = vmul.f32 %v2538, %v2552
      %v2576 = vmul.f32 %v2539, %v2552
      %v2577 = vmul.f32 %v2540, %v2552
      %v2578 = vmul.f32 %v2541, %v2552
      %v2579 = vmul.f32 %v2542, %v2552
      %v2580 = vmul.f32 %v2543, %v2552
      %v2581 = vmul.f32 %v2544, %v2552
      %v2582 = vmul.f32 %v2545, %v2552
      %v2583 = vmul.f32 %v2546, %v2552
      %v2584 = vmul.f32 %v2547, %v2552
      %v2585 = vadd.f32 %v2484, %v2553
      %v2586 = vadd.f32 %v2485, %v2554
      %v2587 = vadd.f32 %v2486, %v2555
      %v2588 = vadd.f32 %v2487, %v2556
      %v2589 = vadd.f32 %v2488, %v2557
      %v2590 = vadd.f32 %v2489, %v2558
      %v2591 = vadd.f32 %v2490, %v2559
      %v2592 = vadd.f32 %v2491, %v2560
      %v2593 = vadd.f32 %v2492, %v2561
      %v2594 = vadd.f32 %v2493, %v2562
      %v2595 = vadd.f32 %v2494, %v2563
      %v2596 = vadd.f32 %v2495, %v2564
      %v2597 = vadd.f32 %v2496, %v2565
      %v2598 = vadd.f32 %v2497, %v2566
      %v2599 = vadd.f32 %v2498, %v2567
      %v2600 = vadd.f32 %v2499, %v2568
      %v2601 = vadd.f32 %v2500, %v2569
      %v2602 = vadd.f32 %v2501, %v2570
      %v2603 = vadd.f32 %v2502, %v2571
      %v2604 = vadd.f32 %v2503, %v2572
      %v2605 = vadd.f32 %v2504, %v2573
      %v2606 = vadd.f32 %v2505, %v2574
      %v2607 = vadd.f32 %v2506, %v2575
      %v2608 = vadd.f32 %v2507, %v2576
      %v2609 = vadd.f32 %v2508, %v2577
      %v2610 = vadd.f32 %v2509, %v2578
      %v2611 = vadd.f32 %v2510, %v2579
      %v2612 = vadd.f32 %v2511, %v2580
      %v2613 = vadd.f32 %v2512, %v2581
      %v2614 = vadd.f32 %v2513, %v2582
      %v2615 = vadd.f32 %v2514, %v2583
      %v2616 = vadd.f32 %v2515, %v2584
      %v2617 = vld [vmem:[%s2414 + $0x2] sm:$0xff]
      %v2618 = vld [vmem:[%s2414 + $0xa] sm:$0xff]
      %v2619 = vld [vmem:[%s2414 + $0x1a] sm:$0xff]
      %v2620 = vld [vmem:[%s2414 + $0x22] sm:$0xff]
      %v2621 = vld [vmem:[%s2414 + $0x32] sm:$0xff]
      %v2622 = vld [vmem:[%s2414 + $0x3a] sm:$0xff]
      %v2623 = vld [vmem:[%s2414 + $0x4a] sm:$0xff]
      %v2624 = vld [vmem:[%s2414 + $0x52] sm:$0xff]
      %v2625 = vld [vmem:[%s2414 + $0x62] sm:$0xff]
      %v2626 = vld [vmem:[%s2414 + $0x6a] sm:$0xff]
      %v2627 = vld [vmem:[%s2414 + $0x7a] sm:$0xff]
      %v2628 = vld [vmem:[%s2414 + $0x82] sm:$0xff]
      %v2629 = vld [vmem:[%s2414 + $0x92] sm:$0xff]
      %v2630 = vld [vmem:[%s2414 + $0x9a] sm:$0xff]
      %v2631 = vld [vmem:[%s2414 + $0xaa] sm:$0xff]
      %v2632 = vld [vmem:[%s2414 + $0xb2] sm:$0xff]
      %v2633 = vld [vmem:[%s2414 + $0xc2] sm:$0xff]
      %v2634 = vld [vmem:[%s2414 + $0xca] sm:$0xff]
      %v2635 = vld [vmem:[%s2414 + $0xda] sm:$0xff]
      %v2636 = vld [vmem:[%s2414 + $0xe2] sm:$0xff]
      %v2637 = vld [vmem:[%s2414 + $0xf2] sm:$0xff]
      %v2638 = vld [vmem:[%s2414 + $0xfa] sm:$0xff]
      %v2639 = vld [vmem:[%s2414 + $0x10a] sm:$0xff]
      %v2640 = vld [vmem:[%s2414 + $0x112] sm:$0xff]
      %v2641 = vld [vmem:[%s2414 + $0x122] sm:$0xff]
      %v2642 = vld [vmem:[%s2414 + $0x12a] sm:$0xff]
      %v2643 = vld [vmem:[%s2414 + $0x13a] sm:$0xff]
      %v2644 = vld [vmem:[%s2414 + $0x142] sm:$0xff]
      %v2645 = vld [vmem:[%s2414 + $0x152] sm:$0xff]
      %v2646 = vld [vmem:[%s2414 + $0x15a] sm:$0xff]
      %v2647 = vld [vmem:[%s2414 + $0x16a] sm:$0xff]
      %v2648 = vld [vmem:[%s2414 + $0x172] sm:$0xff]
      %v2649 = vld [vmem:[%s1 + $0x16] sm:$0x1]
      %v2650 = vlaneseq
      %v2651 = vshrl.u32 %v2650, 7
      %v2652 = vsub.s32 0, %v2651
      %v2653 = vrot.slane %v2649, %v2652
      %v2654 = vmul.f32 %v2617, %v2653
      %v2655 = vmul.f32 %v2618, %v2653
      %v2656 = vmul.f32 %v2619, %v2653
      %v2657 = vmul.f32 %v2620, %v2653
      %v2658 = vmul.f32 %v2621, %v2653
      %v2659 = vmul.f32 %v2622, %v2653
      %v2660 = vmul.f32 %v2623, %v2653
      %v2661 = vmul.f32 %v2624, %v2653
      %v2662 = vmul.f32 %v2625, %v2653
      %v2663 = vmul.f32 %v2626, %v2653
      %v2664 = vmul.f32 %v2627, %v2653
      %v2665 = vmul.f32 %v2628, %v2653
      %v2666 = vmul.f32 %v2629, %v2653
      %v2667 = vmul.f32 %v2630, %v2653
      %v2668 = vmul.f32 %v2631, %v2653
      %v2669 = vmul.f32 %v2632, %v2653
      %v2670 = vmul.f32 %v2633, %v2653
      %v2671 = vmul.f32 %v2634, %v2653
      %v2672 = vmul.f32 %v2635, %v2653
      %v2673 = vmul.f32 %v2636, %v2653
      %v2674 = vmul.f32 %v2637, %v2653
      %v2675 = vmul.f32 %v2638, %v2653
      %v2676 = vmul.f32 %v2639, %v2653
      %v2677 = vmul.f32 %v2640, %v2653
      %v2678 = vmul.f32 %v2641, %v2653
      %v2679 = vmul.f32 %v2642, %v2653
      %v2680 = vmul.f32 %v2643, %v2653
      %v2681 = vmul.f32 %v2644, %v2653
      %v2682 = vmul.f32 %v2645, %v2653
      %v2683 = vmul.f32 %v2646, %v2653
      %v2684 = vmul.f32 %v2647, %v2653
      %v2685 = vmul.f32 %v2648, %v2653
      %v2686 = vadd.f32 %v2585, %v2654
      %v2687 = vadd.f32 %v2586, %v2655
      %v2688 = vadd.f32 %v2587, %v2656
      %v2689 = vadd.f32 %v2588, %v2657
      %v2690 = vadd.f32 %v2589, %v2658
      %v2691 = vadd.f32 %v2590, %v2659
      %v2692 = vadd.f32 %v2591, %v2660
      %v2693 = vadd.f32 %v2592, %v2661
      %v2694 = vadd.f32 %v2593, %v2662
      %v2695 = vadd.f32 %v2594, %v2663
      %v2696 = vadd.f32 %v2595, %v2664
      %v2697 = vadd.f32 %v2596, %v2665
      %v2698 = vadd.f32 %v2597, %v2666
      %v2699 = vadd.f32 %v2598, %v2667
      %v2700 = vadd.f32 %v2599, %v2668
      %v2701 = vadd.f32 %v2600, %v2669
      %v2702 = vadd.f32 %v2601, %v2670
      %v2703 = vadd.f32 %v2602, %v2671
      %v2704 = vadd.f32 %v2603, %v2672
      %v2705 = vadd.f32 %v2604, %v2673
      %v2706 = vadd.f32 %v2605, %v2674
      %v2707 = vadd.f32 %v2606, %v2675
      %v2708 = vadd.f32 %v2607, %v2676
      %v2709 = vadd.f32 %v2608, %v2677
      %v2710 = vadd.f32 %v2609, %v2678
      %v2711 = vadd.f32 %v2610, %v2679
      %v2712 = vadd.f32 %v2611, %v2680
      %v2713 = vadd.f32 %v2612, %v2681
      %v2714 = vadd.f32 %v2613, %v2682
      %v2715 = vadd.f32 %v2614, %v2683
      %v2716 = vadd.f32 %v2615, %v2684
      %v2717 = vadd.f32 %v2616, %v2685
      %v2718 = vld [vmem:[%s2414 + $0x3] sm:$0xff]
      %v2719 = vld [vmem:[%s2414 + $0xb] sm:$0xff]
      %v2720 = vld [vmem:[%s2414 + $0x1b] sm:$0xff]
      %v2721 = vld [vmem:[%s2414 + $0x23] sm:$0xff]
      %v2722 = vld [vmem:[%s2414 + $0x33] sm:$0xff]
      %v2723 = vld [vmem:[%s2414 + $0x3b] sm:$0xff]
      %v2724 = vld [vmem:[%s2414 + $0x4b] sm:$0xff]
      %v2725 = vld [vmem:[%s2414 + $0x53] sm:$0xff]
      %v2726 = vld [vmem:[%s2414 + $0x63] sm:$0xff]
      %v2727 = vld [vmem:[%s2414 + $0x6b] sm:$0xff]
      %v2728 = vld [vmem:[%s2414 + $0x7b] sm:$0xff]
      %v2729 = vld [vmem:[%s2414 + $0x83] sm:$0xff]
      %v2730 = vld [vmem:[%s2414 + $0x93] sm:$0xff]
      %v2731 = vld [vmem:[%s2414 + $0x9b] sm:$0xff]
      %v2732 = vld [vmem:[%s2414 + $0xab] sm:$0xff]
      %v2733 = vld [vmem:[%s2414 + $0xb3] sm:$0xff]
      %v2734 = vld [vmem:[%s2414 + $0xc3] sm:$0xff]
      %v2735 = vld [vmem:[%s2414 + $0xcb] sm:$0xff]
      %v2736 = vld [vmem:[%s2414 + $0xdb] sm:$0xff]
      %v2737 = vld [vmem:[%s2414 + $0xe3] sm:$0xff]
      %v2738 = vld [vmem:[%s2414 + $0xf3] sm:$0xff]
      %v2739 = vld [vmem:[%s2414 + $0xfb] sm:$0xff]
      %v2740 = vld [vmem:[%s2414 + $0x10b] sm:$0xff]
      %v2741 = vld [vmem:[%s2414 + $0x113] sm:$0xff]
      %v2742 = vld [vmem:[%s2414 + $0x123] sm:$0xff]
      %v2743 = vld [vmem:[%s2414 + $0x12b] sm:$0xff]
      %v2744 = vld [vmem:[%s2414 + $0x13b] sm:$0xff]
      %v2745 = vld [vmem:[%s2414 + $0x143] sm:$0xff]
      %v2746 = vld [vmem:[%s2414 + $0x153] sm:$0xff]
      %v2747 = vld [vmem:[%s2414 + $0x15b] sm:$0xff]
      %v2748 = vld [vmem:[%s2414 + $0x16b] sm:$0xff]
      %v2749 = vld [vmem:[%s2414 + $0x173] sm:$0xff]
      %v2750 = vld [vmem:[%s1 + $0x17] sm:$0x1]
      %v2751 = vlaneseq
      %v2752 = vshrl.u32 %v2751, 7
      %v2753 = vsub.s32 0, %v2752
      %v2754 = vrot.slane %v2750, %v2753
      %v2755 = vmul.f32 %v2718, %v2754
      %v2756 = vmul.f32 %v2719, %v2754
      %v2757 = vmul.f32 %v2720, %v2754
      %v2758 = vmul.f32 %v2721, %v2754
      %v2759 = vmul.f32 %v2722, %v2754
      %v2760 = vmul.f32 %v2723, %v2754
      %v2761 = vmul.f32 %v2724, %v2754
      %v2762 = vmul.f32 %v2725, %v2754
      %v2763 = vmul.f32 %v2726, %v2754
      %v2764 = vmul.f32 %v2727, %v2754
      %v2765 = vmul.f32 %v2728, %v2754
      %v2766 = vmul.f32 %v2729, %v2754
      %v2767 = vmul.f32 %v2730, %v2754
      %v2768 = vmul.f32 %v2731, %v2754
      %v2769 = vmul.f32 %v2732, %v2754
      %v2770 = vmul.f32 %v2733, %v2754
      %v2771 = vmul.f32 %v2734, %v2754
      %v2772 = vmul.f32 %v2735, %v2754
      %v2773 = vmul.f32 %v2736, %v2754
      %v2774 = vmul.f32 %v2737, %v2754
      %v2775 = vmul.f32 %v2738, %v2754
      %v2776 = vmul.f32 %v2739, %v2754
      %v2777 = vmul.f32 %v2740, %v2754
      %v2778 = vmul.f32 %v2741, %v2754
      %v2779 = vmul.f32 %v2742, %v2754
      %v2780 = vmul.f32 %v2743, %v2754
      %v2781 = vmul.f32 %v2744, %v2754
      %v2782 = vmul.f32 %v2745, %v2754
      %v2783 = vmul.f32 %v2746, %v2754
      %v2784 = vmul.f32 %v2747, %v2754
      %v2785 = vmul.f32 %v2748, %v2754
      %v2786 = vmul.f32 %v2749, %v2754
      %v2787 = vadd.f32 %v2686, %v2755
      %v2788 = vadd.f32 %v2687, %v2756
      %v2789 = vadd.f32 %v2688, %v2757
      %v2790 = vadd.f32 %v2689, %v2758
      %v2791 = vadd.f32 %v2690, %v2759
      %v2792 = vadd.f32 %v2691, %v2760
      %v2793 = vadd.f32 %v2692, %v2761
      %v2794 = vadd.f32 %v2693, %v2762
      %v2795 = vadd.f32 %v2694, %v2763
      %v2796 = vadd.f32 %v2695, %v2764
      %v2797 = vadd.f32 %v2696, %v2765
      %v2798 = vadd.f32 %v2697, %v2766
      %v2799 = vadd.f32 %v2698, %v2767
      %v2800 = vadd.f32 %v2699, %v2768
      %v2801 = vadd.f32 %v2700, %v2769
      %v2802 = vadd.f32 %v2701, %v2770
      %v2803 = vadd.f32 %v2702, %v2771
      %v2804 = vadd.f32 %v2703, %v2772
      %v2805 = vadd.f32 %v2704, %v2773
      %v2806 = vadd.f32 %v2705, %v2774
      %v2807 = vadd.f32 %v2706, %v2775
      %v2808 = vadd.f32 %v2707, %v2776
      %v2809 = vadd.f32 %v2708, %v2777
      %v2810 = vadd.f32 %v2709, %v2778
      %v2811 = vadd.f32 %v2710, %v2779
      %v2812 = vadd.f32 %v2711, %v2780
      %v2813 = vadd.f32 %v2712, %v2781
      %v2814 = vadd.f32 %v2713, %v2782
      %v2815 = vadd.f32 %v2714, %v2783
      %v2816 = vadd.f32 %v2715, %v2784
      %v2817 = vadd.f32 %v2716, %v2785
      %v2818 = vadd.f32 %v2717, %v2786
      %v2819 = vld [vmem:[%s2414 + $0x4] sm:$0xff]
      %v2820 = vld [vmem:[%s2414 + $0xc] sm:$0xff]
      %v2821 = vld [vmem:[%s2414 + $0x1c] sm:$0xff]
      %v2822 = vld [vmem:[%s2414 + $0x24] sm:$0xff]
      %v2823 = vld [vmem:[%s2414 + $0x34] sm:$0xff]
      %v2824 = vld [vmem:[%s2414 + $0x3c] sm:$0xff]
      %v2825 = vld [vmem:[%s2414 + $0x4c] sm:$0xff]
      %v2826 = vld [vmem:[%s2414 + $0x54] sm:$0xff]
      %v2827 = vld [vmem:[%s2414 + $0x64] sm:$0xff]
      %v2828 = vld [vmem:[%s2414 + $0x6c] sm:$0xff]
      %v2829 = vld [vmem:[%s2414 + $0x7c] sm:$0xff]
      %v2830 = vld [vmem:[%s2414 + $0x84] sm:$0xff]
      %v2831 = vld [vmem:[%s2414 + $0x94] sm:$0xff]
      %v2832 = vld [vmem:[%s2414 + $0x9c] sm:$0xff]
      %v2833 = vld [vmem:[%s2414 + $0xac] sm:$0xff]
      %v2834 = vld [vmem:[%s2414 + $0xb4] sm:$0xff]
      %v2835 = vld [vmem:[%s2414 + $0xc4] sm:$0xff]
      %v2836 = vld [vmem:[%s2414 + $0xcc] sm:$0xff]
      %v2837 = vld [vmem:[%s2414 + $0xdc] sm:$0xff]
      %v2838 = vld [vmem:[%s2414 + $0xe4] sm:$0xff]
      %v2839 = vld [vmem:[%s2414 + $0xf4] sm:$0xff]
      %v2840 = vld [vmem:[%s2414 + $0xfc] sm:$0xff]
      %v2841 = vld [vmem:[%s2414 + $0x10c] sm:$0xff]
      %v2842 = vld [vmem:[%s2414 + $0x114] sm:$0xff]
      %v2843 = vld [vmem:[%s2414 + $0x124] sm:$0xff]
      %v2844 = vld [vmem:[%s2414 + $0x12c] sm:$0xff]
      %v2845 = vld [vmem:[%s2414 + $0x13c] sm:$0xff]
      %v2846 = vld [vmem:[%s2414 + $0x144] sm:$0xff]
      %v2847 = vld [vmem:[%s2414 + $0x154] sm:$0xff]
      %v2848 = vld [vmem:[%s2414 + $0x15c] sm:$0xff]
      %v2849 = vld [vmem:[%s2414 + $0x16c] sm:$0xff]
      %v2850 = vld [vmem:[%s2414 + $0x174] sm:$0xff]
      %v2851 = vld [vmem:[%s1 + $0x18] sm:$0x1]
      %v2852 = vlaneseq
      %v2853 = vshrl.u32 %v2852, 7
      %v2854 = vsub.s32 0, %v2853
      %v2855 = vrot.slane %v2851, %v2854
      %v2856 = vmul.f32 %v2819, %v2855
      %v2857 = vmul.f32 %v2820, %v2855
      %v2858 = vmul.f32 %v2821, %v2855
      %v2859 = vmul.f32 %v2822, %v2855
      %v2860 = vmul.f32 %v2823, %v2855
      %v2861 = vmul.f32 %v2824, %v2855
      %v2862 = vmul.f32 %v2825, %v2855
      %v2863 = vmul.f32 %v2826, %v2855
      %v2864 = vmul.f32 %v2827, %v2855
      %v2865 = vmul.f32 %v2828, %v2855
      %v2866 = vmul.f32 %v2829, %v2855
      %v2867 = vmul.f32 %v2830, %v2855
      %v2868 = vmul.f32 %v2831, %v2855
      %v2869 = vmul.f32 %v2832, %v2855
      %v2870 = vmul.f32 %v2833, %v2855
      %v2871 = vmul.f32 %v2834, %v2855
      %v2872 = vmul.f32 %v2835, %v2855
      %v2873 = vmul.f32 %v2836, %v2855
      %v2874 = vmul.f32 %v2837, %v2855
      %v2875 = vmul.f32 %v2838, %v2855
      %v2876 = vmul.f32 %v2839, %v2855
      %v2877 = vmul.f32 %v2840, %v2855
      %v2878 = vmul.f32 %v2841, %v2855
      %v2879 = vmul.f32 %v2842, %v2855
      %v2880 = vmul.f32 %v2843, %v2855
      %v2881 = vmul.f32 %v2844, %v2855
      %v2882 = vmul.f32 %v2845, %v2855
      %v2883 = vmul.f32 %v2846, %v2855
      %v2884 = vmul.f32 %v2847, %v2855
      %v2885 = vmul.f32 %v2848, %v2855
      %v2886 = vmul.f32 %v2849, %v2855
      %v2887 = vmul.f32 %v2850, %v2855
      %v2888 = vadd.f32 %v2787, %v2856
      %v2889 = vadd.f32 %v2788, %v2857
      %v2890 = vadd.f32 %v2789, %v2858
      %v2891 = vadd.f32 %v2790, %v2859
      %v2892 = vadd.f32 %v2791, %v2860
      %v2893 = vadd.f32 %v2792, %v2861
      %v2894 = vadd.f32 %v2793, %v2862
      %v2895 = vadd.f32 %v2794, %v2863
      %v2896 = vadd.f32 %v2795, %v2864
      %v2897 = vadd.f32 %v2796, %v2865
      %v2898 = vadd.f32 %v2797, %v2866
      %v2899 = vadd.f32 %v2798, %v2867
      %v2900 = vadd.f32 %v2799, %v2868
      %v2901 = vadd.f32 %v2800, %v2869
      %v2902 = vadd.f32 %v2801, %v2870
      %v2903 = vadd.f32 %v2802, %v2871
      %v2904 = vadd.f32 %v2803, %v2872
      %v2905 = vadd.f32 %v2804, %v2873
      %v2906 = vadd.f32 %v2805, %v2874
      %v2907 = vadd.f32 %v2806, %v2875
      %v2908 = vadd.f32 %v2807, %v2876
      %v2909 = vadd.f32 %v2808, %v2877
      %v2910 = vadd.f32 %v2809, %v2878
      %v2911 = vadd.f32 %v2810, %v2879
      %v2912 = vadd.f32 %v2811, %v2880
      %v2913 = vadd.f32 %v2812, %v2881
      %v2914 = vadd.f32 %v2813, %v2882
      %v2915 = vadd.f32 %v2814, %v2883
      %v2916 = vadd.f32 %v2815, %v2884
      %v2917 = vadd.f32 %v2816, %v2885
      %v2918 = vadd.f32 %v2817, %v2886
      %v2919 = vadd.f32 %v2818, %v2887
      %v2920 = vld [vmem:[%s2] sm:$0x1]
      %v2922 = vlaneseq
      %v2923 = vshrl.u32 %v2922, 7
      %v2924 = vsub.s32 0, %v2923
      %v2925 = vrot.slane %v2920, %v2924
      %v2927 = vadd.f32 %v2888, %v2925
      %v2928 = vadd.f32 %v2889, %v2925
      %v2929 = vadd.f32 %v2890, %v2925
      %v2930 = vadd.f32 %v2891, %v2925
      %v2931 = vadd.f32 %v2892, %v2925
      %v2932 = vadd.f32 %v2893, %v2925
      %v2933 = vadd.f32 %v2894, %v2925
      %v2934 = vadd.f32 %v2895, %v2925
      %v2935 = vadd.f32 %v2896, %v2925
      %v2936 = vadd.f32 %v2897, %v2925
      %v2937 = vadd.f32 %v2898, %v2925
      %v2938 = vadd.f32 %v2899, %v2925
      %v2939 = vadd.f32 %v2900, %v2925
      %v2940 = vadd.f32 %v2901, %v2925
      %v2941 = vadd.f32 %v2902, %v2925
      %v2942 = vadd.f32 %v2903, %v2925
      %v2943 = vadd.f32 %v2904, %v2925
      %v2944 = vadd.f32 %v2905, %v2925
      %v2945 = vadd.f32 %v2906, %v2925
      %v2946 = vadd.f32 %v2907, %v2925
      %v2947 = vadd.f32 %v2908, %v2925
      %v2948 = vadd.f32 %v2909, %v2925
      %v2949 = vadd.f32 %v2910, %v2925
      %v2950 = vadd.f32 %v2911, %v2925
      %v2951 = vadd.f32 %v2912, %v2925
      %v2952 = vadd.f32 %v2913, %v2925
      %v2953 = vadd.f32 %v2914, %v2925
      %v2954 = vadd.f32 %v2915, %v2925
      %v2955 = vadd.f32 %v2916, %v2925
      %v2956 = vadd.f32 %v2917, %v2925
      %v2957 = vadd.f32 %v2918, %v2925
      %v2958 = vadd.f32 %v2919, %v2925
      %2959 = vst.msk [vmem:[#allocation3] sm:$0xff] %vm279, 0.0
      %2960 = vst.msk [vmem:[#allocation3 + $0x8] sm:$0xff] %vm279, 0.0
      %2961 = vst.msk [vmem:[#allocation3 + $0x10] sm:$0xff] %vm279, 0.0
      %2962 = vst.msk [vmem:[#allocation3 + $0x18] sm:$0xff] %vm279, 0.0
      %2963 = vst.msk [vmem:[#allocation3 + $0x20] sm:$0x3] %vm295, 0.0
      %2964 = vst.msk [vmem:[#allocation3 + $0x28] sm:$0xff] %vm279, 0.0
      %2965 = vst.msk [vmem:[#allocation3 + $0x30] sm:$0xff] %vm279, 0.0
      %2966 = vst.msk [vmem:[#allocation3 + $0x38] sm:$0xff] %vm279, 0.0
      %2967 = vst.msk [vmem:[#allocation3 + $0x40] sm:$0xff] %vm279, 0.0
      %2968 = vst.msk [vmem:[#allocation3 + $0x48] sm:$0x3] %vm295, 0.0
      %2969 = vst.msk [vmem:[#allocation3 + $0x50] sm:$0xff] %vm279, 0.0
      %2970 = vst.msk [vmem:[#allocation3 + $0x58] sm:$0xff] %vm279, 0.0
      %2971 = vst.msk [vmem:[#allocation3 + $0x60] sm:$0xff] %vm279, 0.0
      %2972 = vst.msk [vmem:[#allocation3 + $0x68] sm:$0xff] %vm279, 0.0
      %2973 = vst.msk [vmem:[#allocation3 + $0x70] sm:$0x3] %vm295, 0.0
      %2974 = vst.msk [vmem:[#allocation3 + $0x78] sm:$0xff] %vm279, 0.0
      %2975 = vst.msk [vmem:[#allocation3 + $0x80] sm:$0xff] %vm279, 0.0
      %2976 = vst.msk [vmem:[#allocation3 + $0x88] sm:$0xff] %vm279, 0.0
      %2977 = vst.msk [vmem:[#allocation3 + $0x90] sm:$0xff] %vm279, 0.0
      %2978 = vst.msk [vmem:[#allocation3 + $0x98] sm:$0x3] %vm295, 0.0
      %2979 = vst.msk [vmem:[#allocation3 + $0xa0] sm:$0xff] %vm279, 0.0
      %2980 = vst.msk [vmem:[#allocation3 + $0xa8] sm:$0xff] %vm279, 0.0
      %2981 = vst.msk [vmem:[#allocation3 + $0xb0] sm:$0xff] %vm279, 0.0
      %2982 = vst.msk [vmem:[#allocation3 + $0xb8] sm:$0xff] %vm279, 0.0
      %2983 = vst.msk [vmem:[#allocation3 + $0xc0] sm:$0x3] %vm295, 0.0
      %2984 = vst.msk [vmem:[#allocation3 + $0xc8] sm:$0xff] %vm279, 0.0
      %2985 = vst.msk [vmem:[#allocation3 + $0xd0] sm:$0xff] %vm279, 0.0
      %2986 = vst.msk [vmem:[#allocation3 + $0xd8] sm:$0xff] %vm279, 0.0
      %2987 = vst.msk [vmem:[#allocation3 + $0xe0] sm:$0xff] %vm279, 0.0
      %2988 = vst.msk [vmem:[#allocation3 + $0xe8] sm:$0x3] %vm295, 0.0
      %2989 = vst.msk [vmem:[#allocation3 + $0xf0] sm:$0xff] %vm279, 0.0
      %2990 = vst.msk [vmem:[#allocation3 + $0xf8] sm:$0xff] %vm279, 0.0
      %2991 = vst.msk [vmem:[#allocation3 + $0x100] sm:$0xff] %vm279, 0.0
      %2992 = vst.msk [vmem:[#allocation3 + $0x108] sm:$0xff] %vm279, 0.0
      %2993 = vst.msk [vmem:[#allocation3 + $0x110] sm:$0x3] %vm295, 0.0
      %2994 = vst.msk [vmem:[#allocation3 + $0x118] sm:$0xff] %vm279, 0.0
      %2995 = vst.msk [vmem:[#allocation3 + $0x120] sm:$0xff] %vm279, 0.0
      %2996 = vst.msk [vmem:[#allocation3 + $0x128] sm:$0xff] %vm279, 0.0
      %2997 = vst.msk [vmem:[#allocation3 + $0x130] sm:$0xff] %vm279, 0.0
      %2998 = vst.msk [vmem:[#allocation3 + $0x138] sm:$0x3] %vm295, 0.0
      %2999 = vst.msk [vmem:[#allocation3 + $0x140] sm:$0xff] %vm279, 0.0
      %3000 = vst.msk [vmem:[#allocation3 + $0x148] sm:$0xff] %vm279, 0.0
      %3001 = vst.msk [vmem:[#allocation3 + $0x150] sm:$0xff] %vm279, 0.0
      %3002 = vst.msk [vmem:[#allocation3 + $0x158] sm:$0xff] %vm279, 0.0
      %3003 = vst.msk [vmem:[#allocation3 + $0x160] sm:$0x3] %vm295, 0.0
      %s3004 = scalar_lea.vmem [#allocation3], 1000
      %3005 = vst.msk [vmem:[%s3004] sm:$0xff] %vm279, 0.0
      %3006 = vst.msk [vmem:[%s3004 + $0x8] sm:$0xff] %vm279, 0.0
      %3007 = vst.msk [vmem:[%s3004 + $0x10] sm:$0xff] %vm279, 0.0
      %3008 = vst.msk [vmem:[%s3004 + $0x18] sm:$0xff] %vm279, 0.0
      %3009 = vst.msk [vmem:[%s3004 + $0x20] sm:$0x3] %vm295, 0.0
      %3010 = vst.msk [vmem:[%s3004 + $0x28] sm:$0xff] %vm279, 0.0
      %3011 = vst.msk [vmem:[%s3004 + $0x30] sm:$0xff] %vm279, 0.0
      %3012 = vst.msk [vmem:[%s3004 + $0x38] sm:$0xff] %vm279, 0.0
      %3013 = vst.msk [vmem:[%s3004 + $0x40] sm:$0xff] %vm279, 0.0
      %3014 = vst.msk [vmem:[%s3004 + $0x48] sm:$0x3] %vm295, 0.0
      %3015 = vst.msk [vmem:[%s3004 + $0x50] sm:$0xff] %vm279, 0.0
      %3016 = vst.msk [vmem:[%s3004 + $0x58] sm:$0xff] %vm279, 0.0
      %3017 = vst.msk [vmem:[%s3004 + $0x60] sm:$0xff] %vm279, 0.0
      %3018 = vst.msk [vmem:[%s3004 + $0x68] sm:$0xff] %vm279, 0.0
      %3019 = vst.msk [vmem:[%s3004 + $0x70] sm:$0x3] %vm295, 0.0
      %3020 = vst.msk [vmem:[%s3004 + $0x78] sm:$0xff] %vm279, 0.0
      %3021 = vst.msk [vmem:[%s3004 + $0x80] sm:$0xff] %vm279, 0.0
      %3022 = vst.msk [vmem:[%s3004 + $0x88] sm:$0xff] %vm279, 0.0
      %3023 = vst.msk [vmem:[%s3004 + $0x90] sm:$0xff] %vm279, 0.0
      %3024 = vst.msk [vmem:[%s3004 + $0x98] sm:$0x3] %vm295, 0.0
      %3025 = vst.msk [vmem:[%s3004 + $0xa0] sm:$0xff] %vm279, 0.0
      %3026 = vst.msk [vmem:[%s3004 + $0xa8] sm:$0xff] %vm279, 0.0
      %3027 = vst.msk [vmem:[%s3004 + $0xb0] sm:$0xff] %vm279, 0.0
      %3028 = vst.msk [vmem:[%s3004 + $0xb8] sm:$0xff] %vm279, 0.0
      %3029 = vst.msk [vmem:[%s3004 + $0xc0] sm:$0x3] %vm295, 0.0
      %3030 = vst.msk [vmem:[%s3004 + $0xc8] sm:$0xff] %vm279, 0.0
      %3031 = vst.msk [vmem:[%s3004 + $0xd0] sm:$0xff] %vm279, 0.0
      %3032 = vst.msk [vmem:[%s3004 + $0xd8] sm:$0xff] %vm279, 0.0
      %3033 = vst.msk [vmem:[%s3004 + $0xe0] sm:$0xff] %vm279, 0.0
      %3034 = vst.msk [vmem:[%s3004 + $0xe8] sm:$0x3] %vm295, 0.0
      %3035 = vst.msk [vmem:[%s3004 + $0xf0] sm:$0xff] %vm279, 0.0
      %3036 = vst.msk [vmem:[%s3004 + $0xf8] sm:$0xff] %vm279, 0.0
      %3037 = vst.msk [vmem:[%s3004 + $0x100] sm:$0xff] %vm279, 0.0
      %3038 = vst.msk [vmem:[%s3004 + $0x108] sm:$0xff] %vm279, 0.0
      %3039 = vst.msk [vmem:[%s3004 + $0x110] sm:$0x3] %vm295, 0.0
      %3040 = vst.msk [vmem:[%s3004 + $0x118] sm:$0xff] %vm279, 0.0
      %3041 = vst.msk [vmem:[%s3004 + $0x120] sm:$0xff] %vm279, 0.0
      %3042 = vst.msk [vmem:[%s3004 + $0x128] sm:$0xff] %vm279, 0.0
      %3043 = vst.msk [vmem:[%s3004 + $0x130] sm:$0xff] %vm279, 0.0
      %3044 = vst.msk [vmem:[%s3004 + $0x138] sm:$0x3] %vm295, 0.0
      %3045 = vst.msk [vmem:[%s3004 + $0x140] sm:$0xff] %vm279, 0.0
      %3046 = vst.msk [vmem:[%s3004 + $0x148] sm:$0xff] %vm279, 0.0
      %3047 = vst.msk [vmem:[%s3004 + $0x150] sm:$0xff] %vm279, 0.0
      %3048 = vst.msk [vmem:[%s3004 + $0x158] sm:$0xff] %vm279, 0.0
      %3049 = vst.msk [vmem:[%s3004 + $0x160] sm:$0x3] %vm295, 0.0
      %s3050 = scalar_lea.vmem [#allocation3], 360
      %3051 = vst.msk [vmem:[%s3050] sm:$0xff] %vm279, 0.0
      %vm3052 = vcmask 24576
      %3053 = vst.msk [vmem:[%s3050 + $0x8] sm:$0x1] %vm3052, 0.0
      %3054 = vst.msk [vmem:[%s3050 + $0x28] sm:$0xff] %vm279, 0.0
      %3055 = vst.msk [vmem:[%s3050 + $0x30] sm:$0x1] %vm3052, 0.0
      %3056 = vst.msk [vmem:[%s3050 + $0x50] sm:$0xff] %vm279, 0.0
      %3057 = vst.msk [vmem:[%s3050 + $0x58] sm:$0x1] %vm3052, 0.0
      %3058 = vst.msk [vmem:[%s3050 + $0x78] sm:$0xff] %vm279, 0.0
      %3059 = vst.msk [vmem:[%s3050 + $0x80] sm:$0x1] %vm3052, 0.0
      %3060 = vst.msk [vmem:[%s3050 + $0xa0] sm:$0xff] %vm279, 0.0
      %3061 = vst.msk [vmem:[%s3050 + $0xa8] sm:$0x1] %vm3052, 0.0
      %3062 = vst.msk [vmem:[%s3050 + $0xc8] sm:$0xff] %vm279, 0.0
      %3063 = vst.msk [vmem:[%s3050 + $0xd0] sm:$0x1] %vm3052, 0.0
      %3064 = vst.msk [vmem:[%s3050 + $0xf0] sm:$0xff] %vm279, 0.0
      %3065 = vst.msk [vmem:[%s3050 + $0xf8] sm:$0x1] %vm3052, 0.0
      %3066 = vst.msk [vmem:[%s3050 + $0x118] sm:$0xff] %vm279, 0.0
      %3067 = vst.msk [vmem:[%s3050 + $0x120] sm:$0x1] %vm3052, 0.0
      %3068 = vst.msk [vmem:[%s3050 + $0x140] sm:$0xff] %vm279, 0.0
      %3069 = vst.msk [vmem:[%s3050 + $0x148] sm:$0x1] %vm3052, 0.0
      %3070 = vst.msk [vmem:[%s3050 + $0x168] sm:$0xff] %vm279, 0.0
      %3071 = vst.msk [vmem:[%s3050 + $0x170] sm:$0x1] %vm3052, 0.0
      %3072 = vst.msk [vmem:[%s3050 + $0x190] sm:$0xff] %vm279, 0.0
      %3073 = vst.msk [vmem:[%s3050 + $0x198] sm:$0x1] %vm3052, 0.0
      %3074 = vst.msk [vmem:[%s3050 + $0x1b8] sm:$0xff] %vm279, 0.0
      %3075 = vst.msk [vmem:[%s3050 + $0x1c0] sm:$0x1] %vm3052, 0.0
      %3076 = vst.msk [vmem:[%s3050 + $0x1e0] sm:$0xff] %vm279, 0.0
      %3077 = vst.msk [vmem:[%s3050 + $0x1e8] sm:$0x1] %vm3052, 0.0
      %3078 = vst.msk [vmem:[%s3050 + $0x208] sm:$0xff] %vm279, 0.0
      %3079 = vst.msk [vmem:[%s3050 + $0x210] sm:$0x1] %vm3052, 0.0
      %3080 = vst.msk [vmem:[%s3050 + $0x230] sm:$0xff] %vm279, 0.0
      %3081 = vst.msk [vmem:[%s3050 + $0x238] sm:$0x1] %vm3052, 0.0
      %3082 = vst.msk [vmem:[%s3050 + $0x258] sm:$0xff] %vm279, 0.0
      %3083 = vst.msk [vmem:[%s3050 + $0x260] sm:$0x1] %vm3052, 0.0
      %3084 = vst.msk [vmem:[%s3050 + $0x19] sm:$0xff] %vm279, 0.0
      %3085 = vst.msk [vmem:[%s3050 + $0x21] sm:$0x1] %vm3052, 0.0
      %3086 = vst.msk [vmem:[%s3050 + $0x41] sm:$0xff] %vm279, 0.0
      %3087 = vst.msk [vmem:[%s3050 + $0x49] sm:$0x1] %vm3052, 0.0
      %3088 = vst.msk [vmem:[%s3050 + $0x69] sm:$0xff] %vm279, 0.0
      %3089 = vst.msk [vmem:[%s3050 + $0x71] sm:$0x1] %vm3052, 0.0
      %3090 = vst.msk [vmem:[%s3050 + $0x91] sm:$0xff] %vm279, 0.0
      %3091 = vst.msk [vmem:[%s3050 + $0x99] sm:$0x1] %vm3052, 0.0
      %3092 = vst.msk [vmem:[%s3050 + $0xb9] sm:$0xff] %vm279, 0.0
      %3093 = vst.msk [vmem:[%s3050 + $0xc1] sm:$0x1] %vm3052, 0.0
      %3094 = vst.msk [vmem:[%s3050 + $0xe1] sm:$0xff] %vm279, 0.0
      %3095 = vst.msk [vmem:[%s3050 + $0xe9] sm:$0x1] %vm3052, 0.0
      %3096 = vst.msk [vmem:[%s3050 + $0x109] sm:$0xff] %vm279, 0.0
      %3097 = vst.msk [vmem:[%s3050 + $0x111] sm:$0x1] %vm3052, 0.0
      %3098 = vst.msk [vmem:[%s3050 + $0x131] sm:$0xff] %vm279, 0.0
      %3099 = vst.msk [vmem:[%s3050 + $0x139] sm:$0x1] %vm3052, 0.0
      %3100 = vst.msk [vmem:[%s3050 + $0x159] sm:$0xff] %vm279, 0.0
      %3101 = vst.msk [vmem:[%s3050 + $0x161] sm:$0x1] %vm3052, 0.0
      %3102 = vst.msk [vmem:[%s3050 + $0x181] sm:$0xff] %vm279, 0.0
      %3103 = vst.msk [vmem:[%s3050 + $0x189] sm:$0x1] %vm3052, 0.0
      %3104 = vst.msk [vmem:[%s3050 + $0x1a9] sm:$0xff] %vm279, 0.0
      %3105 = vst.msk [vmem:[%s3050 + $0x1b1] sm:$0x1] %vm3052, 0.0
      %3106 = vst.msk [vmem:[%s3050 + $0x1d1] sm:$0xff] %vm279, 0.0
      %3107 = vst.msk [vmem:[%s3050 + $0x1d9] sm:$0x1] %vm3052, 0.0
      %3108 = vst.msk [vmem:[%s3050 + $0x1f9] sm:$0xff] %vm279, 0.0
      %3109 = vst.msk [vmem:[%s3050 + $0x201] sm:$0x1] %vm3052, 0.0
      %3110 = vst.msk [vmem:[%s3050 + $0x221] sm:$0xff] %vm279, 0.0
      %3111 = vst.msk [vmem:[%s3050 + $0x229] sm:$0x1] %vm3052, 0.0
      %3112 = vst.msk [vmem:[%s3050 + $0x249] sm:$0xff] %vm279, 0.0
      %3113 = vst.msk [vmem:[%s3050 + $0x251] sm:$0x1] %vm3052, 0.0
      %3114 = vst.msk [vmem:[%s3050 + $0x271] sm:$0xff] %vm279, 0.0
      %3115 = vst.msk [vmem:[%s3050 + $0x279] sm:$0x1] %vm3052, 0.0
      %3116 = vst.msk [vmem:[%s3050 + $0x9] sm:$0xff] %vm279, %v2927
      %3117 = vst.msk [vmem:[%s3050 + $0x11] sm:$0xff] %vm279, %v2928
      %3118 = vst.msk [vmem:[%s3050 + $0x31] sm:$0xff] %vm279, %v2929
      %3119 = vst.msk [vmem:[%s3050 + $0x39] sm:$0xff] %vm279, %v2930
      %3120 = vst.msk [vmem:[%s3050 + $0x59] sm:$0xff] %vm279, %v2931
      %3121 = vst.msk [vmem:[%s3050 + $0x61] sm:$0xff] %vm279, %v2932
      %3122 = vst.msk [vmem:[%s3050 + $0x81] sm:$0xff] %vm279, %v2933
      %3123 = vst.msk [vmem:[%s3050 + $0x89] sm:$0xff] %vm279, %v2934
      %3124 = vst.msk [vmem:[%s3050 + $0xa9] sm:$0xff] %vm279, %v2935
      %3125 = vst.msk [vmem:[%s3050 + $0xb1] sm:$0xff] %vm279, %v2936
      %3126 = vst.msk [vmem:[%s3050 + $0xd1] sm:$0xff] %vm279, %v2937
      %3127 = vst.msk [vmem:[%s3050 + $0xd9] sm:$0xff] %vm279, %v2938
      %3128 = vst.msk [vmem:[%s3050 + $0xf9] sm:$0xff] %vm279, %v2939
      %3129 = vst.msk [vmem:[%s3050 + $0x101] sm:$0xff] %vm279, %v2940
      %3130 = vst.msk [vmem:[%s3050 + $0x121] sm:$0xff] %vm279, %v2941
      %3131 = vst.msk [vmem:[%s3050 + $0x129] sm:$0xff] %vm279, %v2942
      %3132 = vst.msk [vmem:[%s3050 + $0x149] sm:$0xff] %vm279, %v2943
      %3133 = vst.msk [vmem:[%s3050 + $0x151] sm:$0xff] %vm279, %v2944
      %3134 = vst.msk [vmem:[%s3050 + $0x171] sm:$0xff] %vm279, %v2945
      %3135 = vst.msk [vmem:[%s3050 + $0x179] sm:$0xff] %vm279, %v2946
      %3136 = vst.msk [vmem:[%s3050 + $0x199] sm:$0xff] %vm279, %v2947
      %3137 = vst.msk [vmem:[%s3050 + $0x1a1] sm:$0xff] %vm279, %v2948
      %3138 = vst.msk [vmem:[%s3050 + $0x1c1] sm:$0xff] %vm279, %v2949
      %3139 = vst.msk [vmem:[%s3050 + $0x1c9] sm:$0xff] %vm279, %v2950
      %3140 = vst.msk [vmem:[%s3050 + $0x1e9] sm:$0xff] %vm279, %v2951
      %3141 = vst.msk [vmem:[%s3050 + $0x1f1] sm:$0xff] %vm279, %v2952
      %3142 = vst.msk [vmem:[%s3050 + $0x211] sm:$0xff] %vm279, %v2953
      %3143 = vst.msk [vmem:[%s3050 + $0x219] sm:$0xff] %vm279, %v2954
      %3144 = vst.msk [vmem:[%s3050 + $0x239] sm:$0xff] %vm279, %v2955
      %3145 = vst.msk [vmem:[%s3050 + $0x241] sm:$0xff] %vm279, %v2956
      %3146 = vst.msk [vmem:[%s3050 + $0x261] sm:$0xff] %vm279, %v2957
      %3147 = vst.msk [vmem:[%s3050 + $0x269] sm:$0xff] %vm279, %v2958
      %v3148 = vld [vmem:[#allocation3] sm:$0xff]
      %v3149 = vld [vmem:[#allocation3 + $0x8] sm:$0xff]
      %v3150 = vld [vmem:[#allocation3 + $0x28] sm:$0xff]
      %v3151 = vld [vmem:[#allocation3 + $0x30] sm:$0xff]
      %v3152 = vld [vmem:[#allocation3 + $0x50] sm:$0xff]
      %v3153 = vld [vmem:[#allocation3 + $0x58] sm:$0xff]
      %v3154 = vld [vmem:[#allocation3 + $0x78] sm:$0xff]
      %v3155 = vld [vmem:[#allocation3 + $0x80] sm:$0xff]
      %v3156 = vld [vmem:[#allocation3 + $0xa0] sm:$0xff]
      %v3157 = vld [vmem:[#allocation3 + $0xa8] sm:$0xff]
      %v3158 = vld [vmem:[#allocation3 + $0xc8] sm:$0xff]
      %v3159 = vld [vmem:[#allocation3 + $0xd0] sm:$0xff]
      %v3160 = vld [vmem:[#allocation3 + $0xf0] sm:$0xff]
      %v3161 = vld [vmem:[#allocation3 + $0xf8] sm:$0xff]
      %v3162 = vld [vmem:[#allocation3 + $0x118] sm:$0xff]
      %v3163 = vld [vmem:[#allocation3 + $0x120] sm:$0xff]
      %v3164 = vld [vmem:[#allocation3 + $0x140] sm:$0xff]
      %v3165 = vld [vmem:[#allocation3 + $0x148] sm:$0xff]
      %v3166 = vld [vmem:[#allocation3 + $0x168] sm:$0xff]
      %v3167 = vld [vmem:[#allocation3 + $0x170] sm:$0xff]
      %v3168 = vld [vmem:[#allocation3 + $0x190] sm:$0xff]
      %v3169 = vld [vmem:[#allocation3 + $0x198] sm:$0xff]
      %v3170 = vld [vmem:[#allocation3 + $0x1b8] sm:$0xff]
      %v3171 = vld [vmem:[#allocation3 + $0x1c0] sm:$0xff]
      %v3172 = vld [vmem:[#allocation3 + $0x1e0] sm:$0xff]
      %v3173 = vld [vmem:[#allocation3 + $0x1e8] sm:$0xff]
      %v3174 = vld [vmem:[#allocation3 + $0x208] sm:$0xff]
      %v3175 = vld [vmem:[#allocation3 + $0x210] sm:$0xff]
      %v3176 = vld [vmem:[#allocation3 + $0x230] sm:$0xff]
      %v3177 = vld [vmem:[#allocation3 + $0x238] sm:$0xff]
      %v3178 = vld [vmem:[#allocation3 + $0x258] sm:$0xff]
      %v3179 = vld [vmem:[#allocation3 + $0x260] sm:$0xff]
      %v3180 = vld [vmem:[%s3] sm:$0x1]
      %v3181 = vlaneseq
      %v3182 = vshrl.u32 %v3181, 7
      %v3183 = vsub.s32 0, %v3182
      %v3184 = vrot.slane %v3180, %v3183
      %v3185 = vmul.f32 %v3148, %v3184
      %v3186 = vmul.f32 %v3149, %v3184
      %v3187 = vmul.f32 %v3150, %v3184
      %v3188 = vmul.f32 %v3151, %v3184
      %v3189 = vmul.f32 %v3152, %v3184
      %v3190 = vmul.f32 %v3153, %v3184
      %v3191 = vmul.f32 %v3154, %v3184
      %v3192 = vmul.f32 %v3155, %v3184
      %v3193 = vmul.f32 %v3156, %v3184
      %v3194 = vmul.f32 %v3157, %v3184
      %v3195 = vmul.f32 %v3158, %v3184
      %v3196 = vmul.f32 %v3159, %v3184
      %v3197 = vmul.f32 %v3160, %v3184
      %v3198 = vmul.f32 %v3161, %v3184
      %v3199 = vmul.f32 %v3162, %v3184
      %v3200 = vmul.f32 %v3163, %v3184
      %v3201 = vmul.f32 %v3164, %v3184
      %v3202 = vmul.f32 %v3165, %v3184
      %v3203 = vmul.f32 %v3166, %v3184
      %v3204 = vmul.f32 %v3167, %v3184
      %v3205 = vmul.f32 %v3168, %v3184
      %v3206 = vmul.f32 %v3169, %v3184
      %v3207 = vmul.f32 %v3170, %v3184
      %v3208 = vmul.f32 %v3171, %v3184
      %v3209 = vmul.f32 %v3172, %v3184
      %v3210 = vmul.f32 %v3173, %v3184
      %v3211 = vmul.f32 %v3174, %v3184
      %v3212 = vmul.f32 %v3175, %v3184
      %v3213 = vmul.f32 %v3176, %v3184
      %v3214 = vmul.f32 %v3177, %v3184
      %v3215 = vmul.f32 %v3178, %v3184
      %v3216 = vmul.f32 %v3179, %v3184
      %v3217 = vadd.f32 %v3185, 0.0
      %v3218 = vadd.f32 %v3186, 0.0
      %v3219 = vadd.f32 %v3187, 0.0
      %v3220 = vadd.f32 %v3188, 0.0
      %v3221 = vadd.f32 %v3189, 0.0
      %v3222 = vadd.f32 %v3190, 0.0
      %v3223 = vadd.f32 %v3191, 0.0
      %v3224 = vadd.f32 %v3192, 0.0
      %v3225 = vadd.f32 %v3193, 0.0
      %v3226 = vadd.f32 %v3194, 0.0
      %v3227 = vadd.f32 %v3195, 0.0
      %v3228 = vadd.f32 %v3196, 0.0
      %v3229 = vadd.f32 %v3197, 0.0
      %v3230 = vadd.f32 %v3198, 0.0
      %v3231 = vadd.f32 %v3199, 0.0
      %v3232 = vadd.f32 %v3200, 0.0
      %v3233 = vadd.f32 %v3201, 0.0
      %v3234 = vadd.f32 %v3202, 0.0
      %v3235 = vadd.f32 %v3203, 0.0
      %v3236 = vadd.f32 %v3204, 0.0
      %v3237 = vadd.f32 %v3205, 0.0
      %v3238 = vadd.f32 %v3206, 0.0
      %v3239 = vadd.f32 %v3207, 0.0
      %v3240 = vadd.f32 %v3208, 0.0
      %v3241 = vadd.f32 %v3209, 0.0
      %v3242 = vadd.f32 %v3210, 0.0
      %v3243 = vadd.f32 %v3211, 0.0
      %v3244 = vadd.f32 %v3212, 0.0
      %v3245 = vadd.f32 %v3213, 0.0
      %v3246 = vadd.f32 %v3214, 0.0
      %v3247 = vadd.f32 %v3215, 0.0
      %v3248 = vadd.f32 %v3216, 0.0
      %v3249 = vld [vmem:[#allocation3 + $0x3] sm:$0xff]
      %v3250 = vld [vmem:[#allocation3 + $0xb] sm:$0xff]
      %v3251 = vld [vmem:[#allocation3 + $0x2b] sm:$0xff]
      %v3252 = vld [vmem:[#allocation3 + $0x33] sm:$0xff]
      %v3253 = vld [vmem:[#allocation3 + $0x53] sm:$0xff]
      %v3254 = vld [vmem:[#allocation3 + $0x5b] sm:$0xff]
      %v3255 = vld [vmem:[#allocation3 + $0x7b] sm:$0xff]
      %v3256 = vld [vmem:[#allocation3 + $0x83] sm:$0xff]
      %v3257 = vld [vmem:[#allocation3 + $0xa3] sm:$0xff]
      %v3258 = vld [vmem:[#allocation3 + $0xab] sm:$0xff]
      %v3259 = vld [vmem:[#allocation3 + $0xcb] sm:$0xff]
      %v3260 = vld [vmem:[#allocation3 + $0xd3] sm:$0xff]
      %v3261 = vld [vmem:[#allocation3 + $0xf3] sm:$0xff]
      %v3262 = vld [vmem:[#allocation3 + $0xfb] sm:$0xff]
      %v3263 = vld [vmem:[#allocation3 + $0x11b] sm:$0xff]
      %v3264 = vld [vmem:[#allocation3 + $0x123] sm:$0xff]
      %v3265 = vld [vmem:[#allocation3 + $0x143] sm:$0xff]
      %v3266 = vld [vmem:[#allocation3 + $0x14b] sm:$0xff]
      %v3267 = vld [vmem:[#allocation3 + $0x16b] sm:$0xff]
      %v3268 = vld [vmem:[#allocation3 + $0x173] sm:$0xff]
      %v3269 = vld [vmem:[#allocation3 + $0x193] sm:$0xff]
      %v3270 = vld [vmem:[#allocation3 + $0x19b] sm:$0xff]
      %v3271 = vld [vmem:[#allocation3 + $0x1bb] sm:$0xff]
      %v3272 = vld [vmem:[#allocation3 + $0x1c3] sm:$0xff]
      %v3273 = vld [vmem:[#allocation3 + $0x1e3] sm:$0xff]
      %v3274 = vld [vmem:[#allocation3 + $0x1eb] sm:$0xff]
      %v3275 = vld [vmem:[#allocation3 + $0x20b] sm:$0xff]
      %v3276 = vld [vmem:[#allocation3 + $0x213] sm:$0xff]
      %v3277 = vld [vmem:[#allocation3 + $0x233] sm:$0xff]
      %v3278 = vld [vmem:[#allocation3 + $0x23b] sm:$0xff]
      %v3279 = vld [vmem:[#allocation3 + $0x25b] sm:$0xff]
      %v3280 = vld [vmem:[#allocation3 + $0x263] sm:$0xff]
      %v3281 = vld [vmem:[%s3 + $0x1] sm:$0x1]
      %v3282 = vlaneseq
      %v3283 = vshrl.u32 %v3282, 7
      %v3284 = vsub.s32 0, %v3283
      %v3285 = vrot.slane %v3281, %v3284
      %v3286 = vmul.f32 %v3249, %v3285
      %v3287 = vmul.f32 %v3250, %v3285
      %v3288 = vmul.f32 %v3251, %v3285
      %v3289 = vmul.f32 %v3252, %v3285
      %v3290 = vmul.f32 %v3253, %v3285
      %v3291 = vmul.f32 %v3254, %v3285
      %v3292 = vmul.f32 %v3255, %v3285
      %v3293 = vmul.f32 %v3256, %v3285
      %v3294 = vmul.f32 %v3257, %v3285
      %v3295 = vmul.f32 %v3258, %v3285
      %v3296 = vmul.f32 %v3259, %v3285
      %v3297 = vmul.f32 %v3260, %v3285
      %v3298 = vmul.f32 %v3261, %v3285
      %v3299 = vmul.f32 %v3262, %v3285
      %v3300 = vmul.f32 %v3263, %v3285
      %v3301 = vmul.f32 %v3264, %v3285
      %v3302 = vmul.f32 %v3265, %v3285
      %v3303 = vmul.f32 %v3266, %v3285
      %v3304 = vmul.f32 %v3267, %v3285
      %v3305 = vmul.f32 %v3268, %v3285
      %v3306 = vmul.f32 %v3269, %v3285
      %v3307 = vmul.f32 %v3270, %v3285
      %v3308 = vmul.f32 %v3271, %v3285
      %v3309 = vmul.f32 %v3272, %v3285
      %v3310 = vmul.f32 %v3273, %v3285
      %v3311 = vmul.f32 %v3274, %v3285
      %v3312 = vmul.f32 %v3275, %v3285
      %v3313 = vmul.f32 %v3276, %v3285
      %v3314 = vmul.f32 %v3277, %v3285
      %v3315 = vmul.f32 %v3278, %v3285
      %v3316 = vmul.f32 %v3279, %v3285
      %v3317 = vmul.f32 %v3280, %v3285
      %v3318 = vadd.f32 %v3217, %v3286
      %v3319 = vadd.f32 %v3218, %v3287
      %v3320 = vadd.f32 %v3219, %v3288
      %v3321 = vadd.f32 %v3220, %v3289
      %v3322 = vadd.f32 %v3221, %v3290
      %v3323 = vadd.f32 %v3222, %v3291
      %v3324 = vadd.f32 %v3223, %v3292
      %v3325 = vadd.f32 %v3224, %v3293
      %v3326 = vadd.f32 %v3225, %v3294
      %v3327 = vadd.f32 %v3226, %v3295
      %v3328 = vadd.f32 %v3227, %v3296
      %v3329 = vadd.f32 %v3228, %v3297
      %v3330 = vadd.f32 %v3229, %v3298
      %v3331 = vadd.f32 %v3230, %v3299
      %v3332 = vadd.f32 %v3231, %v3300
      %v3333 = vadd.f32 %v3232, %v3301
      %v3334 = vadd.f32 %v3233, %v3302
      %v3335 = vadd.f32 %v3234, %v3303
      %v3336 = vadd.f32 %v3235, %v3304
      %v3337 = vadd.f32 %v3236, %v3305
      %v3338 = vadd.f32 %v3237, %v3306
      %v3339 = vadd.f32 %v3238, %v3307
      %v3340 = vadd.f32 %v3239, %v3308
      %v3341 = vadd.f32 %v3240, %v3309
      %v3342 = vadd.f32 %v3241, %v3310
      %v3343 = vadd.f32 %v3242, %v3311
      %v3344 = vadd.f32 %v3243, %v3312
      %v3345 = vadd.f32 %v3244, %v3313
      %v3346 = vadd.f32 %v3245, %v3314
      %v3347 = vadd.f32 %v3246, %v3315
      %v3348 = vadd.f32 %v3247, %v3316
      %v3349 = vadd.f32 %v3248, %v3317
      %v3350 = vld [vmem:[#allocation3 + $0x6] sm:$0xff]
      %v3351 = vld [vmem:[#allocation3 + $0xe] sm:$0xff]
      %v3352 = vld [vmem:[#allocation3 + $0x2e] sm:$0xff]
      %v3353 = vld [vmem:[#allocation3 + $0x36] sm:$0xff]
      %v3354 = vld [vmem:[#allocation3 + $0x56] sm:$0xff]
      %v3355 = vld [vmem:[#allocation3 + $0x5e] sm:$0xff]
      %v3356 = vld [vmem:[#allocation3 + $0x7e] sm:$0xff]
      %v3357 = vld [vmem:[#allocation3 + $0x86] sm:$0xff]
      %v3358 = vld [vmem:[#allocation3 + $0xa6] sm:$0xff]
      %v3359 = vld [vmem:[#allocation3 + $0xae] sm:$0xff]
      %v3360 = vld [vmem:[#allocation3 + $0xce] sm:$0xff]
      %v3361 = vld [vmem:[#allocation3 + $0xd6] sm:$0xff]
      %v3362 = vld [vmem:[#allocation3 + $0xf6] sm:$0xff]
      %v3363 = vld [vmem:[#allocation3 + $0xfe] sm:$0xff]
      %v3364 = vld [vmem:[#allocation3 + $0x11e] sm:$0xff]
      %v3365 = vld [vmem:[#allocation3 + $0x126] sm:$0xff]
      %v3366 = vld [vmem:[#allocation3 + $0x146] sm:$0xff]
      %v3367 = vld [vmem:[#allocation3 + $0x14e] sm:$0xff]
      %v3368 = vld [vmem:[#allocation3 + $0x16e] sm:$0xff]
      %v3369 = vld [vmem:[#allocation3 + $0x176] sm:$0xff]
      %v3370 = vld [vmem:[#allocation3 + $0x196] sm:$0xff]
      %v3371 = vld [vmem:[#allocation3 + $0x19e] sm:$0xff]
      %v3372 = vld [vmem:[#allocation3 + $0x1be] sm:$0xff]
      %v3373 = vld [vmem:[#allocation3 + $0x1c6] sm:$0xff]
      %v3374 = vld [vmem:[#allocation3 + $0x1e6] sm:$0xff]
      %v3375 = vld [vmem:[#allocation3 + $0x1ee] sm:$0xff]
      %v3376 = vld [vmem:[#allocation3 + $0x20e] sm:$0xff]
      %v3377 = vld [vmem:[#allocation3 + $0x216] sm:$0xff]
      %v3378 = vld [vmem:[#allocation3 + $0x236] sm:$0xff]
      %v3379 = vld [vmem:[#allocation3 + $0x23e] sm:$0xff]
      %v3380 = vld [vmem:[#allocation3 + $0x25e] sm:$0xff]
      %v3381 = vld [vmem:[#allocation3 + $0x266] sm:$0xff]
      %v3382 = vld [vmem:[%s3 + $0x2] sm:$0x1]
      %v3383 = vlaneseq
      %v3384 = vshrl.u32 %v3383, 7
      %v3385 = vsub.s32 0, %v3384
      %v3386 = vrot.slane %v3382, %v3385
      %v3387 = vmul.f32 %v3350, %v3386
      %v3388 = vmul.f32 %v3351, %v3386
      %v3389 = vmul.f32 %v3352, %v3386
      %v3390 = vmul.f32 %v3353, %v3386
      %v3391 = vmul.f32 %v3354, %v3386
      %v3392 = vmul.f32 %v3355, %v3386
      %v3393 = vmul.f32 %v3356, %v3386
      %v3394 = vmul.f32 %v3357, %v3386
      %v3395 = vmul.f32 %v3358, %v3386
      %v3396 = vmul.f32 %v3359, %v3386
      %v3397 = vmul.f32 %v3360, %v3386
      %v3398 = vmul.f32 %v3361, %v3386
      %v3399 = vmul.f32 %v3362, %v3386
      %v3400 = vmul.f32 %v3363, %v3386
      %v3401 = vmul.f32 %v3364, %v3386
      %v3402 = vmul.f32 %v3365, %v3386
      %v3403 = vmul.f32 %v3366, %v3386
      %v3404 = vmul.f32 %v3367, %v3386
      %v3405 = vmul.f32 %v3368, %v3386
      %v3406 = vmul.f32 %v3369, %v3386
      %v3407 = vmul.f32 %v3370, %v3386
      %v3408 = vmul.f32 %v3371, %v3386
      %v3409 = vmul.f32 %v3372, %v3386
      %v3410 = vmul.f32 %v3373, %v3386
      %v3411 = vmul.f32 %v3374, %v3386
      %v3412 = vmul.f32 %v3375, %v3386
      %v3413 = vmul.f32 %v3376, %v3386
      %v3414 = vmul.f32 %v3377, %v3386
      %v3415 = vmul.f32 %v3378, %v3386
      %v3416 = vmul.f32 %v3379, %v3386
      %v3417 = vmul.f32 %v3380, %v3386
      %v3418 = vmul.f32 %v3381, %v3386
      %v3419 = vadd.f32 %v3318, %v3387
      %v3420 = vadd.f32 %v3319, %v3388
      %v3421 = vadd.f32 %v3320, %v3389
      %v3422 = vadd.f32 %v3321, %v3390
      %v3423 = vadd.f32 %v3322, %v3391
      %v3424 = vadd.f32 %v3323, %v3392
      %v3425 = vadd.f32 %v3324, %v3393
      %v3426 = vadd.f32 %v3325, %v3394
      %v3427 = vadd.f32 %v3326, %v3395
      %v3428 = vadd.f32 %v3327, %v3396
      %v3429 = vadd.f32 %v3328, %v3397
      %v3430 = vadd.f32 %v3329, %v3398
      %v3431 = vadd.f32 %v3330, %v3399
      %v3432 = vadd.f32 %v3331, %v3400
      %v3433 = vadd.f32 %v3332, %v3401
      %v3434 = vadd.f32 %v3333, %v3402
      %v3435 = vadd.f32 %v3334, %v3403
      %v3436 = vadd.f32 %v3335, %v3404
      %v3437 = vadd.f32 %v3336, %v3405
      %v3438 = vadd.f32 %v3337, %v3406
      %v3439 = vadd.f32 %v3338, %v3407
      %v3440 = vadd.f32 %v3339, %v3408
      %v3441 = vadd.f32 %v3340, %v3409
      %v3442 = vadd.f32 %v3341, %v3410
      %v3443 = vadd.f32 %v3342, %v3411
      %v3444 = vadd.f32 %v3343, %v3412
      %v3445 = vadd.f32 %v3344, %v3413
      %v3446 = vadd.f32 %v3345, %v3414
      %v3447 = vadd.f32 %v3346, %v3415
      %v3448 = vadd.f32 %v3347, %v3416
      %v3449 = vadd.f32 %v3348, %v3417
      %v3450 = vadd.f32 %v3349, %v3418
      %v3451 = vld [vmem:[#allocation3 + $0x9] sm:$0xff]
      %v3452 = vld [vmem:[#allocation3 + $0x11] sm:$0xff]
      %v3453 = vld [vmem:[#allocation3 + $0x31] sm:$0xff]
      %v3454 = vld [vmem:[#allocation3 + $0x39] sm:$0xff]
      %v3455 = vld [vmem:[#allocation3 + $0x59] sm:$0xff]
      %v3456 = vld [vmem:[#allocation3 + $0x61] sm:$0xff]
      %v3457 = vld [vmem:[#allocation3 + $0x81] sm:$0xff]
      %v3458 = vld [vmem:[#allocation3 + $0x89] sm:$0xff]
      %v3459 = vld [vmem:[#allocation3 + $0xa9] sm:$0xff]
      %v3460 = vld [vmem:[#allocation3 + $0xb1] sm:$0xff]
      %v3461 = vld [vmem:[#allocation3 + $0xd1] sm:$0xff]
      %v3462 = vld [vmem:[#allocation3 + $0xd9] sm:$0xff]
      %v3463 = vld [vmem:[#allocation3 + $0xf9] sm:$0xff]
      %v3464 = vld [vmem:[#allocation3 + $0x101] sm:$0xff]
      %v3465 = vld [vmem:[#allocation3 + $0x121] sm:$0xff]
      %v3466 = vld [vmem:[#allocation3 + $0x129] sm:$0xff]
      %v3467 = vld [vmem:[#allocation3 + $0x149] sm:$0xff]
      %v3468 = vld [vmem:[#allocation3 + $0x151] sm:$0xff]
      %v3469 = vld [vmem:[#allocation3 + $0x171] sm:$0xff]
      %v3470 = vld [vmem:[#allocation3 + $0x179] sm:$0xff]
      %v3471 = vld [vmem:[#allocation3 + $0x199] sm:$0xff]
      %v3472 = vld [vmem:[#allocation3 + $0x1a1] sm:$0xff]
      %v3473 = vld [vmem:[#allocation3 + $0x1c1] sm:$0xff]
      %v3474 = vld [vmem:[#allocation3 + $0x1c9] sm:$0xff]
      %v3475 = vld [vmem:[#allocation3 + $0x1e9] sm:$0xff]
      %v3476 = vld [vmem:[#allocation3 + $0x1f1] sm:$0xff]
      %v3477 = vld [vmem:[#allocation3 + $0x211] sm:$0xff]
      %v3478 = vld [vmem:[#allocation3 + $0x219] sm:$0xff]
      %v3479 = vld [vmem:[#allocation3 + $0x239] sm:$0xff]
      %v3480 = vld [vmem:[#allocation3 + $0x241] sm:$0xff]
      %v3481 = vld [vmem:[#allocation3 + $0x261] sm:$0xff]
      %v3482 = vld [vmem:[#allocation3 + $0x269] sm:$0xff]
      %v3483 = vld [vmem:[%s3 + $0x3] sm:$0x1]
      %v3484 = vlaneseq
      %v3485 = vshrl.u32 %v3484, 7
      %v3486 = vsub.s32 0, %v3485
      %v3487 = vrot.slane %v3483, %v3486
      %v3488 = vmul.f32 %v3451, %v3487
      %v3489 = vmul.f32 %v3452, %v3487
      %v3490 = vmul.f32 %v3453, %v3487
      %v3491 = vmul.f32 %v3454, %v3487
      %v3492 = vmul.f32 %v3455, %v3487
      %v3493 = vmul.f32 %v3456, %v3487
      %v3494 = vmul.f32 %v3457, %v3487
      %v3495 = vmul.f32 %v3458, %v3487
      %v3496 = vmul.f32 %v3459, %v3487
      %v3497 = vmul.f32 %v3460, %v3487
      %v3498 = vmul.f32 %v3461, %v3487
      %v3499 = vmul.f32 %v3462, %v3487
      %v3500 = vmul.f32 %v3463, %v3487
      %v3501 = vmul.f32 %v3464, %v3487
      %v3502 = vmul.f32 %v3465, %v3487
      %v3503 = vmul.f32 %v3466, %v3487
      %v3504 = vmul.f32 %v3467, %v3487
      %v3505 = vmul.f32 %v3468, %v3487
      %v3506 = vmul.f32 %v3469, %v3487
      %v3507 = vmul.f32 %v3470, %v3487
      %v3508 = vmul.f32 %v3471, %v3487
      %v3509 = vmul.f32 %v3472, %v3487
      %v3510 = vmul.f32 %v3473, %v3487
      %v3511 = vmul.f32 %v3474, %v3487
      %v3512 = vmul.f32 %v3475, %v3487
      %v3513 = vmul.f32 %v3476, %v3487
      %v3514 = vmul.f32 %v3477, %v3487
      %v3515 = vmul.f32 %v3478, %v3487
      %v3516 = vmul.f32 %v3479, %v3487
      %v3517 = vmul.f32 %v3480, %v3487
      %v3518 = vmul.f32 %v3481, %v3487
      %v3519 = vmul.f32 %v3482, %v3487
      %v3520 = vadd.f32 %v3419, %v3488
      %v3521 = vadd.f32 %v3420, %v3489
      %v3522 = vadd.f32 %v3421, %v3490
      %v3523 = vadd.f32 %v3422, %v3491
      %v3524 = vadd.f32 %v3423, %v3492
      %v3525 = vadd.f32 %v3424, %v3493
      %v3526 = vadd.f32 %v3425, %v3494
      %v3527 = vadd.f32 %v3426, %v3495
      %v3528 = vadd.f32 %v3427, %v3496
      %v3529 = vadd.f32 %v3428, %v3497
      %v3530 = vadd.f32 %v3429, %v3498
      %v3531 = vadd.f32 %v3430, %v3499
      %v3532 = vadd.f32 %v3431, %v3500
      %v3533 = vadd.f32 %v3432, %v3501
      %v3534 = vadd.f32 %v3433, %v3502
      %v3535 = vadd.f32 %v3434, %v3503
      %v3536 = vadd.f32 %v3435, %v3504
      %v3537 = vadd.f32 %v3436, %v3505
      %v3538 = vadd.f32 %v3437, %v3506
      %v3539 = vadd.f32 %v3438, %v3507
      %v3540 = vadd.f32 %v3439, %v3508
      %v3541 = vadd.f32 %v3440, %v3509
      %v3542 = vadd.f32 %v3441, %v3510
      %v3543 = vadd.f32 %v3442, %v3511
      %v3544 = vadd.f32 %v3443, %v3512
      %v3545 = vadd.f32 %v3444, %v3513
      %v3546 = vadd.f32 %v3445, %v3514
      %v3547 = vadd.f32 %v3446, %v3515
      %v3548 = vadd.f32 %v3447, %v3516
      %v3549 = vadd.f32 %v3448, %v3517
      %v3550 = vadd.f32 %v3449, %v3518
      %v3551 = vadd.f32 %v3450, %v3519
      %v3552 = vld [vmem:[#allocation3 + $0xc] sm:$0xff]
      %v3553 = vld [vmem:[#allocation3 + $0x14] sm:$0xff]
      %v3554 = vld [vmem:[#allocation3 + $0x34] sm:$0xff]
      %v3555 = vld [vmem:[#allocation3 + $0x3c] sm:$0xff]
      %v3556 = vld [vmem:[#allocation3 + $0x5c] sm:$0xff]
      %v3557 = vld [vmem:[#allocation3 + $0x64] sm:$0xff]
      %v3558 = vld [vmem:[#allocation3 + $0x84] sm:$0xff]
      %v3559 = vld [vmem:[#allocation3 + $0x8c] sm:$0xff]
      %v3560 = vld [vmem:[#allocation3 + $0xac] sm:$0xff]
      %v3561 = vld [vmem:[#allocation3 + $0xb4] sm:$0xff]
      %v3562 = vld [vmem:[#allocation3 + $0xd4] sm:$0xff]
      %v3563 = vld [vmem:[#allocation3 + $0xdc] sm:$0xff]
      %v3564 = vld [vmem:[#allocation3 + $0xfc] sm:$0xff]
      %v3565 = vld [vmem:[#allocation3 + $0x104] sm:$0xff]
      %v3566 = vld [vmem:[#allocation3 + $0x124] sm:$0xff]
      %v3567 = vld [vmem:[#allocation3 + $0x12c] sm:$0xff]
      %v3568 = vld [vmem:[#allocation3 + $0x14c] sm:$0xff]
      %v3569 = vld [vmem:[#allocation3 + $0x154] sm:$0xff]
      %v3570 = vld [vmem:[#allocation3 + $0x174] sm:$0xff]
      %v3571 = vld [vmem:[#allocation3 + $0x17c] sm:$0xff]
      %v3572 = vld [vmem:[#allocation3 + $0x19c] sm:$0xff]
      %v3573 = vld [vmem:[#allocation3 + $0x1a4] sm:$0xff]
      %v3574 = vld [vmem:[#allocation3 + $0x1c4] sm:$0xff]
      %v3575 = vld [vmem:[#allocation3 + $0x1cc] sm:$0xff]
      %v3576 = vld [vmem:[#allocation3 + $0x1ec] sm:$0xff]
      %v3577 = vld [vmem:[#allocation3 + $0x1f4] sm:$0xff]
      %v3578 = vld [vmem:[#allocation3 + $0x214] sm:$0xff]
      %v3579 = vld [vmem:[#allocation3 + $0x21c] sm:$0xff]
      %v3580 = vld [vmem:[#allocation3 + $0x23c] sm:$0xff]
      %v3581 = vld [vmem:[#allocation3 + $0x244] sm:$0xff]
      %v3582 = vld [vmem:[#allocation3 + $0x264] sm:$0xff]
      %v3583 = vld [vmem:[#allocation3 + $0x26c] sm:$0xff]
      %v3584 = vld [vmem:[%s3 + $0x4] sm:$0x1]
      %v3585 = vlaneseq
      %v3586 = vshrl.u32 %v3585, 7
      %v3587 = vsub.s32 0, %v3586
      %v3588 = vrot.slane %v3584, %v3587
      %v3589 = vmul.f32 %v3552, %v3588
      %v3590 = vmul.f32 %v3553, %v3588
      %v3591 = vmul.f32 %v3554, %v3588
      %v3592 = vmul.f32 %v3555, %v3588
      %v3593 = vmul.f32 %v3556, %v3588
      %v3594 = vmul.f32 %v3557, %v3588
      %v3595 = vmul.f32 %v3558, %v3588
      %v3596 = vmul.f32 %v3559, %v3588
      %v3597 = vmul.f32 %v3560, %v3588
      %v3598 = vmul.f32 %v3561, %v3588
      %v3599 = vmul.f32 %v3562, %v3588
      %v3600 = vmul.f32 %v3563, %v3588
      %v3601 = vmul.f32 %v3564, %v3588
      %v3602 = vmul.f32 %v3565, %v3588
      %v3603 = vmul.f32 %v3566, %v3588
      %v3604 = vmul.f32 %v3567, %v3588
      %v3605 = vmul.f32 %v3568, %v3588
      %v3606 = vmul.f32 %v3569, %v3588
      %v3607 = vmul.f32 %v3570, %v3588
      %v3608 = vmul.f32 %v3571, %v3588
      %v3609 = vmul.f32 %v3572, %v3588
      %v3610 = vmul.f32 %v3573, %v3588
      %v3611 = vmul.f32 %v3574, %v3588
      %v3612 = vmul.f32 %v3575, %v3588
      %v3613 = vmul.f32 %v3576, %v3588
      %v3614 = vmul.f32 %v3577, %v3588
      %v3615 = vmul.f32 %v3578, %v3588
      %v3616 = vmul.f32 %v3579, %v3588
      %v3617 = vmul.f32 %v3580, %v3588
      %v3618 = vmul.f32 %v3581, %v3588
      %v3619 = vmul.f32 %v3582, %v3588
      %v3620 = vmul.f32 %v3583, %v3588
      %v3621 = vadd.f32 %v3520, %v3589
      %v3622 = vadd.f32 %v3521, %v3590
      %v3623 = vadd.f32 %v3522, %v3591
      %v3624 = vadd.f32 %v3523, %v3592
      %v3625 = vadd.f32 %v3524, %v3593
      %v3626 = vadd.f32 %v3525, %v3594
      %v3627 = vadd.f32 %v3526, %v3595
      %v3628 = vadd.f32 %v3527, %v3596
      %v3629 = vadd.f32 %v3528, %v3597
      %v3630 = vadd.f32 %v3529, %v3598
      %v3631 = vadd.f32 %v3530, %v3599
      %v3632 = vadd.f32 %v3531, %v3600
      %v3633 = vadd.f32 %v3532, %v3601
      %v3634 = vadd.f32 %v3533, %v3602
      %v3635 = vadd.f32 %v3534, %v3603
      %v3636 = vadd.f32 %v3535, %v3604
      %v3637 = vadd.f32 %v3536, %v3605
      %v3638 = vadd.f32 %v3537, %v3606
      %v3639 = vadd.f32 %v3538, %v3607
      %v3640 = vadd.f32 %v3539, %v3608
      %v3641 = vadd.f32 %v3540, %v3609
      %v3642 = vadd.f32 %v3541, %v3610
      %v3643 = vadd.f32 %v3542, %v3611
      %v3644 = vadd.f32 %v3543, %v3612
      %v3645 = vadd.f32 %v3544, %v3613
      %v3646 = vadd.f32 %v3545, %v3614
      %v3647 = vadd.f32 %v3546, %v3615
      %v3648 = vadd.f32 %v3547, %v3616
      %v3649 = vadd.f32 %v3548, %v3617
      %v3650 = vadd.f32 %v3549, %v3618
      %v3651 = vadd.f32 %v3550, %v3619
      %v3652 = vadd.f32 %v3551, %v3620
      %v3653 = vld [vmem:[#allocation3 + $0xf] sm:$0xff]
      %v3654 = vld [vmem:[#allocation3 + $0x17] sm:$0xff]
      %v3655 = vld [vmem:[#allocation3 + $0x37] sm:$0xff]
      %v3656 = vld [vmem:[#allocation3 + $0x3f] sm:$0xff]
      %v3657 = vld [vmem:[#allocation3 + $0x5f] sm:$0xff]
      %v3658 = vld [vmem:[#allocation3 + $0x67] sm:$0xff]
      %v3659 = vld [vmem:[#allocation3 + $0x87] sm:$0xff]
      %v3660 = vld [vmem:[#allocation3 + $0x8f] sm:$0xff]
      %v3661 = vld [vmem:[#allocation3 + $0xaf] sm:$0xff]
      %v3662 = vld [vmem:[#allocation3 + $0xb7] sm:$0xff]
      %v3663 = vld [vmem:[#allocation3 + $0xd7] sm:$0xff]
      %v3664 = vld [vmem:[#allocation3 + $0xdf] sm:$0xff]
      %v3665 = vld [vmem:[#allocation3 + $0xff] sm:$0xff]
      %v3666 = vld [vmem:[#allocation3 + $0x107] sm:$0xff]
      %v3667 = vld [vmem:[#allocation3 + $0x127] sm:$0xff]
      %v3668 = vld [vmem:[#allocation3 + $0x12f] sm:$0xff]
      %v3669 = vld [vmem:[#allocation3 + $0x14f] sm:$0xff]
      %v3670 = vld [vmem:[#allocation3 + $0x157] sm:$0xff]
      %v3671 = vld [vmem:[#allocation3 + $0x177] sm:$0xff]
      %v3672 = vld [vmem:[#allocation3 + $0x17f] sm:$0xff]
      %v3673 = vld [vmem:[#allocation3 + $0x19f] sm:$0xff]
      %v3674 = vld [vmem:[#allocation3 + $0x1a7] sm:$0xff]
      %v3675 = vld [vmem:[#allocation3 + $0x1c7] sm:$0xff]
      %v3676 = vld [vmem:[#allocation3 + $0x1cf] sm:$0xff]
      %v3677 = vld [vmem:[#allocation3 + $0x1ef] sm:$0xff]
      %v3678 = vld [vmem:[#allocation3 + $0x1f7] sm:$0xff]
      %v3679 = vld [vmem:[#allocation3 + $0x217] sm:$0xff]
      %v3680 = vld [vmem:[#allocation3 + $0x21f] sm:$0xff]
      %v3681 = vld [vmem:[#allocation3 + $0x23f] sm:$0xff]
      %v3682 = vld [vmem:[#allocation3 + $0x247] sm:$0xff]
      %v3683 = vld [vmem:[#allocation3 + $0x267] sm:$0xff]
      %v3684 = vld [vmem:[#allocation3 + $0x26f] sm:$0xff]
      %v3685 = vld [vmem:[%s3 + $0x5] sm:$0x1]
      %v3686 = vlaneseq
      %v3687 = vshrl.u32 %v3686, 7
      %v3688 = vsub.s32 0, %v3687
      %v3689 = vrot.slane %v3685, %v3688
      %v3690 = vmul.f32 %v3653, %v3689
      %v3691 = vmul.f32 %v3654, %v3689
      %v3692 = vmul.f32 %v3655, %v3689
      %v3693 = vmul.f32 %v3656, %v3689
      %v3694 = vmul.f32 %v3657, %v3689
      %v3695 = vmul.f32 %v3658, %v3689
      %v3696 = vmul.f32 %v3659, %v3689
      %v3697 = vmul.f32 %v3660, %v3689
      %v3698 = vmul.f32 %v3661, %v3689
      %v3699 = vmul.f32 %v3662, %v3689
      %v3700 = vmul.f32 %v3663, %v3689
      %v3701 = vmul.f32 %v3664, %v3689
      %v3702 = vmul.f32 %v3665, %v3689
      %v3703 = vmul.f32 %v3666, %v3689
      %v3704 = vmul.f32 %v3667, %v3689
      %v3705 = vmul.f32 %v3668, %v3689
      %v3706 = vmul.f32 %v3669, %v3689
      %v3707 = vmul.f32 %v3670, %v3689
      %v3708 = vmul.f32 %v3671, %v3689
      %v3709 = vmul.f32 %v3672, %v3689
      %v3710 = vmul.f32 %v3673, %v3689
      %v3711 = vmul.f32 %v3674, %v3689
      %v3712 = vmul.f32 %v3675, %v3689
      %v3713 = vmul.f32 %v3676, %v3689
      %v3714 = vmul.f32 %v3677, %v3689
      %v3715 = vmul.f32 %v3678, %v3689
      %v3716 = vmul.f32 %v3679, %v3689
      %v3717 = vmul.f32 %v3680, %v3689
      %v3718 = vmul.f32 %v3681, %v3689
      %v3719 = vmul.f32 %v3682, %v3689
      %v3720 = vmul.f32 %v3683, %v3689
      %v3721 = vmul.f32 %v3684, %v3689
      %v3722 = vadd.f32 %v3621, %v3690
      %v3723 = vadd.f32 %v3622, %v3691
      %v3724 = vadd.f32 %v3623, %v3692
      %v3725 = vadd.f32 %v3624, %v3693
      %v3726 = vadd.f32 %v3625, %v3694
      %v3727 = vadd.f32 %v3626, %v3695
      %v3728 = vadd.f32 %v3627, %v3696
      %v3729 = vadd.f32 %v3628, %v3697
      %v3730 = vadd.f32 %v3629, %v3698
      %v3731 = vadd.f32 %v3630, %v3699
      %v3732 = vadd.f32 %v3631, %v3700
      %v3733 = vadd.f32 %v3632, %v3701
      %v3734 = vadd.f32 %v3633, %v3702
      %v3735 = vadd.f32 %v3634, %v3703
      %v3736 = vadd.f32 %v3635, %v3704
      %v3737 = vadd.f32 %v3636, %v3705
      %v3738 = vadd.f32 %v3637, %v3706
      %v3739 = vadd.f32 %v3638, %v3707
      %v3740 = vadd.f32 %v3639, %v3708
      %v3741 = vadd.f32 %v3640, %v3709
      %v3742 = vadd.f32 %v3641, %v3710
      %v3743 = vadd.f32 %v3642, %v3711
      %v3744 = vadd.f32 %v3643, %v3712
      %v3745 = vadd.f32 %v3644, %v3713
      %v3746 = vadd.f32 %v3645, %v3714
      %v3747 = vadd.f32 %v3646, %v3715
      %v3748 = vadd.f32 %v3647, %v3716
      %v3749 = vadd.f32 %v3648, %v3717
      %v3750 = vadd.f32 %v3649, %v3718
      %v3751 = vadd.f32 %v3650, %v3719
      %v3752 = vadd.f32 %v3651, %v3720
      %v3753 = vadd.f32 %v3652, %v3721
      %v3754 = vld [vmem:[#allocation3 + $0x12] sm:$0xff]
      %v3755 = vld [vmem:[#allocation3 + $0x1a] sm:$0xff]
      %v3756 = vld [vmem:[#allocation3 + $0x3a] sm:$0xff]
      %v3757 = vld [vmem:[#allocation3 + $0x42] sm:$0xff]
      %v3758 = vld [vmem:[#allocation3 + $0x62] sm:$0xff]
      %v3759 = vld [vmem:[#allocation3 + $0x6a] sm:$0xff]
      %v3760 = vld [vmem:[#allocation3 + $0x8a] sm:$0xff]
      %v3761 = vld [vmem:[#allocation3 + $0x92] sm:$0xff]
      %v3762 = vld [vmem:[#allocation3 + $0xb2] sm:$0xff]
      %v3763 = vld [vmem:[#allocation3 + $0xba] sm:$0xff]
      %v3764 = vld [vmem:[#allocation3 + $0xda] sm:$0xff]
      %v3765 = vld [vmem:[#allocation3 + $0xe2] sm:$0xff]
      %v3766 = vld [vmem:[#allocation3 + $0x102] sm:$0xff]
      %v3767 = vld [vmem:[#allocation3 + $0x10a] sm:$0xff]
      %v3768 = vld [vmem:[#allocation3 + $0x12a] sm:$0xff]
      %v3769 = vld [vmem:[#allocation3 + $0x132] sm:$0xff]
      %v3770 = vld [vmem:[#allocation3 + $0x152] sm:$0xff]
      %v3771 = vld [vmem:[#allocation3 + $0x15a] sm:$0xff]
      %v3772 = vld [vmem:[#allocation3 + $0x17a] sm:$0xff]
      %v3773 = vld [vmem:[#allocation3 + $0x182] sm:$0xff]
      %v3774 = vld [vmem:[#allocation3 + $0x1a2] sm:$0xff]
      %v3775 = vld [vmem:[#allocation3 + $0x1aa] sm:$0xff]
      %v3776 = vld [vmem:[#allocation3 + $0x1ca] sm:$0xff]
      %v3777 = vld [vmem:[#allocation3 + $0x1d2] sm:$0xff]
      %v3778 = vld [vmem:[#allocation3 + $0x1f2] sm:$0xff]
      %v3779 = vld [vmem:[#allocation3 + $0x1fa] sm:$0xff]
      %v3780 = vld [vmem:[#allocation3 + $0x21a] sm:$0xff]
      %v3781 = vld [vmem:[#allocation3 + $0x222] sm:$0xff]
      %v3782 = vld [vmem:[#allocation3 + $0x242] sm:$0xff]
      %v3783 = vld [vmem:[#allocation3 + $0x24a] sm:$0xff]
      %v3784 = vld [vmem:[#allocation3 + $0x26a] sm:$0xff]
      %v3785 = vld [vmem:[#allocation3 + $0x272] sm:$0xff]
      %v3786 = vld [vmem:[%s3 + $0x6] sm:$0x1]
      %v3787 = vlaneseq
      %v3788 = vshrl.u32 %v3787, 7
      %v3789 = vsub.s32 0, %v3788
      %v3790 = vrot.slane %v3786, %v3789
      %v3791 = vmul.f32 %v3754, %v3790
      %v3792 = vmul.f32 %v3755, %v3790
      %v3793 = vmul.f32 %v3756, %v3790
      %v3794 = vmul.f32 %v3757, %v3790
      %v3795 = vmul.f32 %v3758, %v3790
      %v3796 = vmul.f32 %v3759, %v3790
      %v3797 = vmul.f32 %v3760, %v3790
      %v3798 = vmul.f32 %v3761, %v3790
      %v3799 = vmul.f32 %v3762, %v3790
      %v3800 = vmul.f32 %v3763, %v3790
      %v3801 = vmul.f32 %v3764, %v3790
      %v3802 = vmul.f32 %v3765, %v3790
      %v3803 = vmul.f32 %v3766, %v3790
      %v3804 = vmul.f32 %v3767, %v3790
      %v3805 = vmul.f32 %v3768, %v3790
      %v3806 = vmul.f32 %v3769, %v3790
      %v3807 = vmul.f32 %v3770, %v3790
      %v3808 = vmul.f32 %v3771, %v3790
      %v3809 = vmul.f32 %v3772, %v3790
      %v3810 = vmul.f32 %v3773, %v3790
      %v3811 = vmul.f32 %v3774, %v3790
      %v3812 = vmul.f32 %v3775, %v3790
      %v3813 = vmul.f32 %v3776, %v3790
      %v3814 = vmul.f32 %v3777, %v3790
      %v3815 = vmul.f32 %v3778, %v3790
      %v3816 = vmul.f32 %v3779, %v3790
      %v3817 = vmul.f32 %v3780, %v3790
      %v3818 = vmul.f32 %v3781, %v3790
      %v3819 = vmul.f32 %v3782, %v3790
      %v3820 = vmul.f32 %v3783, %v3790
      %v3821 = vmul.f32 %v3784, %v3790
      %v3822 = vmul.f32 %v3785, %v3790
      %v3823 = vadd.f32 %v3722, %v3791
      %v3824 = vadd.f32 %v3723, %v3792
      %v3825 = vadd.f32 %v3724, %v3793
      %v3826 = vadd.f32 %v3725, %v3794
      %v3827 = vadd.f32 %v3726, %v3795
      %v3828 = vadd.f32 %v3727, %v3796
      %v3829 = vadd.f32 %v3728, %v3797
      %v3830 = vadd.f32 %v3729, %v3798
      %v3831 = vadd.f32 %v3730, %v3799
      %v3832 = vadd.f32 %v3731, %v3800
      %v3833 = vadd.f32 %v3732, %v3801
      %v3834 = vadd.f32 %v3733, %v3802
      %v3835 = vadd.f32 %v3734, %v3803
      %v3836 = vadd.f32 %v3735, %v3804
      %v3837 = vadd.f32 %v3736, %v3805
      %v3838 = vadd.f32 %v3737, %v3806
      %v3839 = vadd.f32 %v3738, %v3807
      %v3840 = vadd.f32 %v3739, %v3808
      %v3841 = vadd.f32 %v3740, %v3809
      %v3842 = vadd.f32 %v3741, %v3810
      %v3843 = vadd.f32 %v3742, %v3811
      %v3844 = vadd.f32 %v3743, %v3812
      %v3845 = vadd.f32 %v3744, %v3813
      %v3846 = vadd.f32 %v3745, %v3814
      %v3847 = vadd.f32 %v3746, %v3815
      %v3848 = vadd.f32 %v3747, %v3816
      %v3849 = vadd.f32 %v3748, %v3817
      %v3850 = vadd.f32 %v3749, %v3818
      %v3851 = vadd.f32 %v3750, %v3819
      %v3852 = vadd.f32 %v3751, %v3820
      %v3853 = vadd.f32 %v3752, %v3821
      %v3854 = vadd.f32 %v3753, %v3822
      %s3855 = scalar_lea.vmem [#allocation3], 120
      %v3856 = vld [vmem:[%s3855] sm:$0xff]
      %v3857 = vld [vmem:[%s3855 + $0x8] sm:$0xff]
      %v3858 = vld [vmem:[%s3855 + $0x28] sm:$0xff]
      %v3859 = vld [vmem:[%s3855 + $0x30] sm:$0xff]
      %v3860 = vld [vmem:[%s3855 + $0x50] sm:$0xff]
      %v3861 = vld [vmem:[%s3855 + $0x58] sm:$0xff]
      %v3862 = vld [vmem:[%s3855 + $0x78] sm:$0xff]
      %v3863 = vld [vmem:[%s3855 + $0x80] sm:$0xff]
      %v3864 = vld [vmem:[%s3855 + $0xa0] sm:$0xff]
      %v3865 = vld [vmem:[%s3855 + $0xa8] sm:$0xff]
      %v3866 = vld [vmem:[%s3855 + $0xc8] sm:$0xff]
      %v3867 = vld [vmem:[%s3855 + $0xd0] sm:$0xff]
      %v3868 = vld [vmem:[%s3855 + $0xf0] sm:$0xff]
      %v3869 = vld [vmem:[%s3855 + $0xf8] sm:$0xff]
      %v3870 = vld [vmem:[%s3855 + $0x118] sm:$0xff]
      %v3871 = vld [vmem:[%s3855 + $0x120] sm:$0xff]
      %v3872 = vld [vmem:[%s3855 + $0x140] sm:$0xff]
      %v3873 = vld [vmem:[%s3855 + $0x148] sm:$0xff]
      %v3874 = vld [vmem:[%s3855 + $0x168] sm:$0xff]
      %v3875 = vld [vmem:[%s3855 + $0x170] sm:$0xff]
      %v3876 = vld [vmem:[%s3855 + $0x190] sm:$0xff]
      %v3877 = vld [vmem:[%s3855 + $0x198] sm:$0xff]
      %v3878 = vld [vmem:[%s3855 + $0x1b8] sm:$0xff]
      %v3879 = vld [vmem:[%s3855 + $0x1c0] sm:$0xff]
      %v3880 = vld [vmem:[%s3855 + $0x1e0] sm:$0xff]
      %v3881 = vld [vmem:[%s3855 + $0x1e8] sm:$0xff]
      %v3882 = vld [vmem:[%s3855 + $0x208] sm:$0xff]
      %v3883 = vld [vmem:[%s3855 + $0x210] sm:$0xff]
      %v3884 = vld [vmem:[%s3855 + $0x230] sm:$0xff]
      %v3885 = vld [vmem:[%s3855 + $0x238] sm:$0xff]
      %v3886 = vld [vmem:[%s3855 + $0x258] sm:$0xff]
      %v3887 = vld [vmem:[%s3855 + $0x260] sm:$0xff]
      %v3888 = vld [vmem:[%s3 + $0x7] sm:$0x1]
      %v3889 = vlaneseq
      %v3890 = vshrl.u32 %v3889, 7
      %v3891 = vsub.s32 0, %v3890
      %v3892 = vrot.slane %v3888, %v3891
      %v3893 = vmul.f32 %v3856, %v3892
      %v3894 = vmul.f32 %v3857, %v3892
      %v3895 = vmul.f32 %v3858, %v3892
      %v3896 = vmul.f32 %v3859, %v3892
      %v3897 = vmul.f32 %v3860, %v3892
      %v3898 = vmul.f32 %v3861, %v3892
      %v3899 = vmul.f32 %v3862, %v3892
      %v3900 = vmul.f32 %v3863, %v3892
      %v3901 = vmul.f32 %v3864, %v3892
      %v3902 = vmul.f32 %v3865, %v3892
      %v3903 = vmul.f32 %v3866, %v3892
      %v3904 = vmul.f32 %v3867, %v3892
      %v3905 = vmul.f32 %v3868, %v3892
      %v3906 = vmul.f32 %v3869, %v3892
      %v3907 = vmul.f32 %v3870, %v3892
      %v3908 = vmul.f32 %v3871, %v3892
      %v3909 = vmul.f32 %v3872, %v3892
      %v3910 = vmul.f32 %v3873, %v3892
      %v3911 = vmul.f32 %v3874, %v3892
      %v3912 = vmul.f32 %v3875, %v3892
      %v3913 = vmul.f32 %v3876, %v3892
      %v3914 = vmul.f32 %v3877, %v3892
      %v3915 = vmul.f32 %v3878, %v3892
      %v3916 = vmul.f32 %v3879, %v3892
      %v3917 = vmul.f32 %v3880, %v3892
      %v3918 = vmul.f32 %v3881, %v3892
      %v3919 = vmul.f32 %v3882, %v3892
      %v3920 = vmul.f32 %v3883, %v3892
      %v3921 = vmul.f32 %v3884, %v3892
      %v3922 = vmul.f32 %v3885, %v3892
      %v3923 = vmul.f32 %v3886, %v3892
      %v3924 = vmul.f32 %v3887, %v3892
      %v3925 = vadd.f32 %v3823, %v3893
      %v3926 = vadd.f32 %v3824, %v3894
      %v3927 = vadd.f32 %v3825, %v3895
      %v3928 = vadd.f32 %v3826, %v3896
      %v3929 = vadd.f32 %v3827, %v3897
      %v3930 = vadd.f32 %v3828, %v3898
      %v3931 = vadd.f32 %v3829, %v3899
      %v3932 = vadd.f32 %v3830, %v3900
      %v3933 = vadd.f32 %v3831, %v3901
      %v3934 = vadd.f32 %v3832, %v3902
      %v3935 = vadd.f32 %v3833, %v3903
      %v3936 = vadd.f32 %v3834, %v3904
      %v3937 = vadd.f32 %v3835, %v3905
      %v3938 = vadd.f32 %v3836, %v3906
      %v3939 = vadd.f32 %v3837, %v3907
      %v3940 = vadd.f32 %v3838, %v3908
      %v3941 = vadd.f32 %v3839, %v3909
      %v3942 = vadd.f32 %v3840, %v3910
      %v3943 = vadd.f32 %v3841, %v3911
      %v3944 = vadd.f32 %v3842, %v3912
      %v3945 = vadd.f32 %v3843, %v3913
      %v3946 = vadd.f32 %v3844, %v3914
      %v3947 = vadd.f32 %v3845, %v3915
      %v3948 = vadd.f32 %v3846, %v3916
      %v3949 = vadd.f32 %v3847, %v3917
      %v3950 = vadd.f32 %v3848, %v3918
      %v3951 = vadd.f32 %v3849, %v3919
      %v3952 = vadd.f32 %v3850, %v3920
      %v3953 = vadd.f32 %v3851, %v3921
      %v3954 = vadd.f32 %v3852, %v3922
      %v3955 = vadd.f32 %v3853, %v3923
      %v3956 = vadd.f32 %v3854, %v3924
      %v3957 = vld [vmem:[%s3855 + $0x3] sm:$0xff]
      %v3958 = vld [vmem:[%s3855 + $0xb] sm:$0xff]
      %v3959 = vld [vmem:[%s3855 + $0x2b] sm:$0xff]
      %v3960 = vld [vmem:[%s3855 + $0x33] sm:$0xff]
      %v3961 = vld [vmem:[%s3855 + $0x53] sm:$0xff]
      %v3962 = vld [vmem:[%s3855 + $0x5b] sm:$0xff]
      %v3963 = vld [vmem:[%s3855 + $0x7b] sm:$0xff]
      %v3964 = vld [vmem:[%s3855 + $0x83] sm:$0xff]
      %v3965 = vld [vmem:[%s3855 + $0xa3] sm:$0xff]
      %v3966 = vld [vmem:[%s3855 + $0xab] sm:$0xff]
      %v3967 = vld [vmem:[%s3855 + $0xcb] sm:$0xff]
      %v3968 = vld [vmem:[%s3855 + $0xd3] sm:$0xff]
      %v3969 = vld [vmem:[%s3855 + $0xf3] sm:$0xff]
      %v3970 = vld [vmem:[%s3855 + $0xfb] sm:$0xff]
      %v3971 = vld [vmem:[%s3855 + $0x11b] sm:$0xff]
      %v3972 = vld [vmem:[%s3855 + $0x123] sm:$0xff]
      %v3973 = vld [vmem:[%s3855 + $0x143] sm:$0xff]
      %v3974 = vld [vmem:[%s3855 + $0x14b] sm:$0xff]
      %v3975 = vld [vmem:[%s3855 + $0x16b] sm:$0xff]
      %v3976 = vld [vmem:[%s3855 + $0x173] sm:$0xff]
      %v3977 = vld [vmem:[%s3855 + $0x193] sm:$0xff]
      %v3978 = vld [vmem:[%s3855 + $0x19b] sm:$0xff]
      %v3979 = vld [vmem:[%s3855 + $0x1bb] sm:$0xff]
      %v3980 = vld [vmem:[%s3855 + $0x1c3] sm:$0xff]
      %v3981 = vld [vmem:[%s3855 + $0x1e3] sm:$0xff]
      %v3982 = vld [vmem:[%s3855 + $0x1eb] sm:$0xff]
      %v3983 = vld [vmem:[%s3855 + $0x20b] sm:$0xff]
      %v3984 = vld [vmem:[%s3855 + $0x213] sm:$0xff]
      %v3985 = vld [vmem:[%s3855 + $0x233] sm:$0xff]
      %v3986 = vld [vmem:[%s3855 + $0x23b] sm:$0xff]
      %v3987 = vld [vmem:[%s3855 + $0x25b] sm:$0xff]
      %v3988 = vld [vmem:[%s3855 + $0x263] sm:$0xff]
      %v3989 = vld [vmem:[%s3 + $0x8] sm:$0x1]
      %v3990 = vlaneseq
      %v3991 = vshrl.u32 %v3990, 7
      %v3992 = vsub.s32 0, %v3991
      %v3993 = vrot.slane %v3989, %v3992
      %v3994 = vmul.f32 %v3957, %v3993
      %v3995 = vmul.f32 %v3958, %v3993
      %v3996 = vmul.f32 %v3959, %v3993
      %v3997 = vmul.f32 %v3960, %v3993
      %v3998 = vmul.f32 %v3961, %v3993
      %v3999 = vmul.f32 %v3962, %v3993
      %v4000 = vmul.f32 %v3963, %v3993
      %v4001 = vmul.f32 %v3964, %v3993
      %v4002 = vmul.f32 %v3965, %v3993
      %v4003 = vmul.f32 %v3966, %v3993
      %v4004 = vmul.f32 %v3967, %v3993
      %v4005 = vmul.f32 %v3968, %v3993
      %v4006 = vmul.f32 %v3969, %v3993
      %v4007 = vmul.f32 %v3970, %v3993
      %v4008 = vmul.f32 %v3971, %v3993
      %v4009 = vmul.f32 %v3972, %v3993
      %v4010 = vmul.f32 %v3973, %v3993
      %v4011 = vmul.f32 %v3974, %v3993
      %v4012 = vmul.f32 %v3975, %v3993
      %v4013 = vmul.f32 %v3976, %v3993
      %v4014 = vmul.f32 %v3977, %v3993
      %v4015 = vmul.f32 %v3978, %v3993
      %v4016 = vmul.f32 %v3979, %v3993
      %v4017 = vmul.f32 %v3980, %v3993
      %v4018 = vmul.f32 %v3981, %v3993
      %v4019 = vmul.f32 %v3982, %v3993
      %v4020 = vmul.f32 %v3983, %v3993
      %v4021 = vmul.f32 %v3984, %v3993
      %v4022 = vmul.f32 %v3985, %v3993
      %v4023 = vmul.f32 %v3986, %v3993
      %v4024 = vmul.f32 %v3987, %v3993
      %v4025 = vmul.f32 %v3988, %v3993
      %v4026 = vadd.f32 %v3925, %v3994
      %v4027 = vadd.f32 %v3926, %v3995
      %v4028 = vadd.f32 %v3927, %v3996
      %v4029 = vadd.f32 %v3928, %v3997
      %v4030 = vadd.f32 %v3929, %v3998
      %v4031 = vadd.f32 %v3930, %v3999
      %v4032 = vadd.f32 %v3931, %v4000
      %v4033 = vadd.f32 %v3932, %v4001
      %v4034 = vadd.f32 %v3933, %v4002
      %v4035 = vadd.f32 %v3934, %v4003
      %v4036 = vadd.f32 %v3935, %v4004
      %v4037 = vadd.f32 %v3936, %v4005
      %v4038 = vadd.f32 %v3937, %v4006
      %v4039 = vadd.f32 %v3938, %v4007
      %v4040 = vadd.f32 %v3939, %v4008
      %v4041 = vadd.f32 %v3940, %v4009
      %v4042 = vadd.f32 %v3941, %v4010
      %v4043 = vadd.f32 %v3942, %v4011
      %v4044 = vadd.f32 %v3943, %v4012
      %v4045 = vadd.f32 %v3944, %v4013
      %v4046 = vadd.f32 %v3945, %v4014
      %v4047 = vadd.f32 %v3946, %v4015
      %v4048 = vadd.f32 %v3947, %v4016
      %v4049 = vadd.f32 %v3948, %v4017
      %v4050 = vadd.f32 %v3949, %v4018
      %v4051 = vadd.f32 %v3950, %v4019
      %v4052 = vadd.f32 %v3951, %v4020
      %v4053 = vadd.f32 %v3952, %v4021
      %v4054 = vadd.f32 %v3953, %v4022
      %v4055 = vadd.f32 %v3954, %v4023
      %v4056 = vadd.f32 %v3955, %v4024
      %v4057 = vadd.f32 %v3956, %v4025
      %v4058 = vld [vmem:[%s3855 + $0x6] sm:$0xff]
      %v4059 = vld [vmem:[%s3855 + $0xe] sm:$0xff]
      %v4060 = vld [vmem:[%s3855 + $0x2e] sm:$0xff]
      %v4061 = vld [vmem:[%s3855 + $0x36] sm:$0xff]
      %v4062 = vld [vmem:[%s3855 + $0x56] sm:$0xff]
      %v4063 = vld [vmem:[%s3855 + $0x5e] sm:$0xff]
      %v4064 = vld [vmem:[%s3855 + $0x7e] sm:$0xff]
      %v4065 = vld [vmem:[%s3855 + $0x86] sm:$0xff]
      %v4066 = vld [vmem:[%s3855 + $0xa6] sm:$0xff]
      %v4067 = vld [vmem:[%s3855 + $0xae] sm:$0xff]
      %v4068 = vld [vmem:[%s3855 + $0xce] sm:$0xff]
      %v4069 = vld [vmem:[%s3855 + $0xd6] sm:$0xff]
      %v4070 = vld [vmem:[%s3855 + $0xf6] sm:$0xff]
      %v4071 = vld [vmem:[%s3855 + $0xfe] sm:$0xff]
      %v4072 = vld [vmem:[%s3855 + $0x11e] sm:$0xff]
      %v4073 = vld [vmem:[%s3855 + $0x126] sm:$0xff]
      %v4074 = vld [vmem:[%s3855 + $0x146] sm:$0xff]
      %v4075 = vld [vmem:[%s3855 + $0x14e] sm:$0xff]
      %v4076 = vld [vmem:[%s3855 + $0x16e] sm:$0xff]
      %v4077 = vld [vmem:[%s3855 + $0x176] sm:$0xff]
      %v4078 = vld [vmem:[%s3855 + $0x196] sm:$0xff]
      %v4079 = vld [vmem:[%s3855 + $0x19e] sm:$0xff]
      %v4080 = vld [vmem:[%s3855 + $0x1be] sm:$0xff]
      %v4081 = vld [vmem:[%s3855 + $0x1c6] sm:$0xff]
      %v4082 = vld [vmem:[%s3855 + $0x1e6] sm:$0xff]
      %v4083 = vld [vmem:[%s3855 + $0x1ee] sm:$0xff]
      %v4084 = vld [vmem:[%s3855 + $0x20e] sm:$0xff]
      %v4085 = vld [vmem:[%s3855 + $0x216] sm:$0xff]
      %v4086 = vld [vmem:[%s3855 + $0x236] sm:$0xff]
      %v4087 = vld [vmem:[%s3855 + $0x23e] sm:$0xff]
      %v4088 = vld [vmem:[%s3855 + $0x25e] sm:$0xff]
      %v4089 = vld [vmem:[%s3855 + $0x266] sm:$0xff]
      %v4090 = vld [vmem:[%s3 + $0x9] sm:$0x1]
      %v4091 = vlaneseq
      %v4092 = vshrl.u32 %v4091, 7
      %v4093 = vsub.s32 0, %v4092
      %v4094 = vrot.slane %v4090, %v4093
      %v4095 = vmul.f32 %v4058, %v4094
      %v4096 = vmul.f32 %v4059, %v4094
      %v4097 = vmul.f32 %v4060, %v4094
      %v4098 = vmul.f32 %v4061, %v4094
      %v4099 = vmul.f32 %v4062, %v4094
      %v4100 = vmul.f32 %v4063, %v4094
      %v4101 = vmul.f32 %v4064, %v4094
      %v4102 = vmul.f32 %v4065, %v4094
      %v4103 = vmul.f32 %v4066, %v4094
      %v4104 = vmul.f32 %v4067, %v4094
      %v4105 = vmul.f32 %v4068, %v4094
      %v4106 = vmul.f32 %v4069, %v4094
      %v4107 = vmul.f32 %v4070, %v4094
      %v4108 = vmul.f32 %v4071, %v4094
      %v4109 = vmul.f32 %v4072, %v4094
      %v4110 = vmul.f32 %v4073, %v4094
      %v4111 = vmul.f32 %v4074, %v4094
      %v4112 = vmul.f32 %v4075, %v4094
      %v4113 = vmul.f32 %v4076, %v4094
      %v4114 = vmul.f32 %v4077, %v4094
      %v4115 = vmul.f32 %v4078, %v4094
      %v4116 = vmul.f32 %v4079, %v4094
      %v4117 = vmul.f32 %v4080, %v4094
      %v4118 = vmul.f32 %v4081, %v4094
      %v4119 = vmul.f32 %v4082, %v4094
      %v4120 = vmul.f32 %v4083, %v4094
      %v4121 = vmul.f32 %v4084, %v4094
      %v4122 = vmul.f32 %v4085, %v4094
      %v4123 = vmul.f32 %v4086, %v4094
      %v4124 = vmul.f32 %v4087, %v4094
      %v4125 = vmul.f32 %v4088, %v4094
      %v4126 = vmul.f32 %v4089, %v4094
      %v4127 = vadd.f32 %v4026, %v4095
      %v4128 = vadd.f32 %v4027, %v4096
      %v4129 = vadd.f32 %v4028, %v4097
      %v4130 = vadd.f32 %v4029, %v4098
      %v4131 = vadd.f32 %v4030, %v4099
      %v4132 = vadd.f32 %v4031, %v4100
      %v4133 = vadd.f32 %v4032, %v4101
      %v4134 = vadd.f32 %v4033, %v4102
      %v4135 = vadd.f32 %v4034, %v4103
      %v4136 = vadd.f32 %v4035, %v4104
      %v4137 = vadd.f32 %v4036, %v4105
      %v4138 = vadd.f32 %v4037, %v4106
      %v4139 = vadd.f32 %v4038, %v4107
      %v4140 = vadd.f32 %v4039, %v4108
      %v4141 = vadd.f32 %v4040, %v4109
      %v4142 = vadd.f32 %v4041, %v4110
      %v4143 = vadd.f32 %v4042, %v4111
      %v4144 = vadd.f32 %v4043, %v4112
      %v4145 = vadd.f32 %v4044, %v4113
      %v4146 = vadd.f32 %v4045, %v4114
      %v4147 = vadd.f32 %v4046, %v4115
      %v4148 = vadd.f32 %v4047, %v4116
      %v4149 = vadd.f32 %v4048, %v4117
      %v4150 = vadd.f32 %v4049, %v4118
      %v4151 = vadd.f32 %v4050, %v4119
      %v4152 = vadd.f32 %v4051, %v4120
      %v4153 = vadd.f32 %v4052, %v4121
      %v4154 = vadd.f32 %v4053, %v4122
      %v4155 = vadd.f32 %v4054, %v4123
      %v4156 = vadd.f32 %v4055, %v4124
      %v4157 = vadd.f32 %v4056, %v4125
      %v4158 = vadd.f32 %v4057, %v4126
      %v4159 = vld [vmem:[%s3855 + $0x9] sm:$0xff]
      %v4160 = vld [vmem:[%s3855 + $0x11] sm:$0xff]
      %v4161 = vld [vmem:[%s3855 + $0x31] sm:$0xff]
      %v4162 = vld [vmem:[%s3855 + $0x39] sm:$0xff]
      %v4163 = vld [vmem:[%s3855 + $0x59] sm:$0xff]
      %v4164 = vld [vmem:[%s3855 + $0x61] sm:$0xff]
      %v4165 = vld [vmem:[%s3855 + $0x81] sm:$0xff]
      %v4166 = vld [vmem:[%s3855 + $0x89] sm:$0xff]
      %v4167 = vld [vmem:[%s3855 + $0xa9] sm:$0xff]
      %v4168 = vld [vmem:[%s3855 + $0xb1] sm:$0xff]
      %v4169 = vld [vmem:[%s3855 + $0xd1] sm:$0xff]
      %v4170 = vld [vmem:[%s3855 + $0xd9] sm:$0xff]
      %v4171 = vld [vmem:[%s3855 + $0xf9] sm:$0xff]
      %v4172 = vld [vmem:[%s3855 + $0x101] sm:$0xff]
      %v4173 = vld [vmem:[%s3855 + $0x121] sm:$0xff]
      %v4174 = vld [vmem:[%s3855 + $0x129] sm:$0xff]
      %v4175 = vld [vmem:[%s3855 + $0x149] sm:$0xff]
      %v4176 = vld [vmem:[%s3855 + $0x151] sm:$0xff]
      %v4177 = vld [vmem:[%s3855 + $0x171] sm:$0xff]
      %v4178 = vld [vmem:[%s3855 + $0x179] sm:$0xff]
      %v4179 = vld [vmem:[%s3855 + $0x199] sm:$0xff]
      %v4180 = vld [vmem:[%s3855 + $0x1a1] sm:$0xff]
      %v4181 = vld [vmem:[%s3855 + $0x1c1] sm:$0xff]
      %v4182 = vld [vmem:[%s3855 + $0x1c9] sm:$0xff]
      %v4183 = vld [vmem:[%s3855 + $0x1e9] sm:$0xff]
      %v4184 = vld [vmem:[%s3855 + $0x1f1] sm:$0xff]
      %v4185 = vld [vmem:[%s3855 + $0x211] sm:$0xff]
      %v4186 = vld [vmem:[%s3855 + $0x219] sm:$0xff]
      %v4187 = vld [vmem:[%s3855 + $0x239] sm:$0xff]
      %v4188 = vld [vmem:[%s3855 + $0x241] sm:$0xff]
      %v4189 = vld [vmem:[%s3855 + $0x261] sm:$0xff]
      %v4190 = vld [vmem:[%s3855 + $0x269] sm:$0xff]
      %v4191 = vld [vmem:[%s3 + $0xa] sm:$0x1]
      %v4192 = vlaneseq
      %v4193 = vshrl.u32 %v4192, 7
      %v4194 = vsub.s32 0, %v4193
      %v4195 = vrot.slane %v4191, %v4194
      %v4196 = vmul.f32 %v4159, %v4195
      %v4197 = vmul.f32 %v4160, %v4195
      %v4198 = vmul.f32 %v4161, %v4195
      %v4199 = vmul.f32 %v4162, %v4195
      %v4200 = vmul.f32 %v4163, %v4195
      %v4201 = vmul.f32 %v4164, %v4195
      %v4202 = vmul.f32 %v4165, %v4195
      %v4203 = vmul.f32 %v4166, %v4195
      %v4204 = vmul.f32 %v4167, %v4195
      %v4205 = vmul.f32 %v4168, %v4195
      %v4206 = vmul.f32 %v4169, %v4195
      %v4207 = vmul.f32 %v4170, %v4195
      %v4208 = vmul.f32 %v4171, %v4195
      %v4209 = vmul.f32 %v4172, %v4195
      %v4210 = vmul.f32 %v4173, %v4195
      %v4211 = vmul.f32 %v4174, %v4195
      %v4212 = vmul.f32 %v4175, %v4195
      %v4213 = vmul.f32 %v4176, %v4195
      %v4214 = vmul.f32 %v4177, %v4195
      %v4215 = vmul.f32 %v4178, %v4195
      %v4216 = vmul.f32 %v4179, %v4195
      %v4217 = vmul.f32 %v4180, %v4195
      %v4218 = vmul.f32 %v4181, %v4195
      %v4219 = vmul.f32 %v4182, %v4195
      %v4220 = vmul.f32 %v4183, %v4195
      %v4221 = vmul.f32 %v4184, %v4195
      %v4222 = vmul.f32 %v4185, %v4195
      %v4223 = vmul.f32 %v4186, %v4195
      %v4224 = vmul.f32 %v4187, %v4195
      %v4225 = vmul.f32 %v4188, %v4195
      %v4226 = vmul.f32 %v4189, %v4195
      %v4227 = vmul.f32 %v4190, %v4195
      %v4228 = vadd.f32 %v4127, %v4196
      %v4229 = vadd.f32 %v4128, %v4197
      %v4230 = vadd.f32 %v4129, %v4198
      %v4231 = vadd.f32 %v4130, %v4199
      %v4232 = vadd.f32 %v4131, %v4200
      %v4233 = vadd.f32 %v4132, %v4201
      %v4234 = vadd.f32 %v4133, %v4202
      %v4235 = vadd.f32 %v4134, %v4203
      %v4236 = vadd.f32 %v4135, %v4204
      %v4237 = vadd.f32 %v4136, %v4205
      %v4238 = vadd.f32 %v4137, %v4206
      %v4239 = vadd.f32 %v4138, %v4207
      %v4240 = vadd.f32 %v4139, %v4208
      %v4241 = vadd.f32 %v4140, %v4209
      %v4242 = vadd.f32 %v4141, %v4210
      %v4243 = vadd.f32 %v4142, %v4211
      %v4244 = vadd.f32 %v4143, %v4212
      %v4245 = vadd.f32 %v4144, %v4213
      %v4246 = vadd.f32 %v4145, %v4214
      %v4247 = vadd.f32 %v4146, %v4215
      %v4248 = vadd.f32 %v4147, %v4216
      %v4249 = vadd.f32 %v4148, %v4217
      %v4250 = vadd.f32 %v4149, %v4218
      %v4251 = vadd.f32 %v4150, %v4219
      %v4252 = vadd.f32 %v4151, %v4220
      %v4253 = vadd.f32 %v4152, %v4221
      %v4254 = vadd.f32 %v4153, %v4222
      %v4255 = vadd.f32 %v4154, %v4223
      %v4256 = vadd.f32 %v4155, %v4224
      %v4257 = vadd.f32 %v4156, %v4225
      %v4258 = vadd.f32 %v4157, %v4226
      %v4259 = vadd.f32 %v4158, %v4227
      %v4260 = vld [vmem:[%s3855 + $0xc] sm:$0xff]
      %v4261 = vld [vmem:[%s3855 + $0x14] sm:$0xff]
      %v4262 = vld [vmem:[%s3855 + $0x34] sm:$0xff]
      %v4263 = vld [vmem:[%s3855 + $0x3c] sm:$0xff]
      %v4264 = vld [vmem:[%s3855 + $0x5c] sm:$0xff]
      %v4265 = vld [vmem:[%s3855 + $0x64] sm:$0xff]
      %v4266 = vld [vmem:[%s3855 + $0x84] sm:$0xff]
      %v4267 = vld [vmem:[%s3855 + $0x8c] sm:$0xff]
      %v4268 = vld [vmem:[%s3855 + $0xac] sm:$0xff]
      %v4269 = vld [vmem:[%s3855 + $0xb4] sm:$0xff]
      %v4270 = vld [vmem:[%s3855 + $0xd4] sm:$0xff]
      %v4271 = vld [vmem:[%s3855 + $0xdc] sm:$0xff]
      %v4272 = vld [vmem:[%s3855 + $0xfc] sm:$0xff]
      %v4273 = vld [vmem:[%s3855 + $0x104] sm:$0xff]
      %v4274 = vld [vmem:[%s3855 + $0x124] sm:$0xff]
      %v4275 = vld [vmem:[%s3855 + $0x12c] sm:$0xff]
      %v4276 = vld [vmem:[%s3855 + $0x14c] sm:$0xff]
      %v4277 = vld [vmem:[%s3855 + $0x154] sm:$0xff]
      %v4278 = vld [vmem:[%s3855 + $0x174] sm:$0xff]
      %v4279 = vld [vmem:[%s3855 + $0x17c] sm:$0xff]
      %v4280 = vld [vmem:[%s3855 + $0x19c] sm:$0xff]
      %v4281 = vld [vmem:[%s3855 + $0x1a4] sm:$0xff]
      %v4282 = vld [vmem:[%s3855 + $0x1c4] sm:$0xff]
      %v4283 = vld [vmem:[%s3855 + $0x1cc] sm:$0xff]
      %v4284 = vld [vmem:[%s3855 + $0x1ec] sm:$0xff]
      %v4285 = vld [vmem:[%s3855 + $0x1f4] sm:$0xff]
      %v4286 = vld [vmem:[%s3855 + $0x214] sm:$0xff]
      %v4287 = vld [vmem:[%s3855 + $0x21c] sm:$0xff]
      %v4288 = vld [vmem:[%s3855 + $0x23c] sm:$0xff]
      %v4289 = vld [vmem:[%s3855 + $0x244] sm:$0xff]
      %v4290 = vld [vmem:[%s3855 + $0x264] sm:$0xff]
      %v4291 = vld [vmem:[%s3855 + $0x26c] sm:$0xff]
      %v4292 = vld [vmem:[%s3 + $0xb] sm:$0x1]
      %v4293 = vlaneseq
      %v4294 = vshrl.u32 %v4293, 7
      %v4295 = vsub.s32 0, %v4294
      %v4296 = vrot.slane %v4292, %v4295
      %v4297 = vmul.f32 %v4260, %v4296
      %v4298 = vmul.f32 %v4261, %v4296
      %v4299 = vmul.f32 %v4262, %v4296
      %v4300 = vmul.f32 %v4263, %v4296
      %v4301 = vmul.f32 %v4264, %v4296
      %v4302 = vmul.f32 %v4265, %v4296
      %v4303 = vmul.f32 %v4266, %v4296
      %v4304 = vmul.f32 %v4267, %v4296
      %v4305 = vmul.f32 %v4268, %v4296
      %v4306 = vmul.f32 %v4269, %v4296
      %v4307 = vmul.f32 %v4270, %v4296
      %v4308 = vmul.f32 %v4271, %v4296
      %v4309 = vmul.f32 %v4272, %v4296
      %v4310 = vmul.f32 %v4273, %v4296
      %v4311 = vmul.f32 %v4274, %v4296
      %v4312 = vmul.f32 %v4275, %v4296
      %v4313 = vmul.f32 %v4276, %v4296
      %v4314 = vmul.f32 %v4277, %v4296
      %v4315 = vmul.f32 %v4278, %v4296
      %v4316 = vmul.f32 %v4279, %v4296
      %v4317 = vmul.f32 %v4280, %v4296
      %v4318 = vmul.f32 %v4281, %v4296
      %v4319 = vmul.f32 %v4282, %v4296
      %v4320 = vmul.f32 %v4283, %v4296
      %v4321 = vmul.f32 %v4284, %v4296
      %v4322 = vmul.f32 %v4285, %v4296
      %v4323 = vmul.f32 %v4286, %v4296
      %v4324 = vmul.f32 %v4287, %v4296
      %v4325 = vmul.f32 %v4288, %v4296
      %v4326 = vmul.f32 %v4289, %v4296
      %v4327 = vmul.f32 %v4290, %v4296
      %v4328 = vmul.f32 %v4291, %v4296
      %v4329 = vadd.f32 %v4228, %v4297
      %v4330 = vadd.f32 %v4229, %v4298
      %v4331 = vadd.f32 %v4230, %v4299
      %v4332 = vadd.f32 %v4231, %v4300
      %v4333 = vadd.f32 %v4232, %v4301
      %v4334 = vadd.f32 %v4233, %v4302
      %v4335 = vadd.f32 %v4234, %v4303
      %v4336 = vadd.f32 %v4235, %v4304
      %v4337 = vadd.f32 %v4236, %v4305
      %v4338 = vadd.f32 %v4237, %v4306
      %v4339 = vadd.f32 %v4238, %v4307
      %v4340 = vadd.f32 %v4239, %v4308
      %v4341 = vadd.f32 %v4240, %v4309
      %v4342 = vadd.f32 %v4241, %v4310
      %v4343 = vadd.f32 %v4242, %v4311
      %v4344 = vadd.f32 %v4243, %v4312
      %v4345 = vadd.f32 %v4244, %v4313
      %v4346 = vadd.f32 %v4245, %v4314
      %v4347 = vadd.f32 %v4246, %v4315
      %v4348 = vadd.f32 %v4247, %v4316
      %v4349 = vadd.f32 %v4248, %v4317
      %v4350 = vadd.f32 %v4249, %v4318
      %v4351 = vadd.f32 %v4250, %v4319
      %v4352 = vadd.f32 %v4251, %v4320
      %v4353 = vadd.f32 %v4252, %v4321
      %v4354 = vadd.f32 %v4253, %v4322
      %v4355 = vadd.f32 %v4254, %v4323
      %v4356 = vadd.f32 %v4255, %v4324
      %v4357 = vadd.f32 %v4256, %v4325
      %v4358 = vadd.f32 %v4257, %v4326
      %v4359 = vadd.f32 %v4258, %v4327
      %v4360 = vadd.f32 %v4259, %v4328
      %v4361 = vld [vmem:[%s3855 + $0xf] sm:$0xff]
      %v4362 = vld [vmem:[%s3855 + $0x17] sm:$0xff]
      %v4363 = vld [vmem:[%s3855 + $0x37] sm:$0xff]
      %v4364 = vld [vmem:[%s3855 + $0x3f] sm:$0xff]
      %v4365 = vld [vmem:[%s3855 + $0x5f] sm:$0xff]
      %v4366 = vld [vmem:[%s3855 + $0x67] sm:$0xff]
      %v4367 = vld [vmem:[%s3855 + $0x87] sm:$0xff]
      %v4368 = vld [vmem:[%s3855 + $0x8f] sm:$0xff]
      %v4369 = vld [vmem:[%s3855 + $0xaf] sm:$0xff]
      %v4370 = vld [vmem:[%s3855 + $0xb7] sm:$0xff]
      %v4371 = vld [vmem:[%s3855 + $0xd7] sm:$0xff]
      %v4372 = vld [vmem:[%s3855 + $0xdf] sm:$0xff]
      %v4373 = vld [vmem:[%s3855 + $0xff] sm:$0xff]
      %v4374 = vld [vmem:[%s3855 + $0x107] sm:$0xff]
      %v4375 = vld [vmem:[%s3855 + $0x127] sm:$0xff]
      %v4376 = vld [vmem:[%s3855 + $0x12f] sm:$0xff]
      %v4377 = vld [vmem:[%s3855 + $0x14f] sm:$0xff]
      %v4378 = vld [vmem:[%s3855 + $0x157] sm:$0xff]
      %v4379 = vld [vmem:[%s3855 + $0x177] sm:$0xff]
      %v4380 = vld [vmem:[%s3855 + $0x17f] sm:$0xff]
      %v4381 = vld [vmem:[%s3855 + $0x19f] sm:$0xff]
      %v4382 = vld [vmem:[%s3855 + $0x1a7] sm:$0xff]
      %v4383 = vld [vmem:[%s3855 + $0x1c7] sm:$0xff]
      %v4384 = vld [vmem:[%s3855 + $0x1cf] sm:$0xff]
      %v4385 = vld [vmem:[%s3855 + $0x1ef] sm:$0xff]
      %v4386 = vld [vmem:[%s3855 + $0x1f7] sm:$0xff]
      %v4387 = vld [vmem:[%s3855 + $0x217] sm:$0xff]
      %v4388 = vld [vmem:[%s3855 + $0x21f] sm:$0xff]
      %v4389 = vld [vmem:[%s3855 + $0x23f] sm:$0xff]
      %v4390 = vld [vmem:[%s3855 + $0x247] sm:$0xff]
      %v4391 = vld [vmem:[%s3855 + $0x267] sm:$0xff]
      %v4392 = vld [vmem:[%s3855 + $0x26f] sm:$0xff]
      %v4393 = vld [vmem:[%s3 + $0xc] sm:$0x1]
      %v4394 = vlaneseq
      %v4395 = vshrl.u32 %v4394, 7
      %v4396 = vsub.s32 0, %v4395
      %v4397 = vrot.slane %v4393, %v4396
      %v4398 = vmul.f32 %v4361, %v4397
      %v4399 = vmul.f32 %v4362, %v4397
      %v4400 = vmul.f32 %v4363, %v4397
      %v4401 = vmul.f32 %v4364, %v4397
      %v4402 = vmul.f32 %v4365, %v4397
      %v4403 = vmul.f32 %v4366, %v4397
      %v4404 = vmul.f32 %v4367, %v4397
      %v4405 = vmul.f32 %v4368, %v4397
      %v4406 = vmul.f32 %v4369, %v4397
      %v4407 = vmul.f32 %v4370, %v4397
      %v4408 = vmul.f32 %v4371, %v4397
      %v4409 = vmul.f32 %v4372, %v4397
      %v4410 = vmul.f32 %v4373, %v4397
      %v4411 = vmul.f32 %v4374, %v4397
      %v4412 = vmul.f32 %v4375, %v4397
      %v4413 = vmul.f32 %v4376, %v4397
      %v4414 = vmul.f32 %v4377, %v4397
      %v4415 = vmul.f32 %v4378, %v4397
      %v4416 = vmul.f32 %v4379, %v4397
      %v4417 = vmul.f32 %v4380, %v4397
      %v4418 = vmul.f32 %v4381, %v4397
      %v4419 = vmul.f32 %v4382, %v4397
      %v4420 = vmul.f32 %v4383, %v4397
      %v4421 = vmul.f32 %v4384, %v4397
      %v4422 = vmul.f32 %v4385, %v4397
      %v4423 = vmul.f32 %v4386, %v4397
      %v4424 = vmul.f32 %v4387, %v4397
      %v4425 = vmul.f32 %v4388, %v4397
      %v4426 = vmul.f32 %v4389, %v4397
      %v4427 = vmul.f32 %v4390, %v4397
      %v4428 = vmul.f32 %v4391, %v4397
      %v4429 = vmul.f32 %v4392, %v4397
      %v4430 = vadd.f32 %v4329, %v4398
      %v4431 = vadd.f32 %v4330, %v4399
      %v4432 = vadd.f32 %v4331, %v4400
      %v4433 = vadd.f32 %v4332, %v4401
      %v4434 = vadd.f32 %v4333, %v4402
      %v4435 = vadd.f32 %v4334, %v4403
      %v4436 = vadd.f32 %v4335, %v4404
      %v4437 = vadd.f32 %v4336, %v4405
      %v4438 = vadd.f32 %v4337, %v4406
      %v4439 = vadd.f32 %v4338, %v4407
      %v4440 = vadd.f32 %v4339, %v4408
      %v4441 = vadd.f32 %v4340, %v4409
      %v4442 = vadd.f32 %v4341, %v4410
      %v4443 = vadd.f32 %v4342, %v4411
      %v4444 = vadd.f32 %v4343, %v4412
      %v4445 = vadd.f32 %v4344, %v4413
      %v4446 = vadd.f32 %v4345, %v4414
      %v4447 = vadd.f32 %v4346, %v4415
      %v4448 = vadd.f32 %v4347, %v4416
      %v4449 = vadd.f32 %v4348, %v4417
      %v4450 = vadd.f32 %v4349, %v4418
      %v4451 = vadd.f32 %v4350, %v4419
      %v4452 = vadd.f32 %v4351, %v4420
      %v4453 = vadd.f32 %v4352, %v4421
      %v4454 = vadd.f32 %v4353, %v4422
      %v4455 = vadd.f32 %v4354, %v4423
      %v4456 = vadd.f32 %v4355, %v4424
      %v4457 = vadd.f32 %v4356, %v4425
      %v4458 = vadd.f32 %v4357, %v4426
      %v4459 = vadd.f32 %v4358, %v4427
      %v4460 = vadd.f32 %v4359, %v4428
      %v4461 = vadd.f32 %v4360, %v4429
      %v4462 = vld [vmem:[%s3855 + $0x12] sm:$0xff]
      %v4463 = vld [vmem:[%s3855 + $0x1a] sm:$0xff]
      %v4464 = vld [vmem:[%s3855 + $0x3a] sm:$0xff]
      %v4465 = vld [vmem:[%s3855 + $0x42] sm:$0xff]
      %v4466 = vld [vmem:[%s3855 + $0x62] sm:$0xff]
      %v4467 = vld [vmem:[%s3855 + $0x6a] sm:$0xff]
      %v4468 = vld [vmem:[%s3855 + $0x8a] sm:$0xff]
      %v4469 = vld [vmem:[%s3855 + $0x92] sm:$0xff]
      %v4470 = vld [vmem:[%s3855 + $0xb2] sm:$0xff]
      %v4471 = vld [vmem:[%s3855 + $0xba] sm:$0xff]
      %v4472 = vld [vmem:[%s3855 + $0xda] sm:$0xff]
      %v4473 = vld [vmem:[%s3855 + $0xe2] sm:$0xff]
      %v4474 = vld [vmem:[%s3855 + $0x102] sm:$0xff]
      %v4475 = vld [vmem:[%s3855 + $0x10a] sm:$0xff]
      %v4476 = vld [vmem:[%s3855 + $0x12a] sm:$0xff]
      %v4477 = vld [vmem:[%s3855 + $0x132] sm:$0xff]
      %v4478 = vld [vmem:[%s3855 + $0x152] sm:$0xff]
      %v4479 = vld [vmem:[%s3855 + $0x15a] sm:$0xff]
      %v4480 = vld [vmem:[%s3855 + $0x17a] sm:$0xff]
      %v4481 = vld [vmem:[%s3855 + $0x182] sm:$0xff]
      %v4482 = vld [vmem:[%s3855 + $0x1a2] sm:$0xff]
      %v4483 = vld [vmem:[%s3855 + $0x1aa] sm:$0xff]
      %v4484 = vld [vmem:[%s3855 + $0x1ca] sm:$0xff]
      %v4485 = vld [vmem:[%s3855 + $0x1d2] sm:$0xff]
      %v4486 = vld [vmem:[%s3855 + $0x1f2] sm:$0xff]
      %v4487 = vld [vmem:[%s3855 + $0x1fa] sm:$0xff]
      %v4488 = vld [vmem:[%s3855 + $0x21a] sm:$0xff]
      %v4489 = vld [vmem:[%s3855 + $0x222] sm:$0xff]
      %v4490 = vld [vmem:[%s3855 + $0x242] sm:$0xff]
      %v4491 = vld [vmem:[%s3855 + $0x24a] sm:$0xff]
      %v4492 = vld [vmem:[%s3855 + $0x26a] sm:$0xff]
      %v4493 = vld [vmem:[%s3855 + $0x272] sm:$0xff]
      %v4494 = vld [vmem:[%s3 + $0xd] sm:$0x1]
      %v4495 = vlaneseq
      %v4496 = vshrl.u32 %v4495, 7
      %v4497 = vsub.s32 0, %v4496
      %v4498 = vrot.slane %v4494, %v4497
      %v4499 = vmul.f32 %v4462, %v4498
      %v4500 = vmul.f32 %v4463, %v4498
      %v4501 = vmul.f32 %v4464, %v4498
      %v4502 = vmul.f32 %v4465, %v4498
      %v4503 = vmul.f32 %v4466, %v4498
      %v4504 = vmul.f32 %v4467, %v4498
      %v4505 = vmul.f32 %v4468, %v4498
      %v4506 = vmul.f32 %v4469, %v4498
      %v4507 = vmul.f32 %v4470, %v4498
      %v4508 = vmul.f32 %v4471, %v4498
      %v4509 = vmul.f32 %v4472, %v4498
      %v4510 = vmul.f32 %v4473, %v4498
      %v4511 = vmul.f32 %v4474, %v4498
      %v4512 = vmul.f32 %v4475, %v4498
      %v4513 = vmul.f32 %v4476, %v4498
      %v4514 = vmul.f32 %v4477, %v4498
      %v4515 = vmul.f32 %v4478, %v4498
      %v4516 = vmul.f32 %v4479, %v4498
      %v4517 = vmul.f32 %v4480, %v4498
      %v4518 = vmul.f32 %v4481, %v4498
      %v4519 = vmul.f32 %v4482, %v4498
      %v4520 = vmul.f32 %v4483, %v4498
      %v4521 = vmul.f32 %v4484, %v4498
      %v4522 = vmul.f32 %v4485, %v4498
      %v4523 = vmul.f32 %v4486, %v4498
      %v4524 = vmul.f32 %v4487, %v4498
      %v4525 = vmul.f32 %v4488, %v4498
      %v4526 = vmul.f32 %v4489, %v4498
      %v4527 = vmul.f32 %v4490, %v4498
      %v4528 = vmul.f32 %v4491, %v4498
      %v4529 = vmul.f32 %v4492, %v4498
      %v4530 = vmul.f32 %v4493, %v4498
      %v4531 = vadd.f32 %v4430, %v4499
      %v4532 = vadd.f32 %v4431, %v4500
      %v4533 = vadd.f32 %v4432, %v4501
      %v4534 = vadd.f32 %v4433, %v4502
      %v4535 = vadd.f32 %v4434, %v4503
      %v4536 = vadd.f32 %v4435, %v4504
      %v4537 = vadd.f32 %v4436, %v4505
      %v4538 = vadd.f32 %v4437, %v4506
      %v4539 = vadd.f32 %v4438, %v4507
      %v4540 = vadd.f32 %v4439, %v4508
      %v4541 = vadd.f32 %v4440, %v4509
      %v4542 = vadd.f32 %v4441, %v4510
      %v4543 = vadd.f32 %v4442, %v4511
      %v4544 = vadd.f32 %v4443, %v4512
      %v4545 = vadd.f32 %v4444, %v4513
      %v4546 = vadd.f32 %v4445, %v4514
      %v4547 = vadd.f32 %v4446, %v4515
      %v4548 = vadd.f32 %v4447, %v4516
      %v4549 = vadd.f32 %v4448, %v4517
      %v4550 = vadd.f32 %v4449, %v4518
      %v4551 = vadd.f32 %v4450, %v4519
      %v4552 = vadd.f32 %v4451, %v4520
      %v4553 = vadd.f32 %v4452, %v4521
      %v4554 = vadd.f32 %v4453, %v4522
      %v4555 = vadd.f32 %v4454, %v4523
      %v4556 = vadd.f32 %v4455, %v4524
      %v4557 = vadd.f32 %v4456, %v4525
      %v4558 = vadd.f32 %v4457, %v4526
      %v4559 = vadd.f32 %v4458, %v4527
      %v4560 = vadd.f32 %v4459, %v4528
      %v4561 = vadd.f32 %v4460, %v4529
      %v4562 = vadd.f32 %v4461, %v4530
      %s4563 = scalar_lea.vmem [#allocation3], 240
      %v4564 = vld [vmem:[%s4563] sm:$0xff]
      %v4565 = vld [vmem:[%s4563 + $0x8] sm:$0xff]
      %v4566 = vld [vmem:[%s4563 + $0x28] sm:$0xff]
      %v4567 = vld [vmem:[%s4563 + $0x30] sm:$0xff]
      %v4568 = vld [vmem:[%s4563 + $0x50] sm:$0xff]
      %v4569 = vld [vmem:[%s4563 + $0x58] sm:$0xff]
      %v4570 = vld [vmem:[%s4563 + $0x78] sm:$0xff]
      %v4571 = vld [vmem:[%s4563 + $0x80] sm:$0xff]
      %v4572 = vld [vmem:[%s4563 + $0xa0] sm:$0xff]
      %v4573 = vld [vmem:[%s4563 + $0xa8] sm:$0xff]
      %v4574 = vld [vmem:[%s4563 + $0xc8] sm:$0xff]
      %v4575 = vld [vmem:[%s4563 + $0xd0] sm:$0xff]
      %v4576 = vld [vmem:[%s4563 + $0xf0] sm:$0xff]
      %v4577 = vld [vmem:[%s4563 + $0xf8] sm:$0xff]
      %v4578 = vld [vmem:[%s4563 + $0x118] sm:$0xff]
      %v4579 = vld [vmem:[%s4563 + $0x120] sm:$0xff]
      %v4580 = vld [vmem:[%s4563 + $0x140] sm:$0xff]
      %v4581 = vld [vmem:[%s4563 + $0x148] sm:$0xff]
      %v4582 = vld [vmem:[%s4563 + $0x168] sm:$0xff]
      %v4583 = vld [vmem:[%s4563 + $0x170] sm:$0xff]
      %v4584 = vld [vmem:[%s4563 + $0x190] sm:$0xff]
      %v4585 = vld [vmem:[%s4563 + $0x198] sm:$0xff]
      %v4586 = vld [vmem:[%s4563 + $0x1b8] sm:$0xff]
      %v4587 = vld [vmem:[%s4563 + $0x1c0] sm:$0xff]
      %v4588 = vld [vmem:[%s4563 + $0x1e0] sm:$0xff]
      %v4589 = vld [vmem:[%s4563 + $0x1e8] sm:$0xff]
      %v4590 = vld [vmem:[%s4563 + $0x208] sm:$0xff]
      %v4591 = vld [vmem:[%s4563 + $0x210] sm:$0xff]
      %v4592 = vld [vmem:[%s4563 + $0x230] sm:$0xff]
      %v4593 = vld [vmem:[%s4563 + $0x238] sm:$0xff]
      %v4594 = vld [vmem:[%s4563 + $0x258] sm:$0xff]
      %v4595 = vld [vmem:[%s4563 + $0x260] sm:$0xff]
      %v4596 = vld [vmem:[%s3 + $0xe] sm:$0x1]
      %v4597 = vlaneseq
      %v4598 = vshrl.u32 %v4597, 7
      %v4599 = vsub.s32 0, %v4598
      %v4600 = vrot.slane %v4596, %v4599
      %v4601 = vmul.f32 %v4564, %v4600
      %v4602 = vmul.f32 %v4565, %v4600
      %v4603 = vmul.f32 %v4566, %v4600
      %v4604 = vmul.f32 %v4567, %v4600
      %v4605 = vmul.f32 %v4568, %v4600
      %v4606 = vmul.f32 %v4569, %v4600
      %v4607 = vmul.f32 %v4570, %v4600
      %v4608 = vmul.f32 %v4571, %v4600
      %v4609 = vmul.f32 %v4572, %v4600
      %v4610 = vmul.f32 %v4573, %v4600
      %v4611 = vmul.f32 %v4574, %v4600
      %v4612 = vmul.f32 %v4575, %v4600
      %v4613 = vmul.f32 %v4576, %v4600
      %v4614 = vmul.f32 %v4577, %v4600
      %v4615 = vmul.f32 %v4578, %v4600
      %v4616 = vmul.f32 %v4579, %v4600
      %v4617 = vmul.f32 %v4580, %v4600
      %v4618 = vmul.f32 %v4581, %v4600
      %v4619 = vmul.f32 %v4582, %v4600
      %v4620 = vmul.f32 %v4583, %v4600
      %v4621 = vmul.f32 %v4584, %v4600
      %v4622 = vmul.f32 %v4585, %v4600
      %v4623 = vmul.f32 %v4586, %v4600
      %v4624 = vmul.f32 %v4587, %v4600
      %v4625 = vmul.f32 %v4588, %v4600
      %v4626 = vmul.f32 %v4589, %v4600
      %v4627 = vmul.f32 %v4590, %v4600
      %v4628 = vmul.f32 %v4591, %v4600
      %v4629 = vmul.f32 %v4592, %v4600
      %v4630 = vmul.f32 %v4593, %v4600
      %v4631 = vmul.f32 %v4594, %v4600
      %v4632 = vmul.f32 %v4595, %v4600
      %v4633 = vadd.f32 %v4531, %v4601
      %v4634 = vadd.f32 %v4532, %v4602
      %v4635 = vadd.f32 %v4533, %v4603
      %v4636 = vadd.f32 %v4534, %v4604
      %v4637 = vadd.f32 %v4535, %v4605
      %v4638 = vadd.f32 %v4536, %v4606
      %v4639 = vadd.f32 %v4537, %v4607
      %v4640 = vadd.f32 %v4538, %v4608
      %v4641 = vadd.f32 %v4539, %v4609
      %v4642 = vadd.f32 %v4540, %v4610
      %v4643 = vadd.f32 %v4541, %v4611
      %v4644 = vadd.f32 %v4542, %v4612
      %v4645 = vadd.f32 %v4543, %v4613
      %v4646 = vadd.f32 %v4544, %v4614
      %v4647 = vadd.f32 %v4545, %v4615
      %v4648 = vadd.f32 %v4546, %v4616
      %v4649 = vadd.f32 %v4547, %v4617
      %v4650 = vadd.f32 %v4548, %v4618
      %v4651 = vadd.f32 %v4549, %v4619
      %v4652 = vadd.f32 %v4550, %v4620
      %v4653 = vadd.f32 %v4551, %v4621
      %v4654 = vadd.f32 %v4552, %v4622
      %v4655 = vadd.f32 %v4553, %v4623
      %v4656 = vadd.f32 %v4554, %v4624
      %v4657 = vadd.f32 %v4555, %v4625
      %v4658 = vadd.f32 %v4556, %v4626
      %v4659 = vadd.f32 %v4557, %v4627
      %v4660 = vadd.f32 %v4558, %v4628
      %v4661 = vadd.f32 %v4559, %v4629
      %v4662 = vadd.f32 %v4560, %v4630
      %v4663 = vadd.f32 %v4561, %v4631
      %v4664 = vadd.f32 %v4562, %v4632
      %v4665 = vld [vmem:[%s4563 + $0x3] sm:$0xff]
      %v4666 = vld [vmem:[%s4563 + $0xb] sm:$0xff]
      %v4667 = vld [vmem:[%s4563 + $0x2b] sm:$0xff]
      %v4668 = vld [vmem:[%s4563 + $0x33] sm:$0xff]
      %v4669 = vld [vmem:[%s4563 + $0x53] sm:$0xff]
      %v4670 = vld [vmem:[%s4563 + $0x5b] sm:$0xff]
      %v4671 = vld [vmem:[%s4563 + $0x7b] sm:$0xff]
      %v4672 = vld [vmem:[%s4563 + $0x83] sm:$0xff]
      %v4673 = vld [vmem:[%s4563 + $0xa3] sm:$0xff]
      %v4674 = vld [vmem:[%s4563 + $0xab] sm:$0xff]
      %v4675 = vld [vmem:[%s4563 + $0xcb] sm:$0xff]
      %v4676 = vld [vmem:[%s4563 + $0xd3] sm:$0xff]
      %v4677 = vld [vmem:[%s4563 + $0xf3] sm:$0xff]
      %v4678 = vld [vmem:[%s4563 + $0xfb] sm:$0xff]
      %v4679 = vld [vmem:[%s4563 + $0x11b] sm:$0xff]
      %v4680 = vld [vmem:[%s4563 + $0x123] sm:$0xff]
      %v4681 = vld [vmem:[%s4563 + $0x143] sm:$0xff]
      %v4682 = vld [vmem:[%s4563 + $0x14b] sm:$0xff]
      %v4683 = vld [vmem:[%s4563 + $0x16b] sm:$0xff]
      %v4684 = vld [vmem:[%s4563 + $0x173] sm:$0xff]
      %v4685 = vld [vmem:[%s4563 + $0x193] sm:$0xff]
      %v4686 = vld [vmem:[%s4563 + $0x19b] sm:$0xff]
      %v4687 = vld [vmem:[%s4563 + $0x1bb] sm:$0xff]
      %v4688 = vld [vmem:[%s4563 + $0x1c3] sm:$0xff]
      %v4689 = vld [vmem:[%s4563 + $0x1e3] sm:$0xff]
      %v4690 = vld [vmem:[%s4563 + $0x1eb] sm:$0xff]
      %v4691 = vld [vmem:[%s4563 + $0x20b] sm:$0xff]
      %v4692 = vld [vmem:[%s4563 + $0x213] sm:$0xff]
      %v4693 = vld [vmem:[%s4563 + $0x233] sm:$0xff]
      %v4694 = vld [vmem:[%s4563 + $0x23b] sm:$0xff]
      %v4695 = vld [vmem:[%s4563 + $0x25b] sm:$0xff]
      %v4696 = vld [vmem:[%s4563 + $0x263] sm:$0xff]
      %v4697 = vld [vmem:[%s3 + $0xf] sm:$0x1]
      %v4698 = vlaneseq
      %v4699 = vshrl.u32 %v4698, 7
      %v4700 = vsub.s32 0, %v4699
      %v4701 = vrot.slane %v4697, %v4700
      %v4702 = vmul.f32 %v4665, %v4701
      %v4703 = vmul.f32 %v4666, %v4701
      %v4704 = vmul.f32 %v4667, %v4701
      %v4705 = vmul.f32 %v4668, %v4701
      %v4706 = vmul.f32 %v4669, %v4701
      %v4707 = vmul.f32 %v4670, %v4701
      %v4708 = vmul.f32 %v4671, %v4701
      %v4709 = vmul.f32 %v4672, %v4701
      %v4710 = vmul.f32 %v4673, %v4701
      %v4711 = vmul.f32 %v4674, %v4701
      %v4712 = vmul.f32 %v4675, %v4701
      %v4713 = vmul.f32 %v4676, %v4701
      %v4714 = vmul.f32 %v4677, %v4701
      %v4715 = vmul.f32 %v4678, %v4701
      %v4716 = vmul.f32 %v4679, %v4701
      %v4717 = vmul.f32 %v4680, %v4701
      %v4718 = vmul.f32 %v4681, %v4701
      %v4719 = vmul.f32 %v4682, %v4701
      %v4720 = vmul.f32 %v4683, %v4701
      %v4721 = vmul.f32 %v4684, %v4701
      %v4722 = vmul.f32 %v4685, %v4701
      %v4723 = vmul.f32 %v4686, %v4701
      %v4724 = vmul.f32 %v4687, %v4701
      %v4725 = vmul.f32 %v4688, %v4701
      %v4726 = vmul.f32 %v4689, %v4701
      %v4727 = vmul.f32 %v4690, %v4701
      %v4728 = vmul.f32 %v4691, %v4701
      %v4729 = vmul.f32 %v4692, %v4701
      %v4730 = vmul.f32 %v4693, %v4701
      %v4731 = vmul.f32 %v4694, %v4701
      %v4732 = vmul.f32 %v4695, %v4701
      %v4733 = vmul.f32 %v4696, %v4701
      %v4734 = vadd.f32 %v4633, %v4702
      %v4735 = vadd.f32 %v4634, %v4703
      %v4736 = vadd.f32 %v4635, %v4704
      %v4737 = vadd.f32 %v4636, %v4705
      %v4738 = vadd.f32 %v4637, %v4706
      %v4739 = vadd.f32 %v4638, %v4707
      %v4740 = vadd.f32 %v4639, %v4708
      %v4741 = vadd.f32 %v4640, %v4709
      %v4742 = vadd.f32 %v4641, %v4710
      %v4743 = vadd.f32 %v4642, %v4711
      %v4744 = vadd.f32 %v4643, %v4712
      %v4745 = vadd.f32 %v4644, %v4713
      %v4746 = vadd.f32 %v4645, %v4714
      %v4747 = vadd.f32 %v4646, %v4715
      %v4748 = vadd.f32 %v4647, %v4716
      %v4749 = vadd.f32 %v4648, %v4717
      %v4750 = vadd.f32 %v4649, %v4718
      %v4751 = vadd.f32 %v4650, %v4719
      %v4752 = vadd.f32 %v4651, %v4720
      %v4753 = vadd.f32 %v4652, %v4721
      %v4754 = vadd.f32 %v4653, %v4722
      %v4755 = vadd.f32 %v4654, %v4723
      %v4756 = vadd.f32 %v4655, %v4724
      %v4757 = vadd.f32 %v4656, %v4725
      %v4758 = vadd.f32 %v4657, %v4726
      %v4759 = vadd.f32 %v4658, %v4727
      %v4760 = vadd.f32 %v4659, %v4728
      %v4761 = vadd.f32 %v4660, %v4729
      %v4762 = vadd.f32 %v4661, %v4730
      %v4763 = vadd.f32 %v4662, %v4731
      %v4764 = vadd.f32 %v4663, %v4732
      %v4765 = vadd.f32 %v4664, %v4733
      %v4766 = vld [vmem:[%s4563 + $0x6] sm:$0xff]
      %v4767 = vld [vmem:[%s4563 + $0xe] sm:$0xff]
      %v4768 = vld [vmem:[%s4563 + $0x2e] sm:$0xff]
      %v4769 = vld [vmem:[%s4563 + $0x36] sm:$0xff]
      %v4770 = vld [vmem:[%s4563 + $0x56] sm:$0xff]
      %v4771 = vld [vmem:[%s4563 + $0x5e] sm:$0xff]
      %v4772 = vld [vmem:[%s4563 + $0x7e] sm:$0xff]
      %v4773 = vld [vmem:[%s4563 + $0x86] sm:$0xff]
      %v4774 = vld [vmem:[%s4563 + $0xa6] sm:$0xff]
      %v4775 = vld [vmem:[%s4563 + $0xae] sm:$0xff]
      %v4776 = vld [vmem:[%s4563 + $0xce] sm:$0xff]
      %v4777 = vld [vmem:[%s4563 + $0xd6] sm:$0xff]
      %v4778 = vld [vmem:[%s4563 + $0xf6] sm:$0xff]
      %v4779 = vld [vmem:[%s4563 + $0xfe] sm:$0xff]
      %v4780 = vld [vmem:[%s4563 + $0x11e] sm:$0xff]
      %v4781 = vld [vmem:[%s4563 + $0x126] sm:$0xff]
      %v4782 = vld [vmem:[%s4563 + $0x146] sm:$0xff]
      %v4783 = vld [vmem:[%s4563 + $0x14e] sm:$0xff]
      %v4784 = vld [vmem:[%s4563 + $0x16e] sm:$0xff]
      %v4785 = vld [vmem:[%s4563 + $0x176] sm:$0xff]
      %v4786 = vld [vmem:[%s4563 + $0x196] sm:$0xff]
      %v4787 = vld [vmem:[%s4563 + $0x19e] sm:$0xff]
      %v4788 = vld [vmem:[%s4563 + $0x1be] sm:$0xff]
      %v4789 = vld [vmem:[%s4563 + $0x1c6] sm:$0xff]
      %v4790 = vld [vmem:[%s4563 + $0x1e6] sm:$0xff]
      %v4791 = vld [vmem:[%s4563 + $0x1ee] sm:$0xff]
      %v4792 = vld [vmem:[%s4563 + $0x20e] sm:$0xff]
      %v4793 = vld [vmem:[%s4563 + $0x216] sm:$0xff]
      %v4794 = vld [vmem:[%s4563 + $0x236] sm:$0xff]
      %v4795 = vld [vmem:[%s4563 + $0x23e] sm:$0xff]
      %v4796 = vld [vmem:[%s4563 + $0x25e] sm:$0xff]
      %v4797 = vld [vmem:[%s4563 + $0x266] sm:$0xff]
      %v4798 = vld [vmem:[%s3 + $0x10] sm:$0x1]
      %v4799 = vlaneseq
      %v4800 = vshrl.u32 %v4799, 7
      %v4801 = vsub.s32 0, %v4800
      %v4802 = vrot.slane %v4798, %v4801
      %v4803 = vmul.f32 %v4766, %v4802
      %v4804 = vmul.f32 %v4767, %v4802
      %v4805 = vmul.f32 %v4768, %v4802
      %v4806 = vmul.f32 %v4769, %v4802
      %v4807 = vmul.f32 %v4770, %v4802
      %v4808 = vmul.f32 %v4771, %v4802
      %v4809 = vmul.f32 %v4772, %v4802
      %v4810 = vmul.f32 %v4773, %v4802
      %v4811 = vmul.f32 %v4774, %v4802
      %v4812 = vmul.f32 %v4775, %v4802
      %v4813 = vmul.f32 %v4776, %v4802
      %v4814 = vmul.f32 %v4777, %v4802
      %v4815 = vmul.f32 %v4778, %v4802
      %v4816 = vmul.f32 %v4779, %v4802
      %v4817 = vmul.f32 %v4780, %v4802
      %v4818 = vmul.f32 %v4781, %v4802
      %v4819 = vmul.f32 %v4782, %v4802
      %v4820 = vmul.f32 %v4783, %v4802
      %v4821 = vmul.f32 %v4784, %v4802
      %v4822 = vmul.f32 %v4785, %v4802
      %v4823 = vmul.f32 %v4786, %v4802
      %v4824 = vmul.f32 %v4787, %v4802
      %v4825 = vmul.f32 %v4788, %v4802
      %v4826 = vmul.f32 %v4789, %v4802
      %v4827 = vmul.f32 %v4790, %v4802
      %v4828 = vmul.f32 %v4791, %v4802
      %v4829 = vmul.f32 %v4792, %v4802
      %v4830 = vmul.f32 %v4793, %v4802
      %v4831 = vmul.f32 %v4794, %v4802
      %v4832 = vmul.f32 %v4795, %v4802
      %v4833 = vmul.f32 %v4796, %v4802
      %v4834 = vmul.f32 %v4797, %v4802
      %v4835 = vadd.f32 %v4734, %v4803
      %v4836 = vadd.f32 %v4735, %v4804
      %v4837 = vadd.f32 %v4736, %v4805
      %v4838 = vadd.f32 %v4737, %v4806
      %v4839 = vadd.f32 %v4738, %v4807
      %v4840 = vadd.f32 %v4739, %v4808
      %v4841 = vadd.f32 %v4740, %v4809
      %v4842 = vadd.f32 %v4741, %v4810
      %v4843 = vadd.f32 %v4742, %v4811
      %v4844 = vadd.f32 %v4743, %v4812
      %v4845 = vadd.f32 %v4744, %v4813
      %v4846 = vadd.f32 %v4745, %v4814
      %v4847 = vadd.f32 %v4746, %v4815
      %v4848 = vadd.f32 %v4747, %v4816
      %v4849 = vadd.f32 %v4748, %v4817
      %v4850 = vadd.f32 %v4749, %v4818
      %v4851 = vadd.f32 %v4750, %v4819
      %v4852 = vadd.f32 %v4751, %v4820
      %v4853 = vadd.f32 %v4752, %v4821
      %v4854 = vadd.f32 %v4753, %v4822
      %v4855 = vadd.f32 %v4754, %v4823
      %v4856 = vadd.f32 %v4755, %v4824
      %v4857 = vadd.f32 %v4756, %v4825
      %v4858 = vadd.f32 %v4757, %v4826
      %v4859 = vadd.f32 %v4758, %v4827
      %v4860 = vadd.f32 %v4759, %v4828
      %v4861 = vadd.f32 %v4760, %v4829
      %v4862 = vadd.f32 %v4761, %v4830
      %v4863 = vadd.f32 %v4762, %v4831
      %v4864 = vadd.f32 %v4763, %v4832
      %v4865 = vadd.f32 %v4764, %v4833
      %v4866 = vadd.f32 %v4765, %v4834
      %v4867 = vld [vmem:[%s4563 + $0x9] sm:$0xff]
      %v4868 = vld [vmem:[%s4563 + $0x11] sm:$0xff]
      %v4869 = vld [vmem:[%s4563 + $0x31] sm:$0xff]
      %v4870 = vld [vmem:[%s4563 + $0x39] sm:$0xff]
      %v4871 = vld [vmem:[%s4563 + $0x59] sm:$0xff]
      %v4872 = vld [vmem:[%s4563 + $0x61] sm:$0xff]
      %v4873 = vld [vmem:[%s4563 + $0x81] sm:$0xff]
      %v4874 = vld [vmem:[%s4563 + $0x89] sm:$0xff]
      %v4875 = vld [vmem:[%s4563 + $0xa9] sm:$0xff]
      %v4876 = vld [vmem:[%s4563 + $0xb1] sm:$0xff]
      %v4877 = vld [vmem:[%s4563 + $0xd1] sm:$0xff]
      %v4878 = vld [vmem:[%s4563 + $0xd9] sm:$0xff]
      %v4879 = vld [vmem:[%s4563 + $0xf9] sm:$0xff]
      %v4880 = vld [vmem:[%s4563 + $0x101] sm:$0xff]
      %v4881 = vld [vmem:[%s4563 + $0x121] sm:$0xff]
      %v4882 = vld [vmem:[%s4563 + $0x129] sm:$0xff]
      %v4883 = vld [vmem:[%s4563 + $0x149] sm:$0xff]
      %v4884 = vld [vmem:[%s4563 + $0x151] sm:$0xff]
      %v4885 = vld [vmem:[%s4563 + $0x171] sm:$0xff]
      %v4886 = vld [vmem:[%s4563 + $0x179] sm:$0xff]
      %v4887 = vld [vmem:[%s4563 + $0x199] sm:$0xff]
      %v4888 = vld [vmem:[%s4563 + $0x1a1] sm:$0xff]
      %v4889 = vld [vmem:[%s4563 + $0x1c1] sm:$0xff]
      %v4890 = vld [vmem:[%s4563 + $0x1c9] sm:$0xff]
      %v4891 = vld [vmem:[%s4563 + $0x1e9] sm:$0xff]
      %v4892 = vld [vmem:[%s4563 + $0x1f1] sm:$0xff]
      %v4893 = vld [vmem:[%s4563 + $0x211] sm:$0xff]
      %v4894 = vld [vmem:[%s4563 + $0x219] sm:$0xff]
      %v4895 = vld [vmem:[%s4563 + $0x239] sm:$0xff]
      %v4896 = vld [vmem:[%s4563 + $0x241] sm:$0xff]
      %v4897 = vld [vmem:[%s4563 + $0x261] sm:$0xff]
      %v4898 = vld [vmem:[%s4563 + $0x269] sm:$0xff]
      %v4899 = vld [vmem:[%s3 + $0x11] sm:$0x1]
      %v4900 = vlaneseq
      %v4901 = vshrl.u32 %v4900, 7
      %v4902 = vsub.s32 0, %v4901
      %v4903 = vrot.slane %v4899, %v4902
      %v4904 = vmul.f32 %v4867, %v4903
      %v4905 = vmul.f32 %v4868, %v4903
      %v4906 = vmul.f32 %v4869, %v4903
      %v4907 = vmul.f32 %v4870, %v4903
      %v4908 = vmul.f32 %v4871, %v4903
      %v4909 = vmul.f32 %v4872, %v4903
      %v4910 = vmul.f32 %v4873, %v4903
      %v4911 = vmul.f32 %v4874, %v4903
      %v4912 = vmul.f32 %v4875, %v4903
      %v4913 = vmul.f32 %v4876, %v4903
      %v4914 = vmul.f32 %v4877, %v4903
      %v4915 = vmul.f32 %v4878, %v4903
      %v4916 = vmul.f32 %v4879, %v4903
      %v4917 = vmul.f32 %v4880, %v4903
      %v4918 = vmul.f32 %v4881, %v4903
      %v4919 = vmul.f32 %v4882, %v4903
      %v4920 = vmul.f32 %v4883, %v4903
      %v4921 = vmul.f32 %v4884, %v4903
      %v4922 = vmul.f32 %v4885, %v4903
      %v4923 = vmul.f32 %v4886, %v4903
      %v4924 = vmul.f32 %v4887, %v4903
      %v4925 = vmul.f32 %v4888, %v4903
      %v4926 = vmul.f32 %v4889, %v4903
      %v4927 = vmul.f32 %v4890, %v4903
      %v4928 = vmul.f32 %v4891, %v4903
      %v4929 = vmul.f32 %v4892, %v4903
      %v4930 = vmul.f32 %v4893, %v4903
      %v4931 = vmul.f32 %v4894, %v4903
      %v4932 = vmul.f32 %v4895, %v4903
      %v4933 = vmul.f32 %v4896, %v4903
      %v4934 = vmul.f32 %v4897, %v4903
      %v4935 = vmul.f32 %v4898, %v4903
      %v4936 = vadd.f32 %v4835, %v4904
      %v4937 = vadd.f32 %v4836, %v4905
      %v4938 = vadd.f32 %v4837, %v4906
      %v4939 = vadd.f32 %v4838, %v4907
      %v4940 = vadd.f32 %v4839, %v4908
      %v4941 = vadd.f32 %v4840, %v4909
      %v4942 = vadd.f32 %v4841, %v4910
      %v4943 = vadd.f32 %v4842, %v4911
      %v4944 = vadd.f32 %v4843, %v4912
      %v4945 = vadd.f32 %v4844, %v4913
      %v4946 = vadd.f32 %v4845, %v4914
      %v4947 = vadd.f32 %v4846, %v4915
      %v4948 = vadd.f32 %v4847, %v4916
      %v4949 = vadd.f32 %v4848, %v4917
      %v4950 = vadd.f32 %v4849, %v4918
      %v4951 = vadd.f32 %v4850, %v4919
      %v4952 = vadd.f32 %v4851, %v4920
      %v4953 = vadd.f32 %v4852, %v4921
      %v4954 = vadd.f32 %v4853, %v4922
      %v4955 = vadd.f32 %v4854, %v4923
      %v4956 = vadd.f32 %v4855, %v4924
      %v4957 = vadd.f32 %v4856, %v4925
      %v4958 = vadd.f32 %v4857, %v4926
      %v4959 = vadd.f32 %v4858, %v4927
      %v4960 = vadd.f32 %v4859, %v4928
      %v4961 = vadd.f32 %v4860, %v4929
      %v4962 = vadd.f32 %v4861, %v4930
      %v4963 = vadd.f32 %v4862, %v4931
      %v4964 = vadd.f32 %v4863, %v4932
      %v4965 = vadd.f32 %v4864, %v4933
      %v4966 = vadd.f32 %v4865, %v4934
      %v4967 = vadd.f32 %v4866, %v4935
      %v4968 = vld [vmem:[%s4563 + $0xc] sm:$0xff]
      %v4969 = vld [vmem:[%s4563 + $0x14] sm:$0xff]
      %v4970 = vld [vmem:[%s4563 + $0x34] sm:$0xff]
      %v4971 = vld [vmem:[%s4563 + $0x3c] sm:$0xff]
      %v4972 = vld [vmem:[%s4563 + $0x5c] sm:$0xff]
      %v4973 = vld [vmem:[%s4563 + $0x64] sm:$0xff]
      %v4974 = vld [vmem:[%s4563 + $0x84] sm:$0xff]
      %v4975 = vld [vmem:[%s4563 + $0x8c] sm:$0xff]
      %v4976 = vld [vmem:[%s4563 + $0xac] sm:$0xff]
      %v4977 = vld [vmem:[%s4563 + $0xb4] sm:$0xff]
      %v4978 = vld [vmem:[%s4563 + $0xd4] sm:$0xff]
      %v4979 = vld [vmem:[%s4563 + $0xdc] sm:$0xff]
      %v4980 = vld [vmem:[%s4563 + $0xfc] sm:$0xff]
      %v4981 = vld [vmem:[%s4563 + $0x104] sm:$0xff]
      %v4982 = vld [vmem:[%s4563 + $0x124] sm:$0xff]
      %v4983 = vld [vmem:[%s4563 + $0x12c] sm:$0xff]
      %v4984 = vld [vmem:[%s4563 + $0x14c] sm:$0xff]
      %v4985 = vld [vmem:[%s4563 + $0x154] sm:$0xff]
      %v4986 = vld [vmem:[%s4563 + $0x174] sm:$0xff]
      %v4987 = vld [vmem:[%s4563 + $0x17c] sm:$0xff]
      %v4988 = vld [vmem:[%s4563 + $0x19c] sm:$0xff]
      %v4989 = vld [vmem:[%s4563 + $0x1a4] sm:$0xff]
      %v4990 = vld [vmem:[%s4563 + $0x1c4] sm:$0xff]
      %v4991 = vld [vmem:[%s4563 + $0x1cc] sm:$0xff]
      %v4992 = vld [vmem:[%s4563 + $0x1ec] sm:$0xff]
      %v4993 = vld [vmem:[%s4563 + $0x1f4] sm:$0xff]
      %v4994 = vld [vmem:[%s4563 + $0x214] sm:$0xff]
      %v4995 = vld [vmem:[%s4563 + $0x21c] sm:$0xff]
      %v4996 = vld [vmem:[%s4563 + $0x23c] sm:$0xff]
      %v4997 = vld [vmem:[%s4563 + $0x244] sm:$0xff]
      %v4998 = vld [vmem:[%s4563 + $0x264] sm:$0xff]
      %v4999 = vld [vmem:[%s4563 + $0x26c] sm:$0xff]
      %v5000 = vld [vmem:[%s3 + $0x12] sm:$0x1]
      %v5001 = vlaneseq
      %v5002 = vshrl.u32 %v5001, 7
      %v5003 = vsub.s32 0, %v5002
      %v5004 = vrot.slane %v5000, %v5003
      %v5005 = vmul.f32 %v4968, %v5004
      %v5006 = vmul.f32 %v4969, %v5004
      %v5007 = vmul.f32 %v4970, %v5004
      %v5008 = vmul.f32 %v4971, %v5004
      %v5009 = vmul.f32 %v4972, %v5004
      %v5010 = vmul.f32 %v4973, %v5004
      %v5011 = vmul.f32 %v4974, %v5004
      %v5012 = vmul.f32 %v4975, %v5004
      %v5013 = vmul.f32 %v4976, %v5004
      %v5014 = vmul.f32 %v4977, %v5004
      %v5015 = vmul.f32 %v4978, %v5004
      %v5016 = vmul.f32 %v4979, %v5004
      %v5017 = vmul.f32 %v4980, %v5004
      %v5018 = vmul.f32 %v4981, %v5004
      %v5019 = vmul.f32 %v4982, %v5004
      %v5020 = vmul.f32 %v4983, %v5004
      %v5021 = vmul.f32 %v4984, %v5004
      %v5022 = vmul.f32 %v4985, %v5004
      %v5023 = vmul.f32 %v4986, %v5004
      %v5024 = vmul.f32 %v4987, %v5004
      %v5025 = vmul.f32 %v4988, %v5004
      %v5026 = vmul.f32 %v4989, %v5004
      %v5027 = vmul.f32 %v4990, %v5004
      %v5028 = vmul.f32 %v4991, %v5004
      %v5029 = vmul.f32 %v4992, %v5004
      %v5030 = vmul.f32 %v4993, %v5004
      %v5031 = vmul.f32 %v4994, %v5004
      %v5032 = vmul.f32 %v4995, %v5004
      %v5033 = vmul.f32 %v4996, %v5004
      %v5034 = vmul.f32 %v4997, %v5004
      %v5035 = vmul.f32 %v4998, %v5004
      %v5036 = vmul.f32 %v4999, %v5004
      %v5037 = vadd.f32 %v4936, %v5005
      %v5038 = vadd.f32 %v4937, %v5006
      %v5039 = vadd.f32 %v4938, %v5007
      %v5040 = vadd.f32 %v4939, %v5008
      %v5041 = vadd.f32 %v4940, %v5009
      %v5042 = vadd.f32 %v4941, %v5010
      %v5043 = vadd.f32 %v4942, %v5011
      %v5044 = vadd.f32 %v4943, %v5012
      %v5045 = vadd.f32 %v4944, %v5013
      %v5046 = vadd.f32 %v4945, %v5014
      %v5047 = vadd.f32 %v4946, %v5015
      %v5048 = vadd.f32 %v4947, %v5016
      %v5049 = vadd.f32 %v4948, %v5017
      %v5050 = vadd.f32 %v4949, %v5018
      %v5051 = vadd.f32 %v4950, %v5019
      %v5052 = vadd.f32 %v4951, %v5020
      %v5053 = vadd.f32 %v4952, %v5021
      %v5054 = vadd.f32 %v4953, %v5022
      %v5055 = vadd.f32 %v4954, %v5023
      %v5056 = vadd.f32 %v4955, %v5024
      %v5057 = vadd.f32 %v4956, %v5025
      %v5058 = vadd.f32 %v4957, %v5026
      %v5059 = vadd.f32 %v4958, %v5027
      %v5060 = vadd.f32 %v4959, %v5028
      %v5061 = vadd.f32 %v4960, %v5029
      %v5062 = vadd.f32 %v4961, %v5030
      %v5063 = vadd.f32 %v4962, %v5031
      %v5064 = vadd.f32 %v4963, %v5032
      %v5065 = vadd.f32 %v4964, %v5033
      %v5066 = vadd.f32 %v4965, %v5034
      %v5067 = vadd.f32 %v4966, %v5035
      %v5068 = vadd.f32 %v4967, %v5036
      %v5069 = vld [vmem:[%s4563 + $0xf] sm:$0xff]
      %v5070 = vld [vmem:[%s4563 + $0x17] sm:$0xff]
      %v5071 = vld [vmem:[%s4563 + $0x37] sm:$0xff]
      %v5072 = vld [vmem:[%s4563 + $0x3f] sm:$0xff]
      %v5073 = vld [vmem:[%s4563 + $0x5f] sm:$0xff]
      %v5074 = vld [vmem:[%s4563 + $0x67] sm:$0xff]
      %v5075 = vld [vmem:[%s4563 + $0x87] sm:$0xff]
      %v5076 = vld [vmem:[%s4563 + $0x8f] sm:$0xff]
      %v5077 = vld [vmem:[%s4563 + $0xaf] sm:$0xff]
      %v5078 = vld [vmem:[%s4563 + $0xb7] sm:$0xff]
      %v5079 = vld [vmem:[%s4563 + $0xd7] sm:$0xff]
      %v5080 = vld [vmem:[%s4563 + $0xdf] sm:$0xff]
      %v5081 = vld [vmem:[%s4563 + $0xff] sm:$0xff]
      %v5082 = vld [vmem:[%s4563 + $0x107] sm:$0xff]
      %v5083 = vld [vmem:[%s4563 + $0x127] sm:$0xff]
      %v5084 = vld [vmem:[%s4563 + $0x12f] sm:$0xff]
      %v5085 = vld [vmem:[%s4563 + $0x14f] sm:$0xff]
      %v5086 = vld [vmem:[%s4563 + $0x157] sm:$0xff]
      %v5087 = vld [vmem:[%s4563 + $0x177] sm:$0xff]
      %v5088 = vld [vmem:[%s4563 + $0x17f] sm:$0xff]
      %v5089 = vld [vmem:[%s4563 + $0x19f] sm:$0xff]
      %v5090 = vld [vmem:[%s4563 + $0x1a7] sm:$0xff]
      %v5091 = vld [vmem:[%s4563 + $0x1c7] sm:$0xff]
      %v5092 = vld [vmem:[%s4563 + $0x1cf] sm:$0xff]
      %v5093 = vld [vmem:[%s4563 + $0x1ef] sm:$0xff]
      %v5094 = vld [vmem:[%s4563 + $0x1f7] sm:$0xff]
      %v5095 = vld [vmem:[%s4563 + $0x217] sm:$0xff]
      %v5096 = vld [vmem:[%s4563 + $0x21f] sm:$0xff]
      %v5097 = vld [vmem:[%s4563 + $0x23f] sm:$0xff]
      %v5098 = vld [vmem:[%s4563 + $0x247] sm:$0xff]
      %v5099 = vld [vmem:[%s4563 + $0x267] sm:$0xff]
      %v5100 = vld [vmem:[%s4563 + $0x26f] sm:$0xff]
      %v5101 = vld [vmem:[%s3 + $0x13] sm:$0x1]
      %v5102 = vlaneseq
      %v5103 = vshrl.u32 %v5102, 7
      %v5104 = vsub.s32 0, %v5103
      %v5105 = vrot.slane %v5101, %v5104
      %v5106 = vmul.f32 %v5069, %v5105
      %v5107 = vmul.f32 %v5070, %v5105
      %v5108 = vmul.f32 %v5071, %v5105
      %v5109 = vmul.f32 %v5072, %v5105
      %v5110 = vmul.f32 %v5073, %v5105
      %v5111 = vmul.f32 %v5074, %v5105
      %v5112 = vmul.f32 %v5075, %v5105
      %v5113 = vmul.f32 %v5076, %v5105
      %v5114 = vmul.f32 %v5077, %v5105
      %v5115 = vmul.f32 %v5078, %v5105
      %v5116 = vmul.f32 %v5079, %v5105
      %v5117 = vmul.f32 %v5080, %v5105
      %v5118 = vmul.f32 %v5081, %v5105
      %v5119 = vmul.f32 %v5082, %v5105
      %v5120 = vmul.f32 %v5083, %v5105
      %v5121 = vmul.f32 %v5084, %v5105
      %v5122 = vmul.f32 %v5085, %v5105
      %v5123 = vmul.f32 %v5086, %v5105
      %v5124 = vmul.f32 %v5087, %v5105
      %v5125 = vmul.f32 %v5088, %v5105
      %v5126 = vmul.f32 %v5089, %v5105
      %v5127 = vmul.f32 %v5090, %v5105
      %v5128 = vmul.f32 %v5091, %v5105
      %v5129 = vmul.f32 %v5092, %v5105
      %v5130 = vmul.f32 %v5093, %v5105
      %v5131 = vmul.f32 %v5094, %v5105
      %v5132 = vmul.f32 %v5095, %v5105
      %v5133 = vmul.f32 %v5096, %v5105
      %v5134 = vmul.f32 %v5097, %v5105
      %v5135 = vmul.f32 %v5098, %v5105
      %v5136 = vmul.f32 %v5099, %v5105
      %v5137 = vmul.f32 %v5100, %v5105
      %v5138 = vadd.f32 %v5037, %v5106
      %v5139 = vadd.f32 %v5038, %v5107
      %v5140 = vadd.f32 %v5039, %v5108
      %v5141 = vadd.f32 %v5040, %v5109
      %v5142 = vadd.f32 %v5041, %v5110
      %v5143 = vadd.f32 %v5042, %v5111
      %v5144 = vadd.f32 %v5043, %v5112
      %v5145 = vadd.f32 %v5044, %v5113
      %v5146 = vadd.f32 %v5045, %v5114
      %v5147 = vadd.f32 %v5046, %v5115
      %v5148 = vadd.f32 %v5047, %v5116
      %v5149 = vadd.f32 %v5048, %v5117
      %v5150 = vadd.f32 %v5049, %v5118
      %v5151 = vadd.f32 %v5050, %v5119
      %v5152 = vadd.f32 %v5051, %v5120
      %v5153 = vadd.f32 %v5052, %v5121
      %v5154 = vadd.f32 %v5053, %v5122
      %v5155 = vadd.f32 %v5054, %v5123
      %v5156 = vadd.f32 %v5055, %v5124
      %v5157 = vadd.f32 %v5056, %v5125
      %v5158 = vadd.f32 %v5057, %v5126
      %v5159 = vadd.f32 %v5058, %v5127
      %v5160 = vadd.f32 %v5059, %v5128
      %v5161 = vadd.f32 %v5060, %v5129
      %v5162 = vadd.f32 %v5061, %v5130
      %v5163 = vadd.f32 %v5062, %v5131
      %v5164 = vadd.f32 %v5063, %v5132
      %v5165 = vadd.f32 %v5064, %v5133
      %v5166 = vadd.f32 %v5065, %v5134
      %v5167 = vadd.f32 %v5066, %v5135
      %v5168 = vadd.f32 %v5067, %v5136
      %v5169 = vadd.f32 %v5068, %v5137
      %v5170 = vld [vmem:[%s4563 + $0x12] sm:$0xff]
      %v5171 = vld [vmem:[%s4563 + $0x1a] sm:$0xff]
      %v5172 = vld [vmem:[%s4563 + $0x3a] sm:$0xff]
      %v5173 = vld [vmem:[%s4563 + $0x42] sm:$0xff]
      %v5174 = vld [vmem:[%s4563 + $0x62] sm:$0xff]
      %v5175 = vld [vmem:[%s4563 + $0x6a] sm:$0xff]
      %v5176 = vld [vmem:[%s4563 + $0x8a] sm:$0xff]
      %v5177 = vld [vmem:[%s4563 + $0x92] sm:$0xff]
      %v5178 = vld [vmem:[%s4563 + $0xb2] sm:$0xff]
      %v5179 = vld [vmem:[%s4563 + $0xba] sm:$0xff]
      %v5180 = vld [vmem:[%s4563 + $0xda] sm:$0xff]
      %v5181 = vld [vmem:[%s4563 + $0xe2] sm:$0xff]
      %v5182 = vld [vmem:[%s4563 + $0x102] sm:$0xff]
      %v5183 = vld [vmem:[%s4563 + $0x10a] sm:$0xff]
      %v5184 = vld [vmem:[%s4563 + $0x12a] sm:$0xff]
      %v5185 = vld [vmem:[%s4563 + $0x132] sm:$0xff]
      %v5186 = vld [vmem:[%s4563 + $0x152] sm:$0xff]
      %v5187 = vld [vmem:[%s4563 + $0x15a] sm:$0xff]
      %v5188 = vld [vmem:[%s4563 + $0x17a] sm:$0xff]
      %v5189 = vld [vmem:[%s4563 + $0x182] sm:$0xff]
      %v5190 = vld [vmem:[%s4563 + $0x1a2] sm:$0xff]
      %v5191 = vld [vmem:[%s4563 + $0x1aa] sm:$0xff]
      %v5192 = vld [vmem:[%s4563 + $0x1ca] sm:$0xff]
      %v5193 = vld [vmem:[%s4563 + $0x1d2] sm:$0xff]
      %v5194 = vld [vmem:[%s4563 + $0x1f2] sm:$0xff]
      %v5195 = vld [vmem:[%s4563 + $0x1fa] sm:$0xff]
      %v5196 = vld [vmem:[%s4563 + $0x21a] sm:$0xff]
      %v5197 = vld [vmem:[%s4563 + $0x222] sm:$0xff]
      %v5198 = vld [vmem:[%s4563 + $0x242] sm:$0xff]
      %v5199 = vld [vmem:[%s4563 + $0x24a] sm:$0xff]
      %v5200 = vld [vmem:[%s4563 + $0x26a] sm:$0xff]
      %v5201 = vld [vmem:[%s4563 + $0x272] sm:$0xff]
      %v5202 = vld [vmem:[%s3 + $0x14] sm:$0x1]
      %v5203 = vlaneseq
      %v5204 = vshrl.u32 %v5203, 7
      %v5205 = vsub.s32 0, %v5204
      %v5206 = vrot.slane %v5202, %v5205
      %v5207 = vmul.f32 %v5170, %v5206
      %v5208 = vmul.f32 %v5171, %v5206
      %v5209 = vmul.f32 %v5172, %v5206
      %v5210 = vmul.f32 %v5173, %v5206
      %v5211 = vmul.f32 %v5174, %v5206
      %v5212 = vmul.f32 %v5175, %v5206
      %v5213 = vmul.f32 %v5176, %v5206
      %v5214 = vmul.f32 %v5177, %v5206
      %v5215 = vmul.f32 %v5178, %v5206
      %v5216 = vmul.f32 %v5179, %v5206
      %v5217 = vmul.f32 %v5180, %v5206
      %v5218 = vmul.f32 %v5181, %v5206
      %v5219 = vmul.f32 %v5182, %v5206
      %v5220 = vmul.f32 %v5183, %v5206
      %v5221 = vmul.f32 %v5184, %v5206
      %v5222 = vmul.f32 %v5185, %v5206
      %v5223 = vmul.f32 %v5186, %v5206
      %v5224 = vmul.f32 %v5187, %v5206
      %v5225 = vmul.f32 %v5188, %v5206
      %v5226 = vmul.f32 %v5189, %v5206
      %v5227 = vmul.f32 %v5190, %v5206
      %v5228 = vmul.f32 %v5191, %v5206
      %v5229 = vmul.f32 %v5192, %v5206
      %v5230 = vmul.f32 %v5193, %v5206
      %v5231 = vmul.f32 %v5194, %v5206
      %v5232 = vmul.f32 %v5195, %v5206
      %v5233 = vmul.f32 %v5196, %v5206
      %v5234 = vmul.f32 %v5197, %v5206
      %v5235 = vmul.f32 %v5198, %v5206
      %v5236 = vmul.f32 %v5199, %v5206
      %v5237 = vmul.f32 %v5200, %v5206
      %v5238 = vmul.f32 %v5201, %v5206
      %v5239 = vadd.f32 %v5138, %v5207
      %v5240 = vadd.f32 %v5139, %v5208
      %v5241 = vadd.f32 %v5140, %v5209
      %v5242 = vadd.f32 %v5141, %v5210
      %v5243 = vadd.f32 %v5142, %v5211
      %v5244 = vadd.f32 %v5143, %v5212
      %v5245 = vadd.f32 %v5144, %v5213
      %v5246 = vadd.f32 %v5145, %v5214
      %v5247 = vadd.f32 %v5146, %v5215
      %v5248 = vadd.f32 %v5147, %v5216
      %v5249 = vadd.f32 %v5148, %v5217
      %v5250 = vadd.f32 %v5149, %v5218
      %v5251 = vadd.f32 %v5150, %v5219
      %v5252 = vadd.f32 %v5151, %v5220
      %v5253 = vadd.f32 %v5152, %v5221
      %v5254 = vadd.f32 %v5153, %v5222
      %v5255 = vadd.f32 %v5154, %v5223
      %v5256 = vadd.f32 %v5155, %v5224
      %v5257 = vadd.f32 %v5156, %v5225
      %v5258 = vadd.f32 %v5157, %v5226
      %v5259 = vadd.f32 %v5158, %v5227
      %v5260 = vadd.f32 %v5159, %v5228
      %v5261 = vadd.f32 %v5160, %v5229
      %v5262 = vadd.f32 %v5161, %v5230
      %v5263 = vadd.f32 %v5162, %v5231
      %v5264 = vadd.f32 %v5163, %v5232
      %v5265 = vadd.f32 %v5164, %v5233
      %v5266 = vadd.f32 %v5165, %v5234
      %v5267 = vadd.f32 %v5166, %v5235
      %v5268 = vadd.f32 %v5167, %v5236
      %v5269 = vadd.f32 %v5168, %v5237
      %v5270 = vadd.f32 %v5169, %v5238
      %v5271 = vld [vmem:[%s3050] sm:$0xff]
      %v5272 = vld [vmem:[%s3050 + $0x8] sm:$0xff]
      %v5273 = vld [vmem:[%s3050 + $0x28] sm:$0xff]
      %v5274 = vld [vmem:[%s3050 + $0x30] sm:$0xff]
      %v5275 = vld [vmem:[%s3050 + $0x50] sm:$0xff]
      %v5276 = vld [vmem:[%s3050 + $0x58] sm:$0xff]
      %v5277 = vld [vmem:[%s3050 + $0x78] sm:$0xff]
      %v5278 = vld [vmem:[%s3050 + $0x80] sm:$0xff]
      %v5279 = vld [vmem:[%s3050 + $0xa0] sm:$0xff]
      %v5280 = vld [vmem:[%s3050 + $0xa8] sm:$0xff]
      %v5281 = vld [vmem:[%s3050 + $0xc8] sm:$0xff]
      %v5282 = vld [vmem:[%s3050 + $0xd0] sm:$0xff]
      %v5283 = vld [vmem:[%s3050 + $0xf0] sm:$0xff]
      %v5284 = vld [vmem:[%s3050 + $0xf8] sm:$0xff]
      %v5285 = vld [vmem:[%s3050 + $0x118] sm:$0xff]
      %v5286 = vld [vmem:[%s3050 + $0x120] sm:$0xff]
      %v5287 = vld [vmem:[%s3050 + $0x140] sm:$0xff]
      %v5288 = vld [vmem:[%s3050 + $0x148] sm:$0xff]
      %v5289 = vld [vmem:[%s3050 + $0x168] sm:$0xff]
      %v5290 = vld [vmem:[%s3050 + $0x170] sm:$0xff]
      %v5291 = vld [vmem:[%s3050 + $0x190] sm:$0xff]
      %v5292 = vld [vmem:[%s3050 + $0x198] sm:$0xff]
      %v5293 = vld [vmem:[%s3050 + $0x1b8] sm:$0xff]
      %v5294 = vld [vmem:[%s3050 + $0x1c0] sm:$0xff]
      %v5295 = vld [vmem:[%s3050 + $0x1e0] sm:$0xff]
      %v5296 = vld [vmem:[%s3050 + $0x1e8] sm:$0xff]
      %v5297 = vld [vmem:[%s3050 + $0x208] sm:$0xff]
      %v5298 = vld [vmem:[%s3050 + $0x210] sm:$0xff]
      %v5299 = vld [vmem:[%s3050 + $0x230] sm:$0xff]
      %v5300 = vld [vmem:[%s3050 + $0x238] sm:$0xff]
      %v5301 = vld [vmem:[%s3050 + $0x258] sm:$0xff]
      %v5302 = vld [vmem:[%s3050 + $0x260] sm:$0xff]
      %v5303 = vld [vmem:[%s3 + $0x15] sm:$0x1]
      %v5304 = vlaneseq
      %v5305 = vshrl.u32 %v5304, 7
      %v5306 = vsub.s32 0, %v5305
      %v5307 = vrot.slane %v5303, %v5306
      %v5308 = vmul.f32 %v5271, %v5307
      %v5309 = vmul.f32 %v5272, %v5307
      %v5310 = vmul.f32 %v5273, %v5307
      %v5311 = vmul.f32 %v5274, %v5307
      %v5312 = vmul.f32 %v5275, %v5307
      %v5313 = vmul.f32 %v5276, %v5307
      %v5314 = vmul.f32 %v5277, %v5307
      %v5315 = vmul.f32 %v5278, %v5307
      %v5316 = vmul.f32 %v5279, %v5307
      %v5317 = vmul.f32 %v5280, %v5307
      %v5318 = vmul.f32 %v5281, %v5307
      %v5319 = vmul.f32 %v5282, %v5307
      %v5320 = vmul.f32 %v5283, %v5307
      %v5321 = vmul.f32 %v5284, %v5307
      %v5322 = vmul.f32 %v5285, %v5307
      %v5323 = vmul.f32 %v5286, %v5307
      %v5324 = vmul.f32 %v5287, %v5307
      %v5325 = vmul.f32 %v5288, %v5307
      %v5326 = vmul.f32 %v5289, %v5307
      %v5327 = vmul.f32 %v5290, %v5307
      %v5328 = vmul.f32 %v5291, %v5307
      %v5329 = vmul.f32 %v5292, %v5307
      %v5330 = vmul.f32 %v5293, %v5307
      %v5331 = vmul.f32 %v5294, %v5307
      %v5332 = vmul.f32 %v5295, %v5307
      %v5333 = vmul.f32 %v5296, %v5307
      %v5334 = vmul.f32 %v5297, %v5307
      %v5335 = vmul.f32 %v5298, %v5307
      %v5336 = vmul.f32 %v5299, %v5307
      %v5337 = vmul.f32 %v5300, %v5307
      %v5338 = vmul.f32 %v5301, %v5307
      %v5339 = vmul.f32 %v5302, %v5307
      %v5340 = vadd.f32 %v5239, %v5308
      %v5341 = vadd.f32 %v5240, %v5309
      %v5342 = vadd.f32 %v5241, %v5310
      %v5343 = vadd.f32 %v5242, %v5311
      %v5344 = vadd.f32 %v5243, %v5312
      %v5345 = vadd.f32 %v5244, %v5313
      %v5346 = vadd.f32 %v5245, %v5314
      %v5347 = vadd.f32 %v5246, %v5315
      %v5348 = vadd.f32 %v5247, %v5316
      %v5349 = vadd.f32 %v5248, %v5317
      %v5350 = vadd.f32 %v5249, %v5318
      %v5351 = vadd.f32 %v5250, %v5319
      %v5352 = vadd.f32 %v5251, %v5320
      %v5353 = vadd.f32 %v5252, %v5321
      %v5354 = vadd.f32 %v5253, %v5322
      %v5355 = vadd.f32 %v5254, %v5323
      %v5356 = vadd.f32 %v5255, %v5324
      %v5357 = vadd.f32 %v5256, %v5325
      %v5358 = vadd.f32 %v5257, %v5326
      %v5359 = vadd.f32 %v5258, %v5327
      %v5360 = vadd.f32 %v5259, %v5328
      %v5361 = vadd.f32 %v5260, %v5329
      %v5362 = vadd.f32 %v5261, %v5330
      %v5363 = vadd.f32 %v5262, %v5331
      %v5364 = vadd.f32 %v5263, %v5332
      %v5365 = vadd.f32 %v5264, %v5333
      %v5366 = vadd.f32 %v5265, %v5334
      %v5367 = vadd.f32 %v5266, %v5335
      %v5368 = vadd.f32 %v5267, %v5336
      %v5369 = vadd.f32 %v5268, %v5337
      %v5370 = vadd.f32 %v5269, %v5338
      %v5371 = vadd.f32 %v5270, %v5339
      %v5372 = vld [vmem:[%s3050 + $0x3] sm:$0xff]
      %v5373 = vld [vmem:[%s3050 + $0xb] sm:$0xff]
      %v5374 = vld [vmem:[%s3050 + $0x2b] sm:$0xff]
      %v5375 = vld [vmem:[%s3050 + $0x33] sm:$0xff]
      %v5376 = vld [vmem:[%s3050 + $0x53] sm:$0xff]
      %v5377 = vld [vmem:[%s3050 + $0x5b] sm:$0xff]
      %v5378 = vld [vmem:[%s3050 + $0x7b] sm:$0xff]
      %v5379 = vld [vmem:[%s3050 + $0x83] sm:$0xff]
      %v5380 = vld [vmem:[%s3050 + $0xa3] sm:$0xff]
      %v5381 = vld [vmem:[%s3050 + $0xab] sm:$0xff]
      %v5382 = vld [vmem:[%s3050 + $0xcb] sm:$0xff]
      %v5383 = vld [vmem:[%s3050 + $0xd3] sm:$0xff]
      %v5384 = vld [vmem:[%s3050 + $0xf3] sm:$0xff]
      %v5385 = vld [vmem:[%s3050 + $0xfb] sm:$0xff]
      %v5386 = vld [vmem:[%s3050 + $0x11b] sm:$0xff]
      %v5387 = vld [vmem:[%s3050 + $0x123] sm:$0xff]
      %v5388 = vld [vmem:[%s3050 + $0x143] sm:$0xff]
      %v5389 = vld [vmem:[%s3050 + $0x14b] sm:$0xff]
      %v5390 = vld [vmem:[%s3050 + $0x16b] sm:$0xff]
      %v5391 = vld [vmem:[%s3050 + $0x173] sm:$0xff]
      %v5392 = vld [vmem:[%s3050 + $0x193] sm:$0xff]
      %v5393 = vld [vmem:[%s3050 + $0x19b] sm:$0xff]
      %v5394 = vld [vmem:[%s3050 + $0x1bb] sm:$0xff]
      %v5395 = vld [vmem:[%s3050 + $0x1c3] sm:$0xff]
      %v5396 = vld [vmem:[%s3050 + $0x1e3] sm:$0xff]
      %v5397 = vld [vmem:[%s3050 + $0x1eb] sm:$0xff]
      %v5398 = vld [vmem:[%s3050 + $0x20b] sm:$0xff]
      %v5399 = vld [vmem:[%s3050 + $0x213] sm:$0xff]
      %v5400 = vld [vmem:[%s3050 + $0x233] sm:$0xff]
      %v5401 = vld [vmem:[%s3050 + $0x23b] sm:$0xff]
      %v5402 = vld [vmem:[%s3050 + $0x25b] sm:$0xff]
      %v5403 = vld [vmem:[%s3050 + $0x263] sm:$0xff]
      %v5404 = vld [vmem:[%s3 + $0x16] sm:$0x1]
      %v5405 = vlaneseq
      %v5406 = vshrl.u32 %v5405, 7
      %v5407 = vsub.s32 0, %v5406
      %v5408 = vrot.slane %v5404, %v5407
      %v5409 = vmul.f32 %v5372, %v5408
      %v5410 = vmul.f32 %v5373, %v5408
      %v5411 = vmul.f32 %v5374, %v5408
      %v5412 = vmul.f32 %v5375, %v5408
      %v5413 = vmul.f32 %v5376, %v5408
      %v5414 = vmul.f32 %v5377, %v5408
      %v5415 = vmul.f32 %v5378, %v5408
      %v5416 = vmul.f32 %v5379, %v5408
      %v5417 = vmul.f32 %v5380, %v5408
      %v5418 = vmul.f32 %v5381, %v5408
      %v5419 = vmul.f32 %v5382, %v5408
      %v5420 = vmul.f32 %v5383, %v5408
      %v5421 = vmul.f32 %v5384, %v5408
      %v5422 = vmul.f32 %v5385, %v5408
      %v5423 = vmul.f32 %v5386, %v5408
      %v5424 = vmul.f32 %v5387, %v5408
      %v5425 = vmul.f32 %v5388, %v5408
      %v5426 = vmul.f32 %v5389, %v5408
      %v5427 = vmul.f32 %v5390, %v5408
      %v5428 = vmul.f32 %v5391, %v5408
      %v5429 = vmul.f32 %v5392, %v5408
      %v5430 = vmul.f32 %v5393, %v5408
      %v5431 = vmul.f32 %v5394, %v5408
      %v5432 = vmul.f32 %v5395, %v5408
      %v5433 = vmul.f32 %v5396, %v5408
      %v5434 = vmul.f32 %v5397, %v5408
      %v5435 = vmul.f32 %v5398, %v5408
      %v5436 = vmul.f32 %v5399, %v5408
      %v5437 = vmul.f32 %v5400, %v5408
      %v5438 = vmul.f32 %v5401, %v5408
      %v5439 = vmul.f32 %v5402, %v5408
      %v5440 = vmul.f32 %v5403, %v5408
      %v5441 = vadd.f32 %v5340, %v5409
      %v5442 = vadd.f32 %v5341, %v5410
      %v5443 = vadd.f32 %v5342, %v5411
      %v5444 = vadd.f32 %v5343, %v5412
      %v5445 = vadd.f32 %v5344, %v5413
      %v5446 = vadd.f32 %v5345, %v5414
      %v5447 = vadd.f32 %v5346, %v5415
      %v5448 = vadd.f32 %v5347, %v5416
      %v5449 = vadd.f32 %v5348, %v5417
      %v5450 = vadd.f32 %v5349, %v5418
      %v5451 = vadd.f32 %v5350, %v5419
      %v5452 = vadd.f32 %v5351, %v5420
      %v5453 = vadd.f32 %v5352, %v5421
      %v5454 = vadd.f32 %v5353, %v5422
      %v5455 = vadd.f32 %v5354, %v5423
      %v5456 = vadd.f32 %v5355, %v5424
      %v5457 = vadd.f32 %v5356, %v5425
      %v5458 = vadd.f32 %v5357, %v5426
      %v5459 = vadd.f32 %v5358, %v5427
      %v5460 = vadd.f32 %v5359, %v5428
      %v5461 = vadd.f32 %v5360, %v5429
      %v5462 = vadd.f32 %v5361, %v5430
      %v5463 = vadd.f32 %v5362, %v5431
      %v5464 = vadd.f32 %v5363, %v5432
      %v5465 = vadd.f32 %v5364, %v5433
      %v5466 = vadd.f32 %v5365, %v5434
      %v5467 = vadd.f32 %v5366, %v5435
      %v5468 = vadd.f32 %v5367, %v5436
      %v5469 = vadd.f32 %v5368, %v5437
      %v5470 = vadd.f32 %v5369, %v5438
      %v5471 = vadd.f32 %v5370, %v5439
      %v5472 = vadd.f32 %v5371, %v5440
      %v5473 = vld [vmem:[%s3050 + $0x6] sm:$0xff]
      %v5474 = vld [vmem:[%s3050 + $0xe] sm:$0xff]
      %v5475 = vld [vmem:[%s3050 + $0x2e] sm:$0xff]
      %v5476 = vld [vmem:[%s3050 + $0x36] sm:$0xff]
      %v5477 = vld [vmem:[%s3050 + $0x56] sm:$0xff]
      %v5478 = vld [vmem:[%s3050 + $0x5e] sm:$0xff]
      %v5479 = vld [vmem:[%s3050 + $0x7e] sm:$0xff]
      %v5480 = vld [vmem:[%s3050 + $0x86] sm:$0xff]
      %v5481 = vld [vmem:[%s3050 + $0xa6] sm:$0xff]
      %v5482 = vld [vmem:[%s3050 + $0xae] sm:$0xff]
      %v5483 = vld [vmem:[%s3050 + $0xce] sm:$0xff]
      %v5484 = vld [vmem:[%s3050 + $0xd6] sm:$0xff]
      %v5485 = vld [vmem:[%s3050 + $0xf6] sm:$0xff]
      %v5486 = vld [vmem:[%s3050 + $0xfe] sm:$0xff]
      %v5487 = vld [vmem:[%s3050 + $0x11e] sm:$0xff]
      %v5488 = vld [vmem:[%s3050 + $0x126] sm:$0xff]
      %v5489 = vld [vmem:[%s3050 + $0x146] sm:$0xff]
      %v5490 = vld [vmem:[%s3050 + $0x14e] sm:$0xff]
      %v5491 = vld [vmem:[%s3050 + $0x16e] sm:$0xff]
      %v5492 = vld [vmem:[%s3050 + $0x176] sm:$0xff]
      %v5493 = vld [vmem:[%s3050 + $0x196] sm:$0xff]
      %v5494 = vld [vmem:[%s3050 + $0x19e] sm:$0xff]
      %v5495 = vld [vmem:[%s3050 + $0x1be] sm:$0xff]
      %v5496 = vld [vmem:[%s3050 + $0x1c6] sm:$0xff]
      %v5497 = vld [vmem:[%s3050 + $0x1e6] sm:$0xff]
      %v5498 = vld [vmem:[%s3050 + $0x1ee] sm:$0xff]
      %v5499 = vld [vmem:[%s3050 + $0x20e] sm:$0xff]
      %v5500 = vld [vmem:[%s3050 + $0x216] sm:$0xff]
      %v5501 = vld [vmem:[%s3050 + $0x236] sm:$0xff]
      %v5502 = vld [vmem:[%s3050 + $0x23e] sm:$0xff]
      %v5503 = vld [vmem:[%s3050 + $0x25e] sm:$0xff]
      %v5504 = vld [vmem:[%s3050 + $0x266] sm:$0xff]
      %v5505 = vld [vmem:[%s3 + $0x17] sm:$0x1]
      %v5506 = vlaneseq
      %v5507 = vshrl.u32 %v5506, 7
      %v5508 = vsub.s32 0, %v5507
      %v5509 = vrot.slane %v5505, %v5508
      %v5510 = vmul.f32 %v5473, %v5509
      %v5511 = vmul.f32 %v5474, %v5509
      %v5512 = vmul.f32 %v5475, %v5509
      %v5513 = vmul.f32 %v5476, %v5509
      %v5514 = vmul.f32 %v5477, %v5509
      %v5515 = vmul.f32 %v5478, %v5509
      %v5516 = vmul.f32 %v5479, %v5509
      %v5517 = vmul.f32 %v5480, %v5509
      %v5518 = vmul.f32 %v5481, %v5509
      %v5519 = vmul.f32 %v5482, %v5509
      %v5520 = vmul.f32 %v5483, %v5509
      %v5521 = vmul.f32 %v5484, %v5509
      %v5522 = vmul.f32 %v5485, %v5509
      %v5523 = vmul.f32 %v5486, %v5509
      %v5524 = vmul.f32 %v5487, %v5509
      %v5525 = vmul.f32 %v5488, %v5509
      %v5526 = vmul.f32 %v5489, %v5509
      %v5527 = vmul.f32 %v5490, %v5509
      %v5528 = vmul.f32 %v5491, %v5509
      %v5529 = vmul.f32 %v5492, %v5509
      %v5530 = vmul.f32 %v5493, %v5509
      %v5531 = vmul.f32 %v5494, %v5509
      %v5532 = vmul.f32 %v5495, %v5509
      %v5533 = vmul.f32 %v5496, %v5509
      %v5534 = vmul.f32 %v5497, %v5509
      %v5535 = vmul.f32 %v5498, %v5509
      %v5536 = vmul.f32 %v5499, %v5509
      %v5537 = vmul.f32 %v5500, %v5509
      %v5538 = vmul.f32 %v5501, %v5509
      %v5539 = vmul.f32 %v5502, %v5509
      %v5540 = vmul.f32 %v5503, %v5509
      %v5541 = vmul.f32 %v5504, %v5509
      %v5542 = vadd.f32 %v5441, %v5510
      %v5543 = vadd.f32 %v5442, %v5511
      %v5544 = vadd.f32 %v5443, %v5512
      %v5545 = vadd.f32 %v5444, %v5513
      %v5546 = vadd.f32 %v5445, %v5514
      %v5547 = vadd.f32 %v5446, %v5515
      %v5548 = vadd.f32 %v5447, %v5516
      %v5549 = vadd.f32 %v5448, %v5517
      %v5550 = vadd.f32 %v5449, %v5518
      %v5551 = vadd.f32 %v5450, %v5519
      %v5552 = vadd.f32 %v5451, %v5520
      %v5553 = vadd.f32 %v5452, %v5521
      %v5554 = vadd.f32 %v5453, %v5522
      %v5555 = vadd.f32 %v5454, %v5523
      %v5556 = vadd.f32 %v5455, %v5524
      %v5557 = vadd.f32 %v5456, %v5525
      %v5558 = vadd.f32 %v5457, %v5526
      %v5559 = vadd.f32 %v5458, %v5527
      %v5560 = vadd.f32 %v5459, %v5528
      %v5561 = vadd.f32 %v5460, %v5529
      %v5562 = vadd.f32 %v5461, %v5530
      %v5563 = vadd.f32 %v5462, %v5531
      %v5564 = vadd.f32 %v5463, %v5532
      %v5565 = vadd.f32 %v5464, %v5533
      %v5566 = vadd.f32 %v5465, %v5534
      %v5567 = vadd.f32 %v5466, %v5535
      %v5568 = vadd.f32 %v5467, %v5536
      %v5569 = vadd.f32 %v5468, %v5537
      %v5570 = vadd.f32 %v5469, %v5538
      %v5571 = vadd.f32 %v5470, %v5539
      %v5572 = vadd.f32 %v5471, %v5540
      %v5573 = vadd.f32 %v5472, %v5541
      %v5574 = vld [vmem:[%s3050 + $0x9] sm:$0xff]
      %v5575 = vld [vmem:[%s3050 + $0x11] sm:$0xff]
      %v5576 = vld [vmem:[%s3050 + $0x31] sm:$0xff]
      %v5577 = vld [vmem:[%s3050 + $0x39] sm:$0xff]
      %v5578 = vld [vmem:[%s3050 + $0x59] sm:$0xff]
      %v5579 = vld [vmem:[%s3050 + $0x61] sm:$0xff]
      %v5580 = vld [vmem:[%s3050 + $0x81] sm:$0xff]
      %v5581 = vld [vmem:[%s3050 + $0x89] sm:$0xff]
      %v5582 = vld [vmem:[%s3050 + $0xa9] sm:$0xff]
      %v5583 = vld [vmem:[%s3050 + $0xb1] sm:$0xff]
      %v5584 = vld [vmem:[%s3050 + $0xd1] sm:$0xff]
      %v5585 = vld [vmem:[%s3050 + $0xd9] sm:$0xff]
      %v5586 = vld [vmem:[%s3050 + $0xf9] sm:$0xff]
      %v5587 = vld [vmem:[%s3050 + $0x101] sm:$0xff]
      %v5588 = vld [vmem:[%s3050 + $0x121] sm:$0xff]
      %v5589 = vld [vmem:[%s3050 + $0x129] sm:$0xff]
      %v5590 = vld [vmem:[%s3050 + $0x149] sm:$0xff]
      %v5591 = vld [vmem:[%s3050 + $0x151] sm:$0xff]
      %v5592 = vld [vmem:[%s3050 + $0x171] sm:$0xff]
      %v5593 = vld [vmem:[%s3050 + $0x179] sm:$0xff]
      %v5594 = vld [vmem:[%s3050 + $0x199] sm:$0xff]
      %v5595 = vld [vmem:[%s3050 + $0x1a1] sm:$0xff]
      %v5596 = vld [vmem:[%s3050 + $0x1c1] sm:$0xff]
      %v5597 = vld [vmem:[%s3050 + $0x1c9] sm:$0xff]
      %v5598 = vld [vmem:[%s3050 + $0x1e9] sm:$0xff]
      %v5599 = vld [vmem:[%s3050 + $0x1f1] sm:$0xff]
      %v5600 = vld [vmem:[%s3050 + $0x211] sm:$0xff]
      %v5601 = vld [vmem:[%s3050 + $0x219] sm:$0xff]
      %v5602 = vld [vmem:[%s3050 + $0x239] sm:$0xff]
      %v5603 = vld [vmem:[%s3050 + $0x241] sm:$0xff]
      %v5604 = vld [vmem:[%s3050 + $0x261] sm:$0xff]
      %v5605 = vld [vmem:[%s3050 + $0x269] sm:$0xff]
      %v5606 = vld [vmem:[%s3 + $0x18] sm:$0x1]
      %v5607 = vlaneseq
      %v5608 = vshrl.u32 %v5607, 7
      %v5609 = vsub.s32 0, %v5608
      %v5610 = vrot.slane %v5606, %v5609
      %v5611 = vmul.f32 %v5574, %v5610
      %v5612 = vmul.f32 %v5575, %v5610
      %v5613 = vmul.f32 %v5576, %v5610
      %v5614 = vmul.f32 %v5577, %v5610
      %v5615 = vmul.f32 %v5578, %v5610
      %v5616 = vmul.f32 %v5579, %v5610
      %v5617 = vmul.f32 %v5580, %v5610
      %v5618 = vmul.f32 %v5581, %v5610
      %v5619 = vmul.f32 %v5582, %v5610
      %v5620 = vmul.f32 %v5583, %v5610
      %v5621 = vmul.f32 %v5584, %v5610
      %v5622 = vmul.f32 %v5585, %v5610
      %v5623 = vmul.f32 %v5586, %v5610
      %v5624 = vmul.f32 %v5587, %v5610
      %v5625 = vmul.f32 %v5588, %v5610
      %v5626 = vmul.f32 %v5589, %v5610
      %v5627 = vmul.f32 %v5590, %v5610
      %v5628 = vmul.f32 %v5591, %v5610
      %v5629 = vmul.f32 %v5592, %v5610
      %v5630 = vmul.f32 %v5593, %v5610
      %v5631 = vmul.f32 %v5594, %v5610
      %v5632 = vmul.f32 %v5595, %v5610
      %v5633 = vmul.f32 %v5596, %v5610
      %v5634 = vmul.f32 %v5597, %v5610
      %v5635 = vmul.f32 %v5598, %v5610
      %v5636 = vmul.f32 %v5599, %v5610
      %v5637 = vmul.f32 %v5600, %v5610
      %v5638 = vmul.f32 %v5601, %v5610
      %v5639 = vmul.f32 %v5602, %v5610
      %v5640 = vmul.f32 %v5603, %v5610
      %v5641 = vmul.f32 %v5604, %v5610
      %v5642 = vmul.f32 %v5605, %v5610
      %v5643 = vadd.f32 %v5542, %v5611
      %v5644 = vadd.f32 %v5543, %v5612
      %v5645 = vadd.f32 %v5544, %v5613
      %v5646 = vadd.f32 %v5545, %v5614
      %v5647 = vadd.f32 %v5546, %v5615
      %v5648 = vadd.f32 %v5547, %v5616
      %v5649 = vadd.f32 %v5548, %v5617
      %v5650 = vadd.f32 %v5549, %v5618
      %v5651 = vadd.f32 %v5550, %v5619
      %v5652 = vadd.f32 %v5551, %v5620
      %v5653 = vadd.f32 %v5552, %v5621
      %v5654 = vadd.f32 %v5553, %v5622
      %v5655 = vadd.f32 %v5554, %v5623
      %v5656 = vadd.f32 %v5555, %v5624
      %v5657 = vadd.f32 %v5556, %v5625
      %v5658 = vadd.f32 %v5557, %v5626
      %v5659 = vadd.f32 %v5558, %v5627
      %v5660 = vadd.f32 %v5559, %v5628
      %v5661 = vadd.f32 %v5560, %v5629
      %v5662 = vadd.f32 %v5561, %v5630
      %v5663 = vadd.f32 %v5562, %v5631
      %v5664 = vadd.f32 %v5563, %v5632
      %v5665 = vadd.f32 %v5564, %v5633
      %v5666 = vadd.f32 %v5565, %v5634
      %v5667 = vadd.f32 %v5566, %v5635
      %v5668 = vadd.f32 %v5567, %v5636
      %v5669 = vadd.f32 %v5568, %v5637
      %v5670 = vadd.f32 %v5569, %v5638
      %v5671 = vadd.f32 %v5570, %v5639
      %v5672 = vadd.f32 %v5571, %v5640
      %v5673 = vadd.f32 %v5572, %v5641
      %v5674 = vadd.f32 %v5573, %v5642
      %v5675 = vld [vmem:[%s3050 + $0xc] sm:$0xff]
      %v5676 = vld [vmem:[%s3050 + $0x14] sm:$0xff]
      %v5677 = vld [vmem:[%s3050 + $0x34] sm:$0xff]
      %v5678 = vld [vmem:[%s3050 + $0x3c] sm:$0xff]
      %v5679 = vld [vmem:[%s3050 + $0x5c] sm:$0xff]
      %v5680 = vld [vmem:[%s3050 + $0x64] sm:$0xff]
      %v5681 = vld [vmem:[%s3050 + $0x84] sm:$0xff]
      %v5682 = vld [vmem:[%s3050 + $0x8c] sm:$0xff]
      %v5683 = vld [vmem:[%s3050 + $0xac] sm:$0xff]
      %v5684 = vld [vmem:[%s3050 + $0xb4] sm:$0xff]
      %v5685 = vld [vmem:[%s3050 + $0xd4] sm:$0xff]
      %v5686 = vld [vmem:[%s3050 + $0xdc] sm:$0xff]
      %v5687 = vld [vmem:[%s3050 + $0xfc] sm:$0xff]
      %v5688 = vld [vmem:[%s3050 + $0x104] sm:$0xff]
      %v5689 = vld [vmem:[%s3050 + $0x124] sm:$0xff]
      %v5690 = vld [vmem:[%s3050 + $0x12c] sm:$0xff]
      %v5691 = vld [vmem:[%s3050 + $0x14c] sm:$0xff]
      %v5692 = vld [vmem:[%s3050 + $0x154] sm:$0xff]
      %v5693 = vld [vmem:[%s3050 + $0x174] sm:$0xff]
      %v5694 = vld [vmem:[%s3050 + $0x17c] sm:$0xff]
      %v5695 = vld [vmem:[%s3050 + $0x19c] sm:$0xff]
      %v5696 = vld [vmem:[%s3050 + $0x1a4] sm:$0xff]
      %v5697 = vld [vmem:[%s3050 + $0x1c4] sm:$0xff]
      %v5698 = vld [vmem:[%s3050 + $0x1cc] sm:$0xff]
      %v5699 = vld [vmem:[%s3050 + $0x1ec] sm:$0xff]
      %v5700 = vld [vmem:[%s3050 + $0x1f4] sm:$0xff]
      %v5701 = vld [vmem:[%s3050 + $0x214] sm:$0xff]
      %v5702 = vld [vmem:[%s3050 + $0x21c] sm:$0xff]
      %v5703 = vld [vmem:[%s3050 + $0x23c] sm:$0xff]
      %v5704 = vld [vmem:[%s3050 + $0x244] sm:$0xff]
      %v5705 = vld [vmem:[%s3050 + $0x264] sm:$0xff]
      %v5706 = vld [vmem:[%s3050 + $0x26c] sm:$0xff]
      %v5707 = vld [vmem:[%s3 + $0x19] sm:$0x1]
      %v5708 = vlaneseq
      %v5709 = vshrl.u32 %v5708, 7
      %v5710 = vsub.s32 0, %v5709
      %v5711 = vrot.slane %v5707, %v5710
      %v5712 = vmul.f32 %v5675, %v5711
      %v5713 = vmul.f32 %v5676, %v5711
      %v5714 = vmul.f32 %v5677, %v5711
      %v5715 = vmul.f32 %v5678, %v5711
      %v5716 = vmul.f32 %v5679, %v5711
      %v5717 = vmul.f32 %v5680, %v5711
      %v5718 = vmul.f32 %v5681, %v5711
      %v5719 = vmul.f32 %v5682, %v5711
      %v5720 = vmul.f32 %v5683, %v5711
      %v5721 = vmul.f32 %v5684, %v5711
      %v5722 = vmul.f32 %v5685, %v5711
      %v5723 = vmul.f32 %v5686, %v5711
      %v5724 = vmul.f32 %v5687, %v5711
      %v5725 = vmul.f32 %v5688, %v5711
      %v5726 = vmul.f32 %v5689, %v5711
      %v5727 = vmul.f32 %v5690, %v5711
      %v5728 = vmul.f32 %v5691, %v5711
      %v5729 = vmul.f32 %v5692, %v5711
      %v5730 = vmul.f32 %v5693, %v5711
      %v5731 = vmul.f32 %v5694, %v5711
      %v5732 = vmul.f32 %v5695, %v5711
      %v5733 = vmul.f32 %v5696, %v5711
      %v5734 = vmul.f32 %v5697, %v5711
      %v5735 = vmul.f32 %v5698, %v5711
      %v5736 = vmul.f32 %v5699, %v5711
      %v5737 = vmul.f32 %v5700, %v5711
      %v5738 = vmul.f32 %v5701, %v5711
      %v5739 = vmul.f32 %v5702, %v5711
      %v5740 = vmul.f32 %v5703, %v5711
      %v5741 = vmul.f32 %v5704, %v5711
      %v5742 = vmul.f32 %v5705, %v5711
      %v5743 = vmul.f32 %v5706, %v5711
      %v5744 = vadd.f32 %v5643, %v5712
      %v5745 = vadd.f32 %v5644, %v5713
      %v5746 = vadd.f32 %v5645, %v5714
      %v5747 = vadd.f32 %v5646, %v5715
      %v5748 = vadd.f32 %v5647, %v5716
      %v5749 = vadd.f32 %v5648, %v5717
      %v5750 = vadd.f32 %v5649, %v5718
      %v5751 = vadd.f32 %v5650, %v5719
      %v5752 = vadd.f32 %v5651, %v5720
      %v5753 = vadd.f32 %v5652, %v5721
      %v5754 = vadd.f32 %v5653, %v5722
      %v5755 = vadd.f32 %v5654, %v5723
      %v5756 = vadd.f32 %v5655, %v5724
      %v5757 = vadd.f32 %v5656, %v5725
      %v5758 = vadd.f32 %v5657, %v5726
      %v5759 = vadd.f32 %v5658, %v5727
      %v5760 = vadd.f32 %v5659, %v5728
      %v5761 = vadd.f32 %v5660, %v5729
      %v5762 = vadd.f32 %v5661, %v5730
      %v5763 = vadd.f32 %v5662, %v5731
      %v5764 = vadd.f32 %v5663, %v5732
      %v5765 = vadd.f32 %v5664, %v5733
      %v5766 = vadd.f32 %v5665, %v5734
      %v5767 = vadd.f32 %v5666, %v5735
      %v5768 = vadd.f32 %v5667, %v5736
      %v5769 = vadd.f32 %v5668, %v5737
      %v5770 = vadd.f32 %v5669, %v5738
      %v5771 = vadd.f32 %v5670, %v5739
      %v5772 = vadd.f32 %v5671, %v5740
      %v5773 = vadd.f32 %v5672, %v5741
      %v5774 = vadd.f32 %v5673, %v5742
      %v5775 = vadd.f32 %v5674, %v5743
      %v5776 = vld [vmem:[%s3050 + $0xf] sm:$0xff]
      %v5777 = vld [vmem:[%s3050 + $0x17] sm:$0xff]
      %v5778 = vld [vmem:[%s3050 + $0x37] sm:$0xff]
      %v5779 = vld [vmem:[%s3050 + $0x3f] sm:$0xff]
      %v5780 = vld [vmem:[%s3050 + $0x5f] sm:$0xff]
      %v5781 = vld [vmem:[%s3050 + $0x67] sm:$0xff]
      %v5782 = vld [vmem:[%s3050 + $0x87] sm:$0xff]
      %v5783 = vld [vmem:[%s3050 + $0x8f] sm:$0xff]
      %v5784 = vld [vmem:[%s3050 + $0xaf] sm:$0xff]
      %v5785 = vld [vmem:[%s3050 + $0xb7] sm:$0xff]
      %v5786 = vld [vmem:[%s3050 + $0xd7] sm:$0xff]
      %v5787 = vld [vmem:[%s3050 + $0xdf] sm:$0xff]
      %v5788 = vld [vmem:[%s3050 + $0xff] sm:$0xff]
      %v5789 = vld [vmem:[%s3050 + $0x107] sm:$0xff]
      %v5790 = vld [vmem:[%s3050 + $0x127] sm:$0xff]
      %v5791 = vld [vmem:[%s3050 + $0x12f] sm:$0xff]
      %v5792 = vld [vmem:[%s3050 + $0x14f] sm:$0xff]
      %v5793 = vld [vmem:[%s3050 + $0x157] sm:$0xff]
      %v5794 = vld [vmem:[%s3050 + $0x177] sm:$0xff]
      %v5795 = vld [vmem:[%s3050 + $0x17f] sm:$0xff]
      %v5796 = vld [vmem:[%s3050 + $0x19f] sm:$0xff]
      %v5797 = vld [vmem:[%s3050 + $0x1a7] sm:$0xff]
      %v5798 = vld [vmem:[%s3050 + $0x1c7] sm:$0xff]
      %v5799 = vld [vmem:[%s3050 + $0x1cf] sm:$0xff]
      %v5800 = vld [vmem:[%s3050 + $0x1ef] sm:$0xff]
      %v5801 = vld [vmem:[%s3050 + $0x1f7] sm:$0xff]
      %v5802 = vld [vmem:[%s3050 + $0x217] sm:$0xff]
      %v5803 = vld [vmem:[%s3050 + $0x21f] sm:$0xff]
      %v5804 = vld [vmem:[%s3050 + $0x23f] sm:$0xff]
      %v5805 = vld [vmem:[%s3050 + $0x247] sm:$0xff]
      %v5806 = vld [vmem:[%s3050 + $0x267] sm:$0xff]
      %v5807 = vld [vmem:[%s3050 + $0x26f] sm:$0xff]
      %v5808 = vld [vmem:[%s3 + $0x1a] sm:$0x1]
      %v5809 = vlaneseq
      %v5810 = vshrl.u32 %v5809, 7
      %v5811 = vsub.s32 0, %v5810
      %v5812 = vrot.slane %v5808, %v5811
      %v5813 = vmul.f32 %v5776, %v5812
      %v5814 = vmul.f32 %v5777, %v5812
      %v5815 = vmul.f32 %v5778, %v5812
      %v5816 = vmul.f32 %v5779, %v5812
      %v5817 = vmul.f32 %v5780, %v5812
      %v5818 = vmul.f32 %v5781, %v5812
      %v5819 = vmul.f32 %v5782, %v5812
      %v5820 = vmul.f32 %v5783, %v5812
      %v5821 = vmul.f32 %v5784, %v5812
      %v5822 = vmul.f32 %v5785, %v5812
      %v5823 = vmul.f32 %v5786, %v5812
      %v5824 = vmul.f32 %v5787, %v5812
      %v5825 = vmul.f32 %v5788, %v5812
      %v5826 = vmul.f32 %v5789, %v5812
      %v5827 = vmul.f32 %v5790, %v5812
      %v5828 = vmul.f32 %v5791, %v5812
      %v5829 = vmul.f32 %v5792, %v5812
      %v5830 = vmul.f32 %v5793, %v5812
      %v5831 = vmul.f32 %v5794, %v5812
      %v5832 = vmul.f32 %v5795, %v5812
      %v5833 = vmul.f32 %v5796, %v5812
      %v5834 = vmul.f32 %v5797, %v5812
      %v5835 = vmul.f32 %v5798, %v5812
      %v5836 = vmul.f32 %v5799, %v5812
      %v5837 = vmul.f32 %v5800, %v5812
      %v5838 = vmul.f32 %v5801, %v5812
      %v5839 = vmul.f32 %v5802, %v5812
      %v5840 = vmul.f32 %v5803, %v5812
      %v5841 = vmul.f32 %v5804, %v5812
      %v5842 = vmul.f32 %v5805, %v5812
      %v5843 = vmul.f32 %v5806, %v5812
      %v5844 = vmul.f32 %v5807, %v5812
      %v5845 = vadd.f32 %v5744, %v5813
      %v5846 = vadd.f32 %v5745, %v5814
      %v5847 = vadd.f32 %v5746, %v5815
      %v5848 = vadd.f32 %v5747, %v5816
      %v5849 = vadd.f32 %v5748, %v5817
      %v5850 = vadd.f32 %v5749, %v5818
      %v5851 = vadd.f32 %v5750, %v5819
      %v5852 = vadd.f32 %v5751, %v5820
      %v5853 = vadd.f32 %v5752, %v5821
      %v5854 = vadd.f32 %v5753, %v5822
      %v5855 = vadd.f32 %v5754, %v5823
      %v5856 = vadd.f32 %v5755, %v5824
      %v5857 = vadd.f32 %v5756, %v5825
      %v5858 = vadd.f32 %v5757, %v5826
      %v5859 = vadd.f32 %v5758, %v5827
      %v5860 = vadd.f32 %v5759, %v5828
      %v5861 = vadd.f32 %v5760, %v5829
      %v5862 = vadd.f32 %v5761, %v5830
      %v5863 = vadd.f32 %v5762, %v5831
      %v5864 = vadd.f32 %v5763, %v5832
      %v5865 = vadd.f32 %v5764, %v5833
      %v5866 = vadd.f32 %v5765, %v5834
      %v5867 = vadd.f32 %v5766, %v5835
      %v5868 = vadd.f32 %v5767, %v5836
      %v5869 = vadd.f32 %v5768, %v5837
      %v5870 = vadd.f32 %v5769, %v5838
      %v5871 = vadd.f32 %v5770, %v5839
      %v5872 = vadd.f32 %v5771, %v5840
      %v5873 = vadd.f32 %v5772, %v5841
      %v5874 = vadd.f32 %v5773, %v5842
      %v5875 = vadd.f32 %v5774, %v5843
      %v5876 = vadd.f32 %v5775, %v5844
      %v5877 = vld [vmem:[%s3050 + $0x12] sm:$0xff]
      %v5878 = vld [vmem:[%s3050 + $0x1a] sm:$0xff]
      %v5879 = vld [vmem:[%s3050 + $0x3a] sm:$0xff]
      %v5880 = vld [vmem:[%s3050 + $0x42] sm:$0xff]
      %v5881 = vld [vmem:[%s3050 + $0x62] sm:$0xff]
      %v5882 = vld [vmem:[%s3050 + $0x6a] sm:$0xff]
      %v5883 = vld [vmem:[%s3050 + $0x8a] sm:$0xff]
      %v5884 = vld [vmem:[%s3050 + $0x92] sm:$0xff]
      %v5885 = vld [vmem:[%s3050 + $0xb2] sm:$0xff]
      %v5886 = vld [vmem:[%s3050 + $0xba] sm:$0xff]
      %v5887 = vld [vmem:[%s3050 + $0xda] sm:$0xff]
      %v5888 = vld [vmem:[%s3050 + $0xe2] sm:$0xff]
      %v5889 = vld [vmem:[%s3050 + $0x102] sm:$0xff]
      %v5890 = vld [vmem:[%s3050 + $0x10a] sm:$0xff]
      %v5891 = vld [vmem:[%s3050 + $0x12a] sm:$0xff]
      %v5892 = vld [vmem:[%s3050 + $0x132] sm:$0xff]
      %v5893 = vld [vmem:[%s3050 + $0x152] sm:$0xff]
      %v5894 = vld [vmem:[%s3050 + $0x15a] sm:$0xff]
      %v5895 = vld [vmem:[%s3050 + $0x17a] sm:$0xff]
      %v5896 = vld [vmem:[%s3050 + $0x182] sm:$0xff]
      %v5897 = vld [vmem:[%s3050 + $0x1a2] sm:$0xff]
      %v5898 = vld [vmem:[%s3050 + $0x1aa] sm:$0xff]
      %v5899 = vld [vmem:[%s3050 + $0x1ca] sm:$0xff]
      %v5900 = vld [vmem:[%s3050 + $0x1d2] sm:$0xff]
      %v5901 = vld [vmem:[%s3050 + $0x1f2] sm:$0xff]
      %v5902 = vld [vmem:[%s3050 + $0x1fa] sm:$0xff]
      %v5903 = vld [vmem:[%s3050 + $0x21a] sm:$0xff]
      %v5904 = vld [vmem:[%s3050 + $0x222] sm:$0xff]
      %v5905 = vld [vmem:[%s3050 + $0x242] sm:$0xff]
      %v5906 = vld [vmem:[%s3050 + $0x24a] sm:$0xff]
      %v5907 = vld [vmem:[%s3050 + $0x26a] sm:$0xff]
      %v5908 = vld [vmem:[%s3050 + $0x272] sm:$0xff]
      %v5909 = vld [vmem:[%s3 + $0x1b] sm:$0x1]
      %v5910 = vlaneseq
      %v5911 = vshrl.u32 %v5910, 7
      %v5912 = vsub.s32 0, %v5911
      %v5913 = vrot.slane %v5909, %v5912
      %v5914 = vmul.f32 %v5877, %v5913
      %v5915 = vmul.f32 %v5878, %v5913
      %v5916 = vmul.f32 %v5879, %v5913
      %v5917 = vmul.f32 %v5880, %v5913
      %v5918 = vmul.f32 %v5881, %v5913
      %v5919 = vmul.f32 %v5882, %v5913
      %v5920 = vmul.f32 %v5883, %v5913
      %v5921 = vmul.f32 %v5884, %v5913
      %v5922 = vmul.f32 %v5885, %v5913
      %v5923 = vmul.f32 %v5886, %v5913
      %v5924 = vmul.f32 %v5887, %v5913
      %v5925 = vmul.f32 %v5888, %v5913
      %v5926 = vmul.f32 %v5889, %v5913
      %v5927 = vmul.f32 %v5890, %v5913
      %v5928 = vmul.f32 %v5891, %v5913
      %v5929 = vmul.f32 %v5892, %v5913
      %v5930 = vmul.f32 %v5893, %v5913
      %v5931 = vmul.f32 %v5894, %v5913
      %v5932 = vmul.f32 %v5895, %v5913
      %v5933 = vmul.f32 %v5896, %v5913
      %v5934 = vmul.f32 %v5897, %v5913
      %v5935 = vmul.f32 %v5898, %v5913
      %v5936 = vmul.f32 %v5899, %v5913
      %v5937 = vmul.f32 %v5900, %v5913
      %v5938 = vmul.f32 %v5901, %v5913
      %v5939 = vmul.f32 %v5902, %v5913
      %v5940 = vmul.f32 %v5903, %v5913
      %v5941 = vmul.f32 %v5904, %v5913
      %v5942 = vmul.f32 %v5905, %v5913
      %v5943 = vmul.f32 %v5906, %v5913
      %v5944 = vmul.f32 %v5907, %v5913
      %v5945 = vmul.f32 %v5908, %v5913
      %v5946 = vadd.f32 %v5845, %v5914
      %v5947 = vadd.f32 %v5846, %v5915
      %v5948 = vadd.f32 %v5847, %v5916
      %v5949 = vadd.f32 %v5848, %v5917
      %v5950 = vadd.f32 %v5849, %v5918
      %v5951 = vadd.f32 %v5850, %v5919
      %v5952 = vadd.f32 %v5851, %v5920
      %v5953 = vadd.f32 %v5852, %v5921
      %v5954 = vadd.f32 %v5853, %v5922
      %v5955 = vadd.f32 %v5854, %v5923
      %v5956 = vadd.f32 %v5855, %v5924
      %v5957 = vadd.f32 %v5856, %v5925
      %v5958 = vadd.f32 %v5857, %v5926
      %v5959 = vadd.f32 %v5858, %v5927
      %v5960 = vadd.f32 %v5859, %v5928
      %v5961 = vadd.f32 %v5860, %v5929
      %v5962 = vadd.f32 %v5861, %v5930
      %v5963 = vadd.f32 %v5862, %v5931
      %v5964 = vadd.f32 %v5863, %v5932
      %v5965 = vadd.f32 %v5864, %v5933
      %v5966 = vadd.f32 %v5865, %v5934
      %v5967 = vadd.f32 %v5866, %v5935
      %v5968 = vadd.f32 %v5867, %v5936
      %v5969 = vadd.f32 %v5868, %v5937
      %v5970 = vadd.f32 %v5869, %v5938
      %v5971 = vadd.f32 %v5870, %v5939
      %v5972 = vadd.f32 %v5871, %v5940
      %v5973 = vadd.f32 %v5872, %v5941
      %v5974 = vadd.f32 %v5873, %v5942
      %v5975 = vadd.f32 %v5874, %v5943
      %v5976 = vadd.f32 %v5875, %v5944
      %v5977 = vadd.f32 %v5876, %v5945
      %s5978 = scalar_lea.vmem [#allocation3], 480
      %v5979 = vld [vmem:[%s5978] sm:$0xff]
      %v5980 = vld [vmem:[%s5978 + $0x8] sm:$0xff]
      %v5981 = vld [vmem:[%s5978 + $0x28] sm:$0xff]
      %v5982 = vld [vmem:[%s5978 + $0x30] sm:$0xff]
      %v5983 = vld [vmem:[%s5978 + $0x50] sm:$0xff]
      %v5984 = vld [vmem:[%s5978 + $0x58] sm:$0xff]
      %v5985 = vld [vmem:[%s5978 + $0x78] sm:$0xff]
      %v5986 = vld [vmem:[%s5978 + $0x80] sm:$0xff]
      %v5987 = vld [vmem:[%s5978 + $0xa0] sm:$0xff]
      %v5988 = vld [vmem:[%s5978 + $0xa8] sm:$0xff]
      %v5989 = vld [vmem:[%s5978 + $0xc8] sm:$0xff]
      %v5990 = vld [vmem:[%s5978 + $0xd0] sm:$0xff]
      %v5991 = vld [vmem:[%s5978 + $0xf0] sm:$0xff]
      %v5992 = vld [vmem:[%s5978 + $0xf8] sm:$0xff]
      %v5993 = vld [vmem:[%s5978 + $0x118] sm:$0xff]
      %v5994 = vld [vmem:[%s5978 + $0x120] sm:$0xff]
      %v5995 = vld [vmem:[%s5978 + $0x140] sm:$0xff]
      %v5996 = vld [vmem:[%s5978 + $0x148] sm:$0xff]
      %v5997 = vld [vmem:[%s5978 + $0x168] sm:$0xff]
      %v5998 = vld [vmem:[%s5978 + $0x170] sm:$0xff]
      %v5999 = vld [vmem:[%s5978 + $0x190] sm:$0xff]
      %v6000 = vld [vmem:[%s5978 + $0x198] sm:$0xff]
      %v6001 = vld [vmem:[%s5978 + $0x1b8] sm:$0xff]
      %v6002 = vld [vmem:[%s5978 + $0x1c0] sm:$0xff]
      %v6003 = vld [vmem:[%s5978 + $0x1e0] sm:$0xff]
      %v6004 = vld [vmem:[%s5978 + $0x1e8] sm:$0xff]
      %v6005 = vld [vmem:[%s5978 + $0x208] sm:$0xff]
      %v6006 = vld [vmem:[%s5978 + $0x210] sm:$0xff]
      %v6007 = vld [vmem:[%s5978 + $0x230] sm:$0xff]
      %v6008 = vld [vmem:[%s5978 + $0x238] sm:$0xff]
      %v6009 = vld [vmem:[%s5978 + $0x258] sm:$0xff]
      %v6010 = vld [vmem:[%s5978 + $0x260] sm:$0xff]
      %v6011 = vld [vmem:[%s3 + $0x1c] sm:$0x1]
      %v6012 = vlaneseq
      %v6013 = vshrl.u32 %v6012, 7
      %v6014 = vsub.s32 0, %v6013
      %v6015 = vrot.slane %v6011, %v6014
      %v6016 = vmul.f32 %v5979, %v6015
      %v6017 = vmul.f32 %v5980, %v6015
      %v6018 = vmul.f32 %v5981, %v6015
      %v6019 = vmul.f32 %v5982, %v6015
      %v6020 = vmul.f32 %v5983, %v6015
      %v6021 = vmul.f32 %v5984, %v6015
      %v6022 = vmul.f32 %v5985, %v6015
      %v6023 = vmul.f32 %v5986, %v6015
      %v6024 = vmul.f32 %v5987, %v6015
      %v6025 = vmul.f32 %v5988, %v6015
      %v6026 = vmul.f32 %v5989, %v6015
      %v6027 = vmul.f32 %v5990, %v6015
      %v6028 = vmul.f32 %v5991, %v6015
      %v6029 = vmul.f32 %v5992, %v6015
      %v6030 = vmul.f32 %v5993, %v6015
      %v6031 = vmul.f32 %v5994, %v6015
      %v6032 = vmul.f32 %v5995, %v6015
      %v6033 = vmul.f32 %v5996, %v6015
      %v6034 = vmul.f32 %v5997, %v6015
      %v6035 = vmul.f32 %v5998, %v6015
      %v6036 = vmul.f32 %v5999, %v6015
      %v6037 = vmul.f32 %v6000, %v6015
      %v6038 = vmul.f32 %v6001, %v6015
      %v6039 = vmul.f32 %v6002, %v6015
      %v6040 = vmul.f32 %v6003, %v6015
      %v6041 = vmul.f32 %v6004, %v6015
      %v6042 = vmul.f32 %v6005, %v6015
      %v6043 = vmul.f32 %v6006, %v6015
      %v6044 = vmul.f32 %v6007, %v6015
      %v6045 = vmul.f32 %v6008, %v6015
      %v6046 = vmul.f32 %v6009, %v6015
      %v6047 = vmul.f32 %v6010, %v6015
      %v6048 = vadd.f32 %v5946, %v6016
      %v6049 = vadd.f32 %v5947, %v6017
      %v6050 = vadd.f32 %v5948, %v6018
      %v6051 = vadd.f32 %v5949, %v6019
      %v6052 = vadd.f32 %v5950, %v6020
      %v6053 = vadd.f32 %v5951, %v6021
      %v6054 = vadd.f32 %v5952, %v6022
      %v6055 = vadd.f32 %v5953, %v6023
      %v6056 = vadd.f32 %v5954, %v6024
      %v6057 = vadd.f32 %v5955, %v6025
      %v6058 = vadd.f32 %v5956, %v6026
      %v6059 = vadd.f32 %v5957, %v6027
      %v6060 = vadd.f32 %v5958, %v6028
      %v6061 = vadd.f32 %v5959, %v6029
      %v6062 = vadd.f32 %v5960, %v6030
      %v6063 = vadd.f32 %v5961, %v6031
      %v6064 = vadd.f32 %v5962, %v6032
      %v6065 = vadd.f32 %v5963, %v6033
      %v6066 = vadd.f32 %v5964, %v6034
      %v6067 = vadd.f32 %v5965, %v6035
      %v6068 = vadd.f32 %v5966, %v6036
      %v6069 = vadd.f32 %v5967, %v6037
      %v6070 = vadd.f32 %v5968, %v6038
      %v6071 = vadd.f32 %v5969, %v6039
      %v6072 = vadd.f32 %v5970, %v6040
      %v6073 = vadd.f32 %v5971, %v6041
      %v6074 = vadd.f32 %v5972, %v6042
      %v6075 = vadd.f32 %v5973, %v6043
      %v6076 = vadd.f32 %v5974, %v6044
      %v6077 = vadd.f32 %v5975, %v6045
      %v6078 = vadd.f32 %v5976, %v6046
      %v6079 = vadd.f32 %v5977, %v6047
      %v6080 = vld [vmem:[%s5978 + $0x3] sm:$0xff]
      %v6081 = vld [vmem:[%s5978 + $0xb] sm:$0xff]
      %v6082 = vld [vmem:[%s5978 + $0x2b] sm:$0xff]
      %v6083 = vld [vmem:[%s5978 + $0x33] sm:$0xff]
      %v6084 = vld [vmem:[%s5978 + $0x53] sm:$0xff]
      %v6085 = vld [vmem:[%s5978 + $0x5b] sm:$0xff]
      %v6086 = vld [vmem:[%s5978 + $0x7b] sm:$0xff]
      %v6087 = vld [vmem:[%s5978 + $0x83] sm:$0xff]
      %v6088 = vld [vmem:[%s5978 + $0xa3] sm:$0xff]
      %v6089 = vld [vmem:[%s5978 + $0xab] sm:$0xff]
      %v6090 = vld [vmem:[%s5978 + $0xcb] sm:$0xff]
      %v6091 = vld [vmem:[%s5978 + $0xd3] sm:$0xff]
      %v6092 = vld [vmem:[%s5978 + $0xf3] sm:$0xff]
      %v6093 = vld [vmem:[%s5978 + $0xfb] sm:$0xff]
      %v6094 = vld [vmem:[%s5978 + $0x11b] sm:$0xff]
      %v6095 = vld [vmem:[%s5978 + $0x123] sm:$0xff]
      %v6096 = vld [vmem:[%s5978 + $0x143] sm:$0xff]
      %v6097 = vld [vmem:[%s5978 + $0x14b] sm:$0xff]
      %v6098 = vld [vmem:[%s5978 + $0x16b] sm:$0xff]
      %v6099 = vld [vmem:[%s5978 + $0x173] sm:$0xff]
      %v6100 = vld [vmem:[%s5978 + $0x193] sm:$0xff]
      %v6101 = vld [vmem:[%s5978 + $0x19b] sm:$0xff]
      %v6102 = vld [vmem:[%s5978 + $0x1bb] sm:$0xff]
      %v6103 = vld [vmem:[%s5978 + $0x1c3] sm:$0xff]
      %v6104 = vld [vmem:[%s5978 + $0x1e3] sm:$0xff]
      %v6105 = vld [vmem:[%s5978 + $0x1eb] sm:$0xff]
      %v6106 = vld [vmem:[%s5978 + $0x20b] sm:$0xff]
      %v6107 = vld [vmem:[%s5978 + $0x213] sm:$0xff]
      %v6108 = vld [vmem:[%s5978 + $0x233] sm:$0xff]
      %v6109 = vld [vmem:[%s5978 + $0x23b] sm:$0xff]
      %v6110 = vld [vmem:[%s5978 + $0x25b] sm:$0xff]
      %v6111 = vld [vmem:[%s5978 + $0x263] sm:$0xff]
      %v6112 = vld [vmem:[%s3 + $0x1d] sm:$0x1]
      %v6113 = vlaneseq
      %v6114 = vshrl.u32 %v6113, 7
      %v6115 = vsub.s32 0, %v6114
      %v6116 = vrot.slane %v6112, %v6115
      %v6117 = vmul.f32 %v6080, %v6116
      %v6118 = vmul.f32 %v6081, %v6116
      %v6119 = vmul.f32 %v6082, %v6116
      %v6120 = vmul.f32 %v6083, %v6116
      %v6121 = vmul.f32 %v6084, %v6116
      %v6122 = vmul.f32 %v6085, %v6116
      %v6123 = vmul.f32 %v6086, %v6116
      %v6124 = vmul.f32 %v6087, %v6116
      %v6125 = vmul.f32 %v6088, %v6116
      %v6126 = vmul.f32 %v6089, %v6116
      %v6127 = vmul.f32 %v6090, %v6116
      %v6128 = vmul.f32 %v6091, %v6116
      %v6129 = vmul.f32 %v6092, %v6116
      %v6130 = vmul.f32 %v6093, %v6116
      %v6131 = vmul.f32 %v6094, %v6116
      %v6132 = vmul.f32 %v6095, %v6116
      %v6133 = vmul.f32 %v6096, %v6116
      %v6134 = vmul.f32 %v6097, %v6116
      %v6135 = vmul.f32 %v6098, %v6116
      %v6136 = vmul.f32 %v6099, %v6116
      %v6137 = vmul.f32 %v6100, %v6116
      %v6138 = vmul.f32 %v6101, %v6116
      %v6139 = vmul.f32 %v6102, %v6116
      %v6140 = vmul.f32 %v6103, %v6116
      %v6141 = vmul.f32 %v6104, %v6116
      %v6142 = vmul.f32 %v6105, %v6116
      %v6143 = vmul.f32 %v6106, %v6116
      %v6144 = vmul.f32 %v6107, %v6116
      %v6145 = vmul.f32 %v6108, %v6116
      %v6146 = vmul.f32 %v6109, %v6116
      %v6147 = vmul.f32 %v6110, %v6116
      %v6148 = vmul.f32 %v6111, %v6116
      %v6149 = vadd.f32 %v6048, %v6117
      %v6150 = vadd.f32 %v6049, %v6118
      %v6151 = vadd.f32 %v6050, %v6119
      %v6152 = vadd.f32 %v6051, %v6120
      %v6153 = vadd.f32 %v6052, %v6121
      %v6154 = vadd.f32 %v6053, %v6122
      %v6155 = vadd.f32 %v6054, %v6123
      %v6156 = vadd.f32 %v6055, %v6124
      %v6157 = vadd.f32 %v6056, %v6125
      %v6158 = vadd.f32 %v6057, %v6126
      %v6159 = vadd.f32 %v6058, %v6127
      %v6160 = vadd.f32 %v6059, %v6128
      %v6161 = vadd.f32 %v6060, %v6129
      %v6162 = vadd.f32 %v6061, %v6130
      %v6163 = vadd.f32 %v6062, %v6131
      %v6164 = vadd.f32 %v6063, %v6132
      %v6165 = vadd.f32 %v6064, %v6133
      %v6166 = vadd.f32 %v6065, %v6134
      %v6167 = vadd.f32 %v6066, %v6135
      %v6168 = vadd.f32 %v6067, %v6136
      %v6169 = vadd.f32 %v6068, %v6137
      %v6170 = vadd.f32 %v6069, %v6138
      %v6171 = vadd.f32 %v6070, %v6139
      %v6172 = vadd.f32 %v6071, %v6140
      %v6173 = vadd.f32 %v6072, %v6141
      %v6174 = vadd.f32 %v6073, %v6142
      %v6175 = vadd.f32 %v6074, %v6143
      %v6176 = vadd.f32 %v6075, %v6144
      %v6177 = vadd.f32 %v6076, %v6145
      %v6178 = vadd.f32 %v6077, %v6146
      %v6179 = vadd.f32 %v6078, %v6147
      %v6180 = vadd.f32 %v6079, %v6148
      %v6181 = vld [vmem:[%s5978 + $0x6] sm:$0xff]
      %v6182 = vld [vmem:[%s5978 + $0xe] sm:$0xff]
      %v6183 = vld [vmem:[%s5978 + $0x2e] sm:$0xff]
      %v6184 = vld [vmem:[%s5978 + $0x36] sm:$0xff]
      %v6185 = vld [vmem:[%s5978 + $0x56] sm:$0xff]
      %v6186 = vld [vmem:[%s5978 + $0x5e] sm:$0xff]
      %v6187 = vld [vmem:[%s5978 + $0x7e] sm:$0xff]
      %v6188 = vld [vmem:[%s5978 + $0x86] sm:$0xff]
      %v6189 = vld [vmem:[%s5978 + $0xa6] sm:$0xff]
      %v6190 = vld [vmem:[%s5978 + $0xae] sm:$0xff]
      %v6191 = vld [vmem:[%s5978 + $0xce] sm:$0xff]
      %v6192 = vld [vmem:[%s5978 + $0xd6] sm:$0xff]
      %v6193 = vld [vmem:[%s5978 + $0xf6] sm:$0xff]
      %v6194 = vld [vmem:[%s5978 + $0xfe] sm:$0xff]
      %v6195 = vld [vmem:[%s5978 + $0x11e] sm:$0xff]
      %v6196 = vld [vmem:[%s5978 + $0x126] sm:$0xff]
      %v6197 = vld [vmem:[%s5978 + $0x146] sm:$0xff]
      %v6198 = vld [vmem:[%s5978 + $0x14e] sm:$0xff]
      %v6199 = vld [vmem:[%s5978 + $0x16e] sm:$0xff]
      %v6200 = vld [vmem:[%s5978 + $0x176] sm:$0xff]
      %v6201 = vld [vmem:[%s5978 + $0x196] sm:$0xff]
      %v6202 = vld [vmem:[%s5978 + $0x19e] sm:$0xff]
      %v6203 = vld [vmem:[%s5978 + $0x1be] sm:$0xff]
      %v6204 = vld [vmem:[%s5978 + $0x1c6] sm:$0xff]
      %v6205 = vld [vmem:[%s5978 + $0x1e6] sm:$0xff]
      %v6206 = vld [vmem:[%s5978 + $0x1ee] sm:$0xff]
      %v6207 = vld [vmem:[%s5978 + $0x20e] sm:$0xff]
      %v6208 = vld [vmem:[%s5978 + $0x216] sm:$0xff]
      %v6209 = vld [vmem:[%s5978 + $0x236] sm:$0xff]
      %v6210 = vld [vmem:[%s5978 + $0x23e] sm:$0xff]
      %v6211 = vld [vmem:[%s5978 + $0x25e] sm:$0xff]
      %v6212 = vld [vmem:[%s5978 + $0x266] sm:$0xff]
      %v6213 = vld [vmem:[%s3 + $0x1e] sm:$0x1]
      %v6214 = vlaneseq
      %v6215 = vshrl.u32 %v6214, 7
      %v6216 = vsub.s32 0, %v6215
      %v6217 = vrot.slane %v6213, %v6216
      %v6218 = vmul.f32 %v6181, %v6217
      %v6219 = vmul.f32 %v6182, %v6217
      %v6220 = vmul.f32 %v6183, %v6217
      %v6221 = vmul.f32 %v6184, %v6217
      %v6222 = vmul.f32 %v6185, %v6217
      %v6223 = vmul.f32 %v6186, %v6217
      %v6224 = vmul.f32 %v6187, %v6217
      %v6225 = vmul.f32 %v6188, %v6217
      %v6226 = vmul.f32 %v6189, %v6217
      %v6227 = vmul.f32 %v6190, %v6217
      %v6228 = vmul.f32 %v6191, %v6217
      %v6229 = vmul.f32 %v6192, %v6217
      %v6230 = vmul.f32 %v6193, %v6217
      %v6231 = vmul.f32 %v6194, %v6217
      %v6232 = vmul.f32 %v6195, %v6217
      %v6233 = vmul.f32 %v6196, %v6217
      %v6234 = vmul.f32 %v6197, %v6217
      %v6235 = vmul.f32 %v6198, %v6217
      %v6236 = vmul.f32 %v6199, %v6217
      %v6237 = vmul.f32 %v6200, %v6217
      %v6238 = vmul.f32 %v6201, %v6217
      %v6239 = vmul.f32 %v6202, %v6217
      %v6240 = vmul.f32 %v6203, %v6217
      %v6241 = vmul.f32 %v6204, %v6217
      %v6242 = vmul.f32 %v6205, %v6217
      %v6243 = vmul.f32 %v6206, %v6217
      %v6244 = vmul.f32 %v6207, %v6217
      %v6245 = vmul.f32 %v6208, %v6217
      %v6246 = vmul.f32 %v6209, %v6217
      %v6247 = vmul.f32 %v6210, %v6217
      %v6248 = vmul.f32 %v6211, %v6217
      %v6249 = vmul.f32 %v6212, %v6217
      %v6250 = vadd.f32 %v6149, %v6218
      %v6251 = vadd.f32 %v6150, %v6219
      %v6252 = vadd.f32 %v6151, %v6220
      %v6253 = vadd.f32 %v6152, %v6221
      %v6254 = vadd.f32 %v6153, %v6222
      %v6255 = vadd.f32 %v6154, %v6223
      %v6256 = vadd.f32 %v6155, %v6224
      %v6257 = vadd.f32 %v6156, %v6225
      %v6258 = vadd.f32 %v6157, %v6226
      %v6259 = vadd.f32 %v6158, %v6227
      %v6260 = vadd.f32 %v6159, %v6228
      %v6261 = vadd.f32 %v6160, %v6229
      %v6262 = vadd.f32 %v6161, %v6230
      %v6263 = vadd.f32 %v6162, %v6231
      %v6264 = vadd.f32 %v6163, %v6232
      %v6265 = vadd.f32 %v6164, %v6233
      %v6266 = vadd.f32 %v6165, %v6234
      %v6267 = vadd.f32 %v6166, %v6235
      %v6268 = vadd.f32 %v6167, %v6236
      %v6269 = vadd.f32 %v6168, %v6237
      %v6270 = vadd.f32 %v6169, %v6238
      %v6271 = vadd.f32 %v6170, %v6239
      %v6272 = vadd.f32 %v6171, %v6240
      %v6273 = vadd.f32 %v6172, %v6241
      %v6274 = vadd.f32 %v6173, %v6242
      %v6275 = vadd.f32 %v6174, %v6243
      %v6276 = vadd.f32 %v6175, %v6244
      %v6277 = vadd.f32 %v6176, %v6245
      %v6278 = vadd.f32 %v6177, %v6246
      %v6279 = vadd.f32 %v6178, %v6247
      %v6280 = vadd.f32 %v6179, %v6248
      %v6281 = vadd.f32 %v6180, %v6249
      %v6282 = vld [vmem:[%s5978 + $0x9] sm:$0xff]
      %v6283 = vld [vmem:[%s5978 + $0x11] sm:$0xff]
      %v6284 = vld [vmem:[%s5978 + $0x31] sm:$0xff]
      %v6285 = vld [vmem:[%s5978 + $0x39] sm:$0xff]
      %v6286 = vld [vmem:[%s5978 + $0x59] sm:$0xff]
      %v6287 = vld [vmem:[%s5978 + $0x61] sm:$0xff]
      %v6288 = vld [vmem:[%s5978 + $0x81] sm:$0xff]
      %v6289 = vld [vmem:[%s5978 + $0x89] sm:$0xff]
      %v6290 = vld [vmem:[%s5978 + $0xa9] sm:$0xff]
      %v6291 = vld [vmem:[%s5978 + $0xb1] sm:$0xff]
      %v6292 = vld [vmem:[%s5978 + $0xd1] sm:$0xff]
      %v6293 = vld [vmem:[%s5978 + $0xd9] sm:$0xff]
      %v6294 = vld [vmem:[%s5978 + $0xf9] sm:$0xff]
      %v6295 = vld [vmem:[%s5978 + $0x101] sm:$0xff]
      %v6296 = vld [vmem:[%s5978 + $0x121] sm:$0xff]
      %v6297 = vld [vmem:[%s5978 + $0x129] sm:$0xff]
      %v6298 = vld [vmem:[%s5978 + $0x149] sm:$0xff]
      %v6299 = vld [vmem:[%s5978 + $0x151] sm:$0xff]
      %v6300 = vld [vmem:[%s5978 + $0x171] sm:$0xff]
      %v6301 = vld [vmem:[%s5978 + $0x179] sm:$0xff]
      %v6302 = vld [vmem:[%s5978 + $0x199] sm:$0xff]
      %v6303 = vld [vmem:[%s5978 + $0x1a1] sm:$0xff]
      %v6304 = vld [vmem:[%s5978 + $0x1c1] sm:$0xff]
      %v6305 = vld [vmem:[%s5978 + $0x1c9] sm:$0xff]
      %v6306 = vld [vmem:[%s5978 + $0x1e9] sm:$0xff]
      %v6307 = vld [vmem:[%s5978 + $0x1f1] sm:$0xff]
      %v6308 = vld [vmem:[%s5978 + $0x211] sm:$0xff]
      %v6309 = vld [vmem:[%s5978 + $0x219] sm:$0xff]
      %v6310 = vld [vmem:[%s5978 + $0x239] sm:$0xff]
      %v6311 = vld [vmem:[%s5978 + $0x241] sm:$0xff]
      %v6312 = vld [vmem:[%s5978 + $0x261] sm:$0xff]
      %v6313 = vld [vmem:[%s5978 + $0x269] sm:$0xff]
      %v6314 = vld [vmem:[%s3 + $0x1f] sm:$0x1]
      %v6315 = vlaneseq
      %v6316 = vshrl.u32 %v6315, 7
      %v6317 = vsub.s32 0, %v6316
      %v6318 = vrot.slane %v6314, %v6317
      %v6319 = vmul.f32 %v6282, %v6318
      %v6320 = vmul.f32 %v6283, %v6318
      %v6321 = vmul.f32 %v6284, %v6318
      %v6322 = vmul.f32 %v6285, %v6318
      %v6323 = vmul.f32 %v6286, %v6318
      %v6324 = vmul.f32 %v6287, %v6318
      %v6325 = vmul.f32 %v6288, %v6318
      %v6326 = vmul.f32 %v6289, %v6318
      %v6327 = vmul.f32 %v6290, %v6318
      %v6328 = vmul.f32 %v6291, %v6318
      %v6329 = vmul.f32 %v6292, %v6318
      %v6330 = vmul.f32 %v6293, %v6318
      %v6331 = vmul.f32 %v6294, %v6318
      %v6332 = vmul.f32 %v6295, %v6318
      %v6333 = vmul.f32 %v6296, %v6318
      %v6334 = vmul.f32 %v6297, %v6318
      %v6335 = vmul.f32 %v6298, %v6318
      %v6336 = vmul.f32 %v6299, %v6318
      %v6337 = vmul.f32 %v6300, %v6318
      %v6338 = vmul.f32 %v6301, %v6318
      %v6339 = vmul.f32 %v6302, %v6318
      %v6340 = vmul.f32 %v6303, %v6318
      %v6341 = vmul.f32 %v6304, %v6318
      %v6342 = vmul.f32 %v6305, %v6318
      %v6343 = vmul.f32 %v6306, %v6318
      %v6344 = vmul.f32 %v6307, %v6318
      %v6345 = vmul.f32 %v6308, %v6318
      %v6346 = vmul.f32 %v6309, %v6318
      %v6347 = vmul.f32 %v6310, %v6318
      %v6348 = vmul.f32 %v6311, %v6318
      %v6349 = vmul.f32 %v6312, %v6318
      %v6350 = vmul.f32 %v6313, %v6318
      %v6351 = vadd.f32 %v6250, %v6319
      %v6352 = vadd.f32 %v6251, %v6320
      %v6353 = vadd.f32 %v6252, %v6321
      %v6354 = vadd.f32 %v6253, %v6322
      %v6355 = vadd.f32 %v6254, %v6323
      %v6356 = vadd.f32 %v6255, %v6324
      %v6357 = vadd.f32 %v6256, %v6325
      %v6358 = vadd.f32 %v6257, %v6326
      %v6359 = vadd.f32 %v6258, %v6327
      %v6360 = vadd.f32 %v6259, %v6328
      %v6361 = vadd.f32 %v6260, %v6329
      %v6362 = vadd.f32 %v6261, %v6330
      %v6363 = vadd.f32 %v6262, %v6331
      %v6364 = vadd.f32 %v6263, %v6332
      %v6365 = vadd.f32 %v6264, %v6333
      %v6366 = vadd.f32 %v6265, %v6334
      %v6367 = vadd.f32 %v6266, %v6335
      %v6368 = vadd.f32 %v6267, %v6336
      %v6369 = vadd.f32 %v6268, %v6337
      %v6370 = vadd.f32 %v6269, %v6338
      %v6371 = vadd.f32 %v6270, %v6339
      %v6372 = vadd.f32 %v6271, %v6340
      %v6373 = vadd.f32 %v6272, %v6341
      %v6374 = vadd.f32 %v6273, %v6342
      %v6375 = vadd.f32 %v6274, %v6343
      %v6376 = vadd.f32 %v6275, %v6344
      %v6377 = vadd.f32 %v6276, %v6345
      %v6378 = vadd.f32 %v6277, %v6346
      %v6379 = vadd.f32 %v6278, %v6347
      %v6380 = vadd.f32 %v6279, %v6348
      %v6381 = vadd.f32 %v6280, %v6349
      %v6382 = vadd.f32 %v6281, %v6350
      %v6383 = vld [vmem:[%s5978 + $0xc] sm:$0xff]
      %v6384 = vld [vmem:[%s5978 + $0x14] sm:$0xff]
      %v6385 = vld [vmem:[%s5978 + $0x34] sm:$0xff]
      %v6386 = vld [vmem:[%s5978 + $0x3c] sm:$0xff]
      %v6387 = vld [vmem:[%s5978 + $0x5c] sm:$0xff]
      %v6388 = vld [vmem:[%s5978 + $0x64] sm:$0xff]
      %v6389 = vld [vmem:[%s5978 + $0x84] sm:$0xff]
      %v6390 = vld [vmem:[%s5978 + $0x8c] sm:$0xff]
      %v6391 = vld [vmem:[%s5978 + $0xac] sm:$0xff]
      %v6392 = vld [vmem:[%s5978 + $0xb4] sm:$0xff]
      %v6393 = vld [vmem:[%s5978 + $0xd4] sm:$0xff]
      %v6394 = vld [vmem:[%s5978 + $0xdc] sm:$0xff]
      %v6395 = vld [vmem:[%s5978 + $0xfc] sm:$0xff]
      %v6396 = vld [vmem:[%s5978 + $0x104] sm:$0xff]
      %v6397 = vld [vmem:[%s5978 + $0x124] sm:$0xff]
      %v6398 = vld [vmem:[%s5978 + $0x12c] sm:$0xff]
      %v6399 = vld [vmem:[%s5978 + $0x14c] sm:$0xff]
      %v6400 = vld [vmem:[%s5978 + $0x154] sm:$0xff]
      %v6401 = vld [vmem:[%s5978 + $0x174] sm:$0xff]
      %v6402 = vld [vmem:[%s5978 + $0x17c] sm:$0xff]
      %v6403 = vld [vmem:[%s5978 + $0x19c] sm:$0xff]
      %v6404 = vld [vmem:[%s5978 + $0x1a4] sm:$0xff]
      %v6405 = vld [vmem:[%s5978 + $0x1c4] sm:$0xff]
      %v6406 = vld [vmem:[%s5978 + $0x1cc] sm:$0xff]
      %v6407 = vld [vmem:[%s5978 + $0x1ec] sm:$0xff]
      %v6408 = vld [vmem:[%s5978 + $0x1f4] sm:$0xff]
      %v6409 = vld [vmem:[%s5978 + $0x214] sm:$0xff]
      %v6410 = vld [vmem:[%s5978 + $0x21c] sm:$0xff]
      %v6411 = vld [vmem:[%s5978 + $0x23c] sm:$0xff]
      %v6412 = vld [vmem:[%s5978 + $0x244] sm:$0xff]
      %v6413 = vld [vmem:[%s5978 + $0x264] sm:$0xff]
      %v6414 = vld [vmem:[%s5978 + $0x26c] sm:$0xff]
      %v6415 = vld [vmem:[%s3 + $0x20] sm:$0x1]
      %v6416 = vlaneseq
      %v6417 = vshrl.u32 %v6416, 7
      %v6418 = vsub.s32 0, %v6417
      %v6419 = vrot.slane %v6415, %v6418
      %v6420 = vmul.f32 %v6383, %v6419
      %v6421 = vmul.f32 %v6384, %v6419
      %v6422 = vmul.f32 %v6385, %v6419
      %v6423 = vmul.f32 %v6386, %v6419
      %v6424 = vmul.f32 %v6387, %v6419
      %v6425 = vmul.f32 %v6388, %v6419
      %v6426 = vmul.f32 %v6389, %v6419
      %v6427 = vmul.f32 %v6390, %v6419
      %v6428 = vmul.f32 %v6391, %v6419
      %v6429 = vmul.f32 %v6392, %v6419
      %v6430 = vmul.f32 %v6393, %v6419
      %v6431 = vmul.f32 %v6394, %v6419
      %v6432 = vmul.f32 %v6395, %v6419
      %v6433 = vmul.f32 %v6396, %v6419
      %v6434 = vmul.f32 %v6397, %v6419
      %v6435 = vmul.f32 %v6398, %v6419
      %v6436 = vmul.f32 %v6399, %v6419
      %v6437 = vmul.f32 %v6400, %v6419
      %v6438 = vmul.f32 %v6401, %v6419
      %v6439 = vmul.f32 %v6402, %v6419
      %v6440 = vmul.f32 %v6403, %v6419
      %v6441 = vmul.f32 %v6404, %v6419
      %v6442 = vmul.f32 %v6405, %v6419
      %v6443 = vmul.f32 %v6406, %v6419
      %v6444 = vmul.f32 %v6407, %v6419
      %v6445 = vmul.f32 %v6408, %v6419
      %v6446 = vmul.f32 %v6409, %v6419
      %v6447 = vmul.f32 %v6410, %v6419
      %v6448 = vmul.f32 %v6411, %v6419
      %v6449 = vmul.f32 %v6412, %v6419
      %v6450 = vmul.f32 %v6413, %v6419
      %v6451 = vmul.f32 %v6414, %v6419
      %v6452 = vadd.f32 %v6351, %v6420
      %v6453 = vadd.f32 %v6352, %v6421
      %v6454 = vadd.f32 %v6353, %v6422
      %v6455 = vadd.f32 %v6354, %v6423
      %v6456 = vadd.f32 %v6355, %v6424
      %v6457 = vadd.f32 %v6356, %v6425
      %v6458 = vadd.f32 %v6357, %v6426
      %v6459 = vadd.f32 %v6358, %v6427
      %v6460 = vadd.f32 %v6359, %v6428
      %v6461 = vadd.f32 %v6360, %v6429
      %v6462 = vadd.f32 %v6361, %v6430
      %v6463 = vadd.f32 %v6362, %v6431
      %v6464 = vadd.f32 %v6363, %v6432
      %v6465 = vadd.f32 %v6364, %v6433
      %v6466 = vadd.f32 %v6365, %v6434
      %v6467 = vadd.f32 %v6366, %v6435
      %v6468 = vadd.f32 %v6367, %v6436
      %v6469 = vadd.f32 %v6368, %v6437
      %v6470 = vadd.f32 %v6369, %v6438
      %v6471 = vadd.f32 %v6370, %v6439
      %v6472 = vadd.f32 %v6371, %v6440
      %v6473 = vadd.f32 %v6372, %v6441
      %v6474 = vadd.f32 %v6373, %v6442
      %v6475 = vadd.f32 %v6374, %v6443
      %v6476 = vadd.f32 %v6375, %v6444
      %v6477 = vadd.f32 %v6376, %v6445
      %v6478 = vadd.f32 %v6377, %v6446
      %v6479 = vadd.f32 %v6378, %v6447
      %v6480 = vadd.f32 %v6379, %v6448
      %v6481 = vadd.f32 %v6380, %v6449
      %v6482 = vadd.f32 %v6381, %v6450
      %v6483 = vadd.f32 %v6382, %v6451
      %v6484 = vld [vmem:[%s5978 + $0xf] sm:$0xff]
      %v6485 = vld [vmem:[%s5978 + $0x17] sm:$0xff]
      %v6486 = vld [vmem:[%s5978 + $0x37] sm:$0xff]
      %v6487 = vld [vmem:[%s5978 + $0x3f] sm:$0xff]
      %v6488 = vld [vmem:[%s5978 + $0x5f] sm:$0xff]
      %v6489 = vld [vmem:[%s5978 + $0x67] sm:$0xff]
      %v6490 = vld [vmem:[%s5978 + $0x87] sm:$0xff]
      %v6491 = vld [vmem:[%s5978 + $0x8f] sm:$0xff]
      %v6492 = vld [vmem:[%s5978 + $0xaf] sm:$0xff]
      %v6493 = vld [vmem:[%s5978 + $0xb7] sm:$0xff]
      %v6494 = vld [vmem:[%s5978 + $0xd7] sm:$0xff]
      %v6495 = vld [vmem:[%s5978 + $0xdf] sm:$0xff]
      %v6496 = vld [vmem:[%s5978 + $0xff] sm:$0xff]
      %v6497 = vld [vmem:[%s5978 + $0x107] sm:$0xff]
      %v6498 = vld [vmem:[%s5978 + $0x127] sm:$0xff]
      %v6499 = vld [vmem:[%s5978 + $0x12f] sm:$0xff]
      %v6500 = vld [vmem:[%s5978 + $0x14f] sm:$0xff]
      %v6501 = vld [vmem:[%s5978 + $0x157] sm:$0xff]
      %v6502 = vld [vmem:[%s5978 + $0x177] sm:$0xff]
      %v6503 = vld [vmem:[%s5978 + $0x17f] sm:$0xff]
      %v6504 = vld [vmem:[%s5978 + $0x19f] sm:$0xff]
      %v6505 = vld [vmem:[%s5978 + $0x1a7] sm:$0xff]
      %v6506 = vld [vmem:[%s5978 + $0x1c7] sm:$0xff]
      %v6507 = vld [vmem:[%s5978 + $0x1cf] sm:$0xff]
      %v6508 = vld [vmem:[%s5978 + $0x1ef] sm:$0xff]
      %v6509 = vld [vmem:[%s5978 + $0x1f7] sm:$0xff]
      %v6510 = vld [vmem:[%s5978 + $0x217] sm:$0xff]
      %v6511 = vld [vmem:[%s5978 + $0x21f] sm:$0xff]
      %v6512 = vld [vmem:[%s5978 + $0x23f] sm:$0xff]
      %v6513 = vld [vmem:[%s5978 + $0x247] sm:$0xff]
      %v6514 = vld [vmem:[%s5978 + $0x267] sm:$0xff]
      %v6515 = vld [vmem:[%s5978 + $0x26f] sm:$0xff]
      %v6516 = vld [vmem:[%s3 + $0x21] sm:$0x1]
      %v6517 = vlaneseq
      %v6518 = vshrl.u32 %v6517, 7
      %v6519 = vsub.s32 0, %v6518
      %v6520 = vrot.slane %v6516, %v6519
      %v6521 = vmul.f32 %v6484, %v6520
      %v6522 = vmul.f32 %v6485, %v6520
      %v6523 = vmul.f32 %v6486, %v6520
      %v6524 = vmul.f32 %v6487, %v6520
      %v6525 = vmul.f32 %v6488, %v6520
      %v6526 = vmul.f32 %v6489, %v6520
      %v6527 = vmul.f32 %v6490, %v6520
      %v6528 = vmul.f32 %v6491, %v6520
      %v6529 = vmul.f32 %v6492, %v6520
      %v6530 = vmul.f32 %v6493, %v6520
      %v6531 = vmul.f32 %v6494, %v6520
      %v6532 = vmul.f32 %v6495, %v6520
      %v6533 = vmul.f32 %v6496, %v6520
      %v6534 = vmul.f32 %v6497, %v6520
      %v6535 = vmul.f32 %v6498, %v6520
      %v6536 = vmul.f32 %v6499, %v6520
      %v6537 = vmul.f32 %v6500, %v6520
      %v6538 = vmul.f32 %v6501, %v6520
      %v6539 = vmul.f32 %v6502, %v6520
      %v6540 = vmul.f32 %v6503, %v6520
      %v6541 = vmul.f32 %v6504, %v6520
      %v6542 = vmul.f32 %v6505, %v6520
      %v6543 = vmul.f32 %v6506, %v6520
      %v6544 = vmul.f32 %v6507, %v6520
      %v6545 = vmul.f32 %v6508, %v6520
      %v6546 = vmul.f32 %v6509, %v6520
      %v6547 = vmul.f32 %v6510, %v6520
      %v6548 = vmul.f32 %v6511, %v6520
      %v6549 = vmul.f32 %v6512, %v6520
      %v6550 = vmul.f32 %v6513, %v6520
      %v6551 = vmul.f32 %v6514, %v6520
      %v6552 = vmul.f32 %v6515, %v6520
      %v6553 = vadd.f32 %v6452, %v6521
      %v6554 = vadd.f32 %v6453, %v6522
      %v6555 = vadd.f32 %v6454, %v6523
      %v6556 = vadd.f32 %v6455, %v6524
      %v6557 = vadd.f32 %v6456, %v6525
      %v6558 = vadd.f32 %v6457, %v6526
      %v6559 = vadd.f32 %v6458, %v6527
      %v6560 = vadd.f32 %v6459, %v6528
      %v6561 = vadd.f32 %v6460, %v6529
      %v6562 = vadd.f32 %v6461, %v6530
      %v6563 = vadd.f32 %v6462, %v6531
      %v6564 = vadd.f32 %v6463, %v6532
      %v6565 = vadd.f32 %v6464, %v6533
      %v6566 = vadd.f32 %v6465, %v6534
      %v6567 = vadd.f32 %v6466, %v6535
      %v6568 = vadd.f32 %v6467, %v6536
      %v6569 = vadd.f32 %v6468, %v6537
      %v6570 = vadd.f32 %v6469, %v6538
      %v6571 = vadd.f32 %v6470, %v6539
      %v6572 = vadd.f32 %v6471, %v6540
      %v6573 = vadd.f32 %v6472, %v6541
      %v6574 = vadd.f32 %v6473, %v6542
      %v6575 = vadd.f32 %v6474, %v6543
      %v6576 = vadd.f32 %v6475, %v6544
      %v6577 = vadd.f32 %v6476, %v6545
      %v6578 = vadd.f32 %v6477, %v6546
      %v6579 = vadd.f32 %v6478, %v6547
      %v6580 = vadd.f32 %v6479, %v6548
      %v6581 = vadd.f32 %v6480, %v6549
      %v6582 = vadd.f32 %v6481, %v6550
      %v6583 = vadd.f32 %v6482, %v6551
      %v6584 = vadd.f32 %v6483, %v6552
      %v6585 = vld [vmem:[%s5978 + $0x12] sm:$0xff]
      %v6586 = vld [vmem:[%s5978 + $0x1a] sm:$0xff]
      %v6587 = vld [vmem:[%s5978 + $0x3a] sm:$0xff]
      %v6588 = vld [vmem:[%s5978 + $0x42] sm:$0xff]
      %v6589 = vld [vmem:[%s5978 + $0x62] sm:$0xff]
      %v6590 = vld [vmem:[%s5978 + $0x6a] sm:$0xff]
      %v6591 = vld [vmem:[%s5978 + $0x8a] sm:$0xff]
      %v6592 = vld [vmem:[%s5978 + $0x92] sm:$0xff]
      %v6593 = vld [vmem:[%s5978 + $0xb2] sm:$0xff]
      %v6594 = vld [vmem:[%s5978 + $0xba] sm:$0xff]
      %v6595 = vld [vmem:[%s5978 + $0xda] sm:$0xff]
      %v6596 = vld [vmem:[%s5978 + $0xe2] sm:$0xff]
      %v6597 = vld [vmem:[%s5978 + $0x102] sm:$0xff]
      %v6598 = vld [vmem:[%s5978 + $0x10a] sm:$0xff]
      %v6599 = vld [vmem:[%s5978 + $0x12a] sm:$0xff]
      %v6600 = vld [vmem:[%s5978 + $0x132] sm:$0xff]
      %v6601 = vld [vmem:[%s5978 + $0x152] sm:$0xff]
      %v6602 = vld [vmem:[%s5978 + $0x15a] sm:$0xff]
      %v6603 = vld [vmem:[%s5978 + $0x17a] sm:$0xff]
      %v6604 = vld [vmem:[%s5978 + $0x182] sm:$0xff]
      %v6605 = vld [vmem:[%s5978 + $0x1a2] sm:$0xff]
      %v6606 = vld [vmem:[%s5978 + $0x1aa] sm:$0xff]
      %v6607 = vld [vmem:[%s5978 + $0x1ca] sm:$0xff]
      %v6608 = vld [vmem:[%s5978 + $0x1d2] sm:$0xff]
      %v6609 = vld [vmem:[%s5978 + $0x1f2] sm:$0xff]
      %v6610 = vld [vmem:[%s5978 + $0x1fa] sm:$0xff]
      %v6611 = vld [vmem:[%s5978 + $0x21a] sm:$0xff]
      %v6612 = vld [vmem:[%s5978 + $0x222] sm:$0xff]
      %v6613 = vld [vmem:[%s5978 + $0x242] sm:$0xff]
      %v6614 = vld [vmem:[%s5978 + $0x24a] sm:$0xff]
      %v6615 = vld [vmem:[%s5978 + $0x26a] sm:$0xff]
      %v6616 = vld [vmem:[%s5978 + $0x272] sm:$0xff]
      %v6617 = vld [vmem:[%s3 + $0x22] sm:$0x1]
      %v6618 = vlaneseq
      %v6619 = vshrl.u32 %v6618, 7
      %v6620 = vsub.s32 0, %v6619
      %v6621 = vrot.slane %v6617, %v6620
      %v6622 = vmul.f32 %v6585, %v6621
      %v6623 = vmul.f32 %v6586, %v6621
      %v6624 = vmul.f32 %v6587, %v6621
      %v6625 = vmul.f32 %v6588, %v6621
      %v6626 = vmul.f32 %v6589, %v6621
      %v6627 = vmul.f32 %v6590, %v6621
      %v6628 = vmul.f32 %v6591, %v6621
      %v6629 = vmul.f32 %v6592, %v6621
      %v6630 = vmul.f32 %v6593, %v6621
      %v6631 = vmul.f32 %v6594, %v6621
      %v6632 = vmul.f32 %v6595, %v6621
      %v6633 = vmul.f32 %v6596, %v6621
      %v6634 = vmul.f32 %v6597, %v6621
      %v6635 = vmul.f32 %v6598, %v6621
      %v6636 = vmul.f32 %v6599, %v6621
      %v6637 = vmul.f32 %v6600, %v6621
      %v6638 = vmul.f32 %v6601, %v6621
      %v6639 = vmul.f32 %v6602, %v6621
      %v6640 = vmul.f32 %v6603, %v6621
      %v6641 = vmul.f32 %v6604, %v6621
      %v6642 = vmul.f32 %v6605, %v6621
      %v6643 = vmul.f32 %v6606, %v6621
      %v6644 = vmul.f32 %v6607, %v6621
      %v6645 = vmul.f32 %v6608, %v6621
      %v6646 = vmul.f32 %v6609, %v6621
      %v6647 = vmul.f32 %v6610, %v6621
      %v6648 = vmul.f32 %v6611, %v6621
      %v6649 = vmul.f32 %v6612, %v6621
      %v6650 = vmul.f32 %v6613, %v6621
      %v6651 = vmul.f32 %v6614, %v6621
      %v6652 = vmul.f32 %v6615, %v6621
      %v6653 = vmul.f32 %v6616, %v6621
      %v6654 = vadd.f32 %v6553, %v6622
      %v6655 = vadd.f32 %v6554, %v6623
      %v6656 = vadd.f32 %v6555, %v6624
      %v6657 = vadd.f32 %v6556, %v6625
      %v6658 = vadd.f32 %v6557, %v6626
      %v6659 = vadd.f32 %v6558, %v6627
      %v6660 = vadd.f32 %v6559, %v6628
      %v6661 = vadd.f32 %v6560, %v6629
      %v6662 = vadd.f32 %v6561, %v6630
      %v6663 = vadd.f32 %v6562, %v6631
      %v6664 = vadd.f32 %v6563, %v6632
      %v6665 = vadd.f32 %v6564, %v6633
      %v6666 = vadd.f32 %v6565, %v6634
      %v6667 = vadd.f32 %v6566, %v6635
      %v6668 = vadd.f32 %v6567, %v6636
      %v6669 = vadd.f32 %v6568, %v6637
      %v6670 = vadd.f32 %v6569, %v6638
      %v6671 = vadd.f32 %v6570, %v6639
      %v6672 = vadd.f32 %v6571, %v6640
      %v6673 = vadd.f32 %v6572, %v6641
      %v6674 = vadd.f32 %v6573, %v6642
      %v6675 = vadd.f32 %v6574, %v6643
      %v6676 = vadd.f32 %v6575, %v6644
      %v6677 = vadd.f32 %v6576, %v6645
      %v6678 = vadd.f32 %v6577, %v6646
      %v6679 = vadd.f32 %v6578, %v6647
      %v6680 = vadd.f32 %v6579, %v6648
      %v6681 = vadd.f32 %v6580, %v6649
      %v6682 = vadd.f32 %v6581, %v6650
      %v6683 = vadd.f32 %v6582, %v6651
      %v6684 = vadd.f32 %v6583, %v6652
      %v6685 = vadd.f32 %v6584, %v6653
      %s6686 = scalar_lea.vmem [#allocation3], 600
      %v6687 = vld [vmem:[%s6686] sm:$0xff]
      %v6688 = vld [vmem:[%s6686 + $0x8] sm:$0xff]
      %v6689 = vld [vmem:[%s6686 + $0x28] sm:$0xff]
      %v6690 = vld [vmem:[%s6686 + $0x30] sm:$0xff]
      %v6691 = vld [vmem:[%s6686 + $0x50] sm:$0xff]
      %v6692 = vld [vmem:[%s6686 + $0x58] sm:$0xff]
      %v6693 = vld [vmem:[%s6686 + $0x78] sm:$0xff]
      %v6694 = vld [vmem:[%s6686 + $0x80] sm:$0xff]
      %v6695 = vld [vmem:[%s6686 + $0xa0] sm:$0xff]
      %v6696 = vld [vmem:[%s6686 + $0xa8] sm:$0xff]
      %v6697 = vld [vmem:[%s6686 + $0xc8] sm:$0xff]
      %v6698 = vld [vmem:[%s6686 + $0xd0] sm:$0xff]
      %v6699 = vld [vmem:[%s6686 + $0xf0] sm:$0xff]
      %v6700 = vld [vmem:[%s6686 + $0xf8] sm:$0xff]
      %v6701 = vld [vmem:[%s6686 + $0x118] sm:$0xff]
      %v6702 = vld [vmem:[%s6686 + $0x120] sm:$0xff]
      %v6703 = vld [vmem:[%s6686 + $0x140] sm:$0xff]
      %v6704 = vld [vmem:[%s6686 + $0x148] sm:$0xff]
      %v6705 = vld [vmem:[%s6686 + $0x168] sm:$0xff]
      %v6706 = vld [vmem:[%s6686 + $0x170] sm:$0xff]
      %v6707 = vld [vmem:[%s6686 + $0x190] sm:$0xff]
      %v6708 = vld [vmem:[%s6686 + $0x198] sm:$0xff]
      %v6709 = vld [vmem:[%s6686 + $0x1b8] sm:$0xff]
      %v6710 = vld [vmem:[%s6686 + $0x1c0] sm:$0xff]
      %v6711 = vld [vmem:[%s6686 + $0x1e0] sm:$0xff]
      %v6712 = vld [vmem:[%s6686 + $0x1e8] sm:$0xff]
      %v6713 = vld [vmem:[%s6686 + $0x208] sm:$0xff]
      %v6714 = vld [vmem:[%s6686 + $0x210] sm:$0xff]
      %v6715 = vld [vmem:[%s6686 + $0x230] sm:$0xff]
      %v6716 = vld [vmem:[%s6686 + $0x238] sm:$0xff]
      %v6717 = vld [vmem:[%s6686 + $0x258] sm:$0xff]
      %v6718 = vld [vmem:[%s6686 + $0x260] sm:$0xff]
      %v6719 = vld [vmem:[%s3 + $0x23] sm:$0x1]
      %v6720 = vlaneseq
      %v6721 = vshrl.u32 %v6720, 7
      %v6722 = vsub.s32 0, %v6721
      %v6723 = vrot.slane %v6719, %v6722
      %v6724 = vmul.f32 %v6687, %v6723
      %v6725 = vmul.f32 %v6688, %v6723
      %v6726 = vmul.f32 %v6689, %v6723
      %v6727 = vmul.f32 %v6690, %v6723
      %v6728 = vmul.f32 %v6691, %v6723
      %v6729 = vmul.f32 %v6692, %v6723
      %v6730 = vmul.f32 %v6693, %v6723
      %v6731 = vmul.f32 %v6694, %v6723
      %v6732 = vmul.f32 %v6695, %v6723
      %v6733 = vmul.f32 %v6696, %v6723
      %v6734 = vmul.f32 %v6697, %v6723
      %v6735 = vmul.f32 %v6698, %v6723
      %v6736 = vmul.f32 %v6699, %v6723
      %v6737 = vmul.f32 %v6700, %v6723
      %v6738 = vmul.f32 %v6701, %v6723
      %v6739 = vmul.f32 %v6702, %v6723
      %v6740 = vmul.f32 %v6703, %v6723
      %v6741 = vmul.f32 %v6704, %v6723
      %v6742 = vmul.f32 %v6705, %v6723
      %v6743 = vmul.f32 %v6706, %v6723
      %v6744 = vmul.f32 %v6707, %v6723
      %v6745 = vmul.f32 %v6708, %v6723
      %v6746 = vmul.f32 %v6709, %v6723
      %v6747 = vmul.f32 %v6710, %v6723
      %v6748 = vmul.f32 %v6711, %v6723
      %v6749 = vmul.f32 %v6712, %v6723
      %v6750 = vmul.f32 %v6713, %v6723
      %v6751 = vmul.f32 %v6714, %v6723
      %v6752 = vmul.f32 %v6715, %v6723
      %v6753 = vmul.f32 %v6716, %v6723
      %v6754 = vmul.f32 %v6717, %v6723
      %v6755 = vmul.f32 %v6718, %v6723
      %v6756 = vadd.f32 %v6654, %v6724
      %v6757 = vadd.f32 %v6655, %v6725
      %v6758 = vadd.f32 %v6656, %v6726
      %v6759 = vadd.f32 %v6657, %v6727
      %v6760 = vadd.f32 %v6658, %v6728
      %v6761 = vadd.f32 %v6659, %v6729
      %v6762 = vadd.f32 %v6660, %v6730
      %v6763 = vadd.f32 %v6661, %v6731
      %v6764 = vadd.f32 %v6662, %v6732
      %v6765 = vadd.f32 %v6663, %v6733
      %v6766 = vadd.f32 %v6664, %v6734
      %v6767 = vadd.f32 %v6665, %v6735
      %v6768 = vadd.f32 %v6666, %v6736
      %v6769 = vadd.f32 %v6667, %v6737
      %v6770 = vadd.f32 %v6668, %v6738
      %v6771 = vadd.f32 %v6669, %v6739
      %v6772 = vadd.f32 %v6670, %v6740
      %v6773 = vadd.f32 %v6671, %v6741
      %v6774 = vadd.f32 %v6672, %v6742
      %v6775 = vadd.f32 %v6673, %v6743
      %v6776 = vadd.f32 %v6674, %v6744
      %v6777 = vadd.f32 %v6675, %v6745
      %v6778 = vadd.f32 %v6676, %v6746
      %v6779 = vadd.f32 %v6677, %v6747
      %v6780 = vadd.f32 %v6678, %v6748
      %v6781 = vadd.f32 %v6679, %v6749
      %v6782 = vadd.f32 %v6680, %v6750
      %v6783 = vadd.f32 %v6681, %v6751
      %v6784 = vadd.f32 %v6682, %v6752
      %v6785 = vadd.f32 %v6683, %v6753
      %v6786 = vadd.f32 %v6684, %v6754
      %v6787 = vadd.f32 %v6685, %v6755
      %v6788 = vld [vmem:[%s6686 + $0x3] sm:$0xff]
      %v6789 = vld [vmem:[%s6686 + $0xb] sm:$0xff]
      %v6790 = vld [vmem:[%s6686 + $0x2b] sm:$0xff]
      %v6791 = vld [vmem:[%s6686 + $0x33] sm:$0xff]
      %v6792 = vld [vmem:[%s6686 + $0x53] sm:$0xff]
      %v6793 = vld [vmem:[%s6686 + $0x5b] sm:$0xff]
      %v6794 = vld [vmem:[%s6686 + $0x7b] sm:$0xff]
      %v6795 = vld [vmem:[%s6686 + $0x83] sm:$0xff]
      %v6796 = vld [vmem:[%s6686 + $0xa3] sm:$0xff]
      %v6797 = vld [vmem:[%s6686 + $0xab] sm:$0xff]
      %v6798 = vld [vmem:[%s6686 + $0xcb] sm:$0xff]
      %v6799 = vld [vmem:[%s6686 + $0xd3] sm:$0xff]
      %v6800 = vld [vmem:[%s6686 + $0xf3] sm:$0xff]
      %v6801 = vld [vmem:[%s6686 + $0xfb] sm:$0xff]
      %v6802 = vld [vmem:[%s6686 + $0x11b] sm:$0xff]
      %v6803 = vld [vmem:[%s6686 + $0x123] sm:$0xff]
      %v6804 = vld [vmem:[%s6686 + $0x143] sm:$0xff]
      %v6805 = vld [vmem:[%s6686 + $0x14b] sm:$0xff]
      %v6806 = vld [vmem:[%s6686 + $0x16b] sm:$0xff]
      %v6807 = vld [vmem:[%s6686 + $0x173] sm:$0xff]
      %v6808 = vld [vmem:[%s6686 + $0x193] sm:$0xff]
      %v6809 = vld [vmem:[%s6686 + $0x19b] sm:$0xff]
      %v6810 = vld [vmem:[%s6686 + $0x1bb] sm:$0xff]
      %v6811 = vld [vmem:[%s6686 + $0x1c3] sm:$0xff]
      %v6812 = vld [vmem:[%s6686 + $0x1e3] sm:$0xff]
      %v6813 = vld [vmem:[%s6686 + $0x1eb] sm:$0xff]
      %v6814 = vld [vmem:[%s6686 + $0x20b] sm:$0xff]
      %v6815 = vld [vmem:[%s6686 + $0x213] sm:$0xff]
      %v6816 = vld [vmem:[%s6686 + $0x233] sm:$0xff]
      %v6817 = vld [vmem:[%s6686 + $0x23b] sm:$0xff]
      %v6818 = vld [vmem:[%s6686 + $0x25b] sm:$0xff]
      %v6819 = vld [vmem:[%s6686 + $0x263] sm:$0xff]
      %v6820 = vld [vmem:[%s3 + $0x24] sm:$0x1]
      %v6821 = vlaneseq
      %v6822 = vshrl.u32 %v6821, 7
      %v6823 = vsub.s32 0, %v6822
      %v6824 = vrot.slane %v6820, %v6823
      %v6825 = vmul.f32 %v6788, %v6824
      %v6826 = vmul.f32 %v6789, %v6824
      %v6827 = vmul.f32 %v6790, %v6824
      %v6828 = vmul.f32 %v6791, %v6824
      %v6829 = vmul.f32 %v6792, %v6824
      %v6830 = vmul.f32 %v6793, %v6824
      %v6831 = vmul.f32 %v6794, %v6824
      %v6832 = vmul.f32 %v6795, %v6824
      %v6833 = vmul.f32 %v6796, %v6824
      %v6834 = vmul.f32 %v6797, %v6824
      %v6835 = vmul.f32 %v6798, %v6824
      %v6836 = vmul.f32 %v6799, %v6824
      %v6837 = vmul.f32 %v6800, %v6824
      %v6838 = vmul.f32 %v6801, %v6824
      %v6839 = vmul.f32 %v6802, %v6824
      %v6840 = vmul.f32 %v6803, %v6824
      %v6841 = vmul.f32 %v6804, %v6824
      %v6842 = vmul.f32 %v6805, %v6824
      %v6843 = vmul.f32 %v6806, %v6824
      %v6844 = vmul.f32 %v6807, %v6824
      %v6845 = vmul.f32 %v6808, %v6824
      %v6846 = vmul.f32 %v6809, %v6824
      %v6847 = vmul.f32 %v6810, %v6824
      %v6848 = vmul.f32 %v6811, %v6824
      %v6849 = vmul.f32 %v6812, %v6824
      %v6850 = vmul.f32 %v6813, %v6824
      %v6851 = vmul.f32 %v6814, %v6824
      %v6852 = vmul.f32 %v6815, %v6824
      %v6853 = vmul.f32 %v6816, %v6824
      %v6854 = vmul.f32 %v6817, %v6824
      %v6855 = vmul.f32 %v6818, %v6824
      %v6856 = vmul.f32 %v6819, %v6824
      %v6857 = vadd.f32 %v6756, %v6825
      %v6858 = vadd.f32 %v6757, %v6826
      %v6859 = vadd.f32 %v6758, %v6827
      %v6860 = vadd.f32 %v6759, %v6828
      %v6861 = vadd.f32 %v6760, %v6829
      %v6862 = vadd.f32 %v6761, %v6830
      %v6863 = vadd.f32 %v6762, %v6831
      %v6864 = vadd.f32 %v6763, %v6832
      %v6865 = vadd.f32 %v6764, %v6833
      %v6866 = vadd.f32 %v6765, %v6834
      %v6867 = vadd.f32 %v6766, %v6835
      %v6868 = vadd.f32 %v6767, %v6836
      %v6869 = vadd.f32 %v6768, %v6837
      %v6870 = vadd.f32 %v6769, %v6838
      %v6871 = vadd.f32 %v6770, %v6839
      %v6872 = vadd.f32 %v6771, %v6840
      %v6873 = vadd.f32 %v6772, %v6841
      %v6874 = vadd.f32 %v6773, %v6842
      %v6875 = vadd.f32 %v6774, %v6843
      %v6876 = vadd.f32 %v6775, %v6844
      %v6877 = vadd.f32 %v6776, %v6845
      %v6878 = vadd.f32 %v6777, %v6846
      %v6879 = vadd.f32 %v6778, %v6847
      %v6880 = vadd.f32 %v6779, %v6848
      %v6881 = vadd.f32 %v6780, %v6849
      %v6882 = vadd.f32 %v6781, %v6850
      %v6883 = vadd.f32 %v6782, %v6851
      %v6884 = vadd.f32 %v6783, %v6852
      %v6885 = vadd.f32 %v6784, %v6853
      %v6886 = vadd.f32 %v6785, %v6854
      %v6887 = vadd.f32 %v6786, %v6855
      %v6888 = vadd.f32 %v6787, %v6856
      %v6889 = vld [vmem:[%s6686 + $0x6] sm:$0xff]
      %v6890 = vld [vmem:[%s6686 + $0xe] sm:$0xff]
      %v6891 = vld [vmem:[%s6686 + $0x2e] sm:$0xff]
      %v6892 = vld [vmem:[%s6686 + $0x36] sm:$0xff]
      %v6893 = vld [vmem:[%s6686 + $0x56] sm:$0xff]
      %v6894 = vld [vmem:[%s6686 + $0x5e] sm:$0xff]
      %v6895 = vld [vmem:[%s6686 + $0x7e] sm:$0xff]
      %v6896 = vld [vmem:[%s6686 + $0x86] sm:$0xff]
      %v6897 = vld [vmem:[%s6686 + $0xa6] sm:$0xff]
      %v6898 = vld [vmem:[%s6686 + $0xae] sm:$0xff]
      %v6899 = vld [vmem:[%s6686 + $0xce] sm:$0xff]
      %v6900 = vld [vmem:[%s6686 + $0xd6] sm:$0xff]
      %v6901 = vld [vmem:[%s6686 + $0xf6] sm:$0xff]
      %v6902 = vld [vmem:[%s6686 + $0xfe] sm:$0xff]
      %v6903 = vld [vmem:[%s6686 + $0x11e] sm:$0xff]
      %v6904 = vld [vmem:[%s6686 + $0x126] sm:$0xff]
      %v6905 = vld [vmem:[%s6686 + $0x146] sm:$0xff]
      %v6906 = vld [vmem:[%s6686 + $0x14e] sm:$0xff]
      %v6907 = vld [vmem:[%s6686 + $0x16e] sm:$0xff]
      %v6908 = vld [vmem:[%s6686 + $0x176] sm:$0xff]
      %v6909 = vld [vmem:[%s6686 + $0x196] sm:$0xff]
      %v6910 = vld [vmem:[%s6686 + $0x19e] sm:$0xff]
      %v6911 = vld [vmem:[%s6686 + $0x1be] sm:$0xff]
      %v6912 = vld [vmem:[%s6686 + $0x1c6] sm:$0xff]
      %v6913 = vld [vmem:[%s6686 + $0x1e6] sm:$0xff]
      %v6914 = vld [vmem:[%s6686 + $0x1ee] sm:$0xff]
      %v6915 = vld [vmem:[%s6686 + $0x20e] sm:$0xff]
      %v6916 = vld [vmem:[%s6686 + $0x216] sm:$0xff]
      %v6917 = vld [vmem:[%s6686 + $0x236] sm:$0xff]
      %v6918 = vld [vmem:[%s6686 + $0x23e] sm:$0xff]
      %v6919 = vld [vmem:[%s6686 + $0x25e] sm:$0xff]
      %v6920 = vld [vmem:[%s6686 + $0x266] sm:$0xff]
      %v6921 = vld [vmem:[%s3 + $0x25] sm:$0x1]
      %v6922 = vlaneseq
      %v6923 = vshrl.u32 %v6922, 7
      %v6924 = vsub.s32 0, %v6923
      %v6925 = vrot.slane %v6921, %v6924
      %v6926 = vmul.f32 %v6889, %v6925
      %v6927 = vmul.f32 %v6890, %v6925
      %v6928 = vmul.f32 %v6891, %v6925
      %v6929 = vmul.f32 %v6892, %v6925
      %v6930 = vmul.f32 %v6893, %v6925
      %v6931 = vmul.f32 %v6894, %v6925
      %v6932 = vmul.f32 %v6895, %v6925
      %v6933 = vmul.f32 %v6896, %v6925
      %v6934 = vmul.f32 %v6897, %v6925
      %v6935 = vmul.f32 %v6898, %v6925
      %v6936 = vmul.f32 %v6899, %v6925
      %v6937 = vmul.f32 %v6900, %v6925
      %v6938 = vmul.f32 %v6901, %v6925
      %v6939 = vmul.f32 %v6902, %v6925
      %v6940 = vmul.f32 %v6903, %v6925
      %v6941 = vmul.f32 %v6904, %v6925
      %v6942 = vmul.f32 %v6905, %v6925
      %v6943 = vmul.f32 %v6906, %v6925
      %v6944 = vmul.f32 %v6907, %v6925
      %v6945 = vmul.f32 %v6908, %v6925
      %v6946 = vmul.f32 %v6909, %v6925
      %v6947 = vmul.f32 %v6910, %v6925
      %v6948 = vmul.f32 %v6911, %v6925
      %v6949 = vmul.f32 %v6912, %v6925
      %v6950 = vmul.f32 %v6913, %v6925
      %v6951 = vmul.f32 %v6914, %v6925
      %v6952 = vmul.f32 %v6915, %v6925
      %v6953 = vmul.f32 %v6916, %v6925
      %v6954 = vmul.f32 %v6917, %v6925
      %v6955 = vmul.f32 %v6918, %v6925
      %v6956 = vmul.f32 %v6919, %v6925
      %v6957 = vmul.f32 %v6920, %v6925
      %v6958 = vadd.f32 %v6857, %v6926
      %v6959 = vadd.f32 %v6858, %v6927
      %v6960 = vadd.f32 %v6859, %v6928
      %v6961 = vadd.f32 %v6860, %v6929
      %v6962 = vadd.f32 %v6861, %v6930
      %v6963 = vadd.f32 %v6862, %v6931
      %v6964 = vadd.f32 %v6863, %v6932
      %v6965 = vadd.f32 %v6864, %v6933
      %v6966 = vadd.f32 %v6865, %v6934
      %v6967 = vadd.f32 %v6866, %v6935
      %v6968 = vadd.f32 %v6867, %v6936
      %v6969 = vadd.f32 %v6868, %v6937
      %v6970 = vadd.f32 %v6869, %v6938
      %v6971 = vadd.f32 %v6870, %v6939
      %v6972 = vadd.f32 %v6871, %v6940
      %v6973 = vadd.f32 %v6872, %v6941
      %v6974 = vadd.f32 %v6873, %v6942
      %v6975 = vadd.f32 %v6874, %v6943
      %v6976 = vadd.f32 %v6875, %v6944
      %v6977 = vadd.f32 %v6876, %v6945
      %v6978 = vadd.f32 %v6877, %v6946
      %v6979 = vadd.f32 %v6878, %v6947
      %v6980 = vadd.f32 %v6879, %v6948
      %v6981 = vadd.f32 %v6880, %v6949
      %v6982 = vadd.f32 %v6881, %v6950
      %v6983 = vadd.f32 %v6882, %v6951
      %v6984 = vadd.f32 %v6883, %v6952
      %v6985 = vadd.f32 %v6884, %v6953
      %v6986 = vadd.f32 %v6885, %v6954
      %v6987 = vadd.f32 %v6886, %v6955
      %v6988 = vadd.f32 %v6887, %v6956
      %v6989 = vadd.f32 %v6888, %v6957
      %v6990 = vld [vmem:[%s6686 + $0x9] sm:$0xff]
      %v6991 = vld [vmem:[%s6686 + $0x11] sm:$0xff]
      %v6992 = vld [vmem:[%s6686 + $0x31] sm:$0xff]
      %v6993 = vld [vmem:[%s6686 + $0x39] sm:$0xff]
      %v6994 = vld [vmem:[%s6686 + $0x59] sm:$0xff]
      %v6995 = vld [vmem:[%s6686 + $0x61] sm:$0xff]
      %v6996 = vld [vmem:[%s6686 + $0x81] sm:$0xff]
      %v6997 = vld [vmem:[%s6686 + $0x89] sm:$0xff]
      %v6998 = vld [vmem:[%s6686 + $0xa9] sm:$0xff]
      %v6999 = vld [vmem:[%s6686 + $0xb1] sm:$0xff]
      %v7000 = vld [vmem:[%s6686 + $0xd1] sm:$0xff]
      %v7001 = vld [vmem:[%s6686 + $0xd9] sm:$0xff]
      %v7002 = vld [vmem:[%s6686 + $0xf9] sm:$0xff]
      %v7003 = vld [vmem:[%s6686 + $0x101] sm:$0xff]
      %v7004 = vld [vmem:[%s6686 + $0x121] sm:$0xff]
      %v7005 = vld [vmem:[%s6686 + $0x129] sm:$0xff]
      %v7006 = vld [vmem:[%s6686 + $0x149] sm:$0xff]
      %v7007 = vld [vmem:[%s6686 + $0x151] sm:$0xff]
      %v7008 = vld [vmem:[%s6686 + $0x171] sm:$0xff]
      %v7009 = vld [vmem:[%s6686 + $0x179] sm:$0xff]
      %v7010 = vld [vmem:[%s6686 + $0x199] sm:$0xff]
      %v7011 = vld [vmem:[%s6686 + $0x1a1] sm:$0xff]
      %v7012 = vld [vmem:[%s6686 + $0x1c1] sm:$0xff]
      %v7013 = vld [vmem:[%s6686 + $0x1c9] sm:$0xff]
      %v7014 = vld [vmem:[%s6686 + $0x1e9] sm:$0xff]
      %v7015 = vld [vmem:[%s6686 + $0x1f1] sm:$0xff]
      %v7016 = vld [vmem:[%s6686 + $0x211] sm:$0xff]
      %v7017 = vld [vmem:[%s6686 + $0x219] sm:$0xff]
      %v7018 = vld [vmem:[%s6686 + $0x239] sm:$0xff]
      %v7019 = vld [vmem:[%s6686 + $0x241] sm:$0xff]
      %v7020 = vld [vmem:[%s6686 + $0x261] sm:$0xff]
      %v7021 = vld [vmem:[%s6686 + $0x269] sm:$0xff]
      %v7022 = vld [vmem:[%s3 + $0x26] sm:$0x1]
      %v7023 = vlaneseq
      %v7024 = vshrl.u32 %v7023, 7
      %v7025 = vsub.s32 0, %v7024
      %v7026 = vrot.slane %v7022, %v7025
      %v7027 = vmul.f32 %v6990, %v7026
      %v7028 = vmul.f32 %v6991, %v7026
      %v7029 = vmul.f32 %v6992, %v7026
      %v7030 = vmul.f32 %v6993, %v7026
      %v7031 = vmul.f32 %v6994, %v7026
      %v7032 = vmul.f32 %v6995, %v7026
      %v7033 = vmul.f32 %v6996, %v7026
      %v7034 = vmul.f32 %v6997, %v7026
      %v7035 = vmul.f32 %v6998, %v7026
      %v7036 = vmul.f32 %v6999, %v7026
      %v7037 = vmul.f32 %v7000, %v7026
      %v7038 = vmul.f32 %v7001, %v7026
      %v7039 = vmul.f32 %v7002, %v7026
      %v7040 = vmul.f32 %v7003, %v7026
      %v7041 = vmul.f32 %v7004, %v7026
      %v7042 = vmul.f32 %v7005, %v7026
      %v7043 = vmul.f32 %v7006, %v7026
      %v7044 = vmul.f32 %v7007, %v7026
      %v7045 = vmul.f32 %v7008, %v7026
      %v7046 = vmul.f32 %v7009, %v7026
      %v7047 = vmul.f32 %v7010, %v7026
      %v7048 = vmul.f32 %v7011, %v7026
      %v7049 = vmul.f32 %v7012, %v7026
      %v7050 = vmul.f32 %v7013, %v7026
      %v7051 = vmul.f32 %v7014, %v7026
      %v7052 = vmul.f32 %v7015, %v7026
      %v7053 = vmul.f32 %v7016, %v7026
      %v7054 = vmul.f32 %v7017, %v7026
      %v7055 = vmul.f32 %v7018, %v7026
      %v7056 = vmul.f32 %v7019, %v7026
      %v7057 = vmul.f32 %v7020, %v7026
      %v7058 = vmul.f32 %v7021, %v7026
      %v7059 = vadd.f32 %v6958, %v7027
      %v7060 = vadd.f32 %v6959, %v7028
      %v7061 = vadd.f32 %v6960, %v7029
      %v7062 = vadd.f32 %v6961, %v7030
      %v7063 = vadd.f32 %v6962, %v7031
      %v7064 = vadd.f32 %v6963, %v7032
      %v7065 = vadd.f32 %v6964, %v7033
      %v7066 = vadd.f32 %v6965, %v7034
      %v7067 = vadd.f32 %v6966, %v7035
      %v7068 = vadd.f32 %v6967, %v7036
      %v7069 = vadd.f32 %v6968, %v7037
      %v7070 = vadd.f32 %v6969, %v7038
      %v7071 = vadd.f32 %v6970, %v7039
      %v7072 = vadd.f32 %v6971, %v7040
      %v7073 = vadd.f32 %v6972, %v7041
      %v7074 = vadd.f32 %v6973, %v7042
      %v7075 = vadd.f32 %v6974, %v7043
      %v7076 = vadd.f32 %v6975, %v7044
      %v7077 = vadd.f32 %v6976, %v7045
      %v7078 = vadd.f32 %v6977, %v7046
      %v7079 = vadd.f32 %v6978, %v7047
      %v7080 = vadd.f32 %v6979, %v7048
      %v7081 = vadd.f32 %v6980, %v7049
      %v7082 = vadd.f32 %v6981, %v7050
      %v7083 = vadd.f32 %v6982, %v7051
      %v7084 = vadd.f32 %v6983, %v7052
      %v7085 = vadd.f32 %v6984, %v7053
      %v7086 = vadd.f32 %v6985, %v7054
      %v7087 = vadd.f32 %v6986, %v7055
      %v7088 = vadd.f32 %v6987, %v7056
      %v7089 = vadd.f32 %v6988, %v7057
      %v7090 = vadd.f32 %v6989, %v7058
      %v7091 = vld [vmem:[%s6686 + $0xc] sm:$0xff]
      %v7092 = vld [vmem:[%s6686 + $0x14] sm:$0xff]
      %v7093 = vld [vmem:[%s6686 + $0x34] sm:$0xff]
      %v7094 = vld [vmem:[%s6686 + $0x3c] sm:$0xff]
      %v7095 = vld [vmem:[%s6686 + $0x5c] sm:$0xff]
      %v7096 = vld [vmem:[%s6686 + $0x64] sm:$0xff]
      %v7097 = vld [vmem:[%s6686 + $0x84] sm:$0xff]
      %v7098 = vld [vmem:[%s6686 + $0x8c] sm:$0xff]
      %v7099 = vld [vmem:[%s6686 + $0xac] sm:$0xff]
      %v7100 = vld [vmem:[%s6686 + $0xb4] sm:$0xff]
      %v7101 = vld [vmem:[%s6686 + $0xd4] sm:$0xff]
      %v7102 = vld [vmem:[%s6686 + $0xdc] sm:$0xff]
      %v7103 = vld [vmem:[%s6686 + $0xfc] sm:$0xff]
      %v7104 = vld [vmem:[%s6686 + $0x104] sm:$0xff]
      %v7105 = vld [vmem:[%s6686 + $0x124] sm:$0xff]
      %v7106 = vld [vmem:[%s6686 + $0x12c] sm:$0xff]
      %v7107 = vld [vmem:[%s6686 + $0x14c] sm:$0xff]
      %v7108 = vld [vmem:[%s6686 + $0x154] sm:$0xff]
      %v7109 = vld [vmem:[%s6686 + $0x174] sm:$0xff]
      %v7110 = vld [vmem:[%s6686 + $0x17c] sm:$0xff]
      %v7111 = vld [vmem:[%s6686 + $0x19c] sm:$0xff]
      %v7112 = vld [vmem:[%s6686 + $0x1a4] sm:$0xff]
      %v7113 = vld [vmem:[%s6686 + $0x1c4] sm:$0xff]
      %v7114 = vld [vmem:[%s6686 + $0x1cc] sm:$0xff]
      %v7115 = vld [vmem:[%s6686 + $0x1ec] sm:$0xff]
      %v7116 = vld [vmem:[%s6686 + $0x1f4] sm:$0xff]
      %v7117 = vld [vmem:[%s6686 + $0x214] sm:$0xff]
      %v7118 = vld [vmem:[%s6686 + $0x21c] sm:$0xff]
      %v7119 = vld [vmem:[%s6686 + $0x23c] sm:$0xff]
      %v7120 = vld [vmem:[%s6686 + $0x244] sm:$0xff]
      %v7121 = vld [vmem:[%s6686 + $0x264] sm:$0xff]
      %v7122 = vld [vmem:[%s6686 + $0x26c] sm:$0xff]
      %v7123 = vld [vmem:[%s3 + $0x27] sm:$0x1]
      %v7124 = vlaneseq
      %v7125 = vshrl.u32 %v7124, 7
      %v7126 = vsub.s32 0, %v7125
      %v7127 = vrot.slane %v7123, %v7126
      %v7128 = vmul.f32 %v7091, %v7127
      %v7129 = vmul.f32 %v7092, %v7127
      %v7130 = vmul.f32 %v7093, %v7127
      %v7131 = vmul.f32 %v7094, %v7127
      %v7132 = vmul.f32 %v7095, %v7127
      %v7133 = vmul.f32 %v7096, %v7127
      %v7134 = vmul.f32 %v7097, %v7127
      %v7135 = vmul.f32 %v7098, %v7127
      %v7136 = vmul.f32 %v7099, %v7127
      %v7137 = vmul.f32 %v7100, %v7127
      %v7138 = vmul.f32 %v7101, %v7127
      %v7139 = vmul.f32 %v7102, %v7127
      %v7140 = vmul.f32 %v7103, %v7127
      %v7141 = vmul.f32 %v7104, %v7127
      %v7142 = vmul.f32 %v7105, %v7127
      %v7143 = vmul.f32 %v7106, %v7127
      %v7144 = vmul.f32 %v7107, %v7127
      %v7145 = vmul.f32 %v7108, %v7127
      %v7146 = vmul.f32 %v7109, %v7127
      %v7147 = vmul.f32 %v7110, %v7127
      %v7148 = vmul.f32 %v7111, %v7127
      %v7149 = vmul.f32 %v7112, %v7127
      %v7150 = vmul.f32 %v7113, %v7127
      %v7151 = vmul.f32 %v7114, %v7127
      %v7152 = vmul.f32 %v7115, %v7127
      %v7153 = vmul.f32 %v7116, %v7127
      %v7154 = vmul.f32 %v7117, %v7127
      %v7155 = vmul.f32 %v7118, %v7127
      %v7156 = vmul.f32 %v7119, %v7127
      %v7157 = vmul.f32 %v7120, %v7127
      %v7158 = vmul.f32 %v7121, %v7127
      %v7159 = vmul.f32 %v7122, %v7127
      %v7160 = vadd.f32 %v7059, %v7128
      %v7161 = vadd.f32 %v7060, %v7129
      %v7162 = vadd.f32 %v7061, %v7130
      %v7163 = vadd.f32 %v7062, %v7131
      %v7164 = vadd.f32 %v7063, %v7132
      %v7165 = vadd.f32 %v7064, %v7133
      %v7166 = vadd.f32 %v7065, %v7134
      %v7167 = vadd.f32 %v7066, %v7135
      %v7168 = vadd.f32 %v7067, %v7136
      %v7169 = vadd.f32 %v7068, %v7137
      %v7170 = vadd.f32 %v7069, %v7138
      %v7171 = vadd.f32 %v7070, %v7139
      %v7172 = vadd.f32 %v7071, %v7140
      %v7173 = vadd.f32 %v7072, %v7141
      %v7174 = vadd.f32 %v7073, %v7142
      %v7175 = vadd.f32 %v7074, %v7143
      %v7176 = vadd.f32 %v7075, %v7144
      %v7177 = vadd.f32 %v7076, %v7145
      %v7178 = vadd.f32 %v7077, %v7146
      %v7179 = vadd.f32 %v7078, %v7147
      %v7180 = vadd.f32 %v7079, %v7148
      %v7181 = vadd.f32 %v7080, %v7149
      %v7182 = vadd.f32 %v7081, %v7150
      %v7183 = vadd.f32 %v7082, %v7151
      %v7184 = vadd.f32 %v7083, %v7152
      %v7185 = vadd.f32 %v7084, %v7153
      %v7186 = vadd.f32 %v7085, %v7154
      %v7187 = vadd.f32 %v7086, %v7155
      %v7188 = vadd.f32 %v7087, %v7156
      %v7189 = vadd.f32 %v7088, %v7157
      %v7190 = vadd.f32 %v7089, %v7158
      %v7191 = vadd.f32 %v7090, %v7159
      %v7192 = vld [vmem:[%s6686 + $0xf] sm:$0xff]
      %v7193 = vld [vmem:[%s6686 + $0x17] sm:$0xff]
      %v7194 = vld [vmem:[%s6686 + $0x37] sm:$0xff]
      %v7195 = vld [vmem:[%s6686 + $0x3f] sm:$0xff]
      %v7196 = vld [vmem:[%s6686 + $0x5f] sm:$0xff]
      %v7197 = vld [vmem:[%s6686 + $0x67] sm:$0xff]
      %v7198 = vld [vmem:[%s6686 + $0x87] sm:$0xff]
      %v7199 = vld [vmem:[%s6686 + $0x8f] sm:$0xff]
      %v7200 = vld [vmem:[%s6686 + $0xaf] sm:$0xff]
      %v7201 = vld [vmem:[%s6686 + $0xb7] sm:$0xff]
      %v7202 = vld [vmem:[%s6686 + $0xd7] sm:$0xff]
      %v7203 = vld [vmem:[%s6686 + $0xdf] sm:$0xff]
      %v7204 = vld [vmem:[%s6686 + $0xff] sm:$0xff]
      %v7205 = vld [vmem:[%s6686 + $0x107] sm:$0xff]
      %v7206 = vld [vmem:[%s6686 + $0x127] sm:$0xff]
      %v7207 = vld [vmem:[%s6686 + $0x12f] sm:$0xff]
      %v7208 = vld [vmem:[%s6686 + $0x14f] sm:$0xff]
      %v7209 = vld [vmem:[%s6686 + $0x157] sm:$0xff]
      %v7210 = vld [vmem:[%s6686 + $0x177] sm:$0xff]
      %v7211 = vld [vmem:[%s6686 + $0x17f] sm:$0xff]
      %v7212 = vld [vmem:[%s6686 + $0x19f] sm:$0xff]
      %v7213 = vld [vmem:[%s6686 + $0x1a7] sm:$0xff]
      %v7214 = vld [vmem:[%s6686 + $0x1c7] sm:$0xff]
      %v7215 = vld [vmem:[%s6686 + $0x1cf] sm:$0xff]
      %v7216 = vld [vmem:[%s6686 + $0x1ef] sm:$0xff]
      %v7217 = vld [vmem:[%s6686 + $0x1f7] sm:$0xff]
      %v7218 = vld [vmem:[%s6686 + $0x217] sm:$0xff]
      %v7219 = vld [vmem:[%s6686 + $0x21f] sm:$0xff]
      %v7220 = vld [vmem:[%s6686 + $0x23f] sm:$0xff]
      %v7221 = vld [vmem:[%s6686 + $0x247] sm:$0xff]
      %v7222 = vld [vmem:[%s6686 + $0x267] sm:$0xff]
      %v7223 = vld [vmem:[%s6686 + $0x26f] sm:$0xff]
      %v7224 = vld [vmem:[%s3 + $0x28] sm:$0x1]
      %v7225 = vlaneseq
      %v7226 = vshrl.u32 %v7225, 7
      %v7227 = vsub.s32 0, %v7226
      %v7228 = vrot.slane %v7224, %v7227
      %v7229 = vmul.f32 %v7192, %v7228
      %v7230 = vmul.f32 %v7193, %v7228
      %v7231 = vmul.f32 %v7194, %v7228
      %v7232 = vmul.f32 %v7195, %v7228
      %v7233 = vmul.f32 %v7196, %v7228
      %v7234 = vmul.f32 %v7197, %v7228
      %v7235 = vmul.f32 %v7198, %v7228
      %v7236 = vmul.f32 %v7199, %v7228
      %v7237 = vmul.f32 %v7200, %v7228
      %v7238 = vmul.f32 %v7201, %v7228
      %v7239 = vmul.f32 %v7202, %v7228
      %v7240 = vmul.f32 %v7203, %v7228
      %v7241 = vmul.f32 %v7204, %v7228
      %v7242 = vmul.f32 %v7205, %v7228
      %v7243 = vmul.f32 %v7206, %v7228
      %v7244 = vmul.f32 %v7207, %v7228
      %v7245 = vmul.f32 %v7208, %v7228
      %v7246 = vmul.f32 %v7209, %v7228
      %v7247 = vmul.f32 %v7210, %v7228
      %v7248 = vmul.f32 %v7211, %v7228
      %v7249 = vmul.f32 %v7212, %v7228
      %v7250 = vmul.f32 %v7213, %v7228
      %v7251 = vmul.f32 %v7214, %v7228
      %v7252 = vmul.f32 %v7215, %v7228
      %v7253 = vmul.f32 %v7216, %v7228
      %v7254 = vmul.f32 %v7217, %v7228
      %v7255 = vmul.f32 %v7218, %v7228
      %v7256 = vmul.f32 %v7219, %v7228
      %v7257 = vmul.f32 %v7220, %v7228
      %v7258 = vmul.f32 %v7221, %v7228
      %v7259 = vmul.f32 %v7222, %v7228
      %v7260 = vmul.f32 %v7223, %v7228
      %v7261 = vadd.f32 %v7160, %v7229
      %v7262 = vadd.f32 %v7161, %v7230
      %v7263 = vadd.f32 %v7162, %v7231
      %v7264 = vadd.f32 %v7163, %v7232
      %v7265 = vadd.f32 %v7164, %v7233
      %v7266 = vadd.f32 %v7165, %v7234
      %v7267 = vadd.f32 %v7166, %v7235
      %v7268 = vadd.f32 %v7167, %v7236
      %v7269 = vadd.f32 %v7168, %v7237
      %v7270 = vadd.f32 %v7169, %v7238
      %v7271 = vadd.f32 %v7170, %v7239
      %v7272 = vadd.f32 %v7171, %v7240
      %v7273 = vadd.f32 %v7172, %v7241
      %v7274 = vadd.f32 %v7173, %v7242
      %v7275 = vadd.f32 %v7174, %v7243
      %v7276 = vadd.f32 %v7175, %v7244
      %v7277 = vadd.f32 %v7176, %v7245
      %v7278 = vadd.f32 %v7177, %v7246
      %v7279 = vadd.f32 %v7178, %v7247
      %v7280 = vadd.f32 %v7179, %v7248
      %v7281 = vadd.f32 %v7180, %v7249
      %v7282 = vadd.f32 %v7181, %v7250
      %v7283 = vadd.f32 %v7182, %v7251
      %v7284 = vadd.f32 %v7183, %v7252
      %v7285 = vadd.f32 %v7184, %v7253
      %v7286 = vadd.f32 %v7185, %v7254
      %v7287 = vadd.f32 %v7186, %v7255
      %v7288 = vadd.f32 %v7187, %v7256
      %v7289 = vadd.f32 %v7188, %v7257
      %v7290 = vadd.f32 %v7189, %v7258
      %v7291 = vadd.f32 %v7190, %v7259
      %v7292 = vadd.f32 %v7191, %v7260
      %v7293 = vld [vmem:[%s6686 + $0x12] sm:$0xff]
      %v7294 = vld [vmem:[%s6686 + $0x1a] sm:$0xff]
      %v7295 = vld [vmem:[%s6686 + $0x3a] sm:$0xff]
      %v7296 = vld [vmem:[%s6686 + $0x42] sm:$0xff]
      %v7297 = vld [vmem:[%s6686 + $0x62] sm:$0xff]
      %v7298 = vld [vmem:[%s6686 + $0x6a] sm:$0xff]
      %v7299 = vld [vmem:[%s6686 + $0x8a] sm:$0xff]
      %v7300 = vld [vmem:[%s6686 + $0x92] sm:$0xff]
      %v7301 = vld [vmem:[%s6686 + $0xb2] sm:$0xff]
      %v7302 = vld [vmem:[%s6686 + $0xba] sm:$0xff]
      %v7303 = vld [vmem:[%s6686 + $0xda] sm:$0xff]
      %v7304 = vld [vmem:[%s6686 + $0xe2] sm:$0xff]
      %v7305 = vld [vmem:[%s6686 + $0x102] sm:$0xff]
      %v7306 = vld [vmem:[%s6686 + $0x10a] sm:$0xff]
      %v7307 = vld [vmem:[%s6686 + $0x12a] sm:$0xff]
      %v7308 = vld [vmem:[%s6686 + $0x132] sm:$0xff]
      %v7309 = vld [vmem:[%s6686 + $0x152] sm:$0xff]
      %v7310 = vld [vmem:[%s6686 + $0x15a] sm:$0xff]
      %v7311 = vld [vmem:[%s6686 + $0x17a] sm:$0xff]
      %v7312 = vld [vmem:[%s6686 + $0x182] sm:$0xff]
      %v7313 = vld [vmem:[%s6686 + $0x1a2] sm:$0xff]
      %v7314 = vld [vmem:[%s6686 + $0x1aa] sm:$0xff]
      %v7315 = vld [vmem:[%s6686 + $0x1ca] sm:$0xff]
      %v7316 = vld [vmem:[%s6686 + $0x1d2] sm:$0xff]
      %v7317 = vld [vmem:[%s6686 + $0x1f2] sm:$0xff]
      %v7318 = vld [vmem:[%s6686 + $0x1fa] sm:$0xff]
      %v7319 = vld [vmem:[%s6686 + $0x21a] sm:$0xff]
      %v7320 = vld [vmem:[%s6686 + $0x222] sm:$0xff]
      %v7321 = vld [vmem:[%s6686 + $0x242] sm:$0xff]
      %v7322 = vld [vmem:[%s6686 + $0x24a] sm:$0xff]
      %v7323 = vld [vmem:[%s6686 + $0x26a] sm:$0xff]
      %v7324 = vld [vmem:[%s6686 + $0x272] sm:$0xff]
      %v7325 = vld [vmem:[%s3 + $0x29] sm:$0x1]
      %v7326 = vlaneseq
      %v7327 = vshrl.u32 %v7326, 7
      %v7328 = vsub.s32 0, %v7327
      %v7329 = vrot.slane %v7325, %v7328
      %v7330 = vmul.f32 %v7293, %v7329
      %v7331 = vmul.f32 %v7294, %v7329
      %v7332 = vmul.f32 %v7295, %v7329
      %v7333 = vmul.f32 %v7296, %v7329
      %v7334 = vmul.f32 %v7297, %v7329
      %v7335 = vmul.f32 %v7298, %v7329
      %v7336 = vmul.f32 %v7299, %v7329
      %v7337 = vmul.f32 %v7300, %v7329
      %v7338 = vmul.f32 %v7301, %v7329
      %v7339 = vmul.f32 %v7302, %v7329
      %v7340 = vmul.f32 %v7303, %v7329
      %v7341 = vmul.f32 %v7304, %v7329
      %v7342 = vmul.f32 %v7305, %v7329
      %v7343 = vmul.f32 %v7306, %v7329
      %v7344 = vmul.f32 %v7307, %v7329
      %v7345 = vmul.f32 %v7308, %v7329
      %v7346 = vmul.f32 %v7309, %v7329
      %v7347 = vmul.f32 %v7310, %v7329
      %v7348 = vmul.f32 %v7311, %v7329
      %v7349 = vmul.f32 %v7312, %v7329
      %v7350 = vmul.f32 %v7313, %v7329
      %v7351 = vmul.f32 %v7314, %v7329
      %v7352 = vmul.f32 %v7315, %v7329
      %v7353 = vmul.f32 %v7316, %v7329
      %v7354 = vmul.f32 %v7317, %v7329
      %v7355 = vmul.f32 %v7318, %v7329
      %v7356 = vmul.f32 %v7319, %v7329
      %v7357 = vmul.f32 %v7320, %v7329
      %v7358 = vmul.f32 %v7321, %v7329
      %v7359 = vmul.f32 %v7322, %v7329
      %v7360 = vmul.f32 %v7323, %v7329
      %v7361 = vmul.f32 %v7324, %v7329
      %v7362 = vadd.f32 %v7261, %v7330
      %v7363 = vadd.f32 %v7262, %v7331
      %v7364 = vadd.f32 %v7263, %v7332
      %v7365 = vadd.f32 %v7264, %v7333
      %v7366 = vadd.f32 %v7265, %v7334
      %v7367 = vadd.f32 %v7266, %v7335
      %v7368 = vadd.f32 %v7267, %v7336
      %v7369 = vadd.f32 %v7268, %v7337
      %v7370 = vadd.f32 %v7269, %v7338
      %v7371 = vadd.f32 %v7270, %v7339
      %v7372 = vadd.f32 %v7271, %v7340
      %v7373 = vadd.f32 %v7272, %v7341
      %v7374 = vadd.f32 %v7273, %v7342
      %v7375 = vadd.f32 %v7274, %v7343
      %v7376 = vadd.f32 %v7275, %v7344
      %v7377 = vadd.f32 %v7276, %v7345
      %v7378 = vadd.f32 %v7277, %v7346
      %v7379 = vadd.f32 %v7278, %v7347
      %v7380 = vadd.f32 %v7279, %v7348
      %v7381 = vadd.f32 %v7280, %v7349
      %v7382 = vadd.f32 %v7281, %v7350
      %v7383 = vadd.f32 %v7282, %v7351
      %v7384 = vadd.f32 %v7283, %v7352
      %v7385 = vadd.f32 %v7284, %v7353
      %v7386 = vadd.f32 %v7285, %v7354
      %v7387 = vadd.f32 %v7286, %v7355
      %v7388 = vadd.f32 %v7287, %v7356
      %v7389 = vadd.f32 %v7288, %v7357
      %v7390 = vadd.f32 %v7289, %v7358
      %v7391 = vadd.f32 %v7290, %v7359
      %v7392 = vadd.f32 %v7291, %v7360
      %v7393 = vadd.f32 %v7292, %v7361
      %s7394 = scalar_lea.vmem [#allocation3], 720
      %v7395 = vld [vmem:[%s7394] sm:$0xff]
      %v7396 = vld [vmem:[%s7394 + $0x8] sm:$0xff]
      %v7397 = vld [vmem:[%s7394 + $0x28] sm:$0xff]
      %v7398 = vld [vmem:[%s7394 + $0x30] sm:$0xff]
      %v7399 = vld [vmem:[%s7394 + $0x50] sm:$0xff]
      %v7400 = vld [vmem:[%s7394 + $0x58] sm:$0xff]
      %v7401 = vld [vmem:[%s7394 + $0x78] sm:$0xff]
      %v7402 = vld [vmem:[%s7394 + $0x80] sm:$0xff]
      %v7403 = vld [vmem:[%s7394 + $0xa0] sm:$0xff]
      %v7404 = vld [vmem:[%s7394 + $0xa8] sm:$0xff]
      %v7405 = vld [vmem:[%s7394 + $0xc8] sm:$0xff]
      %v7406 = vld [vmem:[%s7394 + $0xd0] sm:$0xff]
      %v7407 = vld [vmem:[%s7394 + $0xf0] sm:$0xff]
      %v7408 = vld [vmem:[%s7394 + $0xf8] sm:$0xff]
      %v7409 = vld [vmem:[%s7394 + $0x118] sm:$0xff]
      %v7410 = vld [vmem:[%s7394 + $0x120] sm:$0xff]
      %v7411 = vld [vmem:[%s7394 + $0x140] sm:$0xff]
      %v7412 = vld [vmem:[%s7394 + $0x148] sm:$0xff]
      %v7413 = vld [vmem:[%s7394 + $0x168] sm:$0xff]
      %v7414 = vld [vmem:[%s7394 + $0x170] sm:$0xff]
      %v7415 = vld [vmem:[%s7394 + $0x190] sm:$0xff]
      %v7416 = vld [vmem:[%s7394 + $0x198] sm:$0xff]
      %v7417 = vld [vmem:[%s7394 + $0x1b8] sm:$0xff]
      %v7418 = vld [vmem:[%s7394 + $0x1c0] sm:$0xff]
      %v7419 = vld [vmem:[%s7394 + $0x1e0] sm:$0xff]
      %v7420 = vld [vmem:[%s7394 + $0x1e8] sm:$0xff]
      %v7421 = vld [vmem:[%s7394 + $0x208] sm:$0xff]
      %v7422 = vld [vmem:[%s7394 + $0x210] sm:$0xff]
      %v7423 = vld [vmem:[%s7394 + $0x230] sm:$0xff]
      %v7424 = vld [vmem:[%s7394 + $0x238] sm:$0xff]
      %v7425 = vld [vmem:[%s7394 + $0x258] sm:$0xff]
      %v7426 = vld [vmem:[%s7394 + $0x260] sm:$0xff]
      %v7427 = vld [vmem:[%s3 + $0x2a] sm:$0x1]
      %v7428 = vlaneseq
      %v7429 = vshrl.u32 %v7428, 7
      %v7430 = vsub.s32 0, %v7429
      %v7431 = vrot.slane %v7427, %v7430
      %v7432 = vmul.f32 %v7395, %v7431
      %v7433 = vmul.f32 %v7396, %v7431
      %v7434 = vmul.f32 %v7397, %v7431
      %v7435 = vmul.f32 %v7398, %v7431
      %v7436 = vmul.f32 %v7399, %v7431
      %v7437 = vmul.f32 %v7400, %v7431
      %v7438 = vmul.f32 %v7401, %v7431
      %v7439 = vmul.f32 %v7402, %v7431
      %v7440 = vmul.f32 %v7403, %v7431
      %v7441 = vmul.f32 %v7404, %v7431
      %v7442 = vmul.f32 %v7405, %v7431
      %v7443 = vmul.f32 %v7406, %v7431
      %v7444 = vmul.f32 %v7407, %v7431
      %v7445 = vmul.f32 %v7408, %v7431
      %v7446 = vmul.f32 %v7409, %v7431
      %v7447 = vmul.f32 %v7410, %v7431
      %v7448 = vmul.f32 %v7411, %v7431
      %v7449 = vmul.f32 %v7412, %v7431
      %v7450 = vmul.f32 %v7413, %v7431
      %v7451 = vmul.f32 %v7414, %v7431
      %v7452 = vmul.f32 %v7415, %v7431
      %v7453 = vmul.f32 %v7416, %v7431
      %v7454 = vmul.f32 %v7417, %v7431
      %v7455 = vmul.f32 %v7418, %v7431
      %v7456 = vmul.f32 %v7419, %v7431
      %v7457 = vmul.f32 %v7420, %v7431
      %v7458 = vmul.f32 %v7421, %v7431
      %v7459 = vmul.f32 %v7422, %v7431
      %v7460 = vmul.f32 %v7423, %v7431
      %v7461 = vmul.f32 %v7424, %v7431
      %v7462 = vmul.f32 %v7425, %v7431
      %v7463 = vmul.f32 %v7426, %v7431
      %v7464 = vadd.f32 %v7362, %v7432
      %v7465 = vadd.f32 %v7363, %v7433
      %v7466 = vadd.f32 %v7364, %v7434
      %v7467 = vadd.f32 %v7365, %v7435
      %v7468 = vadd.f32 %v7366, %v7436
      %v7469 = vadd.f32 %v7367, %v7437
      %v7470 = vadd.f32 %v7368, %v7438
      %v7471 = vadd.f32 %v7369, %v7439
      %v7472 = vadd.f32 %v7370, %v7440
      %v7473 = vadd.f32 %v7371, %v7441
      %v7474 = vadd.f32 %v7372, %v7442
      %v7475 = vadd.f32 %v7373, %v7443
      %v7476 = vadd.f32 %v7374, %v7444
      %v7477 = vadd.f32 %v7375, %v7445
      %v7478 = vadd.f32 %v7376, %v7446
      %v7479 = vadd.f32 %v7377, %v7447
      %v7480 = vadd.f32 %v7378, %v7448
      %v7481 = vadd.f32 %v7379, %v7449
      %v7482 = vadd.f32 %v7380, %v7450
      %v7483 = vadd.f32 %v7381, %v7451
      %v7484 = vadd.f32 %v7382, %v7452
      %v7485 = vadd.f32 %v7383, %v7453
      %v7486 = vadd.f32 %v7384, %v7454
      %v7487 = vadd.f32 %v7385, %v7455
      %v7488 = vadd.f32 %v7386, %v7456
      %v7489 = vadd.f32 %v7387, %v7457
      %v7490 = vadd.f32 %v7388, %v7458
      %v7491 = vadd.f32 %v7389, %v7459
      %v7492 = vadd.f32 %v7390, %v7460
      %v7493 = vadd.f32 %v7391, %v7461
      %v7494 = vadd.f32 %v7392, %v7462
      %v7495 = vadd.f32 %v7393, %v7463
      %v7496 = vld [vmem:[%s7394 + $0x3] sm:$0xff]
      %v7497 = vld [vmem:[%s7394 + $0xb] sm:$0xff]
      %v7498 = vld [vmem:[%s7394 + $0x2b] sm:$0xff]
      %v7499 = vld [vmem:[%s7394 + $0x33] sm:$0xff]
      %v7500 = vld [vmem:[%s7394 + $0x53] sm:$0xff]
      %v7501 = vld [vmem:[%s7394 + $0x5b] sm:$0xff]
      %v7502 = vld [vmem:[%s7394 + $0x7b] sm:$0xff]
      %v7503 = vld [vmem:[%s7394 + $0x83] sm:$0xff]
      %v7504 = vld [vmem:[%s7394 + $0xa3] sm:$0xff]
      %v7505 = vld [vmem:[%s7394 + $0xab] sm:$0xff]
      %v7506 = vld [vmem:[%s7394 + $0xcb] sm:$0xff]
      %v7507 = vld [vmem:[%s7394 + $0xd3] sm:$0xff]
      %v7508 = vld [vmem:[%s7394 + $0xf3] sm:$0xff]
      %v7509 = vld [vmem:[%s7394 + $0xfb] sm:$0xff]
      %v7510 = vld [vmem:[%s7394 + $0x11b] sm:$0xff]
      %v7511 = vld [vmem:[%s7394 + $0x123] sm:$0xff]
      %v7512 = vld [vmem:[%s7394 + $0x143] sm:$0xff]
      %v7513 = vld [vmem:[%s7394 + $0x14b] sm:$0xff]
      %v7514 = vld [vmem:[%s7394 + $0x16b] sm:$0xff]
      %v7515 = vld [vmem:[%s7394 + $0x173] sm:$0xff]
      %v7516 = vld [vmem:[%s7394 + $0x193] sm:$0xff]
      %v7517 = vld [vmem:[%s7394 + $0x19b] sm:$0xff]
      %v7518 = vld [vmem:[%s7394 + $0x1bb] sm:$0xff]
      %v7519 = vld [vmem:[%s7394 + $0x1c3] sm:$0xff]
      %v7520 = vld [vmem:[%s7394 + $0x1e3] sm:$0xff]
      %v7521 = vld [vmem:[%s7394 + $0x1eb] sm:$0xff]
      %v7522 = vld [vmem:[%s7394 + $0x20b] sm:$0xff]
      %v7523 = vld [vmem:[%s7394 + $0x213] sm:$0xff]
      %v7524 = vld [vmem:[%s7394 + $0x233] sm:$0xff]
      %v7525 = vld [vmem:[%s7394 + $0x23b] sm:$0xff]
      %v7526 = vld [vmem:[%s7394 + $0x25b] sm:$0xff]
      %v7527 = vld [vmem:[%s7394 + $0x263] sm:$0xff]
      %v7528 = vld [vmem:[%s3 + $0x2b] sm:$0x1]
      %v7529 = vlaneseq
      %v7530 = vshrl.u32 %v7529, 7
      %v7531 = vsub.s32 0, %v7530
      %v7532 = vrot.slane %v7528, %v7531
      %v7533 = vmul.f32 %v7496, %v7532
      %v7534 = vmul.f32 %v7497, %v7532
      %v7535 = vmul.f32 %v7498, %v7532
      %v7536 = vmul.f32 %v7499, %v7532
      %v7537 = vmul.f32 %v7500, %v7532
      %v7538 = vmul.f32 %v7501, %v7532
      %v7539 = vmul.f32 %v7502, %v7532
      %v7540 = vmul.f32 %v7503, %v7532
      %v7541 = vmul.f32 %v7504, %v7532
      %v7542 = vmul.f32 %v7505, %v7532
      %v7543 = vmul.f32 %v7506, %v7532
      %v7544 = vmul.f32 %v7507, %v7532
      %v7545 = vmul.f32 %v7508, %v7532
      %v7546 = vmul.f32 %v7509, %v7532
      %v7547 = vmul.f32 %v7510, %v7532
      %v7548 = vmul.f32 %v7511, %v7532
      %v7549 = vmul.f32 %v7512, %v7532
      %v7550 = vmul.f32 %v7513, %v7532
      %v7551 = vmul.f32 %v7514, %v7532
      %v7552 = vmul.f32 %v7515, %v7532
      %v7553 = vmul.f32 %v7516, %v7532
      %v7554 = vmul.f32 %v7517, %v7532
      %v7555 = vmul.f32 %v7518, %v7532
      %v7556 = vmul.f32 %v7519, %v7532
      %v7557 = vmul.f32 %v7520, %v7532
      %v7558 = vmul.f32 %v7521, %v7532
      %v7559 = vmul.f32 %v7522, %v7532
      %v7560 = vmul.f32 %v7523, %v7532
      %v7561 = vmul.f32 %v7524, %v7532
      %v7562 = vmul.f32 %v7525, %v7532
      %v7563 = vmul.f32 %v7526, %v7532
      %v7564 = vmul.f32 %v7527, %v7532
      %v7565 = vadd.f32 %v7464, %v7533
      %v7566 = vadd.f32 %v7465, %v7534
      %v7567 = vadd.f32 %v7466, %v7535
      %v7568 = vadd.f32 %v7467, %v7536
      %v7569 = vadd.f32 %v7468, %v7537
      %v7570 = vadd.f32 %v7469, %v7538
      %v7571 = vadd.f32 %v7470, %v7539
      %v7572 = vadd.f32 %v7471, %v7540
      %v7573 = vadd.f32 %v7472, %v7541
      %v7574 = vadd.f32 %v7473, %v7542
      %v7575 = vadd.f32 %v7474, %v7543
      %v7576 = vadd.f32 %v7475, %v7544
      %v7577 = vadd.f32 %v7476, %v7545
      %v7578 = vadd.f32 %v7477, %v7546
      %v7579 = vadd.f32 %v7478, %v7547
      %v7580 = vadd.f32 %v7479, %v7548
      %v7581 = vadd.f32 %v7480, %v7549
      %v7582 = vadd.f32 %v7481, %v7550
      %v7583 = vadd.f32 %v7482, %v7551
      %v7584 = vadd.f32 %v7483, %v7552
      %v7585 = vadd.f32 %v7484, %v7553
      %v7586 = vadd.f32 %v7485, %v7554
      %v7587 = vadd.f32 %v7486, %v7555
      %v7588 = vadd.f32 %v7487, %v7556
      %v7589 = vadd.f32 %v7488, %v7557
      %v7590 = vadd.f32 %v7489, %v7558
      %v7591 = vadd.f32 %v7490, %v7559
      %v7592 = vadd.f32 %v7491, %v7560
      %v7593 = vadd.f32 %v7492, %v7561
      %v7594 = vadd.f32 %v7493, %v7562
      %v7595 = vadd.f32 %v7494, %v7563
      %v7596 = vadd.f32 %v7495, %v7564
      %v7597 = vld [vmem:[%s7394 + $0x6] sm:$0xff]
      %v7598 = vld [vmem:[%s7394 + $0xe] sm:$0xff]
      %v7599 = vld [vmem:[%s7394 + $0x2e] sm:$0xff]
      %v7600 = vld [vmem:[%s7394 + $0x36] sm:$0xff]
      %v7601 = vld [vmem:[%s7394 + $0x56] sm:$0xff]
      %v7602 = vld [vmem:[%s7394 + $0x5e] sm:$0xff]
      %v7603 = vld [vmem:[%s7394 + $0x7e] sm:$0xff]
      %v7604 = vld [vmem:[%s7394 + $0x86] sm:$0xff]
      %v7605 = vld [vmem:[%s7394 + $0xa6] sm:$0xff]
      %v7606 = vld [vmem:[%s7394 + $0xae] sm:$0xff]
      %v7607 = vld [vmem:[%s7394 + $0xce] sm:$0xff]
      %v7608 = vld [vmem:[%s7394 + $0xd6] sm:$0xff]
      %v7609 = vld [vmem:[%s7394 + $0xf6] sm:$0xff]
      %v7610 = vld [vmem:[%s7394 + $0xfe] sm:$0xff]
      %v7611 = vld [vmem:[%s7394 + $0x11e] sm:$0xff]
      %v7612 = vld [vmem:[%s7394 + $0x126] sm:$0xff]
      %v7613 = vld [vmem:[%s7394 + $0x146] sm:$0xff]
      %v7614 = vld [vmem:[%s7394 + $0x14e] sm:$0xff]
      %v7615 = vld [vmem:[%s7394 + $0x16e] sm:$0xff]
      %v7616 = vld [vmem:[%s7394 + $0x176] sm:$0xff]
      %v7617 = vld [vmem:[%s7394 + $0x196] sm:$0xff]
      %v7618 = vld [vmem:[%s7394 + $0x19e] sm:$0xff]
      %v7619 = vld [vmem:[%s7394 + $0x1be] sm:$0xff]
      %v7620 = vld [vmem:[%s7394 + $0x1c6] sm:$0xff]
      %v7621 = vld [vmem:[%s7394 + $0x1e6] sm:$0xff]
      %v7622 = vld [vmem:[%s7394 + $0x1ee] sm:$0xff]
      %v7623 = vld [vmem:[%s7394 + $0x20e] sm:$0xff]
      %v7624 = vld [vmem:[%s7394 + $0x216] sm:$0xff]
      %v7625 = vld [vmem:[%s7394 + $0x236] sm:$0xff]
      %v7626 = vld [vmem:[%s7394 + $0x23e] sm:$0xff]
      %v7627 = vld [vmem:[%s7394 + $0x25e] sm:$0xff]
      %v7628 = vld [vmem:[%s7394 + $0x266] sm:$0xff]
      %v7629 = vld [vmem:[%s3 + $0x2c] sm:$0x1]
      %v7630 = vlaneseq
      %v7631 = vshrl.u32 %v7630, 7
      %v7632 = vsub.s32 0, %v7631
      %v7633 = vrot.slane %v7629, %v7632
      %v7634 = vmul.f32 %v7597, %v7633
      %v7635 = vmul.f32 %v7598, %v7633
      %v7636 = vmul.f32 %v7599, %v7633
      %v7637 = vmul.f32 %v7600, %v7633
      %v7638 = vmul.f32 %v7601, %v7633
      %v7639 = vmul.f32 %v7602, %v7633
      %v7640 = vmul.f32 %v7603, %v7633
      %v7641 = vmul.f32 %v7604, %v7633
      %v7642 = vmul.f32 %v7605, %v7633
      %v7643 = vmul.f32 %v7606, %v7633
      %v7644 = vmul.f32 %v7607, %v7633
      %v7645 = vmul.f32 %v7608, %v7633
      %v7646 = vmul.f32 %v7609, %v7633
      %v7647 = vmul.f32 %v7610, %v7633
      %v7648 = vmul.f32 %v7611, %v7633
      %v7649 = vmul.f32 %v7612, %v7633
      %v7650 = vmul.f32 %v7613, %v7633
      %v7651 = vmul.f32 %v7614, %v7633
      %v7652 = vmul.f32 %v7615, %v7633
      %v7653 = vmul.f32 %v7616, %v7633
      %v7654 = vmul.f32 %v7617, %v7633
      %v7655 = vmul.f32 %v7618, %v7633
      %v7656 = vmul.f32 %v7619, %v7633
      %v7657 = vmul.f32 %v7620, %v7633
      %v7658 = vmul.f32 %v7621, %v7633
      %v7659 = vmul.f32 %v7622, %v7633
      %v7660 = vmul.f32 %v7623, %v7633
      %v7661 = vmul.f32 %v7624, %v7633
      %v7662 = vmul.f32 %v7625, %v7633
      %v7663 = vmul.f32 %v7626, %v7633
      %v7664 = vmul.f32 %v7627, %v7633
      %v7665 = vmul.f32 %v7628, %v7633
      %v7666 = vadd.f32 %v7565, %v7634
      %v7667 = vadd.f32 %v7566, %v7635
      %v7668 = vadd.f32 %v7567, %v7636
      %v7669 = vadd.f32 %v7568, %v7637
      %v7670 = vadd.f32 %v7569, %v7638
      %v7671 = vadd.f32 %v7570, %v7639
      %v7672 = vadd.f32 %v7571, %v7640
      %v7673 = vadd.f32 %v7572, %v7641
      %v7674 = vadd.f32 %v7573, %v7642
      %v7675 = vadd.f32 %v7574, %v7643
      %v7676 = vadd.f32 %v7575, %v7644
      %v7677 = vadd.f32 %v7576, %v7645
      %v7678 = vadd.f32 %v7577, %v7646
      %v7679 = vadd.f32 %v7578, %v7647
      %v7680 = vadd.f32 %v7579, %v7648
      %v7681 = vadd.f32 %v7580, %v7649
      %v7682 = vadd.f32 %v7581, %v7650
      %v7683 = vadd.f32 %v7582, %v7651
      %v7684 = vadd.f32 %v7583, %v7652
      %v7685 = vadd.f32 %v7584, %v7653
      %v7686 = vadd.f32 %v7585, %v7654
      %v7687 = vadd.f32 %v7586, %v7655
      %v7688 = vadd.f32 %v7587, %v7656
      %v7689 = vadd.f32 %v7588, %v7657
      %v7690 = vadd.f32 %v7589, %v7658
      %v7691 = vadd.f32 %v7590, %v7659
      %v7692 = vadd.f32 %v7591, %v7660
      %v7693 = vadd.f32 %v7592, %v7661
      %v7694 = vadd.f32 %v7593, %v7662
      %v7695 = vadd.f32 %v7594, %v7663
      %v7696 = vadd.f32 %v7595, %v7664
      %v7697 = vadd.f32 %v7596, %v7665
      %v7698 = vld [vmem:[%s7394 + $0x9] sm:$0xff]
      %v7699 = vld [vmem:[%s7394 + $0x11] sm:$0xff]
      %v7700 = vld [vmem:[%s7394 + $0x31] sm:$0xff]
      %v7701 = vld [vmem:[%s7394 + $0x39] sm:$0xff]
      %v7702 = vld [vmem:[%s7394 + $0x59] sm:$0xff]
      %v7703 = vld [vmem:[%s7394 + $0x61] sm:$0xff]
      %v7704 = vld [vmem:[%s7394 + $0x81] sm:$0xff]
      %v7705 = vld [vmem:[%s7394 + $0x89] sm:$0xff]
      %v7706 = vld [vmem:[%s7394 + $0xa9] sm:$0xff]
      %v7707 = vld [vmem:[%s7394 + $0xb1] sm:$0xff]
      %v7708 = vld [vmem:[%s7394 + $0xd1] sm:$0xff]
      %v7709 = vld [vmem:[%s7394 + $0xd9] sm:$0xff]
      %v7710 = vld [vmem:[%s7394 + $0xf9] sm:$0xff]
      %v7711 = vld [vmem:[%s7394 + $0x101] sm:$0xff]
      %v7712 = vld [vmem:[%s7394 + $0x121] sm:$0xff]
      %v7713 = vld [vmem:[%s7394 + $0x129] sm:$0xff]
      %v7714 = vld [vmem:[%s7394 + $0x149] sm:$0xff]
      %v7715 = vld [vmem:[%s7394 + $0x151] sm:$0xff]
      %v7716 = vld [vmem:[%s7394 + $0x171] sm:$0xff]
      %v7717 = vld [vmem:[%s7394 + $0x179] sm:$0xff]
      %v7718 = vld [vmem:[%s7394 + $0x199] sm:$0xff]
      %v7719 = vld [vmem:[%s7394 + $0x1a1] sm:$0xff]
      %v7720 = vld [vmem:[%s7394 + $0x1c1] sm:$0xff]
      %v7721 = vld [vmem:[%s7394 + $0x1c9] sm:$0xff]
      %v7722 = vld [vmem:[%s7394 + $0x1e9] sm:$0xff]
      %v7723 = vld [vmem:[%s7394 + $0x1f1] sm:$0xff]
      %v7724 = vld [vmem:[%s7394 + $0x211] sm:$0xff]
      %v7725 = vld [vmem:[%s7394 + $0x219] sm:$0xff]
      %v7726 = vld [vmem:[%s7394 + $0x239] sm:$0xff]
      %v7727 = vld [vmem:[%s7394 + $0x241] sm:$0xff]
      %v7728 = vld [vmem:[%s7394 + $0x261] sm:$0xff]
      %v7729 = vld [vmem:[%s7394 + $0x269] sm:$0xff]
      %v7730 = vld [vmem:[%s3 + $0x2d] sm:$0x1]
      %v7731 = vlaneseq
      %v7732 = vshrl.u32 %v7731, 7
      %v7733 = vsub.s32 0, %v7732
      %v7734 = vrot.slane %v7730, %v7733
      %v7735 = vmul.f32 %v7698, %v7734
      %v7736 = vmul.f32 %v7699, %v7734
      %v7737 = vmul.f32 %v7700, %v7734
      %v7738 = vmul.f32 %v7701, %v7734
      %v7739 = vmul.f32 %v7702, %v7734
      %v7740 = vmul.f32 %v7703, %v7734
      %v7741 = vmul.f32 %v7704, %v7734
      %v7742 = vmul.f32 %v7705, %v7734
      %v7743 = vmul.f32 %v7706, %v7734
      %v7744 = vmul.f32 %v7707, %v7734
      %v7745 = vmul.f32 %v7708, %v7734
      %v7746 = vmul.f32 %v7709, %v7734
      %v7747 = vmul.f32 %v7710, %v7734
      %v7748 = vmul.f32 %v7711, %v7734
      %v7749 = vmul.f32 %v7712, %v7734
      %v7750 = vmul.f32 %v7713, %v7734
      %v7751 = vmul.f32 %v7714, %v7734
      %v7752 = vmul.f32 %v7715, %v7734
      %v7753 = vmul.f32 %v7716, %v7734
      %v7754 = vmul.f32 %v7717, %v7734
      %v7755 = vmul.f32 %v7718, %v7734
      %v7756 = vmul.f32 %v7719, %v7734
      %v7757 = vmul.f32 %v7720, %v7734
      %v7758 = vmul.f32 %v7721, %v7734
      %v7759 = vmul.f32 %v7722, %v7734
      %v7760 = vmul.f32 %v7723, %v7734
      %v7761 = vmul.f32 %v7724, %v7734
      %v7762 = vmul.f32 %v7725, %v7734
      %v7763 = vmul.f32 %v7726, %v7734
      %v7764 = vmul.f32 %v7727, %v7734
      %v7765 = vmul.f32 %v7728, %v7734
      %v7766 = vmul.f32 %v7729, %v7734
      %v7767 = vadd.f32 %v7666, %v7735
      %v7768 = vadd.f32 %v7667, %v7736
      %v7769 = vadd.f32 %v7668, %v7737
      %v7770 = vadd.f32 %v7669, %v7738
      %v7771 = vadd.f32 %v7670, %v7739
      %v7772 = vadd.f32 %v7671, %v7740
      %v7773 = vadd.f32 %v7672, %v7741
      %v7774 = vadd.f32 %v7673, %v7742
      %v7775 = vadd.f32 %v7674, %v7743
      %v7776 = vadd.f32 %v7675, %v7744
      %v7777 = vadd.f32 %v7676, %v7745
      %v7778 = vadd.f32 %v7677, %v7746
      %v7779 = vadd.f32 %v7678, %v7747
      %v7780 = vadd.f32 %v7679, %v7748
      %v7781 = vadd.f32 %v7680, %v7749
      %v7782 = vadd.f32 %v7681, %v7750
      %v7783 = vadd.f32 %v7682, %v7751
      %v7784 = vadd.f32 %v7683, %v7752
      %v7785 = vadd.f32 %v7684, %v7753
      %v7786 = vadd.f32 %v7685, %v7754
      %v7787 = vadd.f32 %v7686, %v7755
      %v7788 = vadd.f32 %v7687, %v7756
      %v7789 = vadd.f32 %v7688, %v7757
      %v7790 = vadd.f32 %v7689, %v7758
      %v7791 = vadd.f32 %v7690, %v7759
      %v7792 = vadd.f32 %v7691, %v7760
      %v7793 = vadd.f32 %v7692, %v7761
      %v7794 = vadd.f32 %v7693, %v7762
      %v7795 = vadd.f32 %v7694, %v7763
      %v7796 = vadd.f32 %v7695, %v7764
      %v7797 = vadd.f32 %v7696, %v7765
      %v7798 = vadd.f32 %v7697, %v7766
      %v7799 = vld [vmem:[%s7394 + $0xc] sm:$0xff]
      %v7800 = vld [vmem:[%s7394 + $0x14] sm:$0xff]
      %v7801 = vld [vmem:[%s7394 + $0x34] sm:$0xff]
      %v7802 = vld [vmem:[%s7394 + $0x3c] sm:$0xff]
      %v7803 = vld [vmem:[%s7394 + $0x5c] sm:$0xff]
      %v7804 = vld [vmem:[%s7394 + $0x64] sm:$0xff]
      %v7805 = vld [vmem:[%s7394 + $0x84] sm:$0xff]
      %v7806 = vld [vmem:[%s7394 + $0x8c] sm:$0xff]
      %v7807 = vld [vmem:[%s7394 + $0xac] sm:$0xff]
      %v7808 = vld [vmem:[%s7394 + $0xb4] sm:$0xff]
      %v7809 = vld [vmem:[%s7394 + $0xd4] sm:$0xff]
      %v7810 = vld [vmem:[%s7394 + $0xdc] sm:$0xff]
      %v7811 = vld [vmem:[%s7394 + $0xfc] sm:$0xff]
      %v7812 = vld [vmem:[%s7394 + $0x104] sm:$0xff]
      %v7813 = vld [vmem:[%s7394 + $0x124] sm:$0xff]
      %v7814 = vld [vmem:[%s7394 + $0x12c] sm:$0xff]
      %v7815 = vld [vmem:[%s7394 + $0x14c] sm:$0xff]
      %v7816 = vld [vmem:[%s7394 + $0x154] sm:$0xff]
      %v7817 = vld [vmem:[%s7394 + $0x174] sm:$0xff]
      %v7818 = vld [vmem:[%s7394 + $0x17c] sm:$0xff]
      %v7819 = vld [vmem:[%s7394 + $0x19c] sm:$0xff]
      %v7820 = vld [vmem:[%s7394 + $0x1a4] sm:$0xff]
      %v7821 = vld [vmem:[%s7394 + $0x1c4] sm:$0xff]
      %v7822 = vld [vmem:[%s7394 + $0x1cc] sm:$0xff]
      %v7823 = vld [vmem:[%s7394 + $0x1ec] sm:$0xff]
      %v7824 = vld [vmem:[%s7394 + $0x1f4] sm:$0xff]
      %v7825 = vld [vmem:[%s7394 + $0x214] sm:$0xff]
      %v7826 = vld [vmem:[%s7394 + $0x21c] sm:$0xff]
      %v7827 = vld [vmem:[%s7394 + $0x23c] sm:$0xff]
      %v7828 = vld [vmem:[%s7394 + $0x244] sm:$0xff]
      %v7829 = vld [vmem:[%s7394 + $0x264] sm:$0xff]
      %v7830 = vld [vmem:[%s7394 + $0x26c] sm:$0xff]
      %v7831 = vld [vmem:[%s3 + $0x2e] sm:$0x1]
      %v7832 = vlaneseq
      %v7833 = vshrl.u32 %v7832, 7
      %v7834 = vsub.s32 0, %v7833
      %v7835 = vrot.slane %v7831, %v7834
      %v7836 = vmul.f32 %v7799, %v7835
      %v7837 = vmul.f32 %v7800, %v7835
      %v7838 = vmul.f32 %v7801, %v7835
      %v7839 = vmul.f32 %v7802, %v7835
      %v7840 = vmul.f32 %v7803, %v7835
      %v7841 = vmul.f32 %v7804, %v7835
      %v7842 = vmul.f32 %v7805, %v7835
      %v7843 = vmul.f32 %v7806, %v7835
      %v7844 = vmul.f32 %v7807, %v7835
      %v7845 = vmul.f32 %v7808, %v7835
      %v7846 = vmul.f32 %v7809, %v7835
      %v7847 = vmul.f32 %v7810, %v7835
      %v7848 = vmul.f32 %v7811, %v7835
      %v7849 = vmul.f32 %v7812, %v7835
      %v7850 = vmul.f32 %v7813, %v7835
      %v7851 = vmul.f32 %v7814, %v7835
      %v7852 = vmul.f32 %v7815, %v7835
      %v7853 = vmul.f32 %v7816, %v7835
      %v7854 = vmul.f32 %v7817, %v7835
      %v7855 = vmul.f32 %v7818, %v7835
      %v7856 = vmul.f32 %v7819, %v7835
      %v7857 = vmul.f32 %v7820, %v7835
      %v7858 = vmul.f32 %v7821, %v7835
      %v7859 = vmul.f32 %v7822, %v7835
      %v7860 = vmul.f32 %v7823, %v7835
      %v7861 = vmul.f32 %v7824, %v7835
      %v7862 = vmul.f32 %v7825, %v7835
      %v7863 = vmul.f32 %v7826, %v7835
      %v7864 = vmul.f32 %v7827, %v7835
      %v7865 = vmul.f32 %v7828, %v7835
      %v7866 = vmul.f32 %v7829, %v7835
      %v7867 = vmul.f32 %v7830, %v7835
      %v7868 = vadd.f32 %v7767, %v7836
      %v7869 = vadd.f32 %v7768, %v7837
      %v7870 = vadd.f32 %v7769, %v7838
      %v7871 = vadd.f32 %v7770, %v7839
      %v7872 = vadd.f32 %v7771, %v7840
      %v7873 = vadd.f32 %v7772, %v7841
      %v7874 = vadd.f32 %v7773, %v7842
      %v7875 = vadd.f32 %v7774, %v7843
      %v7876 = vadd.f32 %v7775, %v7844
      %v7877 = vadd.f32 %v7776, %v7845
      %v7878 = vadd.f32 %v7777, %v7846
      %v7879 = vadd.f32 %v7778, %v7847
      %v7880 = vadd.f32 %v7779, %v7848
      %v7881 = vadd.f32 %v7780, %v7849
      %v7882 = vadd.f32 %v7781, %v7850
      %v7883 = vadd.f32 %v7782, %v7851
      %v7884 = vadd.f32 %v7783, %v7852
      %v7885 = vadd.f32 %v7784, %v7853
      %v7886 = vadd.f32 %v7785, %v7854
      %v7887 = vadd.f32 %v7786, %v7855
      %v7888 = vadd.f32 %v7787, %v7856
      %v7889 = vadd.f32 %v7788, %v7857
      %v7890 = vadd.f32 %v7789, %v7858
      %v7891 = vadd.f32 %v7790, %v7859
      %v7892 = vadd.f32 %v7791, %v7860
      %v7893 = vadd.f32 %v7792, %v7861
      %v7894 = vadd.f32 %v7793, %v7862
      %v7895 = vadd.f32 %v7794, %v7863
      %v7896 = vadd.f32 %v7795, %v7864
      %v7897 = vadd.f32 %v7796, %v7865
      %v7898 = vadd.f32 %v7797, %v7866
      %v7899 = vadd.f32 %v7798, %v7867
      %v7900 = vld [vmem:[%s7394 + $0xf] sm:$0xff]
      %v7901 = vld [vmem:[%s7394 + $0x17] sm:$0xff]
      %v7902 = vld [vmem:[%s7394 + $0x37] sm:$0xff]
      %v7903 = vld [vmem:[%s7394 + $0x3f] sm:$0xff]
      %v7904 = vld [vmem:[%s7394 + $0x5f] sm:$0xff]
      %v7905 = vld [vmem:[%s7394 + $0x67] sm:$0xff]
      %v7906 = vld [vmem:[%s7394 + $0x87] sm:$0xff]
      %v7907 = vld [vmem:[%s7394 + $0x8f] sm:$0xff]
      %v7908 = vld [vmem:[%s7394 + $0xaf] sm:$0xff]
      %v7909 = vld [vmem:[%s7394 + $0xb7] sm:$0xff]
      %v7910 = vld [vmem:[%s7394 + $0xd7] sm:$0xff]
      %v7911 = vld [vmem:[%s7394 + $0xdf] sm:$0xff]
      %v7912 = vld [vmem:[%s7394 + $0xff] sm:$0xff]
      %v7913 = vld [vmem:[%s7394 + $0x107] sm:$0xff]
      %v7914 = vld [vmem:[%s7394 + $0x127] sm:$0xff]
      %v7915 = vld [vmem:[%s7394 + $0x12f] sm:$0xff]
      %v7916 = vld [vmem:[%s7394 + $0x14f] sm:$0xff]
      %v7917 = vld [vmem:[%s7394 + $0x157] sm:$0xff]
      %v7918 = vld [vmem:[%s7394 + $0x177] sm:$0xff]
      %v7919 = vld [vmem:[%s7394 + $0x17f] sm:$0xff]
      %v7920 = vld [vmem:[%s7394 + $0x19f] sm:$0xff]
      %v7921 = vld [vmem:[%s7394 + $0x1a7] sm:$0xff]
      %v7922 = vld [vmem:[%s7394 + $0x1c7] sm:$0xff]
      %v7923 = vld [vmem:[%s7394 + $0x1cf] sm:$0xff]
      %v7924 = vld [vmem:[%s7394 + $0x1ef] sm:$0xff]
      %v7925 = vld [vmem:[%s7394 + $0x1f7] sm:$0xff]
      %v7926 = vld [vmem:[%s7394 + $0x217] sm:$0xff]
      %v7927 = vld [vmem:[%s7394 + $0x21f] sm:$0xff]
      %v7928 = vld [vmem:[%s7394 + $0x23f] sm:$0xff]
      %v7929 = vld [vmem:[%s7394 + $0x247] sm:$0xff]
      %v7930 = vld [vmem:[%s7394 + $0x267] sm:$0xff]
      %v7931 = vld [vmem:[%s7394 + $0x26f] sm:$0xff]
      %v7932 = vld [vmem:[%s3 + $0x2f] sm:$0x1]
      %v7933 = vlaneseq
      %v7934 = vshrl.u32 %v7933, 7
      %v7935 = vsub.s32 0, %v7934
      %v7936 = vrot.slane %v7932, %v7935
      %v7937 = vmul.f32 %v7900, %v7936
      %v7938 = vmul.f32 %v7901, %v7936
      %v7939 = vmul.f32 %v7902, %v7936
      %v7940 = vmul.f32 %v7903, %v7936
      %v7941 = vmul.f32 %v7904, %v7936
      %v7942 = vmul.f32 %v7905, %v7936
      %v7943 = vmul.f32 %v7906, %v7936
      %v7944 = vmul.f32 %v7907, %v7936
      %v7945 = vmul.f32 %v7908, %v7936
      %v7946 = vmul.f32 %v7909, %v7936
      %v7947 = vmul.f32 %v7910, %v7936
      %v7948 = vmul.f32 %v7911, %v7936
      %v7949 = vmul.f32 %v7912, %v7936
      %v7950 = vmul.f32 %v7913, %v7936
      %v7951 = vmul.f32 %v7914, %v7936
      %v7952 = vmul.f32 %v7915, %v7936
      %v7953 = vmul.f32 %v7916, %v7936
      %v7954 = vmul.f32 %v7917, %v7936
      %v7955 = vmul.f32 %v7918, %v7936
      %v7956 = vmul.f32 %v7919, %v7936
      %v7957 = vmul.f32 %v7920, %v7936
      %v7958 = vmul.f32 %v7921, %v7936
      %v7959 = vmul.f32 %v7922, %v7936
      %v7960 = vmul.f32 %v7923, %v7936
      %v7961 = vmul.f32 %v7924, %v7936
      %v7962 = vmul.f32 %v7925, %v7936
      %v7963 = vmul.f32 %v7926, %v7936
      %v7964 = vmul.f32 %v7927, %v7936
      %v7965 = vmul.f32 %v7928, %v7936
      %v7966 = vmul.f32 %v7929, %v7936
      %v7967 = vmul.f32 %v7930, %v7936
      %v7968 = vmul.f32 %v7931, %v7936
      %v7969 = vadd.f32 %v7868, %v7937
      %v7970 = vadd.f32 %v7869, %v7938
      %v7971 = vadd.f32 %v7870, %v7939
      %v7972 = vadd.f32 %v7871, %v7940
      %v7973 = vadd.f32 %v7872, %v7941
      %v7974 = vadd.f32 %v7873, %v7942
      %v7975 = vadd.f32 %v7874, %v7943
      %v7976 = vadd.f32 %v7875, %v7944
      %v7977 = vadd.f32 %v7876, %v7945
      %v7978 = vadd.f32 %v7877, %v7946
      %v7979 = vadd.f32 %v7878, %v7947
      %v7980 = vadd.f32 %v7879, %v7948
      %v7981 = vadd.f32 %v7880, %v7949
      %v7982 = vadd.f32 %v7881, %v7950
      %v7983 = vadd.f32 %v7882, %v7951
      %v7984 = vadd.f32 %v7883, %v7952
      %v7985 = vadd.f32 %v7884, %v7953
      %v7986 = vadd.f32 %v7885, %v7954
      %v7987 = vadd.f32 %v7886, %v7955
      %v7988 = vadd.f32 %v7887, %v7956
      %v7989 = vadd.f32 %v7888, %v7957
      %v7990 = vadd.f32 %v7889, %v7958
      %v7991 = vadd.f32 %v7890, %v7959
      %v7992 = vadd.f32 %v7891, %v7960
      %v7993 = vadd.f32 %v7892, %v7961
      %v7994 = vadd.f32 %v7893, %v7962
      %v7995 = vadd.f32 %v7894, %v7963
      %v7996 = vadd.f32 %v7895, %v7964
      %v7997 = vadd.f32 %v7896, %v7965
      %v7998 = vadd.f32 %v7897, %v7966
      %v7999 = vadd.f32 %v7898, %v7967
      %v8000 = vadd.f32 %v7899, %v7968
      %v8001 = vld [vmem:[%s7394 + $0x12] sm:$0xff]
      %v8002 = vld [vmem:[%s7394 + $0x1a] sm:$0xff]
      %v8003 = vld [vmem:[%s7394 + $0x3a] sm:$0xff]
      %v8004 = vld [vmem:[%s7394 + $0x42] sm:$0xff]
      %v8005 = vld [vmem:[%s7394 + $0x62] sm:$0xff]
      %v8006 = vld [vmem:[%s7394 + $0x6a] sm:$0xff]
      %v8007 = vld [vmem:[%s7394 + $0x8a] sm:$0xff]
      %v8008 = vld [vmem:[%s7394 + $0x92] sm:$0xff]
      %v8009 = vld [vmem:[%s7394 + $0xb2] sm:$0xff]
      %v8010 = vld [vmem:[%s7394 + $0xba] sm:$0xff]
      %v8011 = vld [vmem:[%s7394 + $0xda] sm:$0xff]
      %v8012 = vld [vmem:[%s7394 + $0xe2] sm:$0xff]
      %v8013 = vld [vmem:[%s7394 + $0x102] sm:$0xff]
      %v8014 = vld [vmem:[%s7394 + $0x10a] sm:$0xff]
      %v8015 = vld [vmem:[%s7394 + $0x12a] sm:$0xff]
      %v8016 = vld [vmem:[%s7394 + $0x132] sm:$0xff]
      %v8017 = vld [vmem:[%s7394 + $0x152] sm:$0xff]
      %v8018 = vld [vmem:[%s7394 + $0x15a] sm:$0xff]
      %v8019 = vld [vmem:[%s7394 + $0x17a] sm:$0xff]
      %v8020 = vld [vmem:[%s7394 + $0x182] sm:$0xff]
      %v8021 = vld [vmem:[%s7394 + $0x1a2] sm:$0xff]
      %v8022 = vld [vmem:[%s7394 + $0x1aa] sm:$0xff]
      %v8023 = vld [vmem:[%s7394 + $0x1ca] sm:$0xff]
      %v8024 = vld [vmem:[%s7394 + $0x1d2] sm:$0xff]
      %v8025 = vld [vmem:[%s7394 + $0x1f2] sm:$0xff]
      %v8026 = vld [vmem:[%s7394 + $0x1fa] sm:$0xff]
      %v8027 = vld [vmem:[%s7394 + $0x21a] sm:$0xff]
      %v8028 = vld [vmem:[%s7394 + $0x222] sm:$0xff]
      %v8029 = vld [vmem:[%s7394 + $0x242] sm:$0xff]
      %v8030 = vld [vmem:[%s7394 + $0x24a] sm:$0xff]
      %v8031 = vld [vmem:[%s7394 + $0x26a] sm:$0xff]
      %v8032 = vld [vmem:[%s7394 + $0x272] sm:$0xff]
      %v8033 = vld [vmem:[%s3 + $0x30] sm:$0x1]
      %v8034 = vlaneseq
      %v8035 = vshrl.u32 %v8034, 7
      %v8036 = vsub.s32 0, %v8035
      %v8037 = vrot.slane %v8033, %v8036
      %v8038 = vmul.f32 %v8001, %v8037
      %v8039 = vmul.f32 %v8002, %v8037
      %v8040 = vmul.f32 %v8003, %v8037
      %v8041 = vmul.f32 %v8004, %v8037
      %v8042 = vmul.f32 %v8005, %v8037
      %v8043 = vmul.f32 %v8006, %v8037
      %v8044 = vmul.f32 %v8007, %v8037
      %v8045 = vmul.f32 %v8008, %v8037
      %v8046 = vmul.f32 %v8009, %v8037
      %v8047 = vmul.f32 %v8010, %v8037
      %v8048 = vmul.f32 %v8011, %v8037
      %v8049 = vmul.f32 %v8012, %v8037
      %v8050 = vmul.f32 %v8013, %v8037
      %v8051 = vmul.f32 %v8014, %v8037
      %v8052 = vmul.f32 %v8015, %v8037
      %v8053 = vmul.f32 %v8016, %v8037
      %v8054 = vmul.f32 %v8017, %v8037
      %v8055 = vmul.f32 %v8018, %v8037
      %v8056 = vmul.f32 %v8019, %v8037
      %v8057 = vmul.f32 %v8020, %v8037
      %v8058 = vmul.f32 %v8021, %v8037
      %v8059 = vmul.f32 %v8022, %v8037
      %v8060 = vmul.f32 %v8023, %v8037
      %v8061 = vmul.f32 %v8024, %v8037
      %v8062 = vmul.f32 %v8025, %v8037
      %v8063 = vmul.f32 %v8026, %v8037
      %v8064 = vmul.f32 %v8027, %v8037
      %v8065 = vmul.f32 %v8028, %v8037
      %v8066 = vmul.f32 %v8029, %v8037
      %v8067 = vmul.f32 %v8030, %v8037
      %v8068 = vmul.f32 %v8031, %v8037
      %v8069 = vmul.f32 %v8032, %v8037
      %v8070 = vadd.f32 %v7969, %v8038
      %v8071 = vadd.f32 %v7970, %v8039
      %v8072 = vadd.f32 %v7971, %v8040
      %v8073 = vadd.f32 %v7972, %v8041
      %v8074 = vadd.f32 %v7973, %v8042
      %v8075 = vadd.f32 %v7974, %v8043
      %v8076 = vadd.f32 %v7975, %v8044
      %v8077 = vadd.f32 %v7976, %v8045
      %v8078 = vadd.f32 %v7977, %v8046
      %v8079 = vadd.f32 %v7978, %v8047
      %v8080 = vadd.f32 %v7979, %v8048
      %v8081 = vadd.f32 %v7980, %v8049
      %v8082 = vadd.f32 %v7981, %v8050
      %v8083 = vadd.f32 %v7982, %v8051
      %v8084 = vadd.f32 %v7983, %v8052
      %v8085 = vadd.f32 %v7984, %v8053
      %v8086 = vadd.f32 %v7985, %v8054
      %v8087 = vadd.f32 %v7986, %v8055
      %v8088 = vadd.f32 %v7987, %v8056
      %v8089 = vadd.f32 %v7988, %v8057
      %v8090 = vadd.f32 %v7989, %v8058
      %v8091 = vadd.f32 %v7990, %v8059
      %v8092 = vadd.f32 %v7991, %v8060
      %v8093 = vadd.f32 %v7992, %v8061
      %v8094 = vadd.f32 %v7993, %v8062
      %v8095 = vadd.f32 %v7994, %v8063
      %v8096 = vadd.f32 %v7995, %v8064
      %v8097 = vadd.f32 %v7996, %v8065
      %v8098 = vadd.f32 %v7997, %v8066
      %v8099 = vadd.f32 %v7998, %v8067
      %v8100 = vadd.f32 %v7999, %v8068
      %v8101 = vadd.f32 %v8000, %v8069
      %v8102 = vld [vmem:[%s4] sm:$0x1]
      %v8104 = vlaneseq
      %v8105 = vshrl.u32 %v8104, 7
      %v8106 = vsub.s32 0, %v8105
      %v8107 = vrot.slane %v8102, %v8106
      %v8109 = vadd.f32 %v8070, %v8107
      %v8110 = vadd.f32 %v8071, %v8107
      %v8111 = vadd.f32 %v8072, %v8107
      %v8112 = vadd.f32 %v8073, %v8107
      %v8113 = vadd.f32 %v8074, %v8107
      %v8114 = vadd.f32 %v8075, %v8107
      %v8115 = vadd.f32 %v8076, %v8107
      %v8116 = vadd.f32 %v8077, %v8107
      %v8117 = vadd.f32 %v8078, %v8107
      %v8118 = vadd.f32 %v8079, %v8107
      %v8119 = vadd.f32 %v8080, %v8107
      %v8120 = vadd.f32 %v8081, %v8107
      %v8121 = vadd.f32 %v8082, %v8107
      %v8122 = vadd.f32 %v8083, %v8107
      %v8123 = vadd.f32 %v8084, %v8107
      %v8124 = vadd.f32 %v8085, %v8107
      %v8125 = vadd.f32 %v8086, %v8107
      %v8126 = vadd.f32 %v8087, %v8107
      %v8127 = vadd.f32 %v8088, %v8107
      %v8128 = vadd.f32 %v8089, %v8107
      %v8129 = vadd.f32 %v8090, %v8107
      %v8130 = vadd.f32 %v8091, %v8107
      %v8131 = vadd.f32 %v8092, %v8107
      %v8132 = vadd.f32 %v8093, %v8107
      %v8133 = vadd.f32 %v8094, %v8107
      %v8134 = vadd.f32 %v8095, %v8107
      %v8135 = vadd.f32 %v8096, %v8107
      %v8136 = vadd.f32 %v8097, %v8107
      %v8137 = vadd.f32 %v8098, %v8107
      %v8138 = vadd.f32 %v8099, %v8107
      %v8139 = vadd.f32 %v8100, %v8107
      %v8140 = vadd.f32 %v8101, %v8107
      %v8141 = vld [vmem:[%s5] sm:$0xf]
      %v8142 = vld [vmem:[%s6] sm:$0x1]
      %v8144 = vlaneseq
      %v8145 = vshrl.u32 %v8144, 7
      %v8146 = vsub.s32 0, %v8145
      %v8147 = vrot.slane %v8142, %v8146
      %v8150 = vsel %vm279, %v8109, 0
      %v8153 = vsel %vm279, %v8110, 0
      %v8156 = vsel %vm279, %v8111, 0
      %v8159 = vsel %vm279, %v8112, 0
      %v8162 = vsel %vm279, %v8113, 0
      %v8165 = vsel %vm279, %v8114, 0
      %v8168 = vsel %vm279, %v8115, 0
      %v8171 = vsel %vm279, %v8116, 0
      %v8174 = vsel %vm279, %v8117, 0
      %v8177 = vsel %vm279, %v8118, 0
      %v8180 = vsel %vm279, %v8119, 0
      %v8183 = vsel %vm279, %v8120, 0
      %v8186 = vsel %vm279, %v8121, 0
      %v8189 = vsel %vm279, %v8122, 0
      %v8192 = vsel %vm279, %v8123, 0
      %v8195 = vsel %vm279, %v8124, 0
      %v8198 = vsel %vm279, %v8125, 0
      %v8201 = vsel %vm279, %v8126, 0
      %v8204 = vsel %vm279, %v8127, 0
      %v8207 = vsel %vm279, %v8128, 0
      %v8210 = vsel %vm279, %v8129, 0
      %v8213 = vsel %vm279, %v8130, 0
      %v8216 = vsel %vm279, %v8131, 0
      %v8219 = vsel %vm279, %v8132, 0
      %v8222 = vsel %vm279, %v8133, 0
      %v8225 = vsel %vm279, %v8134, 0
      %v8228 = vsel %vm279, %v8135, 0
      %v8231 = vsel %vm279, %v8136, 0
      %v8234 = vsel %vm279, %v8137, 0
      %v8237 = vsel %vm279, %v8138, 0
      %v8240 = vsel %vm279, %v8139, 0
      %v8243 = vsel %vm279, %v8140, 0
      %vm8245 = vcmask 1043456
      %v8247 = vsel %vm8245, %v8141, 0
      %8249 = vmatprep.subr.mxu0 0.0
      %8250 = vmatpush1.msra.mxu0 %v8247
      %8251 = vmatprep.subr.mxu0 0.0
      %8252 = vmatpush1.msra.mxu0 0.0
      %8253 = vmatprep.subr.mxu0 0.0
      %8254 = vmatpush1.msra.mxu0 0.0
      %8255 = vmatprep.subr.mxu0 0.0
      %8256 = vmatpush1.msra.mxu0 0.0
      %8257 = vmatprep.subr.mxu0 0.0
      %8258 = vmatpush1.msra.mxu0 0.0
      %8259 = vmatprep.subr.mxu0 0.0
      %8260 = vmatpush1.msra.mxu0 0.0
      %8261 = vmatprep.subr.mxu0 0.0
      %8262 = vmatpush1.msra.mxu0 0.0
      %8263 = vmatprep.subr.mxu0 0.0
      %8264 = vmatpush1.msra.mxu0 0.0
      %8265 = vmatprep.subr.mxu0 0.0
      %8266 = vmatpush1.msra.mxu0 0.0
      %8267 = vmatprep.subr.mxu0 0.0
      %8268 = vmatpush1.msra.mxu0 0.0
      %8269 = vmatprep.subr.mxu0 0.0
      %8270 = vmatpush1.msra.mxu0 0.0
      %8271 = vmatprep.subr.mxu0 0.0
      %8272 = vmatpush1.msra.mxu0 0.0
      %8273 = vmatprep.subr.mxu0 0.0
      %8274 = vmatpush1.msra.mxu0 0.0
      %8275 = vmatprep.subr.mxu0 0.0
      %8276 = vmatpush1.msra.mxu0 0.0
      %8277 = vmatprep.subr.mxu0 0.0
      %8278 = vmatpush1.msra.mxu0 0.0
      %8279 = vmatprep.subr.mxu0 0.0
      %8280 = vmatpush1.msra.mxu0 0.0
      %8281 = vmatprep.subr.mxu0 0.0
      %8282 = vmatpush1.msra.mxu0 0.0
      %8283 = vmatprep.subr.mxu0 0.0
      %8284 = vmatpush1.msra.mxu0 0.0
      %8285 = vmatprep.subr.mxu0 0.0
      %8286 = vmatpush1.msra.mxu0 0.0
      %8287 = vmatprep.subr.mxu0 0.0
      %8288 = vmatpush1.msra.mxu0 0.0
      %8289 = vmatprep.subr.mxu0 0.0
      %8290 = vmatpush1.msra.mxu0 0.0
      %8291 = vmatprep.subr.mxu0 0.0
      %8292 = vmatpush1.msra.mxu0 0.0
      %8293 = vmatprep.subr.mxu0 0.0
      %8294 = vmatpush1.msra.mxu0 0.0
      %8295 = vmatprep.subr.mxu0 0.0
      %8296 = vmatpush1.msra.mxu0 0.0
      %8297 = vmatprep.subr.mxu0 0.0
      %8298 = vmatpush1.msra.mxu0 0.0
      %8299 = vmatprep.subr.mxu0 0.0
      %8300 = vmatpush1.msra.mxu0 0.0
      %8301 = vmatprep.subr.mxu0 0.0
      %8302 = vmatpush1.msra.mxu0 0.0
      %8303 = vmatprep.subr.mxu0 0.0
      %8304 = vmatpush1.msra.mxu0 0.0
      %8305 = vmatprep.subr.mxu0 0.0
      %8306 = vmatpush1.msra.mxu0 0.0
      %8307 = vmatprep.subr.mxu0 0.0
      %8308 = vmatpush1.msra.mxu0 0.0
      %8309 = vmatprep.subr.mxu0 0.0
      %8310 = vmatpush1.msra.mxu0 0.0
      %8311 = vmatprep.subr.mxu0 0.0
      %8312 = vmatpush1.msra.mxu0 0.0
      %8313 = vmatprep.mubr.f32.mxu0 0.0
      %8314 = vmatmul.mubr.f32.gmra.mrb[0].mxu0 %v8150
      %v8315 = vpop.f32.mrb[0].mxu0
      %v8316 = vadd.f32 %v8147, %v8315
      %v8317 = vpop.f32.mrb[0].mxu0
      %8318 = vmatprep.mubr.f32.mxu0 0.0
      %8319 = vmatmul.mubr.f32.gmra.mrb[0].mxu0 %v8153
      %v8320 = vpop.f32.mrb[0].mxu0
      %v8321 = vadd.f32 %v8147, %v8320
      %v8322 = vpop.f32.mrb[0].mxu0
      %8323 = vmatprep.mubr.f32.mxu0 0.0
      %8324 = vmatmul.mubr.f32.gmra.mrb[0].mxu0 %v8156
      %v8325 = vpop.f32.mrb[0].mxu0
      %v8326 = vadd.f32 %v8147, %v8325
      %v8327 = vpop.f32.mrb[0].mxu0
      %8328 = vmatprep.mubr.f32.mxu0 0.0
      %8329 = vmatmul.mubr.f32.gmra.mrb[0].mxu0 %v8159
      %v8330 = vpop.f32.mrb[0].mxu0
      %v8331 = vadd.f32 %v8147, %v8330
      %v8332 = vpop.f32.mrb[0].mxu0
      %8333 = vmatprep.mubr.f32.mxu0 0.0
      %8334 = vmatmul.mubr.f32.gmra.mrb[0].mxu0 %v8162
      %v8335 = vpop.f32.mrb[0].mxu0
      %v8336 = vadd.f32 %v8147, %v8335
      %v8337 = vpop.f32.mrb[0].mxu0
      %8338 = vmatprep.mubr.f32.mxu0 0.0
      %8339 = vmatmul.mubr.f32.gmra.mrb[0].mxu0 %v8165
      %v8340 = vpop.f32.mrb[0].mxu0
      %v8341 = vadd.f32 %v8147, %v8340
      %v8342 = vpop.f32.mrb[0].mxu0
      %8343 = vmatprep.mubr.f32.mxu0 0.0
      %8344 = vmatmul.mubr.f32.gmra.mrb[0].mxu0 %v8168
      %v8345 = vpop.f32.mrb[0].mxu0
      %v8346 = vadd.f32 %v8147, %v8345
      %v8347 = vpop.f32.mrb[0].mxu0
      %8348 = vmatprep.mubr.f32.mxu0 0.0
      %8349 = vmatmul.mubr.f32.gmra.mrb[0].mxu0 %v8171
      %v8350 = vpop.f32.mrb[0].mxu0
      %v8351 = vadd.f32 %v8147, %v8350
      %v8352 = vpop.f32.mrb[0].mxu0
      %8353 = vmatprep.mubr.f32.mxu0 0.0
      %8354 = vmatmul.mubr.f32.gmra.mrb[0].mxu0 %v8174
      %v8355 = vpop.f32.mrb[0].mxu0
      %v8356 = vadd.f32 %v8147, %v8355
      %v8357 = vpop.f32.mrb[0].mxu0
      %8358 = vmatprep.mubr.f32.mxu0 0.0
      %8359 = vmatmul.mubr.f32.gmra.mrb[0].mxu0 %v8177
      %v8360 = vpop.f32.mrb[0].mxu0
      %v8361 = vadd.f32 %v8147, %v8360
      %v8362 = vpop.f32.mrb[0].mxu0
      %8363 = vmatprep.mubr.f32.mxu0 0.0
      %8364 = vmatmul.mubr.f32.gmra.mrb[0].mxu0 %v8180
      %v8365 = vpop.f32.mrb[0].mxu0
      %v8366 = vadd.f32 %v8147, %v8365
      %v8367 = vpop.f32.mrb[0].mxu0
      %8368 = vmatprep.mubr.f32.mxu0 0.0
      %8369 = vmatmul.mubr.f32.gmra.mrb[0].mxu0 %v8183
      %v8370 = vpop.f32.mrb[0].mxu0
      %v8371 = vadd.f32 %v8147, %v8370
      %v8372 = vpop.f32.mrb[0].mxu0
      %8373 = vmatprep.mubr.f32.mxu0 0.0
      %8374 = vmatmul.mubr.f32.gmra.mrb[0].mxu0 %v8186
      %v8375 = vpop.f32.mrb[0].mxu0
      %v8376 = vadd.f32 %v8147, %v8375
      %v8377 = vpop.f32.mrb[0].mxu0
      %8378 = vmatprep.mubr.f32.mxu0 0.0
      %8379 = vmatmul.mubr.f32.gmra.mrb[0].mxu0 %v8189
      %v8380 = vpop.f32.mrb[0].mxu0
      %v8381 = vadd.f32 %v8147, %v8380
      %v8382 = vpop.f32.mrb[0].mxu0
      %8383 = vmatprep.mubr.f32.mxu0 0.0
      %8384 = vmatmul.mubr.f32.gmra.mrb[0].mxu0 %v8192
      %v8385 = vpop.f32.mrb[0].mxu0
      %v8386 = vadd.f32 %v8147, %v8385
      %v8387 = vpop.f32.mrb[0].mxu0
      %8388 = vmatprep.mubr.f32.mxu0 0.0
      %8389 = vmatmul.mubr.f32.gmra.mrb[0].mxu0 %v8195
      %v8390 = vpop.f32.mrb[0].mxu0
      %v8391 = vadd.f32 %v8147, %v8390
      %v8392 = vpop.f32.mrb[0].mxu0
      %8393 = vmatprep.mubr.f32.mxu0 0.0
      %8394 = vmatmul.mubr.f32.gmra.mrb[0].mxu0 %v8198
      %v8395 = vpop.f32.mrb[0].mxu0
      %v8396 = vadd.f32 %v8147, %v8395
      %v8397 = vpop.f32.mrb[0].mxu0
      %8398 = vmatprep.mubr.f32.mxu0 0.0
      %8399 = vmatmul.mubr.f32.gmra.mrb[0].mxu0 %v8201
      %v8400 = vpop.f32.mrb[0].mxu0
      %v8401 = vadd.f32 %v8147, %v8400
      %v8402 = vpop.f32.mrb[0].mxu0
      %8403 = vmatprep.mubr.f32.mxu0 0.0
      %8404 = vmatmul.mubr.f32.gmra.mrb[0].mxu0 %v8204
      %v8405 = vpop.f32.mrb[0].mxu0
      %v8406 = vadd.f32 %v8147, %v8405
      %v8407 = vpop.f32.mrb[0].mxu0
      %8408 = vmatprep.mubr.f32.mxu0 0.0
      %8409 = vmatmul.mubr.f32.gmra.mrb[0].mxu0 %v8207
      %v8410 = vpop.f32.mrb[0].mxu0
      %v8411 = vadd.f32 %v8147, %v8410
      %v8412 = vpop.f32.mrb[0].mxu0
      %8413 = vmatprep.mubr.f32.mxu0 0.0
      %8414 = vmatmul.mubr.f32.gmra.mrb[0].mxu0 %v8210
      %v8415 = vpop.f32.mrb[0].mxu0
      %v8416 = vadd.f32 %v8147, %v8415
      %v8417 = vpop.f32.mrb[0].mxu0
      %8418 = vmatprep.mubr.f32.mxu0 0.0
      %8419 = vmatmul.mubr.f32.gmra.mrb[0].mxu0 %v8213
      %v8420 = vpop.f32.mrb[0].mxu0
      %v8421 = vadd.f32 %v8147, %v8420
      %v8422 = vpop.f32.mrb[0].mxu0
      %8423 = vmatprep.mubr.f32.mxu0 0.0
      %8424 = vmatmul.mubr.f32.gmra.mrb[0].mxu0 %v8216
      %v8425 = vpop.f32.mrb[0].mxu0
      %v8426 = vadd.f32 %v8147, %v8425
      %v8427 = vpop.f32.mrb[0].mxu0
      %8428 = vmatprep.mubr.f32.mxu0 0.0
      %8429 = vmatmul.mubr.f32.gmra.mrb[0].mxu0 %v8219
      %v8430 = vpop.f32.mrb[0].mxu0
      %v8431 = vadd.f32 %v8147, %v8430
      %v8432 = vpop.f32.mrb[0].mxu0
      %8433 = vmatprep.mubr.f32.mxu0 0.0
      %8434 = vmatmul.mubr.f32.gmra.mrb[0].mxu0 %v8222
      %v8435 = vpop.f32.mrb[0].mxu0
      %v8436 = vadd.f32 %v8147, %v8435
      %v8437 = vpop.f32.mrb[0].mxu0
      %8438 = vmatprep.mubr.f32.mxu0 0.0
      %8439 = vmatmul.mubr.f32.gmra.mrb[0].mxu0 %v8225
      %v8440 = vpop.f32.mrb[0].mxu0
      %v8441 = vadd.f32 %v8147, %v8440
      %v8442 = vpop.f32.mrb[0].mxu0
      %8443 = vmatprep.mubr.f32.mxu0 0.0
      %8444 = vmatmul.mubr.f32.gmra.mrb[0].mxu0 %v8228
      %v8445 = vpop.f32.mrb[0].mxu0
      %v8446 = vadd.f32 %v8147, %v8445
      %v8447 = vpop.f32.mrb[0].mxu0
      %8448 = vmatprep.mubr.f32.mxu0 0.0
      %8449 = vmatmul.mubr.f32.gmra.mrb[0].mxu0 %v8231
      %v8450 = vpop.f32.mrb[0].mxu0
      %v8451 = vadd.f32 %v8147, %v8450
      %v8452 = vpop.f32.mrb[0].mxu0
      %8453 = vmatprep.mubr.f32.mxu0 0.0
      %8454 = vmatmul.mubr.f32.gmra.mrb[0].mxu0 %v8234
      %v8455 = vpop.f32.mrb[0].mxu0
      %v8456 = vadd.f32 %v8147, %v8455
      %v8457 = vpop.f32.mrb[0].mxu0
      %8458 = vmatprep.mubr.f32.mxu0 0.0
      %8459 = vmatmul.mubr.f32.gmra.mrb[0].mxu0 %v8237
      %v8460 = vpop.f32.mrb[0].mxu0
      %v8461 = vadd.f32 %v8147, %v8460
      %v8462 = vpop.f32.mrb[0].mxu0
      %8463 = vmatprep.mubr.f32.mxu0 0.0
      %8464 = vmatmul.mubr.f32.gmra.mrb[0].mxu0 %v8240
      %v8465 = vpop.f32.mrb[0].mxu0
      %v8466 = vadd.f32 %v8147, %v8465
      %v8467 = vpop.f32.mrb[0].mxu0
      %8468 = vmatprep.mubr.f32.mxu0 0.0
      %8469 = vmatmul.mubr.f32.gmra.mrb[0].mxu0 %v8243
      %v8470 = vpop.f32.mrb[0].mxu0
      %v8471 = vadd.f32 %v8147, %v8470
      %v8472 = vpop.f32.mrb[0].mxu0
      %8473 = vdwg.mxu0
      %v8474 = vld [vmem:[%s273] sm:$0xff]
      %v8475 = vld [vmem:[%s273 + $0x8] sm:$0xff]
      %v8476 = vld [vmem:[%s273 + $0x10] sm:$0xff]
      %v8477 = vld [vmem:[%s273 + $0x18] sm:$0xff]
      %v8478 = vld [vmem:[%s273 + $0x20] sm:$0xff]
      %v8479 = vld [vmem:[%s273 + $0x28] sm:$0xff]
      %v8480 = vld [vmem:[%s273 + $0x30] sm:$0xff]
      %v8481 = vld [vmem:[%s273 + $0x38] sm:$0xff]
      %v8482 = vld [vmem:[%s273 + $0x40] sm:$0xff]
      %v8483 = vld [vmem:[%s273 + $0x48] sm:$0xff]
      %v8484 = vld [vmem:[%s273 + $0x50] sm:$0xff]
      %v8485 = vld [vmem:[%s273 + $0x58] sm:$0xff]
      %v8486 = vld [vmem:[%s273 + $0x60] sm:$0xff]
      %v8487 = vld [vmem:[%s273 + $0x68] sm:$0xff]
      %v8488 = vld [vmem:[%s273 + $0x70] sm:$0xff]
      %v8489 = vld [vmem:[%s273 + $0x78] sm:$0xff]
      %v8490 = vld [vmem:[%s273 + $0x80] sm:$0xff]
      %v8491 = vld [vmem:[%s273 + $0x88] sm:$0xff]
      %v8492 = vld [vmem:[%s273 + $0x90] sm:$0xff]
      %v8493 = vld [vmem:[%s273 + $0x98] sm:$0xff]
      %v8494 = vld [vmem:[%s273 + $0xa0] sm:$0xff]
      %v8495 = vld [vmem:[%s273 + $0xa8] sm:$0xff]
      %v8496 = vld [vmem:[%s273 + $0xb0] sm:$0xff]
      %v8497 = vld [vmem:[%s273 + $0xb8] sm:$0xff]
      %v8498 = vld [vmem:[%s273 + $0xc0] sm:$0xff]
      %v8499 = vld [vmem:[%s273 + $0xc8] sm:$0xff]
      %v8500 = vld [vmem:[%s273 + $0xd0] sm:$0xff]
      %v8501 = vld [vmem:[%s273 + $0xd8] sm:$0xff]
      %v8502 = vld [vmem:[%s273 + $0xe0] sm:$0xff]
      %v8503 = vld [vmem:[%s273 + $0xe8] sm:$0xff]
      %v8504 = vld [vmem:[%s273 + $0xf0] sm:$0xff]
      %v8505 = vld [vmem:[%s273 + $0xf8] sm:$0xff]
      %v8506 = vmul.f32 %v8474, %v8316
      %v8507 = vmul.f32 %v8475, %v8321
      %v8508 = vmul.f32 %v8476, %v8326
      %v8509 = vmul.f32 %v8477, %v8331
      %v8510 = vmul.f32 %v8478, %v8336
      %v8511 = vmul.f32 %v8479, %v8341
      %v8512 = vmul.f32 %v8480, %v8346
      %v8513 = vmul.f32 %v8481, %v8351
      %v8514 = vmul.f32 %v8482, %v8356
      %v8515 = vmul.f32 %v8483, %v8361
      %v8516 = vmul.f32 %v8484, %v8366
      %v8517 = vmul.f32 %v8485, %v8371
      %v8518 = vmul.f32 %v8486, %v8376
      %v8519 = vmul.f32 %v8487, %v8381
      %v8520 = vmul.f32 %v8488, %v8386
      %v8521 = vmul.f32 %v8489, %v8391
      %v8522 = vmul.f32 %v8490, %v8396
      %v8523 = vmul.f32 %v8491, %v8401
      %v8524 = vmul.f32 %v8492, %v8406
      %v8525 = vmul.f32 %v8493, %v8411
      %v8526 = vmul.f32 %v8494, %v8416
      %v8527 = vmul.f32 %v8495, %v8421
      %v8528 = vmul.f32 %v8496, %v8426
      %v8529 = vmul.f32 %v8497, %v8431
      %v8530 = vmul.f32 %v8498, %v8436
      %v8531 = vmul.f32 %v8499, %v8441
      %v8532 = vmul.f32 %v8500, %v8446
      %v8533 = vmul.f32 %v8501, %v8451
      %v8534 = vmul.f32 %v8502, %v8456
      %v8535 = vmul.f32 %v8503, %v8461
      %v8536 = vmul.f32 %v8504, %v8466
      %v8537 = vmul.f32 %v8505, %v8471
      %8538 = vst.msk [vmem:[%s278] sm:$0xff] %vm279, %v8506
      %8539 = vst.msk [vmem:[%s278 + $0x8] sm:$0xff] %vm279, %v8507
      %8540 = vst.msk [vmem:[%s278 + $0x10] sm:$0xff] %vm279, %v8508
      %8541 = vst.msk [vmem:[%s278 + $0x18] sm:$0xff] %vm279, %v8509
      %8542 = vst.msk [vmem:[%s278 + $0x20] sm:$0xff] %vm279, %v8510
      %8543 = vst.msk [vmem:[%s278 + $0x28] sm:$0xff] %vm279, %v8511
      %8544 = vst.msk [vmem:[%s278 + $0x30] sm:$0xff] %vm279, %v8512
      %8545 = vst.msk [vmem:[%s278 + $0x38] sm:$0xff] %vm279, %v8513
      %8546 = vst.msk [vmem:[%s278 + $0x40] sm:$0xff] %vm279, %v8514
      %8547 = vst.msk [vmem:[%s278 + $0x48] sm:$0xff] %vm279, %v8515
      %8548 = vst.msk [vmem:[%s278 + $0x50] sm:$0xff] %vm279, %v8516
      %8549 = vst.msk [vmem:[%s278 + $0x58] sm:$0xff] %vm279, %v8517
      %8550 = vst.msk [vmem:[%s278 + $0x60] sm:$0xff] %vm279, %v8518
      %8551 = vst.msk [vmem:[%s278 + $0x68] sm:$0xff] %vm279, %v8519
      %8552 = vst.msk [vmem:[%s278 + $0x70] sm:$0xff] %vm279, %v8520
      %8553 = vst.msk [vmem:[%s278 + $0x78] sm:$0xff] %vm279, %v8521
      %8554 = vst.msk [vmem:[%s278 + $0x80] sm:$0xff] %vm279, %v8522
      %8555 = vst.msk [vmem:[%s278 + $0x88] sm:$0xff] %vm279, %v8523
      %8556 = vst.msk [vmem:[%s278 + $0x90] sm:$0xff] %vm279, %v8524
      %8557 = vst.msk [vmem:[%s278 + $0x98] sm:$0xff] %vm279, %v8525
      %8558 = vst.msk [vmem:[%s278 + $0xa0] sm:$0xff] %vm279, %v8526
      %8559 = vst.msk [vmem:[%s278 + $0xa8] sm:$0xff] %vm279, %v8527
      %8560 = vst.msk [vmem:[%s278 + $0xb0] sm:$0xff] %vm279, %v8528
      %8561 = vst.msk [vmem:[%s278 + $0xb8] sm:$0xff] %vm279, %v8529
      %8562 = vst.msk [vmem:[%s278 + $0xc0] sm:$0xff] %vm279, %v8530
      %8563 = vst.msk [vmem:[%s278 + $0xc8] sm:$0xff] %vm279, %v8531
      %8564 = vst.msk [vmem:[%s278 + $0xd0] sm:$0xff] %vm279, %v8532
      %8565 = vst.msk [vmem:[%s278 + $0xd8] sm:$0xff] %vm279, %v8533
      %8566 = vst.msk [vmem:[%s278 + $0xe0] sm:$0xff] %vm279, %v8534
      %8567 = vst.msk [vmem:[%s278 + $0xe8] sm:$0xff] %vm279, %v8535
      %8568 = vst.msk [vmem:[%s278 + $0xf0] sm:$0xff] %vm279, %v8536
      %8569 = vst.msk [vmem:[%s278 + $0xf8] sm:$0xff] %vm279, %v8537
      %p8570 = scmp.lt.s32.totalorder %s18, 1
      %s8571 = scalar_select %p8570, %s18, 1
      %s8572 = smul.addr %s8571, 32
      %s8573 = smul.addr %s8572, 8
      %s8574 = scalar_lea.vmem %s7, %s8573
      // Predicated region
      $region49: #{lka_forward.1} parent=47 // pred_check
        %p8575 = pneg %p188
      $region50: #{lka_forward.1} parent=47 // pred_check_branch
        %8577 = sbr.rel (%p8575) target = $region52
      $region51: #{lka_forward.1} parent=47 // pred_region
        _
      $region52: #{lka_forward.1} parent=47 // pred_fallthru
        _
    $region48: #{lka_forward.1} parent=5 // pred_fallthru
      _
    %p8578 = scmp.le.s32.totalorder 2, %s13
    // Predicated region
    $region53: #{lka_forward.1} parent=5 // pred_check
      %p8579 = pneg %p8578
    $region54: #{lka_forward.1} parent=5 // pred_check_branch
      %8581 = sbr.rel (%p8579) target = $region56
    $region55: #{lka_forward.1} parent=5 // pred_region
      %s8582 = ssub.s32 %s13, 2
      // Predicated region
      $region57: #{lka_forward.1} parent=55 // pred_check
        %p8583 = pneg %p194
      $region58: #{lka_forward.1} parent=55 // pred_check_branch
        %8585 = sbr.rel (%p8583) target = $region60
      $region59: #{lka_forward.1} parent=55 // pred_region
        %p8586 = scmp.lt.s32.totalorder %s19, 1
        %s8587 = scalar_select %p8586, %s19, 1
        %s8588 = smul.addr %s8587, 32
        %s8589 = smul.addr %s8588, 8
        %s8590 = scalar_lea.vmem %s7, %s8589
      $region60: #{lka_forward.1} parent=55 // pred_fallthru
        _
    $region56: #{lka_forward.1} parent=5 // pred_fallthru
      _
  $region6: #{lka_forward.1} parent=0 // loop_footer
    %s17 = sadd.s32 1, %s13
  $region7: #{lka_forward.1} parent=0 // loop_footer_branch
    %12 = sbr.rel target = $region3
  $region8: #{lka_forward.1} parent=0 // loop_exit
    _

</llo_original>
